<compile_context>
chip_gen: v5e
topology: v5e:2x2
jax: 0.10.0
libtpu: 0.0.40
codegen_flags: <defaults>
</compile_context>

<pallas_src>
import jax
import jax.numpy as jnp
from jax.experimental import pallas as pl
from jax.experimental.pallas import tpu as pltpu

# ---- static shape constants implied by the module (Linear in_features=736) ----
T_IN = 750                        # time samples
K1, P1 = 51, 25                   # firstconv kernel / padding
T_PAD1 = T_IN + 2 * P1            # 800
T_POOL1 = (T_IN - 4) // 4 + 1     # 187  (AvgPool (1,4) stride 4)
K3, P3 = 15, 7                    # separable conv kernel / padding
T_PAD3 = T_POOL1 + 2 * P3         # 201
T_POOL2 = (T_POOL1 - 8) // 8 + 1  # 23   (AvgPool (1,8) stride 8)
FEAT = 32 * T_POOL2               # 736


# ============================== fused Pallas kernel ===========================

def eggnet_kernel(x_ref, w1_ref, w2a_ref, w2b_ref, b2_ref, pool4_ref,
                  w3_ref, b3_ref, pool8_ref, lw_ref, lb_ref, out_ref):
    f32 = jnp.float32
    bf16 = jnp.bfloat16

    # ---- stage 1: firstconv Conv2d(1,16,(1,51),pad (0,25)), BN1 scale folded in.
    x = x_ref[0, 0]                                          # (2, 750)
    zpad1 = jnp.zeros((2, P1), f32)
    xpad = jnp.concatenate([zpad1, x, zpad1], axis=1)        # (2, 800) in-kernel pad
    # rows 0..15 <- EEG row 0, rows 16..31 <- EEG row 1 (weights duplicated too),
    # so both rows are convolved with one broadcasted FMA per tap.
    xcat = jnp.concatenate(
        [jnp.broadcast_to(xpad[0:1], (16, T_PAD1)),
         jnp.broadcast_to(xpad[1:2], (16, T_PAD1))], axis=0)  # (32, 800)
    w1 = w1_ref[...]                                          # (32, 51) BN1-scaled
    acc = jnp.zeros((32, T_IN), f32)
    for k in range(K1):                                       # shifted FMAs on the VPU
        acc = acc + w1[:, k:k + 1] * xcat[:, k:k + T_IN]
    # acc[0:16] = conv of row 0, acc[16:32] = conv of row 1 (BN1 bias folded into b2)

    # ---- stage 2: depthwise grouped Conv2d(16,32,(2,1)) + BN2 + ELU + AvgPool(1,4)
    top = acc[0:16]
    bot = acc[16:32]
    wa = w2a_ref[...]                                         # (32,1) scaled, permuted
    wb = w2b_ref[...]
    z = jnp.concatenate(
        [wa[0:16] * top + wb[0:16] * bot,
         wa[16:32] * top + wb[16:32] * bot], axis=0) + b2_ref[...]   # (32, 750)
    z = jnp.where(z > 0, z, jnp.exp(jnp.minimum(z, 0.0)) - 1.0)      # ELU (alpha=1)
    # AvgPool(1,4) stride 4 as one bf16 MXU matmul with a 0.25 block-diagonal matrix
    p1 = jnp.dot(z[:, :4 * T_POOL1].astype(bf16), pool4_ref[...],
                 preferred_element_type=f32)                         # (32, 187)

    # ---- stage 3: separableConv Conv2d(32,32,(1,15),pad (0,7)) + BN3 + ELU + AvgPool(1,8)
    zpad3 = jnp.zeros((32, P3), f32)
    p1p = jnp.concatenate([zpad3, p1, zpad3], axis=1)                # (32, 201)
    # im2col over the 15 taps -> single (32,480)x(480,187) bf16 MXU matmul
    xcol = jnp.concatenate(
        [p1p[:, k:k + T_POOL1] for k in range(K3)], axis=0).astype(bf16)  # (480, 187)
    s = jnp.dot(w3_ref[...], xcol, preferred_element_type=f32) + b3_ref[...]
    s = jnp.where(s > 0, s, jnp.exp(jnp.minimum(s, 0.0)) - 1.0)      # ELU
    p2 = jnp.dot(s[:, :8 * T_POOL2].astype(bf16), pool8_ref[...],
                 preferred_element_type=f32)                         # (32, 23)

    # ---- stage 4: classify — flatten(32*23=736) + Linear(736,2) fused in-kernel.
    # out[n] = sum_{c,t} lw[n, c*23+t] * p2[c, t] done as lane + sublane reductions
    # (avoids an expensive (32,23)->(1,736) lane reshape).
    r0 = jnp.sum(lw_ref[0] * p2, axis=1, keepdims=True)              # (32, 1)
    r1 = jnp.sum(lw_ref[1] * p2, axis=1, keepdims=True)              # (32, 1)
    tot = jnp.sum(jnp.concatenate([r0, r1], axis=1),
                  axis=0, keepdims=True)                             # (1, 2)
    out_ref[0] = tot + lb_ref[...]


# ================================= wrapper ====================================

def eggnet_forward(x, params):
    """x: (B, 1, 2, 750) float32 (NCHW).  Returns (B, 2)."""
    B = x.shape[0]
    out = pl.pallas_call(
        eggnet_kernel,
        out_shape=jax.ShapeDtypeStruct((B, 1, 2), jnp.float32),
        grid=(B,),
        in_specs=[
            pl.BlockSpec((1, 1, 2, T_IN), lambda b: (b, 0, 0, 0)),       # x
            pl.BlockSpec((32, K1), lambda b: (0, 0)),                    # w1cat
            pl.BlockSpec((32, 1), lambda b: (0, 0)),                     # w2a
            pl.BlockSpec((32, 1), lambda b: (0, 0)),                     # w2b
            pl.BlockSpec((32, 1), lambda b: (0, 0)),                     # b2eff
            pl.BlockSpec((4 * T_POOL1, T_POOL1), lambda b: (0, 0)),      # pool4
            pl.BlockSpec((32, K3 * 32), lambda b: (0, 0)),               # w3s
            pl.BlockSpec((32, 1), lambda b: (0, 0)),                     # b3
            pl.BlockSpec((8 * T_POOL2, T_POOL2), lambda b: (0, 0)),      # pool8
            pl.BlockSpec((2, 32, T_POOL2), lambda b: (0, 0, 0)),         # lwr
            pl.BlockSpec((1, 2), lambda b: (0, 0)),                      # lb
        ],
        out_specs=pl.BlockSpec((1, 1, 2), lambda b: (b, 0, 0)),
        compiler_params=pltpu.CompilerParams(
            dimension_semantics=("parallel",)),                          # 2 TCs on v7x
    )(x, params["w1cat"], params["w2a"], params["w2b"], params["b2eff"],
      params["pool4"], params["w3s"], params["b3"], params["pool8"],
      params["lwr"], params["lb"])
    return out.reshape(B, 2)


# ============================ parameters (synthetic) ===========================

def _folded_bn(kg, kb, km, kv, n):
    gamma = 1.0 + 0.1 * jax.random.normal(kg, (n,))
    beta = 0.1 * jax.random.normal(kb, (n,))
    mean = 0.05 * jax.random.normal(km, (n,))
    var = 0.9 + 0.2 * jax.random.uniform(kv, (n,))
    scale = gamma / jnp.sqrt(var + 1e-5)
    bias = beta - mean * scale
    return scale.astype(jnp.float32), bias.astype(jnp.float32)


def init_params(key):
    ks = jax.random.split(key, 17)
    w1 = 0.1 * jax.random.normal(ks[0], (16, K1), jnp.float32)        # Conv2d(1,16,(1,51))
    w2 = 0.2 * jax.random.normal(ks[1], (32, 2), jnp.float32)         # Conv2d(16,32,(2,1),groups=16)
    w3 = 0.05 * jax.random.normal(ks[2], (32, 32, K3), jnp.float32)   # Conv2d(32,32,(1,15))
    lw = 0.05 * jax.random.normal(ks[3], (2, FEAT), jnp.float32)      # Linear(736,2)
    lb = 0.1 * jax.random.normal(ks[4], (1, 2), jnp.float32)

    scale1, bias1 = _folded_bn(ks[5], ks[6], ks[7], ks[8], 16)
    scale2, bias2 = _folded_bn(ks[9], ks[10], ks[11], ks[12], 32)
    scale3, bias3 = _folded_bn(ks[13], ks[14], ks[15], ks[16], 32)

    # internal depthwise channel order: c' = j*16 + ic  <->  PyTorch oc = 2*ic + j
    perm = jnp.array([2 * (c % 16) + (c // 16) for c in range(32)], jnp.int32)

    # stage 1: fold BN1 scale into conv weights, duplicate for the two EEG rows
    w1s = w1 * scale1[:, None]                              # (16, 51)
    w1cat = jnp.concatenate([w1s, w1s], axis=0)             # (32, 51)

    # stage 2: permute to internal order, fold BN2 scale into the weights and
    # fold the BN1 bias through the (linear) depthwise conv into the bias term.
    s2p = scale2[perm]
    w2a = w2[perm, 0] * s2p                                 # (32,)
    w2b = w2[perm, 1] * s2p
    b2eff = bias2[perm] + (w2a + w2b) * jnp.tile(bias1, 2)  # bias1 indexed by ic=c'%16

    # stage 3: stack the 15 taps: w3s[oc, k*32+ic'] = scale3[oc]*w3[oc, perm[ic'], k]
    w3s = jnp.transpose(w3[:, perm, :], (0, 2, 1)).reshape(32, K3 * 32)
    w3s = (w3s * scale3[:, None]).astype(jnp.bfloat16)

    # average-pool matrices (block-diagonal, 1/window), bf16 MXU operands (exact)
    pool4 = ((jnp.arange(4 * T_POOL1)[:, None] // 4 ==
              jnp.arange(T_POOL1)[None, :]).astype(jnp.float32) * 0.25
             ).astype(jnp.bfloat16)
    pool8 = ((jnp.arange(8 * T_POOL2)[:, None] // 8 ==
              jnp.arange(T_POOL2)[None, :]).astype(jnp.float32) * 0.125
             ).astype(jnp.bfloat16)

    return dict(
        # fused-kernel parameters
        w1cat=w1cat,
        w2a=w2a.reshape(32, 1), w2b=w2b.reshape(32, 1), b2eff=b2eff.reshape(32, 1),
        pool4=pool4,
        w3s=w3s, b3=bias3.reshape(32, 1), pool8=pool8,
        lwr=lw.reshape(2, 32, T_POOL2), lb=lb,
        # raw (PyTorch-ordered) copies for the pure-JAX reference check
        w1_raw=w1, scale1_raw=scale1, bias1_raw=bias1,
        w2_raw=w2, scale2_raw=scale2, bias2_raw=bias2,
        w3_raw=w3, scale3_raw=scale3, bias3_raw=bias3,
        lw_raw=lw,
    )


# =========================== pure-JAX reference (check) ========================

def reference_forward(x, p):
    B = x.shape[0]
    xp = jnp.pad(x[:, 0], ((0, 0), (0, 0), (P1, P1)))                  # (B,2,800)
    c1 = jnp.zeros((B, 2, 16, T_IN), jnp.float32)
    for k in range(K1):
        c1 = c1 + p["w1_raw"][None, None, :, k:k + 1] * xp[:, :, None, k:k + T_IN]
    c1 = (c1 * p["scale1_raw"][None, None, :, None]
          + p["bias1_raw"][None, None, :, None])
    top, bot = c1[:, 0], c1[:, 1]                                       # (B,16,750)
    ic = jnp.arange(32) // 2
    z = (p["w2_raw"][None, :, 0, None] * top[:, ic, :] +
         p["w2_raw"][None, :, 1, None] * bot[:, ic, :])                 # (B,32,750)
    z = z * p["scale2_raw"][None, :, None] + p["bias2_raw"][None, :, None]
    z = jnp.where(z > 0, z, jnp.exp(z) - 1.0)
    z = z[:, :, :4 * T_POOL1].reshape(B, 32, T_POOL1, 4).mean(-1)
    zp = jnp.pad(z, ((0, 0), (0, 0), (P3, P3)))
    s = jnp.zeros((B, 32, T_POOL1), jnp.float32)
    for k in range(K3):
        s = s + jnp.einsum("oi,bit->bot", p["w3_raw"][:, :, k], zp[:, :, k:k + T_POOL1])
    s = s * p["scale3_raw"][None, :, None] + p["bias3_raw"][None, :, None]
    s = jnp.where(s > 0, s, jnp.exp(s) - 1.0)
    s = s[:, :, :8 * T_POOL2].reshape(B, 32, T_POOL2, 8).mean(-1)
    return s.reshape(B, FEAT) @ p["lw_raw"].T + p["lb"]


# =================================== main ======================================

if __name__ == "__main__":
    key = jax.random.PRNGKey(0)
    pkey, xkey = jax.random.split(key)
    params = init_params(pkey)
    # batch=2; spatial dims (2, 750) are fixed by the module (Linear expects 736)
    x = jax.random.normal(xkey, (2, 1, 2, T_IN), dtype=jnp.float32)

    out = jax.jit(eggnet_forward)(x, params)
    out = jax.block_until_ready(out)

    ref = jax.jit(reference_forward)(x, params)
    assert out.shape == (2, 2)
    assert bool(jnp.all(jnp.isfinite(out)))
    err = float(jnp.max(jnp.abs(out - ref)))
    assert err < 5e-2, f"max abs diff vs reference: {err}"

    print("KERNEL_OK")
</pallas_src>

<mosaic_0001>
module attributes {stable_mosaic.version = 11 : i64} {
  func.func @eggnet_kernel(%arg0: i32, %arg1: memref<1x1x2x750xf32, #tpu.memory_space<vmem>>, %arg2: memref<32x51xf32, #tpu.memory_space<vmem>>, %arg3: memref<32x1xf32, #tpu.memory_space<vmem>>, %arg4: memref<32x1xf32, #tpu.memory_space<vmem>>, %arg5: memref<32x1xf32, #tpu.memory_space<vmem>>, %arg6: memref<748x187xbf16, #tpu.memory_space<vmem>>, %arg7: memref<32x480xbf16, #tpu.memory_space<vmem>>, %arg8: memref<32x1xf32, #tpu.memory_space<vmem>>, %arg9: memref<184x23xbf16, #tpu.memory_space<vmem>>, %arg10: memref<2x32x23xf32, #tpu.memory_space<vmem>>, %arg11: memref<1x2xf32, #tpu.memory_space<vmem>>, %arg12: memref<1x1x2xf32, #tpu.memory_space<vmem>>) attributes {dimension_semantics = [#tpu.dimension_semantics<parallel>], iteration_bounds = array<i64: 2>, scalar_prefetch = 0 : i64, scratch_operands = 0 : i64, tpu.core_type = #tpu.core_type<tc>, window_params = [{transform_indices = @transform_0, window_bounds = array<i64: 1, 1, 2, 750>}, {pipeline_mode = #tpu.pipeline_mode<synchronous>, transform_indices = @transform_1, window_bounds = array<i64: 32, 51>}, {pipeline_mode = #tpu.pipeline_mode<synchronous>, transform_indices = @transform_2, window_bounds = array<i64: 32, 1>}, {pipeline_mode = #tpu.pipeline_mode<synchronous>, transform_indices = @transform_3, window_bounds = array<i64: 32, 1>}, {pipeline_mode = #tpu.pipeline_mode<synchronous>, transform_indices = @transform_4, window_bounds = array<i64: 32, 1>}, {pipeline_mode = #tpu.pipeline_mode<synchronous>, transform_indices = @transform_5, window_bounds = array<i64: 748, 187>}, {pipeline_mode = #tpu.pipeline_mode<synchronous>, transform_indices = @transform_6, window_bounds = array<i64: 32, 480>}, {pipeline_mode = #tpu.pipeline_mode<synchronous>, transform_indices = @transform_7, window_bounds = array<i64: 32, 1>}, {pipeline_mode = #tpu.pipeline_mode<synchronous>, transform_indices = @transform_8, window_bounds = array<i64: 184, 23>}, {pipeline_mode = #tpu.pipeline_mode<synchronous>, transform_indices = @transform_9, window_bounds = array<i64: 2, 32, 23>}, {pipeline_mode = #tpu.pipeline_mode<synchronous>, transform_indices = @transform_10, window_bounds = array<i64: 1, 2>}, {transform_indices = @transform_11, window_bounds = array<i64: 1, 1, 2>}]} {
    %c0 = arith.constant 0 : index
    %c0_0 = arith.constant 0 : index
    %c0_1 = arith.constant 0 : index
    %c0_2 = arith.constant 0 : index
    %0 = vector.load %arg1[%c0, %c0_0, %c0_1, %c0_2] : memref<1x1x2x750xf32, #tpu.memory_space<vmem>>, vector<1x1x2x750xf32>
    %1 = vector.shape_cast %0 : vector<1x1x2x750xf32> to vector<2x750xf32>
    %cst = arith.constant 0.000000e+00 : f32
    %2 = vector.broadcast %cst : f32 to vector<2x25xf32>
    %3 = tpu.concatenate %2, %1, %2 in 1 : vector<2x25xf32>, vector<2x750xf32>, vector<2x25xf32> -> vector<2x800xf32>
    %4 = vector.extract_strided_slice %3 {offsets = [0, 0], sizes = [1, 800], strides = [1, 1]} : vector<2x800xf32> to vector<1x800xf32>
    %5 = vector.shape_cast %4 : vector<1x800xf32> to vector<1x800xf32>
    %6 = vector.broadcast %5 : vector<1x800xf32> to vector<16x800xf32>
    %7 = vector.extract_strided_slice %3 {offsets = [1, 0], sizes = [1, 800], strides = [1, 1]} : vector<2x800xf32> to vector<1x800xf32>
    %8 = vector.shape_cast %7 : vector<1x800xf32> to vector<1x800xf32>
    %9 = vector.broadcast %8 : vector<1x800xf32> to vector<16x800xf32>
    %10 = tpu.concatenate %6, %9 in 0 : vector<16x800xf32>, vector<16x800xf32> -> vector<32x800xf32>
    %c0_3 = arith.constant 0 : index
    %c0_4 = arith.constant 0 : index
    %11 = vector.load %arg2[%c0_3, %c0_4] : memref<32x51xf32, #tpu.memory_space<vmem>>, vector<32x51xf32>
    %cst_5 = arith.constant 0.000000e+00 : f32
    %12 = vector.broadcast %cst_5 : f32 to vector<32x750xf32>
    %13 = vector.extract_strided_slice %11 {offsets = [0, 0], sizes = [32, 1], strides = [1, 1]} : vector<32x51xf32> to vector<32x1xf32>
    %14 = vector.extract_strided_slice %10 {offsets = [0, 0], sizes = [32, 750], strides = [1, 1]} : vector<32x800xf32> to vector<32x750xf32>
    %15 = vector.broadcast %13 : vector<32x1xf32> to vector<32x750xf32>
    %16 = arith.mulf %15, %14 : vector<32x750xf32>
    %17 = arith.addf %12, %16 : vector<32x750xf32>
    %18 = vector.extract_strided_slice %11 {offsets = [0, 1], sizes = [32, 1], strides = [1, 1]} : vector<32x51xf32> to vector<32x1xf32>
    %19 = vector.extract_strided_slice %10 {offsets = [0, 1], sizes = [32, 750], strides = [1, 1]} : vector<32x800xf32> to vector<32x750xf32>
    %20 = vector.broadcast %18 : vector<32x1xf32> to vector<32x750xf32>
    %21 = arith.mulf %20, %19 : vector<32x750xf32>
    %22 = arith.addf %17, %21 : vector<32x750xf32>
    %23 = vector.extract_strided_slice %11 {offsets = [0, 2], sizes = [32, 1], strides = [1, 1]} : vector<32x51xf32> to vector<32x1xf32>
    %24 = vector.extract_strided_slice %10 {offsets = [0, 2], sizes = [32, 750], strides = [1, 1]} : vector<32x800xf32> to vector<32x750xf32>
    %25 = vector.broadcast %23 : vector<32x1xf32> to vector<32x750xf32>
    %26 = arith.mulf %25, %24 : vector<32x750xf32>
    %27 = arith.addf %22, %26 : vector<32x750xf32>
    %28 = vector.extract_strided_slice %11 {offsets = [0, 3], sizes = [32, 1], strides = [1, 1]} : vector<32x51xf32> to vector<32x1xf32>
    %29 = vector.extract_strided_slice %10 {offsets = [0, 3], sizes = [32, 750], strides = [1, 1]} : vector<32x800xf32> to vector<32x750xf32>
    %30 = vector.broadcast %28 : vector<32x1xf32> to vector<32x750xf32>
    %31 = arith.mulf %30, %29 : vector<32x750xf32>
    %32 = arith.addf %27, %31 : vector<32x750xf32>
    %33 = vector.extract_strided_slice %11 {offsets = [0, 4], sizes = [32, 1], strides = [1, 1]} : vector<32x51xf32> to vector<32x1xf32>
    %34 = vector.extract_strided_slice %10 {offsets = [0, 4], sizes = [32, 750], strides = [1, 1]} : vector<32x800xf32> to vector<32x750xf32>
    %35 = vector.broadcast %33 : vector<32x1xf32> to vector<32x750xf32>
    %36 = arith.mulf %35, %34 : vector<32x750xf32>
    %37 = arith.addf %32, %36 : vector<32x750xf32>
    %38 = vector.extract_strided_slice %11 {offsets = [0, 5], sizes = [32, 1], strides = [1, 1]} : vector<32x51xf32> to vector<32x1xf32>
    %39 = vector.extract_strided_slice %10 {offsets = [0, 5], sizes = [32, 750], strides = [1, 1]} : vector<32x800xf32> to vector<32x750xf32>
    %40 = vector.broadcast %38 : vector<32x1xf32> to vector<32x750xf32>
    %41 = arith.mulf %40, %39 : vector<32x750xf32>
    %42 = arith.addf %37, %41 : vector<32x750xf32>
    %43 = vector.extract_strided_slice %11 {offsets = [0, 6], sizes = [32, 1], strides = [1, 1]} : vector<32x51xf32> to vector<32x1xf32>
    %44 = vector.extract_strided_slice %10 {offsets = [0, 6], sizes = [32, 750], strides = [1, 1]} : vector<32x800xf32> to vector<32x750xf32>
    %45 = vector.broadcast %43 : vector<32x1xf32> to vector<32x750xf32>
    %46 = arith.mulf %45, %44 : vector<32x750xf32>
    %47 = arith.addf %42, %46 : vector<32x750xf32>
    %48 = vector.extract_strided_slice %11 {offsets = [0, 7], sizes = [32, 1], strides = [1, 1]} : vector<32x51xf32> to vector<32x1xf32>
    %49 = vector.extract_strided_slice %10 {offsets = [0, 7], sizes = [32, 750], strides = [1, 1]} : vector<32x800xf32> to vector<32x750xf32>
    %50 = vector.broadcast %48 : vector<32x1xf32> to vector<32x750xf32>
    %51 = arith.mulf %50, %49 : vector<32x750xf32>
    %52 = arith.addf %47, %51 : vector<32x750xf32>
    %53 = vector.extract_strided_slice %11 {offsets = [0, 8], sizes = [32, 1], strides = [1, 1]} : vector<32x51xf32> to vector<32x1xf32>
    %54 = vector.extract_strided_slice %10 {offsets = [0, 8], sizes = [32, 750], strides = [1, 1]} : vector<32x800xf32> to vector<32x750xf32>
    %55 = vector.broadcast %53 : vector<32x1xf32> to vector<32x750xf32>
    %56 = arith.mulf %55, %54 : vector<32x750xf32>
    %57 = arith.addf %52, %56 : vector<32x750xf32>
    %58 = vector.extract_strided_slice %11 {offsets = [0, 9], sizes = [32, 1], strides = [1, 1]} : vector<32x51xf32> to vector<32x1xf32>
    %59 = vector.extract_strided_slice %10 {offsets = [0, 9], sizes = [32, 750], strides = [1, 1]} : vector<32x800xf32> to vector<32x750xf32>
    %60 = vector.broadcast %58 : vector<32x1xf32> to vector<32x750xf32>
    %61 = arith.mulf %60, %59 : vector<32x750xf32>
    %62 = arith.addf %57, %61 : vector<32x750xf32>
    %63 = vector.extract_strided_slice %11 {offsets = [0, 10], sizes = [32, 1], strides = [1, 1]} : vector<32x51xf32> to vector<32x1xf32>
    %64 = vector.extract_strided_slice %10 {offsets = [0, 10], sizes = [32, 750], strides = [1, 1]} : vector<32x800xf32> to vector<32x750xf32>
    %65 = vector.broadcast %63 : vector<32x1xf32> to vector<32x750xf32>
    %66 = arith.mulf %65, %64 : vector<32x750xf32>
    %67 = arith.addf %62, %66 : vector<32x750xf32>
    %68 = vector.extract_strided_slice %11 {offsets = [0, 11], sizes = [32, 1], strides = [1, 1]} : vector<32x51xf32> to vector<32x1xf32>
    %69 = vector.extract_strided_slice %10 {offsets = [0, 11], sizes = [32, 750], strides = [1, 1]} : vector<32x800xf32> to vector<32x750xf32>
    %70 = vector.broadcast %68 : vector<32x1xf32> to vector<32x750xf32>
    %71 = arith.mulf %70, %69 : vector<32x750xf32>
    %72 = arith.addf %67, %71 : vector<32x750xf32>
    %73 = vector.extract_strided_slice %11 {offsets = [0, 12], sizes = [32, 1], strides = [1, 1]} : vector<32x51xf32> to vector<32x1xf32>
    %74 = vector.extract_strided_slice %10 {offsets = [0, 12], sizes = [32, 750], strides = [1, 1]} : vector<32x800xf32> to vector<32x750xf32>
    %75 = vector.broadcast %73 : vector<32x1xf32> to vector<32x750xf32>
    %76 = arith.mulf %75, %74 : vector<32x750xf32>
    %77 = arith.addf %72, %76 : vector<32x750xf32>
    %78 = vector.extract_strided_slice %11 {offsets = [0, 13], sizes = [32, 1], strides = [1, 1]} : vector<32x51xf32> to vector<32x1xf32>
    %79 = vector.extract_strided_slice %10 {offsets = [0, 13], sizes = [32, 750], strides = [1, 1]} : vector<32x800xf32> to vector<32x750xf32>
    %80 = vector.broadcast %78 : vector<32x1xf32> to vector<32x750xf32>
    %81 = arith.mulf %80, %79 : vector<32x750xf32>
    %82 = arith.addf %77, %81 : vector<32x750xf32>
    %83 = vector.extract_strided_slice %11 {offsets = [0, 14], sizes = [32, 1], strides = [1, 1]} : vector<32x51xf32> to vector<32x1xf32>
    %84 = vector.extract_strided_slice %10 {offsets = [0, 14], sizes = [32, 750], strides = [1, 1]} : vector<32x800xf32> to vector<32x750xf32>
    %85 = vector.broadcast %83 : vector<32x1xf32> to vector<32x750xf32>
    %86 = arith.mulf %85, %84 : vector<32x750xf32>
    %87 = arith.addf %82, %86 : vector<32x750xf32>
    %88 = vector.extract_strided_slice %11 {offsets = [0, 15], sizes = [32, 1], strides = [1, 1]} : vector<32x51xf32> to vector<32x1xf32>
    %89 = vector.extract_strided_slice %10 {offsets = [0, 15], sizes = [32, 750], strides = [1, 1]} : vector<32x800xf32> to vector<32x750xf32>
    %90 = vector.broadcast %88 : vector<32x1xf32> to vector<32x750xf32>
    %91 = arith.mulf %90, %89 : vector<32x750xf32>
    %92 = arith.addf %87, %91 : vector<32x750xf32>
    %93 = vector.extract_strided_slice %11 {offsets = [0, 16], sizes = [32, 1], strides = [1, 1]} : vector<32x51xf32> to vector<32x1xf32>
    %94 = vector.extract_strided_slice %10 {offsets = [0, 16], sizes = [32, 750], strides = [1, 1]} : vector<32x800xf32> to vector<32x750xf32>
    %95 = vector.broadcast %93 : vector<32x1xf32> to vector<32x750xf32>
    %96 = arith.mulf %95, %94 : vector<32x750xf32>
    %97 = arith.addf %92, %96 : vector<32x750xf32>
    %98 = vector.extract_strided_slice %11 {offsets = [0, 17], sizes = [32, 1], strides = [1, 1]} : vector<32x51xf32> to vector<32x1xf32>
    %99 = vector.extract_strided_slice %10 {offsets = [0, 17], sizes = [32, 750], strides = [1, 1]} : vector<32x800xf32> to vector<32x750xf32>
    %100 = vector.broadcast %98 : vector<32x1xf32> to vector<32x750xf32>
    %101 = arith.mulf %100, %99 : vector<32x750xf32>
    %102 = arith.addf %97, %101 : vector<32x750xf32>
    %103 = vector.extract_strided_slice %11 {offsets = [0, 18], sizes = [32, 1], strides = [1, 1]} : vector<32x51xf32> to vector<32x1xf32>
    %104 = vector.extract_strided_slice %10 {offsets = [0, 18], sizes = [32, 750], strides = [1, 1]} : vector<32x800xf32> to vector<32x750xf32>
    %105 = vector.broadcast %103 : vector<32x1xf32> to vector<32x750xf32>
    %106 = arith.mulf %105, %104 : vector<32x750xf32>
    %107 = arith.addf %102, %106 : vector<32x750xf32>
    %108 = vector.extract_strided_slice %11 {offsets = [0, 19], sizes = [32, 1], strides = [1, 1]} : vector<32x51xf32> to vector<32x1xf32>
    %109 = vector.extract_strided_slice %10 {offsets = [0, 19], sizes = [32, 750], strides = [1, 1]} : vector<32x800xf32> to vector<32x750xf32>
    %110 = vector.broadcast %108 : vector<32x1xf32> to vector<32x750xf32>
    %111 = arith.mulf %110, %109 : vector<32x750xf32>
    %112 = arith.addf %107, %111 : vector<32x750xf32>
    %113 = vector.extract_strided_slice %11 {offsets = [0, 20], sizes = [32, 1], strides = [1, 1]} : vector<32x51xf32> to vector<32x1xf32>
    %114 = vector.extract_strided_slice %10 {offsets = [0, 20], sizes = [32, 750], strides = [1, 1]} : vector<32x800xf32> to vector<32x750xf32>
    %115 = vector.broadcast %113 : vector<32x1xf32> to vector<32x750xf32>
    %116 = arith.mulf %115, %114 : vector<32x750xf32>
    %117 = arith.addf %112, %116 : vector<32x750xf32>
    %118 = vector.extract_strided_slice %11 {offsets = [0, 21], sizes = [32, 1], strides = [1, 1]} : vector<32x51xf32> to vector<32x1xf32>
    %119 = vector.extract_strided_slice %10 {offsets = [0, 21], sizes = [32, 750], strides = [1, 1]} : vector<32x800xf32> to vector<32x750xf32>
    %120 = vector.broadcast %118 : vector<32x1xf32> to vector<32x750xf32>
    %121 = arith.mulf %120, %119 : vector<32x750xf32>
    %122 = arith.addf %117, %121 : vector<32x750xf32>
    %123 = vector.extract_strided_slice %11 {offsets = [0, 22], sizes = [32, 1], strides = [1, 1]} : vector<32x51xf32> to vector<32x1xf32>
    %124 = vector.extract_strided_slice %10 {offsets = [0, 22], sizes = [32, 750], strides = [1, 1]} : vector<32x800xf32> to vector<32x750xf32>
    %125 = vector.broadcast %123 : vector<32x1xf32> to vector<32x750xf32>
    %126 = arith.mulf %125, %124 : vector<32x750xf32>
    %127 = arith.addf %122, %126 : vector<32x750xf32>
    %128 = vector.extract_strided_slice %11 {offsets = [0, 23], sizes = [32, 1], strides = [1, 1]} : vector<32x51xf32> to vector<32x1xf32>
    %129 = vector.extract_strided_slice %10 {offsets = [0, 23], sizes = [32, 750], strides = [1, 1]} : vector<32x800xf32> to vector<32x750xf32>
    %130 = vector.broadcast %128 : vector<32x1xf32> to vector<32x750xf32>
    %131 = arith.mulf %130, %129 : vector<32x750xf32>
    %132 = arith.addf %127, %131 : vector<32x750xf32>
    %133 = vector.extract_strided_slice %11 {offsets = [0, 24], sizes = [32, 1], strides = [1, 1]} : vector<32x51xf32> to vector<32x1xf32>
    %134 = vector.extract_strided_slice %10 {offsets = [0, 24], sizes = [32, 750], strides = [1, 1]} : vector<32x800xf32> to vector<32x750xf32>
    %135 = vector.broadcast %133 : vector<32x1xf32> to vector<32x750xf32>
    %136 = arith.mulf %135, %134 : vector<32x750xf32>
    %137 = arith.addf %132, %136 : vector<32x750xf32>
    %138 = vector.extract_strided_slice %11 {offsets = [0, 25], sizes = [32, 1], strides = [1, 1]} : vector<32x51xf32> to vector<32x1xf32>
    %139 = vector.extract_strided_slice %10 {offsets = [0, 25], sizes = [32, 750], strides = [1, 1]} : vector<32x800xf32> to vector<32x750xf32>
    %140 = vector.broadcast %138 : vector<32x1xf32> to vector<32x750xf32>
    %141 = arith.mulf %140, %139 : vector<32x750xf32>
    %142 = arith.addf %137, %141 : vector<32x750xf32>
    %143 = vector.extract_strided_slice %11 {offsets = [0, 26], sizes = [32, 1], strides = [1, 1]} : vector<32x51xf32> to vector<32x1xf32>
    %144 = vector.extract_strided_slice %10 {offsets = [0, 26], sizes = [32, 750], strides = [1, 1]} : vector<32x800xf32> to vector<32x750xf32>
    %145 = vector.broadcast %143 : vector<32x1xf32> to vector<32x750xf32>
    %146 = arith.mulf %145, %144 : vector<32x750xf32>
    %147 = arith.addf %142, %146 : vector<32x750xf32>
    %148 = vector.extract_strided_slice %11 {offsets = [0, 27], sizes = [32, 1], strides = [1, 1]} : vector<32x51xf32> to vector<32x1xf32>
    %149 = vector.extract_strided_slice %10 {offsets = [0, 27], sizes = [32, 750], strides = [1, 1]} : vector<32x800xf32> to vector<32x750xf32>
    %150 = vector.broadcast %148 : vector<32x1xf32> to vector<32x750xf32>
    %151 = arith.mulf %150, %149 : vector<32x750xf32>
    %152 = arith.addf %147, %151 : vector<32x750xf32>
    %153 = vector.extract_strided_slice %11 {offsets = [0, 28], sizes = [32, 1], strides = [1, 1]} : vector<32x51xf32> to vector<32x1xf32>
    %154 = vector.extract_strided_slice %10 {offsets = [0, 28], sizes = [32, 750], strides = [1, 1]} : vector<32x800xf32> to vector<32x750xf32>
    %155 = vector.broadcast %153 : vector<32x1xf32> to vector<32x750xf32>
    %156 = arith.mulf %155, %154 : vector<32x750xf32>
    %157 = arith.addf %152, %156 : vector<32x750xf32>
    %158 = vector.extract_strided_slice %11 {offsets = [0, 29], sizes = [32, 1], strides = [1, 1]} : vector<32x51xf32> to vector<32x1xf32>
    %159 = vector.extract_strided_slice %10 {offsets = [0, 29], sizes = [32, 750], strides = [1, 1]} : vector<32x800xf32> to vector<32x750xf32>
    %160 = vector.broadcast %158 : vector<32x1xf32> to vector<32x750xf32>
    %161 = arith.mulf %160, %159 : vector<32x750xf32>
    %162 = arith.addf %157, %161 : vector<32x750xf32>
    %163 = vector.extract_strided_slice %11 {offsets = [0, 30], sizes = [32, 1], strides = [1, 1]} : vector<32x51xf32> to vector<32x1xf32>
    %164 = vector.extract_strided_slice %10 {offsets = [0, 30], sizes = [32, 750], strides = [1, 1]} : vector<32x800xf32> to vector<32x750xf32>
    %165 = vector.broadcast %163 : vector<32x1xf32> to vector<32x750xf32>
    %166 = arith.mulf %165, %164 : vector<32x750xf32>
    %167 = arith.addf %162, %166 : vector<32x750xf32>
    %168 = vector.extract_strided_slice %11 {offsets = [0, 31], sizes = [32, 1], strides = [1, 1]} : vector<32x51xf32> to vector<32x1xf32>
    %169 = vector.extract_strided_slice %10 {offsets = [0, 31], sizes = [32, 750], strides = [1, 1]} : vector<32x800xf32> to vector<32x750xf32>
    %170 = vector.broadcast %168 : vector<32x1xf32> to vector<32x750xf32>
    %171 = arith.mulf %170, %169 : vector<32x750xf32>
    %172 = arith.addf %167, %171 : vector<32x750xf32>
    %173 = vector.extract_strided_slice %11 {offsets = [0, 32], sizes = [32, 1], strides = [1, 1]} : vector<32x51xf32> to vector<32x1xf32>
    %174 = vector.extract_strided_slice %10 {offsets = [0, 32], sizes = [32, 750], strides = [1, 1]} : vector<32x800xf32> to vector<32x750xf32>
    %175 = vector.broadcast %173 : vector<32x1xf32> to vector<32x750xf32>
    %176 = arith.mulf %175, %174 : vector<32x750xf32>
    %177 = arith.addf %172, %176 : vector<32x750xf32>
    %178 = vector.extract_strided_slice %11 {offsets = [0, 33], sizes = [32, 1], strides = [1, 1]} : vector<32x51xf32> to vector<32x1xf32>
    %179 = vector.extract_strided_slice %10 {offsets = [0, 33], sizes = [32, 750], strides = [1, 1]} : vector<32x800xf32> to vector<32x750xf32>
    %180 = vector.broadcast %178 : vector<32x1xf32> to vector<32x750xf32>
    %181 = arith.mulf %180, %179 : vector<32x750xf32>
    %182 = arith.addf %177, %181 : vector<32x750xf32>
    %183 = vector.extract_strided_slice %11 {offsets = [0, 34], sizes = [32, 1], strides = [1, 1]} : vector<32x51xf32> to vector<32x1xf32>
    %184 = vector.extract_strided_slice %10 {offsets = [0, 34], sizes = [32, 750], strides = [1, 1]} : vector<32x800xf32> to vector<32x750xf32>
    %185 = vector.broadcast %183 : vector<32x1xf32> to vector<32x750xf32>
    %186 = arith.mulf %185, %184 : vector<32x750xf32>
    %187 = arith.addf %182, %186 : vector<32x750xf32>
    %188 = vector.extract_strided_slice %11 {offsets = [0, 35], sizes = [32, 1], strides = [1, 1]} : vector<32x51xf32> to vector<32x1xf32>
    %189 = vector.extract_strided_slice %10 {offsets = [0, 35], sizes = [32, 750], strides = [1, 1]} : vector<32x800xf32> to vector<32x750xf32>
    %190 = vector.broadcast %188 : vector<32x1xf32> to vector<32x750xf32>
    %191 = arith.mulf %190, %189 : vector<32x750xf32>
    %192 = arith.addf %187, %191 : vector<32x750xf32>
    %193 = vector.extract_strided_slice %11 {offsets = [0, 36], sizes = [32, 1], strides = [1, 1]} : vector<32x51xf32> to vector<32x1xf32>
    %194 = vector.extract_strided_slice %10 {offsets = [0, 36], sizes = [32, 750], strides = [1, 1]} : vector<32x800xf32> to vector<32x750xf32>
    %195 = vector.broadcast %193 : vector<32x1xf32> to vector<32x750xf32>
    %196 = arith.mulf %195, %194 : vector<32x750xf32>
    %197 = arith.addf %192, %196 : vector<32x750xf32>
    %198 = vector.extract_strided_slice %11 {offsets = [0, 37], sizes = [32, 1], strides = [1, 1]} : vector<32x51xf32> to vector<32x1xf32>
    %199 = vector.extract_strided_slice %10 {offsets = [0, 37], sizes = [32, 750], strides = [1, 1]} : vector<32x800xf32> to vector<32x750xf32>
    %200 = vector.broadcast %198 : vector<32x1xf32> to vector<32x750xf32>
    %201 = arith.mulf %200, %199 : vector<32x750xf32>
    %202 = arith.addf %197, %201 : vector<32x750xf32>
    %203 = vector.extract_strided_slice %11 {offsets = [0, 38], sizes = [32, 1], strides = [1, 1]} : vector<32x51xf32> to vector<32x1xf32>
    %204 = vector.extract_strided_slice %10 {offsets = [0, 38], sizes = [32, 750], strides = [1, 1]} : vector<32x800xf32> to vector<32x750xf32>
    %205 = vector.broadcast %203 : vector<32x1xf32> to vector<32x750xf32>
    %206 = arith.mulf %205, %204 : vector<32x750xf32>
    %207 = arith.addf %202, %206 : vector<32x750xf32>
    %208 = vector.extract_strided_slice %11 {offsets = [0, 39], sizes = [32, 1], strides = [1, 1]} : vector<32x51xf32> to vector<32x1xf32>
    %209 = vector.extract_strided_slice %10 {offsets = [0, 39], sizes = [32, 750], strides = [1, 1]} : vector<32x800xf32> to vector<32x750xf32>
    %210 = vector.broadcast %208 : vector<32x1xf32> to vector<32x750xf32>
    %211 = arith.mulf %210, %209 : vector<32x750xf32>
    %212 = arith.addf %207, %211 : vector<32x750xf32>
    %213 = vector.extract_strided_slice %11 {offsets = [0, 40], sizes = [32, 1], strides = [1, 1]} : vector<32x51xf32> to vector<32x1xf32>
    %214 = vector.extract_strided_slice %10 {offsets = [0, 40], sizes = [32, 750], strides = [1, 1]} : vector<32x800xf32> to vector<32x750xf32>
    %215 = vector.broadcast %213 : vector<32x1xf32> to vector<32x750xf32>
    %216 = arith.mulf %215, %214 : vector<32x750xf32>
    %217 = arith.addf %212, %216 : vector<32x750xf32>
    %218 = vector.extract_strided_slice %11 {offsets = [0, 41], sizes = [32, 1], strides = [1, 1]} : vector<32x51xf32> to vector<32x1xf32>
    %219 = vector.extract_strided_slice %10 {offsets = [0, 41], sizes = [32, 750], strides = [1, 1]} : vector<32x800xf32> to vector<32x750xf32>
    %220 = vector.broadcast %218 : vector<32x1xf32> to vector<32x750xf32>
    %221 = arith.mulf %220, %219 : vector<32x750xf32>
    %222 = arith.addf %217, %221 : vector<32x750xf32>
    %223 = vector.extract_strided_slice %11 {offsets = [0, 42], sizes = [32, 1], strides = [1, 1]} : vector<32x51xf32> to vector<32x1xf32>
    %224 = vector.extract_strided_slice %10 {offsets = [0, 42], sizes = [32, 750], strides = [1, 1]} : vector<32x800xf32> to vector<32x750xf32>
    %225 = vector.broadcast %223 : vector<32x1xf32> to vector<32x750xf32>
    %226 = arith.mulf %225, %224 : vector<32x750xf32>
    %227 = arith.addf %222, %226 : vector<32x750xf32>
    %228 = vector.extract_strided_slice %11 {offsets = [0, 43], sizes = [32, 1], strides = [1, 1]} : vector<32x51xf32> to vector<32x1xf32>
    %229 = vector.extract_strided_slice %10 {offsets = [0, 43], sizes = [32, 750], strides = [1, 1]} : vector<32x800xf32> to vector<32x750xf32>
    %230 = vector.broadcast %228 : vector<32x1xf32> to vector<32x750xf32>
    %231 = arith.mulf %230, %229 : vector<32x750xf32>
    %232 = arith.addf %227, %231 : vector<32x750xf32>
    %233 = vector.extract_strided_slice %11 {offsets = [0, 44], sizes = [32, 1], strides = [1, 1]} : vector<32x51xf32> to vector<32x1xf32>
    %234 = vector.extract_strided_slice %10 {offsets = [0, 44], sizes = [32, 750], strides = [1, 1]} : vector<32x800xf32> to vector<32x750xf32>
    %235 = vector.broadcast %233 : vector<32x1xf32> to vector<32x750xf32>
    %236 = arith.mulf %235, %234 : vector<32x750xf32>
    %237 = arith.addf %232, %236 : vector<32x750xf32>
    %238 = vector.extract_strided_slice %11 {offsets = [0, 45], sizes = [32, 1], strides = [1, 1]} : vector<32x51xf32> to vector<32x1xf32>
    %239 = vector.extract_strided_slice %10 {offsets = [0, 45], sizes = [32, 750], strides = [1, 1]} : vector<32x800xf32> to vector<32x750xf32>
    %240 = vector.broadcast %238 : vector<32x1xf32> to vector<32x750xf32>
    %241 = arith.mulf %240, %239 : vector<32x750xf32>
    %242 = arith.addf %237, %241 : vector<32x750xf32>
    %243 = vector.extract_strided_slice %11 {offsets = [0, 46], sizes = [32, 1], strides = [1, 1]} : vector<32x51xf32> to vector<32x1xf32>
    %244 = vector.extract_strided_slice %10 {offsets = [0, 46], sizes = [32, 750], strides = [1, 1]} : vector<32x800xf32> to vector<32x750xf32>
    %245 = vector.broadcast %243 : vector<32x1xf32> to vector<32x750xf32>
    %246 = arith.mulf %245, %244 : vector<32x750xf32>
    %247 = arith.addf %242, %246 : vector<32x750xf32>
    %248 = vector.extract_strided_slice %11 {offsets = [0, 47], sizes = [32, 1], strides = [1, 1]} : vector<32x51xf32> to vector<32x1xf32>
    %249 = vector.extract_strided_slice %10 {offsets = [0, 47], sizes = [32, 750], strides = [1, 1]} : vector<32x800xf32> to vector<32x750xf32>
    %250 = vector.broadcast %248 : vector<32x1xf32> to vector<32x750xf32>
    %251 = arith.mulf %250, %249 : vector<32x750xf32>
    %252 = arith.addf %247, %251 : vector<32x750xf32>
    %253 = vector.extract_strided_slice %11 {offsets = [0, 48], sizes = [32, 1], strides = [1, 1]} : vector<32x51xf32> to vector<32x1xf32>
    %254 = vector.extract_strided_slice %10 {offsets = [0, 48], sizes = [32, 750], strides = [1, 1]} : vector<32x800xf32> to vector<32x750xf32>
    %255 = vector.broadcast %253 : vector<32x1xf32> to vector<32x750xf32>
    %256 = arith.mulf %255, %254 : vector<32x750xf32>
    %257 = arith.addf %252, %256 : vector<32x750xf32>
    %258 = vector.extract_strided_slice %11 {offsets = [0, 49], sizes = [32, 1], strides = [1, 1]} : vector<32x51xf32> to vector<32x1xf32>
    %259 = vector.extract_strided_slice %10 {offsets = [0, 49], sizes = [32, 750], strides = [1, 1]} : vector<32x800xf32> to vector<32x750xf32>
    %260 = vector.broadcast %258 : vector<32x1xf32> to vector<32x750xf32>
    %261 = arith.mulf %260, %259 : vector<32x750xf32>
    %262 = arith.addf %257, %261 : vector<32x750xf32>
    %263 = vector.extract_strided_slice %11 {offsets = [0, 50], sizes = [32, 1], strides = [1, 1]} : vector<32x51xf32> to vector<32x1xf32>
    %264 = vector.extract_strided_slice %10 {offsets = [0, 50], sizes = [32, 750], strides = [1, 1]} : vector<32x800xf32> to vector<32x750xf32>
    %265 = vector.broadcast %263 : vector<32x1xf32> to vector<32x750xf32>
    %266 = arith.mulf %265, %264 : vector<32x750xf32>
    %267 = arith.addf %262, %266 : vector<32x750xf32>
    %268 = vector.extract_strided_slice %267 {offsets = [0, 0], sizes = [16, 750], strides = [1, 1]} : vector<32x750xf32> to vector<16x750xf32>
    %269 = vector.extract_strided_slice %267 {offsets = [16, 0], sizes = [16, 750], strides = [1, 1]} : vector<32x750xf32> to vector<16x750xf32>
    %c0_6 = arith.constant 0 : index
    %c0_7 = arith.constant 0 : index
    %270 = vector.load %arg3[%c0_6, %c0_7] : memref<32x1xf32, #tpu.memory_space<vmem>>, vector<32x1xf32>
    %c0_8 = arith.constant 0 : index
    %c0_9 = arith.constant 0 : index
    %271 = vector.load %arg4[%c0_8, %c0_9] : memref<32x1xf32, #tpu.memory_space<vmem>>, vector<32x1xf32>
    %272 = vector.extract_strided_slice %270 {offsets = [0, 0], sizes = [16, 1], strides = [1, 1]} : vector<32x1xf32> to vector<16x1xf32>
    %273 = vector.broadcast %272 : vector<16x1xf32> to vector<16x750xf32>
    %274 = arith.mulf %273, %268 : vector<16x750xf32>
    %275 = vector.extract_strided_slice %271 {offsets = [0, 0], sizes = [16, 1], strides = [1, 1]} : vector<32x1xf32> to vector<16x1xf32>
    %276 = vector.broadcast %275 : vector<16x1xf32> to vector<16x750xf32>
    %277 = arith.mulf %276, %269 : vector<16x750xf32>
    %278 = arith.addf %274, %277 : vector<16x750xf32>
    %279 = vector.extract_strided_slice %270 {offsets = [16, 0], sizes = [16, 1], strides = [1, 1]} : vector<32x1xf32> to vector<16x1xf32>
    %280 = vector.broadcast %279 : vector<16x1xf32> to vector<16x750xf32>
    %281 = arith.mulf %280, %268 : vector<16x750xf32>
    %282 = vector.extract_strided_slice %271 {offsets = [16, 0], sizes = [16, 1], strides = [1, 1]} : vector<32x1xf32> to vector<16x1xf32>
    %283 = vector.broadcast %282 : vector<16x1xf32> to vector<16x750xf32>
    %284 = arith.mulf %283, %269 : vector<16x750xf32>
    %285 = arith.addf %281, %284 : vector<16x750xf32>
    %286 = tpu.concatenate %278, %285 in 0 : vector<16x750xf32>, vector<16x750xf32> -> vector<32x750xf32>
    %c0_10 = arith.constant 0 : index
    %c0_11 = arith.constant 0 : index
    %287 = vector.load %arg5[%c0_10, %c0_11] : memref<32x1xf32, #tpu.memory_space<vmem>>, vector<32x1xf32>
    %288 = vector.broadcast %287 : vector<32x1xf32> to vector<32x750xf32>
    %289 = arith.addf %286, %288 : vector<32x750xf32>
    %cst_12 = arith.constant 0.000000e+00 : f32
    %290 = vector.broadcast %cst_12 : f32 to vector<32x750xf32>
    %291 = arith.cmpf ogt, %289, %290 : vector<32x750xf32>
    %cst_13 = arith.constant 0.000000e+00 : f32
    %292 = vector.broadcast %cst_13 : f32 to vector<32x750xf32>
    %293 = arith.minimumf %289, %292 : vector<32x750xf32>
    %294 = math.exp %293 : vector<32x750xf32>
    %cst_14 = arith.constant 1.000000e+00 : f32
    %295 = vector.broadcast %cst_14 : f32 to vector<32x750xf32>
    %296 = arith.subf %294, %295 : vector<32x750xf32>
    %297 = arith.select %291, %289, %296 : vector<32x750xi1>, vector<32x750xf32>
    %298 = vector.extract_strided_slice %297 {offsets = [0, 0], sizes = [32, 748], strides = [1, 1]} : vector<32x750xf32> to vector<32x748xf32>
    %299 = arith.truncf %298 : vector<32x748xf32> to vector<32x748xbf16>
    %c0_15 = arith.constant 0 : index
    %c0_16 = arith.constant 0 : index
    %300 = vector.load %arg6[%c0_15, %c0_16] : memref<748x187xbf16, #tpu.memory_space<vmem>>, vector<748x187xbf16>
    %cst_17 = arith.constant dense<0.000000e+00> : vector<32x187xf32>
    %301 = tpu.matmul %299, %300, %cst_17 {dimension_numbers = #tpu.dot_dimension_numbers<[1], [0], [0], [1], [0, 0, 1, 1], [], []>} : vector<32x748xbf16>, vector<748x187xbf16>, vector<32x187xf32> -> vector<32x187xf32>
    %cst_18 = arith.constant 0.000000e+00 : f32
    %302 = vector.broadcast %cst_18 : f32 to vector<32x7xf32>
    %303 = tpu.concatenate %302, %301, %302 in 1 : vector<32x7xf32>, vector<32x187xf32>, vector<32x7xf32> -> vector<32x201xf32>
    %304 = vector.extract_strided_slice %303 {offsets = [0, 0], sizes = [32, 187], strides = [1, 1]} : vector<32x201xf32> to vector<32x187xf32>
    %305 = vector.extract_strided_slice %303 {offsets = [0, 1], sizes = [32, 187], strides = [1, 1]} : vector<32x201xf32> to vector<32x187xf32>
    %306 = vector.extract_strided_slice %303 {offsets = [0, 2], sizes = [32, 187], strides = [1, 1]} : vector<32x201xf32> to vector<32x187xf32>
    %307 = vector.extract_strided_slice %303 {offsets = [0, 3], sizes = [32, 187], strides = [1, 1]} : vector<32x201xf32> to vector<32x187xf32>
    %308 = vector.extract_strided_slice %303 {offsets = [0, 4], sizes = [32, 187], strides = [1, 1]} : vector<32x201xf32> to vector<32x187xf32>
    %309 = vector.extract_strided_slice %303 {offsets = [0, 5], sizes = [32, 187], strides = [1, 1]} : vector<32x201xf32> to vector<32x187xf32>
    %310 = vector.extract_strided_slice %303 {offsets = [0, 6], sizes = [32, 187], strides = [1, 1]} : vector<32x201xf32> to vector<32x187xf32>
    %311 = vector.extract_strided_slice %303 {offsets = [0, 7], sizes = [32, 187], strides = [1, 1]} : vector<32x201xf32> to vector<32x187xf32>
    %312 = vector.extract_strided_slice %303 {offsets = [0, 8], sizes = [32, 187], strides = [1, 1]} : vector<32x201xf32> to vector<32x187xf32>
    %313 = vector.extract_strided_slice %303 {offsets = [0, 9], sizes = [32, 187], strides = [1, 1]} : vector<32x201xf32> to vector<32x187xf32>
    %314 = vector.extract_strided_slice %303 {offsets = [0, 10], sizes = [32, 187], strides = [1, 1]} : vector<32x201xf32> to vector<32x187xf32>
    %315 = vector.extract_strided_slice %303 {offsets = [0, 11], sizes = [32, 187], strides = [1, 1]} : vector<32x201xf32> to vector<32x187xf32>
    %316 = vector.extract_strided_slice %303 {offsets = [0, 12], sizes = [32, 187], strides = [1, 1]} : vector<32x201xf32> to vector<32x187xf32>
    %317 = vector.extract_strided_slice %303 {offsets = [0, 13], sizes = [32, 187], strides = [1, 1]} : vector<32x201xf32> to vector<32x187xf32>
    %318 = vector.extract_strided_slice %303 {offsets = [0, 14], sizes = [32, 187], strides = [1, 1]} : vector<32x201xf32> to vector<32x187xf32>
    %319 = tpu.concatenate %304, %305, %306, %307, %308, %309, %310, %311, %312, %313, %314, %315, %316, %317, %318 in 0 : vector<32x187xf32>, vector<32x187xf32>, vector<32x187xf32>, vector<32x187xf32>, vector<32x187xf32>, vector<32x187xf32>, vector<32x187xf32>, vector<32x187xf32>, vector<32x187xf32>, vector<32x187xf32>, vector<32x187xf32>, vector<32x187xf32>, vector<32x187xf32>, vector<32x187xf32>, vector<32x187xf32> -> vector<480x187xf32>
    %320 = arith.truncf %319 : vector<480x187xf32> to vector<480x187xbf16>
    %c0_19 = arith.constant 0 : index
    %c0_20 = arith.constant 0 : index
    %321 = vector.load %arg7[%c0_19, %c0_20] : memref<32x480xbf16, #tpu.memory_space<vmem>>, vector<32x480xbf16>
    %cst_21 = arith.constant dense<0.000000e+00> : vector<32x187xf32>
    %322 = tpu.matmul %321, %320, %cst_21 {dimension_numbers = #tpu.dot_dimension_numbers<[1], [0], [0], [1], [0, 0, 1, 1], [], []>} : vector<32x480xbf16>, vector<480x187xbf16>, vector<32x187xf32> -> vector<32x187xf32>
    %c0_22 = arith.constant 0 : index
    %c0_23 = arith.constant 0 : index
    %323 = vector.load %arg8[%c0_22, %c0_23] : memref<32x1xf32, #tpu.memory_space<vmem>>, vector<32x1xf32>
    %324 = vector.broadcast %323 : vector<32x1xf32> to vector<32x187xf32>
    %325 = arith.addf %322, %324 : vector<32x187xf32>
    %cst_24 = arith.constant 0.000000e+00 : f32
    %326 = vector.broadcast %cst_24 : f32 to vector<32x187xf32>
    %327 = arith.cmpf ogt, %325, %326 : vector<32x187xf32>
    %cst_25 = arith.constant 0.000000e+00 : f32
    %328 = vector.broadcast %cst_25 : f32 to vector<32x187xf32>
    %329 = arith.minimumf %325, %328 : vector<32x187xf32>
    %330 = math.exp %329 : vector<32x187xf32>
    %cst_26 = arith.constant 1.000000e+00 : f32
    %331 = vector.broadcast %cst_26 : f32 to vector<32x187xf32>
    %332 = arith.subf %330, %331 : vector<32x187xf32>
    %333 = arith.select %327, %325, %332 : vector<32x187xi1>, vector<32x187xf32>
    %334 = vector.extract_strided_slice %333 {offsets = [0, 0], sizes = [32, 184], strides = [1, 1]} : vector<32x187xf32> to vector<32x184xf32>
    %335 = arith.truncf %334 : vector<32x184xf32> to vector<32x184xbf16>
    %c0_27 = arith.constant 0 : index
    %c0_28 = arith.constant 0 : index
    %336 = vector.load %arg9[%c0_27, %c0_28] : memref<184x23xbf16, #tpu.memory_space<vmem>>, vector<184x23xbf16>
    %cst_29 = arith.constant dense<0.000000e+00> : vector<32x23xf32>
    %337 = tpu.matmul %335, %336, %cst_29 {dimension_numbers = #tpu.dot_dimension_numbers<[1], [0], [0], [1], [0, 0, 1, 1], [], []>} : vector<32x184xbf16>, vector<184x23xbf16>, vector<32x23xf32> -> vector<32x23xf32>
    %c0_30 = arith.constant 0 : index
    %c0_31 = arith.constant 0 : index
    %c0_32 = arith.constant 0 : index
    %338 = vector.load %arg10[%c0_30, %c0_31, %c0_32] : memref<2x32x23xf32, #tpu.memory_space<vmem>>, vector<1x32x23xf32>
    %339 = vector.shape_cast %338 : vector<1x32x23xf32> to vector<32x23xf32>
    %340 = arith.mulf %339, %337 : vector<32x23xf32>
    %cst_33 = arith.constant dense<0.000000e+00> : vector<32xf32>
    %341 = vector.multi_reduction <add>, %340, %cst_33 [1] : vector<32x23xf32> to vector<32xf32>
    %342 = vector.shape_cast %341 : vector<32xf32> to vector<32x1xf32>
    %c1 = arith.constant 1 : index
    %c0_34 = arith.constant 0 : index
    %c0_35 = arith.constant 0 : index
    %343 = vector.load %arg10[%c1, %c0_34, %c0_35] : memref<2x32x23xf32, #tpu.memory_space<vmem>>, vector<1x32x23xf32>
    %344 = vector.shape_cast %343 : vector<1x32x23xf32> to vector<32x23xf32>
    %345 = arith.mulf %344, %337 : vector<32x23xf32>
    %cst_36 = arith.constant dense<0.000000e+00> : vector<32xf32>
    %346 = vector.multi_reduction <add>, %345, %cst_36 [1] : vector<32x23xf32> to vector<32xf32>
    %347 = vector.shape_cast %346 : vector<32xf32> to vector<32x1xf32>
    %348 = tpu.concatenate %342, %347 in 1 : vector<32x1xf32>, vector<32x1xf32> -> vector<32x2xf32>
    %cst_37 = arith.constant dense<0.000000e+00> : vector<2xf32>
    %349 = vector.multi_reduction <add>, %348, %cst_37 [0] : vector<32x2xf32> to vector<2xf32>
    %350 = vector.shape_cast %349 : vector<2xf32> to vector<1x2xf32>
    %c0_38 = arith.constant 0 : index
    %c0_39 = arith.constant 0 : index
    %351 = vector.load %arg11[%c0_38, %c0_39] : memref<1x2xf32, #tpu.memory_space<vmem>>, vector<1x2xf32>
    %352 = arith.addf %350, %351 : vector<1x2xf32>
    %c0_40 = arith.constant 0 : index
    %c0_41 = arith.constant 0 : index
    %c0_42 = arith.constant 0 : index
    %353 = vector.load %arg12[%c0_40, %c0_41, %c0_42] : memref<1x1x2xf32, #tpu.memory_space<vmem>>, vector<1x1x2xf32>
    %354 = vector.shape_cast %353 : vector<1x1x2xf32> to vector<1x2xf32>
    %355 = vector.shape_cast %352 : vector<1x2xf32> to vector<1x1x2xf32>
    tpu.vector_store %arg12[%c0_40, %c0_41, %c0_42], %355 {strides = array<i32>} : memref<1x1x2xf32, #tpu.memory_space<vmem>>, vector<1x1x2xf32>,
    return
  }
  func.func @transform_0(%arg0: i32) -> (i32, i32, i32, i32) {
    %c0_i32 = arith.constant 0 : i32
    %c0_i32_0 = arith.constant 0 : i32
    %c0_i32_1 = arith.constant 0 : i32
    %c0_i32_2 = arith.constant 0 : i32
    return %arg0, %c0_i32, %c0_i32_0, %c0_i32_1 : i32, i32, i32, i32
  }
  func.func @transform_1(%arg0: i32) -> (i32, i32) {
    %c0_i32 = arith.constant 0 : i32
    %c0_i32_0 = arith.constant 0 : i32
    %c0_i32_1 = arith.constant 0 : i32
    return %c0_i32, %c0_i32_0 : i32, i32
  }
  func.func @transform_2(%arg0: i32) -> (i32, i32) {
    %c0_i32 = arith.constant 0 : i32
    %c0_i32_0 = arith.constant 0 : i32
    %c0_i32_1 = arith.constant 0 : i32
    return %c0_i32, %c0_i32_0 : i32, i32
  }
  func.func @transform_3(%arg0: i32) -> (i32, i32) {
    %c0_i32 = arith.constant 0 : i32
    %c0_i32_0 = arith.constant 0 : i32
    %c0_i32_1 = arith.constant 0 : i32
    return %c0_i32, %c0_i32_0 : i32, i32
  }
  func.func @transform_4(%arg0: i32) -> (i32, i32) {
    %c0_i32 = arith.constant 0 : i32
    %c0_i32_0 = arith.constant 0 : i32
    %c0_i32_1 = arith.constant 0 : i32
    return %c0_i32, %c0_i32_0 : i32, i32
  }
  func.func @transform_5(%arg0: i32) -> (i32, i32) {
    %c0_i32 = arith.constant 0 : i32
    %c0_i32_0 = arith.constant 0 : i32
    %c0_i32_1 = arith.constant 0 : i32
    return %c0_i32, %c0_i32_0 : i32, i32
  }
  func.func @transform_6(%arg0: i32) -> (i32, i32) {
    %c0_i32 = arith.constant 0 : i32
    %c0_i32_0 = arith.constant 0 : i32
    %c0_i32_1 = arith.constant 0 : i32
    return %c0_i32, %c0_i32_0 : i32, i32
  }
  func.func @transform_7(%arg0: i32) -> (i32, i32) {
    %c0_i32 = arith.constant 0 : i32
    %c0_i32_0 = arith.constant 0 : i32
    %c0_i32_1 = arith.constant 0 : i32
    return %c0_i32, %c0_i32_0 : i32, i32
  }
  func.func @transform_8(%arg0: i32) -> (i32, i32) {
    %c0_i32 = arith.constant 0 : i32
    %c0_i32_0 = arith.constant 0 : i32
    %c0_i32_1 = arith.constant 0 : i32
    return %c0_i32, %c0_i32_0 : i32, i32
  }
  func.func @transform_9(%arg0: i32) -> (i32, i32, i32) {
    %c0_i32 = arith.constant 0 : i32
    %c0_i32_0 = arith.constant 0 : i32
    %c0_i32_1 = arith.constant 0 : i32
    %c0_i32_2 = arith.constant 0 : i32
    return %c0_i32, %c0_i32_0, %c0_i32_1 : i32, i32, i32
  }
  func.func @transform_10(%arg0: i32) -> (i32, i32) {
    %c0_i32 = arith.constant 0 : i32
    %c0_i32_0 = arith.constant 0 : i32
    %c0_i32_1 = arith.constant 0 : i32
    return %c0_i32, %c0_i32_0 : i32, i32
  }
  func.func @transform_11(%arg0: i32) -> (i32, i32, i32) {
    %c0_i32 = arith.constant 0 : i32
    %c0_i32_0 = arith.constant 0 : i32
    %c0_i32_1 = arith.constant 0 : i32
    return %arg0, %c0_i32, %c0_i32_0 : i32, i32, i32
  }
}

</mosaic_0001>

<llo_original>
// kernel: eggnet_forward.1
$region0: #{eggnet_forward.1}
  #allocation0 [shape = 'u32[]', space=smem, size = 0x4, offset = 0x4, fixed_abs, tag = 'smem constant byte address 0x4 - core index']
  #allocation1 [shape = 'u32[72,128]{1,0:T(1,128)}', space=vmem, size = 0x9000, scoped, tag = 'internal scratch']
  %s0 = inlined_call_operand.vmem [shape: f32[2,1,2,750], index: 0, kind: input, shape index: {}]
  %s1 = inlined_call_operand.vmem [shape: f32[32,51], index: 1, kind: input, shape index: {}]
  %s2 = inlined_call_operand.vmem [shape: f32[32,1], index: 2, kind: input, shape index: {}]
  %s3 = inlined_call_operand.vmem [shape: f32[32,1], index: 3, kind: input, shape index: {}]
  %s4 = inlined_call_operand.vmem [shape: f32[32,1], index: 4, kind: input, shape index: {}]
  %s5 = inlined_call_operand.vmem [shape: bf16[748,187], index: 5, kind: input, shape index: {}]
  %s6 = inlined_call_operand.vmem [shape: bf16[32,480], index: 6, kind: input, shape index: {}]
  %s7 = inlined_call_operand.vmem [shape: f32[32,1], index: 7, kind: input, shape index: {}]
  %s8 = inlined_call_operand.vmem [shape: bf16[184,23], index: 8, kind: input, shape index: {}]
  %s9 = inlined_call_operand.vmem [shape: f32[2,32,23], index: 9, kind: input, shape index: {}]
  %s10 = inlined_call_operand.vmem [shape: f32[1,2], index: 10, kind: input, shape index: {}]
  %s11 = inlined_call_operand.hbm [shape: f32[2,1,2], index: 11, kind: output, shape index: {}]
  %s12 = sld [smem:[#allocation0]]
  $region77: #{eggnet_forward.1} parent=0
    _
  %s14 = ssub.s32 1, %s12
  %s15 = scalar_select 0, %s14, %s12
  $region1: #{eggnet_forward.1} parent=0
    #allocation2 [shape = 'u8[1024]{0}', space=vmem, size = 0x400, scoped, tag = 'output window, operand 0']
    #allocation3 [shape = 's32[2]{0}', space=sflag, size = 0x8, scoped, tag = 'scoped memory for eggnet_forward.1']
    %16 = vsyncpa [#allocation3], 0
    %s17 = scalar_lea.sflag [#allocation3], 1
    %18 = vsyncpa %s17, 0
    loop: start=0, step=1, limit=4
    $region2: #{eggnet_forward.1} parent=1 // loop_pre_header
      _
    $region3: #{eggnet_forward.1} parent=1 // loop_header
      %s20 = sphi 0, %s24
      %p21 = scmp.ge.s32.totalorder %s20, 4
      %s30 = sphi 0, %s32
      %s33 = sphi 0, %s30
      %s34 = sphi 0, %s33
      %s50 = sphi 0, %s34
      %s54 = sphi 0, %s54
      %s56 = sphi 0, %s54
      %s57 = sphi 0, %s56
      %s71 = sphi 0, %s57
      %s75 = sphi 0, %s75
      %s77 = sphi 0, %s75
      %s78 = sphi 0, %s77
      %s92 = sphi 0, %s78
      %s96 = sphi 0, %s96
      %s98 = sphi 0, %s96
      %s99 = sphi 0, %s98
      %s113 = sphi 0, %s99
      %s117 = sphi 0, %s117
      %s119 = sphi 0, %s117
      %s120 = sphi 0, %s119
      %s134 = sphi 0, %s120
      %s138 = sphi 0, %s138
      %s140 = sphi 0, %s138
      %s141 = sphi 0, %s140
      %s155 = sphi 0, %s141
      %s159 = sphi 0, %s159
      %s161 = sphi 0, %s159
      %s162 = sphi 0, %s161
      %s176 = sphi 0, %s162
      %s180 = sphi 0, %s180
      %s182 = sphi 0, %s180
      %s183 = sphi 0, %s182
      %s197 = sphi 0, %s183
      %s201 = sphi 0, %s201
      %s203 = sphi 0, %s201
      %s204 = sphi 0, %s203
      %s218 = sphi 0, %s204
      %s222 = sphi 0, %s222
      %s224 = sphi 0, %s222
      %s225 = sphi 0, %s224
      %s239 = sphi 0, %s225
      %s243 = sphi 0, %s243
      %s245 = sphi 0, %s243
      %s246 = sphi 0, %s245
      %s260 = sphi 0, %s246
      %s266 = sphi 0, %s268
      %s269 = sphi 0, %s266
      %s270 = sphi 0, %s269
      %s286 = sphi 0, %s270
    $region4: #{eggnet_forward.1} parent=1 // loop_header_branch
      %23 = sbr.rel (%p21) target = $region8
    $region5: #{eggnet_forward.1} parent=1 // loop_body
      %s25 = ssub.s32 %s20, 1
      %s26 = ssub.s32 %s20, 2
      %s27 = sadd.s32 %s20, 1
      %s28 = ssub.s32 %s20, %s27
      %p29 = scmp.eq.s32.totalorder %s28, 0
      %s31 = sadd.s32 %s30, 1
      %s32 = scalar_select %p29, %s30, %s31
      %p35 = pneg %p29
      %p36 = scmp.eq.s32.totalorder %s20, 1
      %p37 = por %p35, %p36
      %p38 = scmp.ne.s32.totalorder %s30, %s33
      %p39 = scmp.eq.s32.totalorder %s20, 0
      %p40 = por %p38, %p39
      %p41 = scmp.ne.s32.totalorder %s30, %s33
      %p42 = scmp.eq.s32.totalorder %s25, 1
      %p43 = por %p41, %p42
      %p44 = scmp.ne.s32.totalorder %s33, %s34
      %p45 = scmp.eq.s32.totalorder %s25, 0
      %p46 = por %p44, %p45
      %p47 = scmp.ne.s32.totalorder %s33, %s34
      %p48 = scmp.eq.s32.totalorder %s26, 1
      %p49 = por %p47, %p48
      %p51 = scmp.ne.s32.totalorder %s34, %s50
      %p52 = scmp.eq.s32.totalorder %s26, 0
      %p53 = por %p51, %p52
      %s55 = sadd.s32 %s54, 1
      %p58 = scmp.eq.s32.totalorder %s20, 1
      %p59 = scmp.ne.s32.totalorder %s54, %s56
      %p60 = scmp.eq.s32.totalorder %s20, 0
      %p61 = por %p59, %p60
      %p62 = scmp.ne.s32.totalorder %s54, %s56
      %p63 = scmp.eq.s32.totalorder %s25, 1
      %p64 = por %p62, %p63
      %p65 = scmp.ne.s32.totalorder %s56, %s57
      %p66 = scmp.eq.s32.totalorder %s25, 0
      %p67 = por %p65, %p66
      %p68 = scmp.ne.s32.totalorder %s56, %s57
      %p69 = scmp.eq.s32.totalorder %s26, 1
      %p70 = por %p68, %p69
      %p72 = scmp.ne.s32.totalorder %s57, %s71
      %p73 = scmp.eq.s32.totalorder %s26, 0
      %p74 = por %p72, %p73
      %s76 = sadd.s32 %s75, 1
      %p79 = scmp.eq.s32.totalorder %s20, 1
      %p80 = scmp.ne.s32.totalorder %s75, %s77
      %p81 = scmp.eq.s32.totalorder %s20, 0
      %p82 = por %p80, %p81
      %p83 = scmp.ne.s32.totalorder %s75, %s77
      %p84 = scmp.eq.s32.totalorder %s25, 1
      %p85 = por %p83, %p84
      %p86 = scmp.ne.s32.totalorder %s77, %s78
      %p87 = scmp.eq.s32.totalorder %s25, 0
      %p88 = por %p86, %p87
      %p89 = scmp.ne.s32.totalorder %s77, %s78
      %p90 = scmp.eq.s32.totalorder %s26, 1
      %p91 = por %p89, %p90
      %p93 = scmp.ne.s32.totalorder %s78, %s92
      %p94 = scmp.eq.s32.totalorder %s26, 0
      %p95 = por %p93, %p94
      %s97 = sadd.s32 %s96, 1
      %p100 = scmp.eq.s32.totalorder %s20, 1
      %p101 = scmp.ne.s32.totalorder %s96, %s98
      %p102 = scmp.eq.s32.totalorder %s20, 0
      %p103 = por %p101, %p102
      %p104 = scmp.ne.s32.totalorder %s96, %s98
      %p105 = scmp.eq.s32.totalorder %s25, 1
      %p106 = por %p104, %p105
      %p107 = scmp.ne.s32.totalorder %s98, %s99
      %p108 = scmp.eq.s32.totalorder %s25, 0
      %p109 = por %p107, %p108
      %p110 = scmp.ne.s32.totalorder %s98, %s99
      %p111 = scmp.eq.s32.totalorder %s26, 1
      %p112 = por %p110, %p111
      %p114 = scmp.ne.s32.totalorder %s99, %s113
      %p115 = scmp.eq.s32.totalorder %s26, 0
      %p116 = por %p114, %p115
      %s118 = sadd.s32 %s117, 1
      %p121 = scmp.eq.s32.totalorder %s20, 1
      %p122 = scmp.ne.s32.totalorder %s117, %s119
      %p123 = scmp.eq.s32.totalorder %s20, 0
      %p124 = por %p122, %p123
      %p125 = scmp.ne.s32.totalorder %s117, %s119
      %p126 = scmp.eq.s32.totalorder %s25, 1
      %p127 = por %p125, %p126
      %p128 = scmp.ne.s32.totalorder %s119, %s120
      %p129 = scmp.eq.s32.totalorder %s25, 0
      %p130 = por %p128, %p129
      %p131 = scmp.ne.s32.totalorder %s119, %s120
      %p132 = scmp.eq.s32.totalorder %s26, 1
      %p133 = por %p131, %p132
      %p135 = scmp.ne.s32.totalorder %s120, %s134
      %p136 = scmp.eq.s32.totalorder %s26, 0
      %p137 = por %p135, %p136
      %s139 = sadd.s32 %s138, 1
      %p142 = scmp.eq.s32.totalorder %s20, 1
      %p143 = scmp.ne.s32.totalorder %s138, %s140
      %p144 = scmp.eq.s32.totalorder %s20, 0
      %p145 = por %p143, %p144
      %p146 = scmp.ne.s32.totalorder %s138, %s140
      %p147 = scmp.eq.s32.totalorder %s25, 1
      %p148 = por %p146, %p147
      %p149 = scmp.ne.s32.totalorder %s140, %s141
      %p150 = scmp.eq.s32.totalorder %s25, 0
      %p151 = por %p149, %p150
      %p152 = scmp.ne.s32.totalorder %s140, %s141
      %p153 = scmp.eq.s32.totalorder %s26, 1
      %p154 = por %p152, %p153
      %p156 = scmp.ne.s32.totalorder %s141, %s155
      %p157 = scmp.eq.s32.totalorder %s26, 0
      %p158 = por %p156, %p157
      %s160 = sadd.s32 %s159, 1
      %p163 = scmp.eq.s32.totalorder %s20, 1
      %p164 = scmp.ne.s32.totalorder %s159, %s161
      %p165 = scmp.eq.s32.totalorder %s20, 0
      %p166 = por %p164, %p165
      %p167 = scmp.ne.s32.totalorder %s159, %s161
      %p168 = scmp.eq.s32.totalorder %s25, 1
      %p169 = por %p167, %p168
      %p170 = scmp.ne.s32.totalorder %s161, %s162
      %p171 = scmp.eq.s32.totalorder %s25, 0
      %p172 = por %p170, %p171
      %p173 = scmp.ne.s32.totalorder %s161, %s162
      %p174 = scmp.eq.s32.totalorder %s26, 1
      %p175 = por %p173, %p174
      %p177 = scmp.ne.s32.totalorder %s162, %s176
      %p178 = scmp.eq.s32.totalorder %s26, 0
      %p179 = por %p177, %p178
      %s181 = sadd.s32 %s180, 1
      %p184 = scmp.eq.s32.totalorder %s20, 1
      %p185 = scmp.ne.s32.totalorder %s180, %s182
      %p186 = scmp.eq.s32.totalorder %s20, 0
      %p187 = por %p185, %p186
      %p188 = scmp.ne.s32.totalorder %s180, %s182
      %p189 = scmp.eq.s32.totalorder %s25, 1
      %p190 = por %p188, %p189
      %p191 = scmp.ne.s32.totalorder %s182, %s183
      %p192 = scmp.eq.s32.totalorder %s25, 0
      %p193 = por %p191, %p192
      %p194 = scmp.ne.s32.totalorder %s182, %s183
      %p195 = scmp.eq.s32.totalorder %s26, 1
      %p196 = por %p194, %p195
      %p198 = scmp.ne.s32.totalorder %s183, %s197
      %p199 = scmp.eq.s32.totalorder %s26, 0
      %p200 = por %p198, %p199
      %s202 = sadd.s32 %s201, 1
      %p205 = scmp.eq.s32.totalorder %s20, 1
      %p206 = scmp.ne.s32.totalorder %s201, %s203
      %p207 = scmp.eq.s32.totalorder %s20, 0
      %p208 = por %p206, %p207
      %p209 = scmp.ne.s32.totalorder %s201, %s203
      %p210 = scmp.eq.s32.totalorder %s25, 1
      %p211 = por %p209, %p210
      %p212 = scmp.ne.s32.totalorder %s203, %s204
      %p213 = scmp.eq.s32.totalorder %s25, 0
      %p214 = por %p212, %p213
      %p215 = scmp.ne.s32.totalorder %s203, %s204
      %p216 = scmp.eq.s32.totalorder %s26, 1
      %p217 = por %p215, %p216
      %p219 = scmp.ne.s32.totalorder %s204, %s218
      %p220 = scmp.eq.s32.totalorder %s26, 0
      %p221 = por %p219, %p220
      %s223 = sadd.s32 %s222, 1
      %p226 = scmp.eq.s32.totalorder %s20, 1
      %p227 = scmp.ne.s32.totalorder %s222, %s224
      %p228 = scmp.eq.s32.totalorder %s20, 0
      %p229 = por %p227, %p228
      %p230 = scmp.ne.s32.totalorder %s222, %s224
      %p231 = scmp.eq.s32.totalorder %s25, 1
      %p232 = por %p230, %p231
      %p233 = scmp.ne.s32.totalorder %s224, %s225
      %p234 = scmp.eq.s32.totalorder %s25, 0
      %p235 = por %p233, %p234
      %p236 = scmp.ne.s32.totalorder %s224, %s225
      %p237 = scmp.eq.s32.totalorder %s26, 1
      %p238 = por %p236, %p237
      %p240 = scmp.ne.s32.totalorder %s225, %s239
      %p241 = scmp.eq.s32.totalorder %s26, 0
      %p242 = por %p240, %p241
      %s244 = sadd.s32 %s243, 1
      %p247 = scmp.eq.s32.totalorder %s20, 1
      %p248 = scmp.ne.s32.totalorder %s243, %s245
      %p249 = scmp.eq.s32.totalorder %s20, 0
      %p250 = por %p248, %p249
      %p251 = scmp.ne.s32.totalorder %s243, %s245
      %p252 = scmp.eq.s32.totalorder %s25, 1
      %p253 = por %p251, %p252
      %p254 = scmp.ne.s32.totalorder %s245, %s246
      %p255 = scmp.eq.s32.totalorder %s25, 0
      %p256 = por %p254, %p255
      %p257 = scmp.ne.s32.totalorder %s245, %s246
      %p258 = scmp.eq.s32.totalorder %s26, 1
      %p259 = por %p257, %p258
      %p261 = scmp.ne.s32.totalorder %s246, %s260
      %p262 = scmp.eq.s32.totalorder %s26, 0
      %p263 = por %p261, %p262
      %s264 = ssub.s32 %s20, %s27
      %p265 = scmp.eq.s32.totalorder %s264, 0
      %s267 = sadd.s32 %s266, 1
      %s268 = scalar_select %p265, %s266, %s267
      %p271 = pneg %p265
      %p272 = scmp.eq.s32.totalorder %s20, 1
      %p273 = por %p271, %p272
      %p274 = scmp.ne.s32.totalorder %s266, %s269
      %p275 = scmp.eq.s32.totalorder %s20, 0
      %p276 = por %p274, %p275
      %p277 = scmp.ne.s32.totalorder %s266, %s269
      %p278 = scmp.eq.s32.totalorder %s25, 1
      %p279 = por %p277, %p278
      %p280 = scmp.ne.s32.totalorder %s269, %s270
      %p281 = scmp.eq.s32.totalorder %s25, 0
      %p282 = por %p280, %p281
      %p283 = scmp.ne.s32.totalorder %s269, %s270
      %p284 = scmp.eq.s32.totalorder %s26, 1
      %p285 = por %p283, %p284
      %p287 = scmp.ne.s32.totalorder %s270, %s286
      %p288 = scmp.eq.s32.totalorder %s26, 0
      %p289 = por %p287, %p288
      %p290 = scmp.le.s32.totalorder 1, %s20
      %p291 = scmp.lt.s32.totalorder %s20, 3
      %p292 = pnand %p290, %p291
      %p293 = pneg %p292
      // Predicated region
      $region9: #{eggnet_forward.1} parent=5 // pred_check
        _
      $region10: #{eggnet_forward.1} parent=5 // pred_check_branch
        %295 = sbr.rel (%p292) target = $region12
      $region11: #{eggnet_forward.1} parent=5 // pred_region
        %s296 = ssub.s32 %s20, 1
        // Predicated region
        $region13: #{eggnet_forward.1} parent=11 // pred_check
          %p297 = pneg %p67
        $region14: #{eggnet_forward.1} parent=11 // pred_check_branch
          %299 = sbr.rel (%p297) target = $region16
        $region15: #{eggnet_forward.1} parent=11 // pred_region
          _
        $region16: #{eggnet_forward.1} parent=11 // pred_fallthru
          _
        // Predicated region
        $region17: #{eggnet_forward.1} parent=11 // pred_check
          %p300 = pneg %p88
        $region18: #{eggnet_forward.1} parent=11 // pred_check_branch
          %302 = sbr.rel (%p300) target = $region20
        $region19: #{eggnet_forward.1} parent=11 // pred_region
          _
        $region20: #{eggnet_forward.1} parent=11 // pred_fallthru
          _
        // Predicated region
        $region21: #{eggnet_forward.1} parent=11 // pred_check
          %p303 = pneg %p109
        $region22: #{eggnet_forward.1} parent=11 // pred_check_branch
          %305 = sbr.rel (%p303) target = $region24
        $region23: #{eggnet_forward.1} parent=11 // pred_region
          _
        $region24: #{eggnet_forward.1} parent=11 // pred_fallthru
          _
        // Predicated region
        $region25: #{eggnet_forward.1} parent=11 // pred_check
          %p306 = pneg %p130
        $region26: #{eggnet_forward.1} parent=11 // pred_check_branch
          %308 = sbr.rel (%p306) target = $region28
        $region27: #{eggnet_forward.1} parent=11 // pred_region
          _
        $region28: #{eggnet_forward.1} parent=11 // pred_fallthru
          _
        // Predicated region
        $region29: #{eggnet_forward.1} parent=11 // pred_check
          %p309 = pneg %p151
        $region30: #{eggnet_forward.1} parent=11 // pred_check_branch
          %311 = sbr.rel (%p309) target = $region32
        $region31: #{eggnet_forward.1} parent=11 // pred_region
          _
        $region32: #{eggnet_forward.1} parent=11 // pred_fallthru
          _
        // Predicated region
        $region33: #{eggnet_forward.1} parent=11 // pred_check
          %p312 = pneg %p172
        $region34: #{eggnet_forward.1} parent=11 // pred_check_branch
          %314 = sbr.rel (%p312) target = $region36
        $region35: #{eggnet_forward.1} parent=11 // pred_region
          _
        $region36: #{eggnet_forward.1} parent=11 // pred_fallthru
          _
        // Predicated region
        $region37: #{eggnet_forward.1} parent=11 // pred_check
          %p315 = pneg %p193
        $region38: #{eggnet_forward.1} parent=11 // pred_check_branch
          %317 = sbr.rel (%p315) target = $region40
        $region39: #{eggnet_forward.1} parent=11 // pred_region
          _
        $region40: #{eggnet_forward.1} parent=11 // pred_fallthru
          _
        // Predicated region
        $region41: #{eggnet_forward.1} parent=11 // pred_check
          %p318 = pneg %p214
        $region42: #{eggnet_forward.1} parent=11 // pred_check_branch
          %320 = sbr.rel (%p318) target = $region44
        $region43: #{eggnet_forward.1} parent=11 // pred_region
          _
        $region44: #{eggnet_forward.1} parent=11 // pred_fallthru
          _
        // Predicated region
        $region45: #{eggnet_forward.1} parent=11 // pred_check
          %p321 = pneg %p235
        $region46: #{eggnet_forward.1} parent=11 // pred_check_branch
          %323 = sbr.rel (%p321) target = $region48
        $region47: #{eggnet_forward.1} parent=11 // pred_region
          _
        $region48: #{eggnet_forward.1} parent=11 // pred_fallthru
          _
        // Predicated region
        $region49: #{eggnet_forward.1} parent=11 // pred_check
          %p324 = pneg %p256
        $region50: #{eggnet_forward.1} parent=11 // pred_check_branch
          %326 = sbr.rel (%p324) target = $region52
        $region51: #{eggnet_forward.1} parent=11 // pred_region
          _
        $region52: #{eggnet_forward.1} parent=11 // pred_fallthru
          _
      $region12: #{eggnet_forward.1} parent=5 // pred_fallthru
        _
      %p327 = scmp.lt.s32.totalorder %s20, 2
      // Predicated region
      $region53: #{eggnet_forward.1} parent=5 // pred_check
        %p328 = pneg %p327
      $region54: #{eggnet_forward.1} parent=5 // pred_check_branch
        %330 = sbr.rel (%p328) target = $region56
      $region55: #{eggnet_forward.1} parent=5 // pred_region
        // Predicated region
        $region57: #{eggnet_forward.1} parent=55 // pred_check
          %p331 = pneg %p40
        $region58: #{eggnet_forward.1} parent=55 // pred_check_branch
          %333 = sbr.rel (%p331) target = $region60
        $region59: #{eggnet_forward.1} parent=55 // pred_region
          %p334 = scmp.lt.s32.totalorder %s20, 1
          %s335 = scalar_select %p334, %s20, 1
          %s336 = smul.addr %s335, 6
          %s337 = smul.addr %s336, 2
          %s338 = scalar_lea.vmem %s0, %s337
        $region60: #{eggnet_forward.1} parent=55 // pred_fallthru
          _
      $region56: #{eggnet_forward.1} parent=5 // pred_fallthru
        _
      %p339 = scmp.le.s32.totalorder 1, %s20
      %p340 = scmp.lt.s32.totalorder %s20, 3
      %p341 = pnand %p339, %p340
      %p342 = pneg %p341
      // Predicated region
      $region61: #{eggnet_forward.1} parent=5 // pred_check
        _
      $region62: #{eggnet_forward.1} parent=5 // pred_check_branch
        %344 = sbr.rel (%p341) target = $region64
      $region63: #{eggnet_forward.1} parent=5 // pred_region
        %s345 = ssub.s32 %s20, 1
        %p346 = scmp.lt.s32.totalorder %s25, 1
        %s347 = scalar_select %p346, %s25, 1
        %s348 = smul.addr %s347, 6
        %s349 = smul.addr %s348, 2
        %s350 = scalar_lea.vmem %s0, %s349
        %p351 = pneg %p46
        %p352 = pneg %p43
        %p353 = pneg %p67
        %p354 = pneg %p64
        %p355 = pneg %p88
        %p356 = pneg %p85
        %p357 = pneg %p109
        %p358 = pneg %p106
        %p359 = pneg %p130
        %p360 = pneg %p127
        %p361 = pneg %p151
        %p362 = pneg %p148
        %p363 = pneg %p172
        %p364 = pneg %p169
        %p365 = pneg %p193
        %p366 = pneg %p190
        %p367 = pneg %p214
        %p368 = pneg %p211
        %p369 = pneg %p235
        %p370 = pneg %p232
        %p371 = pneg %p256
        %p372 = pneg %p253
        %p373 = pneg %p282
        %p374 = pneg %p279
        %s375 = sand.u32 %s269, 1
        %s376 = scalar_lea.sflag [#allocation3], %s375
        %s377 = sand.u32 %s269, 1
        %s378 = scalar_lea.vmem [#allocation2], %s377
        %p379 = scmp.lt.s32.totalorder %s25, 1
        %s380 = scalar_select %p379, %s25, 1
        %s381 = smul.addr %s380, 6
        %s382 = smul.addr %s381, 2
        %s383 = scalar_lea.vmem %s0, %s382
        %v385 = vld [vmem:[%s383] sm:$0xff]
        %v386 = vld [vmem:[%s383 + $0x8] sm:$0xf]
        %389 = vst [vmem:[#allocation1] ss:$4 sm:$0xff] %v385
        %s390 = scalar_lea.vmem [#allocation1], 32
        %391 = vst [vmem:[%s390] ss:$4 sm:$0xff] %v386
        %v392 = vld.sshfl [vmem:[#allocation1] sm:$0xff pattern:$0x73625140]
        %v393 = vld.sshfl [vmem:[#allocation1 + $0x8] sm:$0xff pattern:$0x73625140]
        %v394 = vld.sshfl [vmem:[#allocation1 + $0x10] sm:$0xff pattern:$0x73625140]
        %v395 = vld.sshfl [vmem:[#allocation1 + $0x18] sm:$0xff pattern:$0x73625140]
        %v396 = vld.sshfl [vmem:[#allocation1 + $0x20] sm:$0xff pattern:$0x73625140]
        %v397 = vld.sshfl [vmem:[#allocation1 + $0x28] sm:$0xff pattern:$0x73625140]
        %398 = vrot.lane.b32.xlu0 %v392, 25
        %v399 = vpop.permute.xlu0 %398
        %400 = vrot.lane.b32.xlu0 %v393, 25
        %v401 = vpop.permute.xlu0 %400
        %402 = vrot.lane.b32.xlu0 %v394, 25
        %v403 = vpop.permute.xlu0 %402
        %404 = vrot.lane.b32.xlu0 %v395, 25
        %v405 = vpop.permute.xlu0 %404
        %406 = vrot.lane.b32.xlu0 %v396, 25
        %v407 = vpop.permute.xlu0 %406
        %408 = vrot.lane.b32.xlu0 %v397, 25
        %v409 = vpop.permute.xlu0 %408
        %vm410 = vcmask 203776
        %v411 = vsel %vm410, %v399, %v401
        %v412 = vsel %vm410, %v401, %v403
        %v413 = vsel %vm410, %v403, %v405
        %v414 = vsel %vm410, %v405, %v407
        %v415 = vsel %vm410, %v407, %v409
        %v423 = vsel %vm410, 0.0, %v399
        %vm424 = vcmask 56320
        %v425 = vsel %vm424, %v409, 0.0
        %v426 = vperm.slane %v423, 0
        %v427 = vperm.slane %v411, 0
        %v428 = vperm.slane %v412, 0
        %v429 = vperm.slane %v413, 0
        %v430 = vperm.slane %v414, 0
        %v431 = vperm.slane %v415, 0
        %v432 = vperm.slane %v425, 0
        %v433 = vperm.slane %v423, 1
        %v434 = vperm.slane %v411, 1
        %v435 = vperm.slane %v412, 1
        %v436 = vperm.slane %v413, 1
        %v437 = vperm.slane %v414, 1
        %v438 = vperm.slane %v415, 1
        %v439 = vperm.slane %v425, 1
        %v440 = vld [vmem:[%s1] sm:$0xff]
        %v441 = vld [vmem:[%s1 + $0x8] sm:$0xff]
        %v442 = vld [vmem:[%s1 + $0x10] sm:$0xff]
        %v443 = vld [vmem:[%s1 + $0x18] sm:$0xff]
        %445 = vset.pattern.permute.xlu0 0
        %446 = vperm.xlu0 %445, %v440
        %v447 = vpop.permute.xlu0 %446
        %450 = vset.pattern.permute.xlu0 0
        %451 = vperm.xlu0 %450, %v441
        %v452 = vpop.permute.xlu0 %451
        %455 = vset.pattern.permute.xlu0 0
        %456 = vperm.xlu0 %455, %v442
        %v457 = vpop.permute.xlu0 %456
        %460 = vset.pattern.permute.xlu0 0
        %461 = vperm.xlu0 %460, %v443
        %v462 = vpop.permute.xlu0 %461
        %v464 = vmul.f32 %v447, %v426
        %v465 = vmul.f32 %v447, %v427
        %v466 = vmul.f32 %v447, %v428
        %v467 = vmul.f32 %v447, %v429
        %v468 = vmul.f32 %v447, %v430
        %v469 = vmul.f32 %v447, %v431
        %v470 = vmul.f32 %v452, %v426
        %v471 = vmul.f32 %v452, %v427
        %v472 = vmul.f32 %v452, %v428
        %v473 = vmul.f32 %v452, %v429
        %v474 = vmul.f32 %v452, %v430
        %v475 = vmul.f32 %v452, %v431
        %v476 = vmul.f32 %v457, %v433
        %v477 = vmul.f32 %v457, %v434
        %v478 = vmul.f32 %v457, %v435
        %v479 = vmul.f32 %v457, %v436
        %v480 = vmul.f32 %v457, %v437
        %v481 = vmul.f32 %v457, %v438
        %v482 = vmul.f32 %v462, %v433
        %v483 = vmul.f32 %v462, %v434
        %v484 = vmul.f32 %v462, %v435
        %v485 = vmul.f32 %v462, %v436
        %v486 = vmul.f32 %v462, %v437
        %v487 = vmul.f32 %v462, %v438
        %v488 = vadd.f32 %v464, 0.0
        %v489 = vadd.f32 %v465, 0.0
        %v490 = vadd.f32 %v466, 0.0
        %v491 = vadd.f32 %v467, 0.0
        %v492 = vadd.f32 %v468, 0.0
        %v493 = vadd.f32 %v469, 0.0
        %v494 = vadd.f32 %v470, 0.0
        %v495 = vadd.f32 %v471, 0.0
        %v496 = vadd.f32 %v472, 0.0
        %v497 = vadd.f32 %v473, 0.0
        %v498 = vadd.f32 %v474, 0.0
        %v499 = vadd.f32 %v475, 0.0
        %v500 = vadd.f32 %v476, 0.0
        %v501 = vadd.f32 %v477, 0.0
        %v502 = vadd.f32 %v478, 0.0
        %v503 = vadd.f32 %v479, 0.0
        %v504 = vadd.f32 %v480, 0.0
        %v505 = vadd.f32 %v481, 0.0
        %v506 = vadd.f32 %v482, 0.0
        %v507 = vadd.f32 %v483, 0.0
        %v508 = vadd.f32 %v484, 0.0
        %v509 = vadd.f32 %v485, 0.0
        %v510 = vadd.f32 %v486, 0.0
        %v511 = vadd.f32 %v487, 0.0
        %512 = vset.pattern.permute.xlu0 1
        %513 = vperm.xlu0 %512, %v440
        %v514 = vpop.permute.xlu0 %513
        %516 = vset.pattern.permute.xlu0 1
        %517 = vperm.xlu0 %516, %v441
        %v518 = vpop.permute.xlu0 %517
        %520 = vset.pattern.permute.xlu0 1
        %521 = vperm.xlu0 %520, %v442
        %v522 = vpop.permute.xlu0 %521
        %524 = vset.pattern.permute.xlu0 1
        %525 = vperm.xlu0 %524, %v443
        %v526 = vpop.permute.xlu0 %525
        %v528 = vmul.f32 %v514, %v426
        %v529 = vmul.f32 %v514, %v427
        %v530 = vmul.f32 %v514, %v428
        %v531 = vmul.f32 %v514, %v429
        %v532 = vmul.f32 %v514, %v430
        %v533 = vmul.f32 %v514, %v431
        %v534 = vmul.f32 %v518, %v426
        %v535 = vmul.f32 %v518, %v427
        %v536 = vmul.f32 %v518, %v428
        %v537 = vmul.f32 %v518, %v429
        %v538 = vmul.f32 %v518, %v430
        %v539 = vmul.f32 %v518, %v431
        %v540 = vmul.f32 %v522, %v433
        %v541 = vmul.f32 %v522, %v434
        %v542 = vmul.f32 %v522, %v435
        %v543 = vmul.f32 %v522, %v436
        %v544 = vmul.f32 %v522, %v437
        %v545 = vmul.f32 %v522, %v438
        %v546 = vmul.f32 %v526, %v433
        %v547 = vmul.f32 %v526, %v434
        %v548 = vmul.f32 %v526, %v435
        %v549 = vmul.f32 %v526, %v436
        %v550 = vmul.f32 %v526, %v437
        %v551 = vmul.f32 %v526, %v438
        %576 = vrot.lane.b32.xlu0 %v528, 127
        %v577 = vpop.permute.xlu0 %576
        %578 = vrot.lane.b32.xlu0 %v529, 127
        %v579 = vpop.permute.xlu0 %578
        %580 = vrot.lane.b32.xlu0 %v530, 127
        %v581 = vpop.permute.xlu0 %580
        %582 = vrot.lane.b32.xlu0 %v531, 127
        %v583 = vpop.permute.xlu0 %582
        %584 = vrot.lane.b32.xlu0 %v532, 127
        %v585 = vpop.permute.xlu0 %584
        %586 = vrot.lane.b32.xlu0 %v533, 127
        %v587 = vpop.permute.xlu0 %586
        %588 = vrot.lane.b32.xlu0 %v534, 127
        %v589 = vpop.permute.xlu0 %588
        %590 = vrot.lane.b32.xlu0 %v535, 127
        %v591 = vpop.permute.xlu0 %590
        %592 = vrot.lane.b32.xlu0 %v536, 127
        %v593 = vpop.permute.xlu0 %592
        %594 = vrot.lane.b32.xlu0 %v537, 127
        %v595 = vpop.permute.xlu0 %594
        %596 = vrot.lane.b32.xlu0 %v538, 127
        %v597 = vpop.permute.xlu0 %596
        %598 = vrot.lane.b32.xlu0 %v539, 127
        %v599 = vpop.permute.xlu0 %598
        %600 = vrot.lane.b32.xlu0 %v540, 127
        %v601 = vpop.permute.xlu0 %600
        %602 = vrot.lane.b32.xlu0 %v541, 127
        %v603 = vpop.permute.xlu0 %602
        %604 = vrot.lane.b32.xlu0 %v542, 127
        %v605 = vpop.permute.xlu0 %604
        %606 = vrot.lane.b32.xlu0 %v543, 127
        %v607 = vpop.permute.xlu0 %606
        %608 = vrot.lane.b32.xlu0 %v544, 127
        %v609 = vpop.permute.xlu0 %608
        %610 = vrot.lane.b32.xlu0 %v545, 127
        %v611 = vpop.permute.xlu0 %610
        %612 = vrot.lane.b32.xlu0 %v546, 127
        %v613 = vpop.permute.xlu0 %612
        %614 = vrot.lane.b32.xlu0 %v547, 127
        %v615 = vpop.permute.xlu0 %614
        %616 = vrot.lane.b32.xlu0 %v548, 127
        %v617 = vpop.permute.xlu0 %616
        %618 = vrot.lane.b32.xlu0 %v549, 127
        %v619 = vpop.permute.xlu0 %618
        %620 = vrot.lane.b32.xlu0 %v550, 127
        %v621 = vpop.permute.xlu0 %620
        %622 = vrot.lane.b32.xlu0 %v551, 127
        %v623 = vpop.permute.xlu0 %622
        %vm624 = vcmask 1039360
        %v625 = vsel %vm624, %v577, %v579
        %v626 = vsel %vm624, %v579, %v581
        %v627 = vsel %vm624, %v581, %v583
        %v628 = vsel %vm624, %v583, %v585
        %v629 = vsel %vm624, %v585, %v587
        %v630 = vsel %vm624, %v589, %v591
        %v631 = vsel %vm624, %v591, %v593
        %v632 = vsel %vm624, %v593, %v595
        %v633 = vsel %vm624, %v595, %v597
        %v634 = vsel %vm624, %v597, %v599
        %v635 = vsel %vm624, %v601, %v603
        %v636 = vsel %vm624, %v603, %v605
        %v637 = vsel %vm624, %v605, %v607
        %v638 = vsel %vm624, %v607, %v609
        %v639 = vsel %vm624, %v609, %v611
        %v640 = vsel %vm624, %v613, %v615
        %v641 = vsel %vm624, %v615, %v617
        %v642 = vsel %vm624, %v617, %v619
        %v643 = vsel %vm624, %v619, %v621
        %v644 = vsel %vm624, %v621, %v623
        %v669 = vadd.f32 %v488, %v625
        %v670 = vadd.f32 %v489, %v626
        %v671 = vadd.f32 %v490, %v627
        %v672 = vadd.f32 %v491, %v628
        %v673 = vadd.f32 %v492, %v629
        %v674 = vadd.f32 %v493, %v587
        %v675 = vadd.f32 %v494, %v630
        %v676 = vadd.f32 %v495, %v631
        %v677 = vadd.f32 %v496, %v632
        %v678 = vadd.f32 %v497, %v633
        %v679 = vadd.f32 %v498, %v634
        %v680 = vadd.f32 %v499, %v599
        %v681 = vadd.f32 %v500, %v635
        %v682 = vadd.f32 %v501, %v636
        %v683 = vadd.f32 %v502, %v637
        %v684 = vadd.f32 %v503, %v638
        %v685 = vadd.f32 %v504, %v639
        %v686 = vadd.f32 %v505, %v611
        %v687 = vadd.f32 %v506, %v640
        %v688 = vadd.f32 %v507, %v641
        %v689 = vadd.f32 %v508, %v642
        %v690 = vadd.f32 %v509, %v643
        %v691 = vadd.f32 %v510, %v644
        %v692 = vadd.f32 %v511, %v623
        %693 = vset.pattern.permute.xlu0 2
        %694 = vperm.xlu0 %693, %v440
        %v695 = vpop.permute.xlu0 %694
        %697 = vset.pattern.permute.xlu0 2
        %698 = vperm.xlu0 %697, %v441
        %v699 = vpop.permute.xlu0 %698
        %701 = vset.pattern.permute.xlu0 2
        %702 = vperm.xlu0 %701, %v442
        %v703 = vpop.permute.xlu0 %702
        %705 = vset.pattern.permute.xlu0 2
        %706 = vperm.xlu0 %705, %v443
        %v707 = vpop.permute.xlu0 %706
        %v709 = vmul.f32 %v695, %v426
        %v710 = vmul.f32 %v695, %v427
        %v711 = vmul.f32 %v695, %v428
        %v712 = vmul.f32 %v695, %v429
        %v713 = vmul.f32 %v695, %v430
        %v714 = vmul.f32 %v695, %v431
        %v715 = vmul.f32 %v699, %v426
        %v716 = vmul.f32 %v699, %v427
        %v717 = vmul.f32 %v699, %v428
        %v718 = vmul.f32 %v699, %v429
        %v719 = vmul.f32 %v699, %v430
        %v720 = vmul.f32 %v699, %v431
        %v721 = vmul.f32 %v703, %v433
        %v722 = vmul.f32 %v703, %v434
        %v723 = vmul.f32 %v703, %v435
        %v724 = vmul.f32 %v703, %v436
        %v725 = vmul.f32 %v703, %v437
        %v726 = vmul.f32 %v703, %v438
        %v727 = vmul.f32 %v707, %v433
        %v728 = vmul.f32 %v707, %v434
        %v729 = vmul.f32 %v707, %v435
        %v730 = vmul.f32 %v707, %v436
        %v731 = vmul.f32 %v707, %v437
        %v732 = vmul.f32 %v707, %v438
        %757 = vrot.lane.b32.xlu0 %v709, 126
        %v758 = vpop.permute.xlu0 %757
        %759 = vrot.lane.b32.xlu0 %v710, 126
        %v760 = vpop.permute.xlu0 %759
        %761 = vrot.lane.b32.xlu0 %v711, 126
        %v762 = vpop.permute.xlu0 %761
        %763 = vrot.lane.b32.xlu0 %v712, 126
        %v764 = vpop.permute.xlu0 %763
        %765 = vrot.lane.b32.xlu0 %v713, 126
        %v766 = vpop.permute.xlu0 %765
        %767 = vrot.lane.b32.xlu0 %v714, 126
        %v768 = vpop.permute.xlu0 %767
        %769 = vrot.lane.b32.xlu0 %v715, 126
        %v770 = vpop.permute.xlu0 %769
        %771 = vrot.lane.b32.xlu0 %v716, 126
        %v772 = vpop.permute.xlu0 %771
        %773 = vrot.lane.b32.xlu0 %v717, 126
        %v774 = vpop.permute.xlu0 %773
        %775 = vrot.lane.b32.xlu0 %v718, 126
        %v776 = vpop.permute.xlu0 %775
        %777 = vrot.lane.b32.xlu0 %v719, 126
        %v778 = vpop.permute.xlu0 %777
        %779 = vrot.lane.b32.xlu0 %v720, 126
        %v780 = vpop.permute.xlu0 %779
        %781 = vrot.lane.b32.xlu0 %v721, 126
        %v782 = vpop.permute.xlu0 %781
        %783 = vrot.lane.b32.xlu0 %v722, 126
        %v784 = vpop.permute.xlu0 %783
        %785 = vrot.lane.b32.xlu0 %v723, 126
        %v786 = vpop.permute.xlu0 %785
        %787 = vrot.lane.b32.xlu0 %v724, 126
        %v788 = vpop.permute.xlu0 %787
        %789 = vrot.lane.b32.xlu0 %v725, 126
        %v790 = vpop.permute.xlu0 %789
        %791 = vrot.lane.b32.xlu0 %v726, 126
        %v792 = vpop.permute.xlu0 %791
        %793 = vrot.lane.b32.xlu0 %v727, 126
        %v794 = vpop.permute.xlu0 %793
        %795 = vrot.lane.b32.xlu0 %v728, 126
        %v796 = vpop.permute.xlu0 %795
        %797 = vrot.lane.b32.xlu0 %v729, 126
        %v798 = vpop.permute.xlu0 %797
        %799 = vrot.lane.b32.xlu0 %v730, 126
        %v800 = vpop.permute.xlu0 %799
        %801 = vrot.lane.b32.xlu0 %v731, 126
        %v802 = vpop.permute.xlu0 %801
        %803 = vrot.lane.b32.xlu0 %v732, 126
        %v804 = vpop.permute.xlu0 %803
        %vm805 = vcmask 1031168
        %v806 = vsel %vm805, %v758, %v760
        %v807 = vsel %vm805, %v760, %v762
        %v808 = vsel %vm805, %v762, %v764
        %v809 = vsel %vm805, %v764, %v766
        %v810 = vsel %vm805, %v766, %v768
        %v811 = vsel %vm805, %v770, %v772
        %v812 = vsel %vm805, %v772, %v774
        %v813 = vsel %vm805, %v774, %v776
        %v814 = vsel %vm805, %v776, %v778
        %v815 = vsel %vm805, %v778, %v780
        %v816 = vsel %vm805, %v782, %v784
        %v817 = vsel %vm805, %v784, %v786
        %v818 = vsel %vm805, %v786, %v788
        %v819 = vsel %vm805, %v788, %v790
        %v820 = vsel %vm805, %v790, %v792
        %v821 = vsel %vm805, %v794, %v796
        %v822 = vsel %vm805, %v796, %v798
        %v823 = vsel %vm805, %v798, %v800
        %v824 = vsel %vm805, %v800, %v802
        %v825 = vsel %vm805, %v802, %v804
        %v850 = vadd.f32 %v669, %v806
        %v851 = vadd.f32 %v670, %v807
        %v852 = vadd.f32 %v671, %v808
        %v853 = vadd.f32 %v672, %v809
        %v854 = vadd.f32 %v673, %v810
        %v855 = vadd.f32 %v674, %v768
        %v856 = vadd.f32 %v675, %v811
        %v857 = vadd.f32 %v676, %v812
        %v858 = vadd.f32 %v677, %v813
        %v859 = vadd.f32 %v678, %v814
        %v860 = vadd.f32 %v679, %v815
        %v861 = vadd.f32 %v680, %v780
        %v862 = vadd.f32 %v681, %v816
        %v863 = vadd.f32 %v682, %v817
        %v864 = vadd.f32 %v683, %v818
        %v865 = vadd.f32 %v684, %v819
        %v866 = vadd.f32 %v685, %v820
        %v867 = vadd.f32 %v686, %v792
        %v868 = vadd.f32 %v687, %v821
        %v869 = vadd.f32 %v688, %v822
        %v870 = vadd.f32 %v689, %v823
        %v871 = vadd.f32 %v690, %v824
        %v872 = vadd.f32 %v691, %v825
        %v873 = vadd.f32 %v692, %v804
        %874 = vset.pattern.permute.xlu0 3
        %875 = vperm.xlu0 %874, %v440
        %v876 = vpop.permute.xlu0 %875
        %878 = vset.pattern.permute.xlu0 3
        %879 = vperm.xlu0 %878, %v441
        %v880 = vpop.permute.xlu0 %879
        %882 = vset.pattern.permute.xlu0 3
        %883 = vperm.xlu0 %882, %v442
        %v884 = vpop.permute.xlu0 %883
        %886 = vset.pattern.permute.xlu0 3
        %887 = vperm.xlu0 %886, %v443
        %v888 = vpop.permute.xlu0 %887
        %v890 = vmul.f32 %v876, %v426
        %v891 = vmul.f32 %v876, %v427
        %v892 = vmul.f32 %v876, %v428
        %v893 = vmul.f32 %v876, %v429
        %v894 = vmul.f32 %v876, %v430
        %v895 = vmul.f32 %v876, %v431
        %v896 = vmul.f32 %v880, %v426
        %v897 = vmul.f32 %v880, %v427
        %v898 = vmul.f32 %v880, %v428
        %v899 = vmul.f32 %v880, %v429
        %v900 = vmul.f32 %v880, %v430
        %v901 = vmul.f32 %v880, %v431
        %v902 = vmul.f32 %v884, %v433
        %v903 = vmul.f32 %v884, %v434
        %v904 = vmul.f32 %v884, %v435
        %v905 = vmul.f32 %v884, %v436
        %v906 = vmul.f32 %v884, %v437
        %v907 = vmul.f32 %v884, %v438
        %v908 = vmul.f32 %v888, %v433
        %v909 = vmul.f32 %v888, %v434
        %v910 = vmul.f32 %v888, %v435
        %v911 = vmul.f32 %v888, %v436
        %v912 = vmul.f32 %v888, %v437
        %v913 = vmul.f32 %v888, %v438
        %938 = vrot.lane.b32.xlu0 %v890, 125
        %v939 = vpop.permute.xlu0 %938
        %940 = vrot.lane.b32.xlu0 %v891, 125
        %v941 = vpop.permute.xlu0 %940
        %942 = vrot.lane.b32.xlu0 %v892, 125
        %v943 = vpop.permute.xlu0 %942
        %944 = vrot.lane.b32.xlu0 %v893, 125
        %v945 = vpop.permute.xlu0 %944
        %946 = vrot.lane.b32.xlu0 %v894, 125
        %v947 = vpop.permute.xlu0 %946
        %948 = vrot.lane.b32.xlu0 %v895, 125
        %v949 = vpop.permute.xlu0 %948
        %950 = vrot.lane.b32.xlu0 %v896, 125
        %v951 = vpop.permute.xlu0 %950
        %952 = vrot.lane.b32.xlu0 %v897, 125
        %v953 = vpop.permute.xlu0 %952
        %954 = vrot.lane.b32.xlu0 %v898, 125
        %v955 = vpop.permute.xlu0 %954
        %956 = vrot.lane.b32.xlu0 %v899, 125
        %v957 = vpop.permute.xlu0 %956
        %958 = vrot.lane.b32.xlu0 %v900, 125
        %v959 = vpop.permute.xlu0 %958
        %960 = vrot.lane.b32.xlu0 %v901, 125
        %v961 = vpop.permute.xlu0 %960
        %962 = vrot.lane.b32.xlu0 %v902, 125
        %v963 = vpop.permute.xlu0 %962
        %964 = vrot.lane.b32.xlu0 %v903, 125
        %v965 = vpop.permute.xlu0 %964
        %966 = vrot.lane.b32.xlu0 %v904, 125
        %v967 = vpop.permute.xlu0 %966
        %968 = vrot.lane.b32.xlu0 %v905, 125
        %v969 = vpop.permute.xlu0 %968
        %970 = vrot.lane.b32.xlu0 %v906, 125
        %v971 = vpop.permute.xlu0 %970
        %972 = vrot.lane.b32.xlu0 %v907, 125
        %v973 = vpop.permute.xlu0 %972
        %974 = vrot.lane.b32.xlu0 %v908, 125
        %v975 = vpop.permute.xlu0 %974
        %976 = vrot.lane.b32.xlu0 %v909, 125
        %v977 = vpop.permute.xlu0 %976
        %978 = vrot.lane.b32.xlu0 %v910, 125
        %v979 = vpop.permute.xlu0 %978
        %980 = vrot.lane.b32.xlu0 %v911, 125
        %v981 = vpop.permute.xlu0 %980
        %982 = vrot.lane.b32.xlu0 %v912, 125
        %v983 = vpop.permute.xlu0 %982
        %984 = vrot.lane.b32.xlu0 %v913, 125
        %v985 = vpop.permute.xlu0 %984
        %vm986 = vcmask 1022976
        %v987 = vsel %vm986, %v939, %v941
        %v988 = vsel %vm986, %v941, %v943
        %v989 = vsel %vm986, %v943, %v945
        %v990 = vsel %vm986, %v945, %v947
        %v991 = vsel %vm986, %v947, %v949
        %v992 = vsel %vm986, %v951, %v953
        %v993 = vsel %vm986, %v953, %v955
        %v994 = vsel %vm986, %v955, %v957
        %v995 = vsel %vm986, %v957, %v959
        %v996 = vsel %vm986, %v959, %v961
        %v997 = vsel %vm986, %v963, %v965
        %v998 = vsel %vm986, %v965, %v967
        %v999 = vsel %vm986, %v967, %v969
        %v1000 = vsel %vm986, %v969, %v971
        %v1001 = vsel %vm986, %v971, %v973
        %v1002 = vsel %vm986, %v975, %v977
        %v1003 = vsel %vm986, %v977, %v979
        %v1004 = vsel %vm986, %v979, %v981
        %v1005 = vsel %vm986, %v981, %v983
        %v1006 = vsel %vm986, %v983, %v985
        %v1031 = vadd.f32 %v850, %v987
        %v1032 = vadd.f32 %v851, %v988
        %v1033 = vadd.f32 %v852, %v989
        %v1034 = vadd.f32 %v853, %v990
        %v1035 = vadd.f32 %v854, %v991
        %v1036 = vadd.f32 %v855, %v949
        %v1037 = vadd.f32 %v856, %v992
        %v1038 = vadd.f32 %v857, %v993
        %v1039 = vadd.f32 %v858, %v994
        %v1040 = vadd.f32 %v859, %v995
        %v1041 = vadd.f32 %v860, %v996
        %v1042 = vadd.f32 %v861, %v961
        %v1043 = vadd.f32 %v862, %v997
        %v1044 = vadd.f32 %v863, %v998
        %v1045 = vadd.f32 %v864, %v999
        %v1046 = vadd.f32 %v865, %v1000
        %v1047 = vadd.f32 %v866, %v1001
        %v1048 = vadd.f32 %v867, %v973
        %v1049 = vadd.f32 %v868, %v1002
        %v1050 = vadd.f32 %v869, %v1003
        %v1051 = vadd.f32 %v870, %v1004
        %v1052 = vadd.f32 %v871, %v1005
        %v1053 = vadd.f32 %v872, %v1006
        %v1054 = vadd.f32 %v873, %v985
        %1055 = vset.pattern.permute.xlu0 4
        %1056 = vperm.xlu0 %1055, %v440
        %v1057 = vpop.permute.xlu0 %1056
        %1059 = vset.pattern.permute.xlu0 4
        %1060 = vperm.xlu0 %1059, %v441
        %v1061 = vpop.permute.xlu0 %1060
        %1063 = vset.pattern.permute.xlu0 4
        %1064 = vperm.xlu0 %1063, %v442
        %v1065 = vpop.permute.xlu0 %1064
        %1067 = vset.pattern.permute.xlu0 4
        %1068 = vperm.xlu0 %1067, %v443
        %v1069 = vpop.permute.xlu0 %1068
        %v1071 = vmul.f32 %v1057, %v426
        %v1072 = vmul.f32 %v1057, %v427
        %v1073 = vmul.f32 %v1057, %v428
        %v1074 = vmul.f32 %v1057, %v429
        %v1075 = vmul.f32 %v1057, %v430
        %v1076 = vmul.f32 %v1057, %v431
        %v1077 = vmul.f32 %v1061, %v426
        %v1078 = vmul.f32 %v1061, %v427
        %v1079 = vmul.f32 %v1061, %v428
        %v1080 = vmul.f32 %v1061, %v429
        %v1081 = vmul.f32 %v1061, %v430
        %v1082 = vmul.f32 %v1061, %v431
        %v1083 = vmul.f32 %v1065, %v433
        %v1084 = vmul.f32 %v1065, %v434
        %v1085 = vmul.f32 %v1065, %v435
        %v1086 = vmul.f32 %v1065, %v436
        %v1087 = vmul.f32 %v1065, %v437
        %v1088 = vmul.f32 %v1065, %v438
        %v1089 = vmul.f32 %v1069, %v433
        %v1090 = vmul.f32 %v1069, %v434
        %v1091 = vmul.f32 %v1069, %v435
        %v1092 = vmul.f32 %v1069, %v436
        %v1093 = vmul.f32 %v1069, %v437
        %v1094 = vmul.f32 %v1069, %v438
        %1119 = vrot.lane.b32.xlu0 %v1071, 124
        %v1120 = vpop.permute.xlu0 %1119
        %1121 = vrot.lane.b32.xlu0 %v1072, 124
        %v1122 = vpop.permute.xlu0 %1121
        %1123 = vrot.lane.b32.xlu0 %v1073, 124
        %v1124 = vpop.permute.xlu0 %1123
        %1125 = vrot.lane.b32.xlu0 %v1074, 124
        %v1126 = vpop.permute.xlu0 %1125
        %1127 = vrot.lane.b32.xlu0 %v1075, 124
        %v1128 = vpop.permute.xlu0 %1127
        %1129 = vrot.lane.b32.xlu0 %v1076, 124
        %v1130 = vpop.permute.xlu0 %1129
        %1131 = vrot.lane.b32.xlu0 %v1077, 124
        %v1132 = vpop.permute.xlu0 %1131
        %1133 = vrot.lane.b32.xlu0 %v1078, 124
        %v1134 = vpop.permute.xlu0 %1133
        %1135 = vrot.lane.b32.xlu0 %v1079, 124
        %v1136 = vpop.permute.xlu0 %1135
        %1137 = vrot.lane.b32.xlu0 %v1080, 124
        %v1138 = vpop.permute.xlu0 %1137
        %1139 = vrot.lane.b32.xlu0 %v1081, 124
        %v1140 = vpop.permute.xlu0 %1139
        %1141 = vrot.lane.b32.xlu0 %v1082, 124
        %v1142 = vpop.permute.xlu0 %1141
        %1143 = vrot.lane.b32.xlu0 %v1083, 124
        %v1144 = vpop.permute.xlu0 %1143
        %1145 = vrot.lane.b32.xlu0 %v1084, 124
        %v1146 = vpop.permute.xlu0 %1145
        %1147 = vrot.lane.b32.xlu0 %v1085, 124
        %v1148 = vpop.permute.xlu0 %1147
        %1149 = vrot.lane.b32.xlu0 %v1086, 124
        %v1150 = vpop.permute.xlu0 %1149
        %1151 = vrot.lane.b32.xlu0 %v1087, 124
        %v1152 = vpop.permute.xlu0 %1151
        %1153 = vrot.lane.b32.xlu0 %v1088, 124
        %v1154 = vpop.permute.xlu0 %1153
        %1155 = vrot.lane.b32.xlu0 %v1089, 124
        %v1156 = vpop.permute.xlu0 %1155
        %1157 = vrot.lane.b32.xlu0 %v1090, 124
        %v1158 = vpop.permute.xlu0 %1157
        %1159 = vrot.lane.b32.xlu0 %v1091, 124
        %v1160 = vpop.permute.xlu0 %1159
        %1161 = vrot.lane.b32.xlu0 %v1092, 124
        %v1162 = vpop.permute.xlu0 %1161
        %1163 = vrot.lane.b32.xlu0 %v1093, 124
        %v1164 = vpop.permute.xlu0 %1163
        %1165 = vrot.lane.b32.xlu0 %v1094, 124
        %v1166 = vpop.permute.xlu0 %1165
        %vm1167 = vcmask 1014784
        %v1168 = vsel %vm1167, %v1120, %v1122
        %v1169 = vsel %vm1167, %v1122, %v1124
        %v1170 = vsel %vm1167, %v1124, %v1126
        %v1171 = vsel %vm1167, %v1126, %v1128
        %v1172 = vsel %vm1167, %v1128, %v1130
        %v1173 = vsel %vm1167, %v1132, %v1134
        %v1174 = vsel %vm1167, %v1134, %v1136
        %v1175 = vsel %vm1167, %v1136, %v1138
        %v1176 = vsel %vm1167, %v1138, %v1140
        %v1177 = vsel %vm1167, %v1140, %v1142
        %v1178 = vsel %vm1167, %v1144, %v1146
        %v1179 = vsel %vm1167, %v1146, %v1148
        %v1180 = vsel %vm1167, %v1148, %v1150
        %v1181 = vsel %vm1167, %v1150, %v1152
        %v1182 = vsel %vm1167, %v1152, %v1154
        %v1183 = vsel %vm1167, %v1156, %v1158
        %v1184 = vsel %vm1167, %v1158, %v1160
        %v1185 = vsel %vm1167, %v1160, %v1162
        %v1186 = vsel %vm1167, %v1162, %v1164
        %v1187 = vsel %vm1167, %v1164, %v1166
        %v1212 = vadd.f32 %v1031, %v1168
        %v1213 = vadd.f32 %v1032, %v1169
        %v1214 = vadd.f32 %v1033, %v1170
        %v1215 = vadd.f32 %v1034, %v1171
        %v1216 = vadd.f32 %v1035, %v1172
        %v1217 = vadd.f32 %v1036, %v1130
        %v1218 = vadd.f32 %v1037, %v1173
        %v1219 = vadd.f32 %v1038, %v1174
        %v1220 = vadd.f32 %v1039, %v1175
        %v1221 = vadd.f32 %v1040, %v1176
        %v1222 = vadd.f32 %v1041, %v1177
        %v1223 = vadd.f32 %v1042, %v1142
        %v1224 = vadd.f32 %v1043, %v1178
        %v1225 = vadd.f32 %v1044, %v1179
        %v1226 = vadd.f32 %v1045, %v1180
        %v1227 = vadd.f32 %v1046, %v1181
        %v1228 = vadd.f32 %v1047, %v1182
        %v1229 = vadd.f32 %v1048, %v1154
        %v1230 = vadd.f32 %v1049, %v1183
        %v1231 = vadd.f32 %v1050, %v1184
        %v1232 = vadd.f32 %v1051, %v1185
        %v1233 = vadd.f32 %v1052, %v1186
        %v1234 = vadd.f32 %v1053, %v1187
        %v1235 = vadd.f32 %v1054, %v1166
        %1236 = vset.pattern.permute.xlu0 5
        %1237 = vperm.xlu0 %1236, %v440
        %v1238 = vpop.permute.xlu0 %1237
        %1240 = vset.pattern.permute.xlu0 5
        %1241 = vperm.xlu0 %1240, %v441
        %v1242 = vpop.permute.xlu0 %1241
        %1244 = vset.pattern.permute.xlu0 5
        %1245 = vperm.xlu0 %1244, %v442
        %v1246 = vpop.permute.xlu0 %1245
        %1248 = vset.pattern.permute.xlu0 5
        %1249 = vperm.xlu0 %1248, %v443
        %v1250 = vpop.permute.xlu0 %1249
        %v1252 = vmul.f32 %v1238, %v426
        %v1253 = vmul.f32 %v1238, %v427
        %v1254 = vmul.f32 %v1238, %v428
        %v1255 = vmul.f32 %v1238, %v429
        %v1256 = vmul.f32 %v1238, %v430
        %v1257 = vmul.f32 %v1238, %v431
        %v1258 = vmul.f32 %v1242, %v426
        %v1259 = vmul.f32 %v1242, %v427
        %v1260 = vmul.f32 %v1242, %v428
        %v1261 = vmul.f32 %v1242, %v429
        %v1262 = vmul.f32 %v1242, %v430
        %v1263 = vmul.f32 %v1242, %v431
        %v1264 = vmul.f32 %v1246, %v433
        %v1265 = vmul.f32 %v1246, %v434
        %v1266 = vmul.f32 %v1246, %v435
        %v1267 = vmul.f32 %v1246, %v436
        %v1268 = vmul.f32 %v1246, %v437
        %v1269 = vmul.f32 %v1246, %v438
        %v1270 = vmul.f32 %v1250, %v433
        %v1271 = vmul.f32 %v1250, %v434
        %v1272 = vmul.f32 %v1250, %v435
        %v1273 = vmul.f32 %v1250, %v436
        %v1274 = vmul.f32 %v1250, %v437
        %v1275 = vmul.f32 %v1250, %v438
        %1300 = vrot.lane.b32.xlu0 %v1252, 123
        %v1301 = vpop.permute.xlu0 %1300
        %1302 = vrot.lane.b32.xlu0 %v1253, 123
        %v1303 = vpop.permute.xlu0 %1302
        %1304 = vrot.lane.b32.xlu0 %v1254, 123
        %v1305 = vpop.permute.xlu0 %1304
        %1306 = vrot.lane.b32.xlu0 %v1255, 123
        %v1307 = vpop.permute.xlu0 %1306
        %1308 = vrot.lane.b32.xlu0 %v1256, 123
        %v1309 = vpop.permute.xlu0 %1308
        %1310 = vrot.lane.b32.xlu0 %v1257, 123
        %v1311 = vpop.permute.xlu0 %1310
        %1312 = vrot.lane.b32.xlu0 %v1258, 123
        %v1313 = vpop.permute.xlu0 %1312
        %1314 = vrot.lane.b32.xlu0 %v1259, 123
        %v1315 = vpop.permute.xlu0 %1314
        %1316 = vrot.lane.b32.xlu0 %v1260, 123
        %v1317 = vpop.permute.xlu0 %1316
        %1318 = vrot.lane.b32.xlu0 %v1261, 123
        %v1319 = vpop.permute.xlu0 %1318
        %1320 = vrot.lane.b32.xlu0 %v1262, 123
        %v1321 = vpop.permute.xlu0 %1320
        %1322 = vrot.lane.b32.xlu0 %v1263, 123
        %v1323 = vpop.permute.xlu0 %1322
        %1324 = vrot.lane.b32.xlu0 %v1264, 123
        %v1325 = vpop.permute.xlu0 %1324
        %1326 = vrot.lane.b32.xlu0 %v1265, 123
        %v1327 = vpop.permute.xlu0 %1326
        %1328 = vrot.lane.b32.xlu0 %v1266, 123
        %v1329 = vpop.permute.xlu0 %1328
        %1330 = vrot.lane.b32.xlu0 %v1267, 123
        %v1331 = vpop.permute.xlu0 %1330
        %1332 = vrot.lane.b32.xlu0 %v1268, 123
        %v1333 = vpop.permute.xlu0 %1332
        %1334 = vrot.lane.b32.xlu0 %v1269, 123
        %v1335 = vpop.permute.xlu0 %1334
        %1336 = vrot.lane.b32.xlu0 %v1270, 123
        %v1337 = vpop.permute.xlu0 %1336
        %1338 = vrot.lane.b32.xlu0 %v1271, 123
        %v1339 = vpop.permute.xlu0 %1338
        %1340 = vrot.lane.b32.xlu0 %v1272, 123
        %v1341 = vpop.permute.xlu0 %1340
        %1342 = vrot.lane.b32.xlu0 %v1273, 123
        %v1343 = vpop.permute.xlu0 %1342
        %1344 = vrot.lane.b32.xlu0 %v1274, 123
        %v1345 = vpop.permute.xlu0 %1344
        %1346 = vrot.lane.b32.xlu0 %v1275, 123
        %v1347 = vpop.permute.xlu0 %1346
        %vm1348 = vcmask 1006592
        %v1349 = vsel %vm1348, %v1301, %v1303
        %v1350 = vsel %vm1348, %v1303, %v1305
        %v1351 = vsel %vm1348, %v1305, %v1307
        %v1352 = vsel %vm1348, %v1307, %v1309
        %v1353 = vsel %vm1348, %v1309, %v1311
        %v1354 = vsel %vm1348, %v1313, %v1315
        %v1355 = vsel %vm1348, %v1315, %v1317
        %v1356 = vsel %vm1348, %v1317, %v1319
        %v1357 = vsel %vm1348, %v1319, %v1321
        %v1358 = vsel %vm1348, %v1321, %v1323
        %v1359 = vsel %vm1348, %v1325, %v1327
        %v1360 = vsel %vm1348, %v1327, %v1329
        %v1361 = vsel %vm1348, %v1329, %v1331
        %v1362 = vsel %vm1348, %v1331, %v1333
        %v1363 = vsel %vm1348, %v1333, %v1335
        %v1364 = vsel %vm1348, %v1337, %v1339
        %v1365 = vsel %vm1348, %v1339, %v1341
        %v1366 = vsel %vm1348, %v1341, %v1343
        %v1367 = vsel %vm1348, %v1343, %v1345
        %v1368 = vsel %vm1348, %v1345, %v1347
        %v1393 = vadd.f32 %v1212, %v1349
        %v1394 = vadd.f32 %v1213, %v1350
        %v1395 = vadd.f32 %v1214, %v1351
        %v1396 = vadd.f32 %v1215, %v1352
        %v1397 = vadd.f32 %v1216, %v1353
        %v1398 = vadd.f32 %v1217, %v1311
        %v1399 = vadd.f32 %v1218, %v1354
        %v1400 = vadd.f32 %v1219, %v1355
        %v1401 = vadd.f32 %v1220, %v1356
        %v1402 = vadd.f32 %v1221, %v1357
        %v1403 = vadd.f32 %v1222, %v1358
        %v1404 = vadd.f32 %v1223, %v1323
        %v1405 = vadd.f32 %v1224, %v1359
        %v1406 = vadd.f32 %v1225, %v1360
        %v1407 = vadd.f32 %v1226, %v1361
        %v1408 = vadd.f32 %v1227, %v1362
        %v1409 = vadd.f32 %v1228, %v1363
        %v1410 = vadd.f32 %v1229, %v1335
        %v1411 = vadd.f32 %v1230, %v1364
        %v1412 = vadd.f32 %v1231, %v1365
        %v1413 = vadd.f32 %v1232, %v1366
        %v1414 = vadd.f32 %v1233, %v1367
        %v1415 = vadd.f32 %v1234, %v1368
        %v1416 = vadd.f32 %v1235, %v1347
        %1417 = vset.pattern.permute.xlu0 6
        %1418 = vperm.xlu0 %1417, %v440
        %v1419 = vpop.permute.xlu0 %1418
        %1421 = vset.pattern.permute.xlu0 6
        %1422 = vperm.xlu0 %1421, %v441
        %v1423 = vpop.permute.xlu0 %1422
        %1425 = vset.pattern.permute.xlu0 6
        %1426 = vperm.xlu0 %1425, %v442
        %v1427 = vpop.permute.xlu0 %1426
        %1429 = vset.pattern.permute.xlu0 6
        %1430 = vperm.xlu0 %1429, %v443
        %v1431 = vpop.permute.xlu0 %1430
        %v1433 = vmul.f32 %v1419, %v426
        %v1434 = vmul.f32 %v1419, %v427
        %v1435 = vmul.f32 %v1419, %v428
        %v1436 = vmul.f32 %v1419, %v429
        %v1437 = vmul.f32 %v1419, %v430
        %v1438 = vmul.f32 %v1419, %v431
        %v1439 = vmul.f32 %v1423, %v426
        %v1440 = vmul.f32 %v1423, %v427
        %v1441 = vmul.f32 %v1423, %v428
        %v1442 = vmul.f32 %v1423, %v429
        %v1443 = vmul.f32 %v1423, %v430
        %v1444 = vmul.f32 %v1423, %v431
        %v1445 = vmul.f32 %v1427, %v433
        %v1446 = vmul.f32 %v1427, %v434
        %v1447 = vmul.f32 %v1427, %v435
        %v1448 = vmul.f32 %v1427, %v436
        %v1449 = vmul.f32 %v1427, %v437
        %v1450 = vmul.f32 %v1427, %v438
        %v1451 = vmul.f32 %v1431, %v433
        %v1452 = vmul.f32 %v1431, %v434
        %v1453 = vmul.f32 %v1431, %v435
        %v1454 = vmul.f32 %v1431, %v436
        %v1455 = vmul.f32 %v1431, %v437
        %v1456 = vmul.f32 %v1431, %v438
        %1481 = vrot.lane.b32.xlu0 %v1433, 122
        %v1482 = vpop.permute.xlu0 %1481
        %1483 = vrot.lane.b32.xlu0 %v1434, 122
        %v1484 = vpop.permute.xlu0 %1483
        %1485 = vrot.lane.b32.xlu0 %v1435, 122
        %v1486 = vpop.permute.xlu0 %1485
        %1487 = vrot.lane.b32.xlu0 %v1436, 122
        %v1488 = vpop.permute.xlu0 %1487
        %1489 = vrot.lane.b32.xlu0 %v1437, 122
        %v1490 = vpop.permute.xlu0 %1489
        %1491 = vrot.lane.b32.xlu0 %v1438, 122
        %v1492 = vpop.permute.xlu0 %1491
        %1493 = vrot.lane.b32.xlu0 %v1439, 122
        %v1494 = vpop.permute.xlu0 %1493
        %1495 = vrot.lane.b32.xlu0 %v1440, 122
        %v1496 = vpop.permute.xlu0 %1495
        %1497 = vrot.lane.b32.xlu0 %v1441, 122
        %v1498 = vpop.permute.xlu0 %1497
        %1499 = vrot.lane.b32.xlu0 %v1442, 122
        %v1500 = vpop.permute.xlu0 %1499
        %1501 = vrot.lane.b32.xlu0 %v1443, 122
        %v1502 = vpop.permute.xlu0 %1501
        %1503 = vrot.lane.b32.xlu0 %v1444, 122
        %v1504 = vpop.permute.xlu0 %1503
        %1505 = vrot.lane.b32.xlu0 %v1445, 122
        %v1506 = vpop.permute.xlu0 %1505
        %1507 = vrot.lane.b32.xlu0 %v1446, 122
        %v1508 = vpop.permute.xlu0 %1507
        %1509 = vrot.lane.b32.xlu0 %v1447, 122
        %v1510 = vpop.permute.xlu0 %1509
        %1511 = vrot.lane.b32.xlu0 %v1448, 122
        %v1512 = vpop.permute.xlu0 %1511
        %1513 = vrot.lane.b32.xlu0 %v1449, 122
        %v1514 = vpop.permute.xlu0 %1513
        %1515 = vrot.lane.b32.xlu0 %v1450, 122
        %v1516 = vpop.permute.xlu0 %1515
        %1517 = vrot.lane.b32.xlu0 %v1451, 122
        %v1518 = vpop.permute.xlu0 %1517
        %1519 = vrot.lane.b32.xlu0 %v1452, 122
        %v1520 = vpop.permute.xlu0 %1519
        %1521 = vrot.lane.b32.xlu0 %v1453, 122
        %v1522 = vpop.permute.xlu0 %1521
        %1523 = vrot.lane.b32.xlu0 %v1454, 122
        %v1524 = vpop.permute.xlu0 %1523
        %1525 = vrot.lane.b32.xlu0 %v1455, 122
        %v1526 = vpop.permute.xlu0 %1525
        %1527 = vrot.lane.b32.xlu0 %v1456, 122
        %v1528 = vpop.permute.xlu0 %1527
        %vm1529 = vcmask 998400
        %v1530 = vsel %vm1529, %v1482, %v1484
        %v1531 = vsel %vm1529, %v1484, %v1486
        %v1532 = vsel %vm1529, %v1486, %v1488
        %v1533 = vsel %vm1529, %v1488, %v1490
        %v1534 = vsel %vm1529, %v1490, %v1492
        %v1535 = vsel %vm1529, %v1494, %v1496
        %v1536 = vsel %vm1529, %v1496, %v1498
        %v1537 = vsel %vm1529, %v1498, %v1500
        %v1538 = vsel %vm1529, %v1500, %v1502
        %v1539 = vsel %vm1529, %v1502, %v1504
        %v1540 = vsel %vm1529, %v1506, %v1508
        %v1541 = vsel %vm1529, %v1508, %v1510
        %v1542 = vsel %vm1529, %v1510, %v1512
        %v1543 = vsel %vm1529, %v1512, %v1514
        %v1544 = vsel %vm1529, %v1514, %v1516
        %v1545 = vsel %vm1529, %v1518, %v1520
        %v1546 = vsel %vm1529, %v1520, %v1522
        %v1547 = vsel %vm1529, %v1522, %v1524
        %v1548 = vsel %vm1529, %v1524, %v1526
        %v1549 = vsel %vm1529, %v1526, %v1528
        %v1574 = vadd.f32 %v1393, %v1530
        %v1575 = vadd.f32 %v1394, %v1531
        %v1576 = vadd.f32 %v1395, %v1532
        %v1577 = vadd.f32 %v1396, %v1533
        %v1578 = vadd.f32 %v1397, %v1534
        %v1579 = vadd.f32 %v1398, %v1492
        %v1580 = vadd.f32 %v1399, %v1535
        %v1581 = vadd.f32 %v1400, %v1536
        %v1582 = vadd.f32 %v1401, %v1537
        %v1583 = vadd.f32 %v1402, %v1538
        %v1584 = vadd.f32 %v1403, %v1539
        %v1585 = vadd.f32 %v1404, %v1504
        %v1586 = vadd.f32 %v1405, %v1540
        %v1587 = vadd.f32 %v1406, %v1541
        %v1588 = vadd.f32 %v1407, %v1542
        %v1589 = vadd.f32 %v1408, %v1543
        %v1590 = vadd.f32 %v1409, %v1544
        %v1591 = vadd.f32 %v1410, %v1516
        %v1592 = vadd.f32 %v1411, %v1545
        %v1593 = vadd.f32 %v1412, %v1546
        %v1594 = vadd.f32 %v1413, %v1547
        %v1595 = vadd.f32 %v1414, %v1548
        %v1596 = vadd.f32 %v1415, %v1549
        %v1597 = vadd.f32 %v1416, %v1528
        %1598 = vset.pattern.permute.xlu0 7
        %1599 = vperm.xlu0 %1598, %v440
        %v1600 = vpop.permute.xlu0 %1599
        %1602 = vset.pattern.permute.xlu0 7
        %1603 = vperm.xlu0 %1602, %v441
        %v1604 = vpop.permute.xlu0 %1603
        %1606 = vset.pattern.permute.xlu0 7
        %1607 = vperm.xlu0 %1606, %v442
        %v1608 = vpop.permute.xlu0 %1607
        %1610 = vset.pattern.permute.xlu0 7
        %1611 = vperm.xlu0 %1610, %v443
        %v1612 = vpop.permute.xlu0 %1611
        %v1614 = vmul.f32 %v1600, %v426
        %v1615 = vmul.f32 %v1600, %v427
        %v1616 = vmul.f32 %v1600, %v428
        %v1617 = vmul.f32 %v1600, %v429
        %v1618 = vmul.f32 %v1600, %v430
        %v1619 = vmul.f32 %v1600, %v431
        %v1620 = vmul.f32 %v1604, %v426
        %v1621 = vmul.f32 %v1604, %v427
        %v1622 = vmul.f32 %v1604, %v428
        %v1623 = vmul.f32 %v1604, %v429
        %v1624 = vmul.f32 %v1604, %v430
        %v1625 = vmul.f32 %v1604, %v431
        %v1626 = vmul.f32 %v1608, %v433
        %v1627 = vmul.f32 %v1608, %v434
        %v1628 = vmul.f32 %v1608, %v435
        %v1629 = vmul.f32 %v1608, %v436
        %v1630 = vmul.f32 %v1608, %v437
        %v1631 = vmul.f32 %v1608, %v438
        %v1632 = vmul.f32 %v1612, %v433
        %v1633 = vmul.f32 %v1612, %v434
        %v1634 = vmul.f32 %v1612, %v435
        %v1635 = vmul.f32 %v1612, %v436
        %v1636 = vmul.f32 %v1612, %v437
        %v1637 = vmul.f32 %v1612, %v438
        %1662 = vrot.lane.b32.xlu0 %v1614, 121
        %v1663 = vpop.permute.xlu0 %1662
        %1664 = vrot.lane.b32.xlu0 %v1615, 121
        %v1665 = vpop.permute.xlu0 %1664
        %1666 = vrot.lane.b32.xlu0 %v1616, 121
        %v1667 = vpop.permute.xlu0 %1666
        %1668 = vrot.lane.b32.xlu0 %v1617, 121
        %v1669 = vpop.permute.xlu0 %1668
        %1670 = vrot.lane.b32.xlu0 %v1618, 121
        %v1671 = vpop.permute.xlu0 %1670
        %1672 = vrot.lane.b32.xlu0 %v1619, 121
        %v1673 = vpop.permute.xlu0 %1672
        %1674 = vrot.lane.b32.xlu0 %v1620, 121
        %v1675 = vpop.permute.xlu0 %1674
        %1676 = vrot.lane.b32.xlu0 %v1621, 121
        %v1677 = vpop.permute.xlu0 %1676
        %1678 = vrot.lane.b32.xlu0 %v1622, 121
        %v1679 = vpop.permute.xlu0 %1678
        %1680 = vrot.lane.b32.xlu0 %v1623, 121
        %v1681 = vpop.permute.xlu0 %1680
        %1682 = vrot.lane.b32.xlu0 %v1624, 121
        %v1683 = vpop.permute.xlu0 %1682
        %1684 = vrot.lane.b32.xlu0 %v1625, 121
        %v1685 = vpop.permute.xlu0 %1684
        %1686 = vrot.lane.b32.xlu0 %v1626, 121
        %v1687 = vpop.permute.xlu0 %1686
        %1688 = vrot.lane.b32.xlu0 %v1627, 121
        %v1689 = vpop.permute.xlu0 %1688
        %1690 = vrot.lane.b32.xlu0 %v1628, 121
        %v1691 = vpop.permute.xlu0 %1690
        %1692 = vrot.lane.b32.xlu0 %v1629, 121
        %v1693 = vpop.permute.xlu0 %1692
        %1694 = vrot.lane.b32.xlu0 %v1630, 121
        %v1695 = vpop.permute.xlu0 %1694
        %1696 = vrot.lane.b32.xlu0 %v1631, 121
        %v1697 = vpop.permute.xlu0 %1696
        %1698 = vrot.lane.b32.xlu0 %v1632, 121
        %v1699 = vpop.permute.xlu0 %1698
        %1700 = vrot.lane.b32.xlu0 %v1633, 121
        %v1701 = vpop.permute.xlu0 %1700
        %1702 = vrot.lane.b32.xlu0 %v1634, 121
        %v1703 = vpop.permute.xlu0 %1702
        %1704 = vrot.lane.b32.xlu0 %v1635, 121
        %v1705 = vpop.permute.xlu0 %1704
        %1706 = vrot.lane.b32.xlu0 %v1636, 121
        %v1707 = vpop.permute.xlu0 %1706
        %1708 = vrot.lane.b32.xlu0 %v1637, 121
        %v1709 = vpop.permute.xlu0 %1708
        %vm1710 = vcmask 990208
        %v1711 = vsel %vm1710, %v1663, %v1665
        %v1712 = vsel %vm1710, %v1665, %v1667
        %v1713 = vsel %vm1710, %v1667, %v1669
        %v1714 = vsel %vm1710, %v1669, %v1671
        %v1715 = vsel %vm1710, %v1671, %v1673
        %v1716 = vsel %vm1710, %v1675, %v1677
        %v1717 = vsel %vm1710, %v1677, %v1679
        %v1718 = vsel %vm1710, %v1679, %v1681
        %v1719 = vsel %vm1710, %v1681, %v1683
        %v1720 = vsel %vm1710, %v1683, %v1685
        %v1721 = vsel %vm1710, %v1687, %v1689
        %v1722 = vsel %vm1710, %v1689, %v1691
        %v1723 = vsel %vm1710, %v1691, %v1693
        %v1724 = vsel %vm1710, %v1693, %v1695
        %v1725 = vsel %vm1710, %v1695, %v1697
        %v1726 = vsel %vm1710, %v1699, %v1701
        %v1727 = vsel %vm1710, %v1701, %v1703
        %v1728 = vsel %vm1710, %v1703, %v1705
        %v1729 = vsel %vm1710, %v1705, %v1707
        %v1730 = vsel %vm1710, %v1707, %v1709
        %v1755 = vadd.f32 %v1574, %v1711
        %v1756 = vadd.f32 %v1575, %v1712
        %v1757 = vadd.f32 %v1576, %v1713
        %v1758 = vadd.f32 %v1577, %v1714
        %v1759 = vadd.f32 %v1578, %v1715
        %v1760 = vadd.f32 %v1579, %v1673
        %v1761 = vadd.f32 %v1580, %v1716
        %v1762 = vadd.f32 %v1581, %v1717
        %v1763 = vadd.f32 %v1582, %v1718
        %v1764 = vadd.f32 %v1583, %v1719
        %v1765 = vadd.f32 %v1584, %v1720
        %v1766 = vadd.f32 %v1585, %v1685
        %v1767 = vadd.f32 %v1586, %v1721
        %v1768 = vadd.f32 %v1587, %v1722
        %v1769 = vadd.f32 %v1588, %v1723
        %v1770 = vadd.f32 %v1589, %v1724
        %v1771 = vadd.f32 %v1590, %v1725
        %v1772 = vadd.f32 %v1591, %v1697
        %v1773 = vadd.f32 %v1592, %v1726
        %v1774 = vadd.f32 %v1593, %v1727
        %v1775 = vadd.f32 %v1594, %v1728
        %v1776 = vadd.f32 %v1595, %v1729
        %v1777 = vadd.f32 %v1596, %v1730
        %v1778 = vadd.f32 %v1597, %v1709
        %1779 = vset.pattern.permute.xlu0 8
        %1780 = vperm.xlu0 %1779, %v440
        %v1781 = vpop.permute.xlu0 %1780
        %1783 = vset.pattern.permute.xlu0 8
        %1784 = vperm.xlu0 %1783, %v441
        %v1785 = vpop.permute.xlu0 %1784
        %1787 = vset.pattern.permute.xlu0 8
        %1788 = vperm.xlu0 %1787, %v442
        %v1789 = vpop.permute.xlu0 %1788
        %1791 = vset.pattern.permute.xlu0 8
        %1792 = vperm.xlu0 %1791, %v443
        %v1793 = vpop.permute.xlu0 %1792
        %v1795 = vmul.f32 %v1781, %v426
        %v1796 = vmul.f32 %v1781, %v427
        %v1797 = vmul.f32 %v1781, %v428
        %v1798 = vmul.f32 %v1781, %v429
        %v1799 = vmul.f32 %v1781, %v430
        %v1800 = vmul.f32 %v1781, %v431
        %v1801 = vmul.f32 %v1785, %v426
        %v1802 = vmul.f32 %v1785, %v427
        %v1803 = vmul.f32 %v1785, %v428
        %v1804 = vmul.f32 %v1785, %v429
        %v1805 = vmul.f32 %v1785, %v430
        %v1806 = vmul.f32 %v1785, %v431
        %v1807 = vmul.f32 %v1789, %v433
        %v1808 = vmul.f32 %v1789, %v434
        %v1809 = vmul.f32 %v1789, %v435
        %v1810 = vmul.f32 %v1789, %v436
        %v1811 = vmul.f32 %v1789, %v437
        %v1812 = vmul.f32 %v1789, %v438
        %v1813 = vmul.f32 %v1793, %v433
        %v1814 = vmul.f32 %v1793, %v434
        %v1815 = vmul.f32 %v1793, %v435
        %v1816 = vmul.f32 %v1793, %v436
        %v1817 = vmul.f32 %v1793, %v437
        %v1818 = vmul.f32 %v1793, %v438
        %1843 = vrot.lane.b32.xlu0 %v1795, 120
        %v1844 = vpop.permute.xlu0 %1843
        %1845 = vrot.lane.b32.xlu0 %v1796, 120
        %v1846 = vpop.permute.xlu0 %1845
        %1847 = vrot.lane.b32.xlu0 %v1797, 120
        %v1848 = vpop.permute.xlu0 %1847
        %1849 = vrot.lane.b32.xlu0 %v1798, 120
        %v1850 = vpop.permute.xlu0 %1849
        %1851 = vrot.lane.b32.xlu0 %v1799, 120
        %v1852 = vpop.permute.xlu0 %1851
        %1853 = vrot.lane.b32.xlu0 %v1800, 120
        %v1854 = vpop.permute.xlu0 %1853
        %1855 = vrot.lane.b32.xlu0 %v1801, 120
        %v1856 = vpop.permute.xlu0 %1855
        %1857 = vrot.lane.b32.xlu0 %v1802, 120
        %v1858 = vpop.permute.xlu0 %1857
        %1859 = vrot.lane.b32.xlu0 %v1803, 120
        %v1860 = vpop.permute.xlu0 %1859
        %1861 = vrot.lane.b32.xlu0 %v1804, 120
        %v1862 = vpop.permute.xlu0 %1861
        %1863 = vrot.lane.b32.xlu0 %v1805, 120
        %v1864 = vpop.permute.xlu0 %1863
        %1865 = vrot.lane.b32.xlu0 %v1806, 120
        %v1866 = vpop.permute.xlu0 %1865
        %1867 = vrot.lane.b32.xlu0 %v1807, 120
        %v1868 = vpop.permute.xlu0 %1867
        %1869 = vrot.lane.b32.xlu0 %v1808, 120
        %v1870 = vpop.permute.xlu0 %1869
        %1871 = vrot.lane.b32.xlu0 %v1809, 120
        %v1872 = vpop.permute.xlu0 %1871
        %1873 = vrot.lane.b32.xlu0 %v1810, 120
        %v1874 = vpop.permute.xlu0 %1873
        %1875 = vrot.lane.b32.xlu0 %v1811, 120
        %v1876 = vpop.permute.xlu0 %1875
        %1877 = vrot.lane.b32.xlu0 %v1812, 120
        %v1878 = vpop.permute.xlu0 %1877
        %1879 = vrot.lane.b32.xlu0 %v1813, 120
        %v1880 = vpop.permute.xlu0 %1879
        %1881 = vrot.lane.b32.xlu0 %v1814, 120
        %v1882 = vpop.permute.xlu0 %1881
        %1883 = vrot.lane.b32.xlu0 %v1815, 120
        %v1884 = vpop.permute.xlu0 %1883
        %1885 = vrot.lane.b32.xlu0 %v1816, 120
        %v1886 = vpop.permute.xlu0 %1885
        %1887 = vrot.lane.b32.xlu0 %v1817, 120
        %v1888 = vpop.permute.xlu0 %1887
        %1889 = vrot.lane.b32.xlu0 %v1818, 120
        %v1890 = vpop.permute.xlu0 %1889
        %vm1891 = vcmask 982016
        %v1892 = vsel %vm1891, %v1844, %v1846
        %v1893 = vsel %vm1891, %v1846, %v1848
        %v1894 = vsel %vm1891, %v1848, %v1850
        %v1895 = vsel %vm1891, %v1850, %v1852
        %v1896 = vsel %vm1891, %v1852, %v1854
        %v1897 = vsel %vm1891, %v1856, %v1858
        %v1898 = vsel %vm1891, %v1858, %v1860
        %v1899 = vsel %vm1891, %v1860, %v1862
        %v1900 = vsel %vm1891, %v1862, %v1864
        %v1901 = vsel %vm1891, %v1864, %v1866
        %v1902 = vsel %vm1891, %v1868, %v1870
        %v1903 = vsel %vm1891, %v1870, %v1872
        %v1904 = vsel %vm1891, %v1872, %v1874
        %v1905 = vsel %vm1891, %v1874, %v1876
        %v1906 = vsel %vm1891, %v1876, %v1878
        %v1907 = vsel %vm1891, %v1880, %v1882
        %v1908 = vsel %vm1891, %v1882, %v1884
        %v1909 = vsel %vm1891, %v1884, %v1886
        %v1910 = vsel %vm1891, %v1886, %v1888
        %v1911 = vsel %vm1891, %v1888, %v1890
        %v1936 = vadd.f32 %v1755, %v1892
        %v1937 = vadd.f32 %v1756, %v1893
        %v1938 = vadd.f32 %v1757, %v1894
        %v1939 = vadd.f32 %v1758, %v1895
        %v1940 = vadd.f32 %v1759, %v1896
        %v1941 = vadd.f32 %v1760, %v1854
        %v1942 = vadd.f32 %v1761, %v1897
        %v1943 = vadd.f32 %v1762, %v1898
        %v1944 = vadd.f32 %v1763, %v1899
        %v1945 = vadd.f32 %v1764, %v1900
        %v1946 = vadd.f32 %v1765, %v1901
        %v1947 = vadd.f32 %v1766, %v1866
        %v1948 = vadd.f32 %v1767, %v1902
        %v1949 = vadd.f32 %v1768, %v1903
        %v1950 = vadd.f32 %v1769, %v1904
        %v1951 = vadd.f32 %v1770, %v1905
        %v1952 = vadd.f32 %v1771, %v1906
        %v1953 = vadd.f32 %v1772, %v1878
        %v1954 = vadd.f32 %v1773, %v1907
        %v1955 = vadd.f32 %v1774, %v1908
        %v1956 = vadd.f32 %v1775, %v1909
        %v1957 = vadd.f32 %v1776, %v1910
        %v1958 = vadd.f32 %v1777, %v1911
        %v1959 = vadd.f32 %v1778, %v1890
        %1960 = vset.pattern.permute.xlu0 9
        %1961 = vperm.xlu0 %1960, %v440
        %v1962 = vpop.permute.xlu0 %1961
        %1964 = vset.pattern.permute.xlu0 9
        %1965 = vperm.xlu0 %1964, %v441
        %v1966 = vpop.permute.xlu0 %1965
        %1968 = vset.pattern.permute.xlu0 9
        %1969 = vperm.xlu0 %1968, %v442
        %v1970 = vpop.permute.xlu0 %1969
        %1972 = vset.pattern.permute.xlu0 9
        %1973 = vperm.xlu0 %1972, %v443
        %v1974 = vpop.permute.xlu0 %1973
        %v1976 = vmul.f32 %v1962, %v426
        %v1977 = vmul.f32 %v1962, %v427
        %v1978 = vmul.f32 %v1962, %v428
        %v1979 = vmul.f32 %v1962, %v429
        %v1980 = vmul.f32 %v1962, %v430
        %v1981 = vmul.f32 %v1962, %v431
        %v1982 = vmul.f32 %v1966, %v426
        %v1983 = vmul.f32 %v1966, %v427
        %v1984 = vmul.f32 %v1966, %v428
        %v1985 = vmul.f32 %v1966, %v429
        %v1986 = vmul.f32 %v1966, %v430
        %v1987 = vmul.f32 %v1966, %v431
        %v1988 = vmul.f32 %v1970, %v433
        %v1989 = vmul.f32 %v1970, %v434
        %v1990 = vmul.f32 %v1970, %v435
        %v1991 = vmul.f32 %v1970, %v436
        %v1992 = vmul.f32 %v1970, %v437
        %v1993 = vmul.f32 %v1970, %v438
        %v1994 = vmul.f32 %v1974, %v433
        %v1995 = vmul.f32 %v1974, %v434
        %v1996 = vmul.f32 %v1974, %v435
        %v1997 = vmul.f32 %v1974, %v436
        %v1998 = vmul.f32 %v1974, %v437
        %v1999 = vmul.f32 %v1974, %v438
        %2024 = vrot.lane.b32.xlu0 %v1976, 119
        %v2025 = vpop.permute.xlu0 %2024
        %2026 = vrot.lane.b32.xlu0 %v1977, 119
        %v2027 = vpop.permute.xlu0 %2026
        %2028 = vrot.lane.b32.xlu0 %v1978, 119
        %v2029 = vpop.permute.xlu0 %2028
        %2030 = vrot.lane.b32.xlu0 %v1979, 119
        %v2031 = vpop.permute.xlu0 %2030
        %2032 = vrot.lane.b32.xlu0 %v1980, 119
        %v2033 = vpop.permute.xlu0 %2032
        %2034 = vrot.lane.b32.xlu0 %v1981, 119
        %v2035 = vpop.permute.xlu0 %2034
        %2036 = vrot.lane.b32.xlu0 %v1982, 119
        %v2037 = vpop.permute.xlu0 %2036
        %2038 = vrot.lane.b32.xlu0 %v1983, 119
        %v2039 = vpop.permute.xlu0 %2038
        %2040 = vrot.lane.b32.xlu0 %v1984, 119
        %v2041 = vpop.permute.xlu0 %2040
        %2042 = vrot.lane.b32.xlu0 %v1985, 119
        %v2043 = vpop.permute.xlu0 %2042
        %2044 = vrot.lane.b32.xlu0 %v1986, 119
        %v2045 = vpop.permute.xlu0 %2044
        %2046 = vrot.lane.b32.xlu0 %v1987, 119
        %v2047 = vpop.permute.xlu0 %2046
        %2048 = vrot.lane.b32.xlu0 %v1988, 119
        %v2049 = vpop.permute.xlu0 %2048
        %2050 = vrot.lane.b32.xlu0 %v1989, 119
        %v2051 = vpop.permute.xlu0 %2050
        %2052 = vrot.lane.b32.xlu0 %v1990, 119
        %v2053 = vpop.permute.xlu0 %2052
        %2054 = vrot.lane.b32.xlu0 %v1991, 119
        %v2055 = vpop.permute.xlu0 %2054
        %2056 = vrot.lane.b32.xlu0 %v1992, 119
        %v2057 = vpop.permute.xlu0 %2056
        %2058 = vrot.lane.b32.xlu0 %v1993, 119
        %v2059 = vpop.permute.xlu0 %2058
        %2060 = vrot.lane.b32.xlu0 %v1994, 119
        %v2061 = vpop.permute.xlu0 %2060
        %2062 = vrot.lane.b32.xlu0 %v1995, 119
        %v2063 = vpop.permute.xlu0 %2062
        %2064 = vrot.lane.b32.xlu0 %v1996, 119
        %v2065 = vpop.permute.xlu0 %2064
        %2066 = vrot.lane.b32.xlu0 %v1997, 119
        %v2067 = vpop.permute.xlu0 %2066
        %2068 = vrot.lane.b32.xlu0 %v1998, 119
        %v2069 = vpop.permute.xlu0 %2068
        %2070 = vrot.lane.b32.xlu0 %v1999, 119
        %v2071 = vpop.permute.xlu0 %2070
        %vm2072 = vcmask 973824
        %v2073 = vsel %vm2072, %v2025, %v2027
        %v2074 = vsel %vm2072, %v2027, %v2029
        %v2075 = vsel %vm2072, %v2029, %v2031
        %v2076 = vsel %vm2072, %v2031, %v2033
        %v2077 = vsel %vm2072, %v2033, %v2035
        %v2078 = vsel %vm2072, %v2037, %v2039
        %v2079 = vsel %vm2072, %v2039, %v2041
        %v2080 = vsel %vm2072, %v2041, %v2043
        %v2081 = vsel %vm2072, %v2043, %v2045
        %v2082 = vsel %vm2072, %v2045, %v2047
        %v2083 = vsel %vm2072, %v2049, %v2051
        %v2084 = vsel %vm2072, %v2051, %v2053
        %v2085 = vsel %vm2072, %v2053, %v2055
        %v2086 = vsel %vm2072, %v2055, %v2057
        %v2087 = vsel %vm2072, %v2057, %v2059
        %v2088 = vsel %vm2072, %v2061, %v2063
        %v2089 = vsel %vm2072, %v2063, %v2065
        %v2090 = vsel %vm2072, %v2065, %v2067
        %v2091 = vsel %vm2072, %v2067, %v2069
        %v2092 = vsel %vm2072, %v2069, %v2071
        %v2117 = vadd.f32 %v1936, %v2073
        %v2118 = vadd.f32 %v1937, %v2074
        %v2119 = vadd.f32 %v1938, %v2075
        %v2120 = vadd.f32 %v1939, %v2076
        %v2121 = vadd.f32 %v1940, %v2077
        %v2122 = vadd.f32 %v1941, %v2035
        %v2123 = vadd.f32 %v1942, %v2078
        %v2124 = vadd.f32 %v1943, %v2079
        %v2125 = vadd.f32 %v1944, %v2080
        %v2126 = vadd.f32 %v1945, %v2081
        %v2127 = vadd.f32 %v1946, %v2082
        %v2128 = vadd.f32 %v1947, %v2047
        %v2129 = vadd.f32 %v1948, %v2083
        %v2130 = vadd.f32 %v1949, %v2084
        %v2131 = vadd.f32 %v1950, %v2085
        %v2132 = vadd.f32 %v1951, %v2086
        %v2133 = vadd.f32 %v1952, %v2087
        %v2134 = vadd.f32 %v1953, %v2059
        %v2135 = vadd.f32 %v1954, %v2088
        %v2136 = vadd.f32 %v1955, %v2089
        %v2137 = vadd.f32 %v1956, %v2090
        %v2138 = vadd.f32 %v1957, %v2091
        %v2139 = vadd.f32 %v1958, %v2092
        %v2140 = vadd.f32 %v1959, %v2071
        %2141 = vset.pattern.permute.xlu0 10
        %2142 = vperm.xlu0 %2141, %v440
        %v2143 = vpop.permute.xlu0 %2142
        %2145 = vset.pattern.permute.xlu0 10
        %2146 = vperm.xlu0 %2145, %v441
        %v2147 = vpop.permute.xlu0 %2146
        %2149 = vset.pattern.permute.xlu0 10
        %2150 = vperm.xlu0 %2149, %v442
        %v2151 = vpop.permute.xlu0 %2150
        %2153 = vset.pattern.permute.xlu0 10
        %2154 = vperm.xlu0 %2153, %v443
        %v2155 = vpop.permute.xlu0 %2154
        %v2157 = vmul.f32 %v2143, %v426
        %v2158 = vmul.f32 %v2143, %v427
        %v2159 = vmul.f32 %v2143, %v428
        %v2160 = vmul.f32 %v2143, %v429
        %v2161 = vmul.f32 %v2143, %v430
        %v2162 = vmul.f32 %v2143, %v431
        %v2163 = vmul.f32 %v2147, %v426
        %v2164 = vmul.f32 %v2147, %v427
        %v2165 = vmul.f32 %v2147, %v428
        %v2166 = vmul.f32 %v2147, %v429
        %v2167 = vmul.f32 %v2147, %v430
        %v2168 = vmul.f32 %v2147, %v431
        %v2169 = vmul.f32 %v2151, %v433
        %v2170 = vmul.f32 %v2151, %v434
        %v2171 = vmul.f32 %v2151, %v435
        %v2172 = vmul.f32 %v2151, %v436
        %v2173 = vmul.f32 %v2151, %v437
        %v2174 = vmul.f32 %v2151, %v438
        %v2175 = vmul.f32 %v2155, %v433
        %v2176 = vmul.f32 %v2155, %v434
        %v2177 = vmul.f32 %v2155, %v435
        %v2178 = vmul.f32 %v2155, %v436
        %v2179 = vmul.f32 %v2155, %v437
        %v2180 = vmul.f32 %v2155, %v438
        %2205 = vrot.lane.b32.xlu0 %v2157, 118
        %v2206 = vpop.permute.xlu0 %2205
        %2207 = vrot.lane.b32.xlu0 %v2158, 118
        %v2208 = vpop.permute.xlu0 %2207
        %2209 = vrot.lane.b32.xlu0 %v2159, 118
        %v2210 = vpop.permute.xlu0 %2209
        %2211 = vrot.lane.b32.xlu0 %v2160, 118
        %v2212 = vpop.permute.xlu0 %2211
        %2213 = vrot.lane.b32.xlu0 %v2161, 118
        %v2214 = vpop.permute.xlu0 %2213
        %2215 = vrot.lane.b32.xlu0 %v2162, 118
        %v2216 = vpop.permute.xlu0 %2215
        %2217 = vrot.lane.b32.xlu0 %v2163, 118
        %v2218 = vpop.permute.xlu0 %2217
        %2219 = vrot.lane.b32.xlu0 %v2164, 118
        %v2220 = vpop.permute.xlu0 %2219
        %2221 = vrot.lane.b32.xlu0 %v2165, 118
        %v2222 = vpop.permute.xlu0 %2221
        %2223 = vrot.lane.b32.xlu0 %v2166, 118
        %v2224 = vpop.permute.xlu0 %2223
        %2225 = vrot.lane.b32.xlu0 %v2167, 118
        %v2226 = vpop.permute.xlu0 %2225
        %2227 = vrot.lane.b32.xlu0 %v2168, 118
        %v2228 = vpop.permute.xlu0 %2227
        %2229 = vrot.lane.b32.xlu0 %v2169, 118
        %v2230 = vpop.permute.xlu0 %2229
        %2231 = vrot.lane.b32.xlu0 %v2170, 118
        %v2232 = vpop.permute.xlu0 %2231
        %2233 = vrot.lane.b32.xlu0 %v2171, 118
        %v2234 = vpop.permute.xlu0 %2233
        %2235 = vrot.lane.b32.xlu0 %v2172, 118
        %v2236 = vpop.permute.xlu0 %2235
        %2237 = vrot.lane.b32.xlu0 %v2173, 118
        %v2238 = vpop.permute.xlu0 %2237
        %2239 = vrot.lane.b32.xlu0 %v2174, 118
        %v2240 = vpop.permute.xlu0 %2239
        %2241 = vrot.lane.b32.xlu0 %v2175, 118
        %v2242 = vpop.permute.xlu0 %2241
        %2243 = vrot.lane.b32.xlu0 %v2176, 118
        %v2244 = vpop.permute.xlu0 %2243
        %2245 = vrot.lane.b32.xlu0 %v2177, 118
        %v2246 = vpop.permute.xlu0 %2245
        %2247 = vrot.lane.b32.xlu0 %v2178, 118
        %v2248 = vpop.permute.xlu0 %2247
        %2249 = vrot.lane.b32.xlu0 %v2179, 118
        %v2250 = vpop.permute.xlu0 %2249
        %2251 = vrot.lane.b32.xlu0 %v2180, 118
        %v2252 = vpop.permute.xlu0 %2251
        %vm2253 = vcmask 965632
        %v2254 = vsel %vm2253, %v2206, %v2208
        %v2255 = vsel %vm2253, %v2208, %v2210
        %v2256 = vsel %vm2253, %v2210, %v2212
        %v2257 = vsel %vm2253, %v2212, %v2214
        %v2258 = vsel %vm2253, %v2214, %v2216
        %v2259 = vsel %vm2253, %v2218, %v2220
        %v2260 = vsel %vm2253, %v2220, %v2222
        %v2261 = vsel %vm2253, %v2222, %v2224
        %v2262 = vsel %vm2253, %v2224, %v2226
        %v2263 = vsel %vm2253, %v2226, %v2228
        %v2264 = vsel %vm2253, %v2230, %v2232
        %v2265 = vsel %vm2253, %v2232, %v2234
        %v2266 = vsel %vm2253, %v2234, %v2236
        %v2267 = vsel %vm2253, %v2236, %v2238
        %v2268 = vsel %vm2253, %v2238, %v2240
        %v2269 = vsel %vm2253, %v2242, %v2244
        %v2270 = vsel %vm2253, %v2244, %v2246
        %v2271 = vsel %vm2253, %v2246, %v2248
        %v2272 = vsel %vm2253, %v2248, %v2250
        %v2273 = vsel %vm2253, %v2250, %v2252
        %v2298 = vadd.f32 %v2117, %v2254
        %v2299 = vadd.f32 %v2118, %v2255
        %v2300 = vadd.f32 %v2119, %v2256
        %v2301 = vadd.f32 %v2120, %v2257
        %v2302 = vadd.f32 %v2121, %v2258
        %v2303 = vadd.f32 %v2122, %v2216
        %v2304 = vadd.f32 %v2123, %v2259
        %v2305 = vadd.f32 %v2124, %v2260
        %v2306 = vadd.f32 %v2125, %v2261
        %v2307 = vadd.f32 %v2126, %v2262
        %v2308 = vadd.f32 %v2127, %v2263
        %v2309 = vadd.f32 %v2128, %v2228
        %v2310 = vadd.f32 %v2129, %v2264
        %v2311 = vadd.f32 %v2130, %v2265
        %v2312 = vadd.f32 %v2131, %v2266
        %v2313 = vadd.f32 %v2132, %v2267
        %v2314 = vadd.f32 %v2133, %v2268
        %v2315 = vadd.f32 %v2134, %v2240
        %v2316 = vadd.f32 %v2135, %v2269
        %v2317 = vadd.f32 %v2136, %v2270
        %v2318 = vadd.f32 %v2137, %v2271
        %v2319 = vadd.f32 %v2138, %v2272
        %v2320 = vadd.f32 %v2139, %v2273
        %v2321 = vadd.f32 %v2140, %v2252
        %2322 = vset.pattern.permute.xlu0 11
        %2323 = vperm.xlu0 %2322, %v440
        %v2324 = vpop.permute.xlu0 %2323
        %2326 = vset.pattern.permute.xlu0 11
        %2327 = vperm.xlu0 %2326, %v441
        %v2328 = vpop.permute.xlu0 %2327
        %2330 = vset.pattern.permute.xlu0 11
        %2331 = vperm.xlu0 %2330, %v442
        %v2332 = vpop.permute.xlu0 %2331
        %2334 = vset.pattern.permute.xlu0 11
        %2335 = vperm.xlu0 %2334, %v443
        %v2336 = vpop.permute.xlu0 %2335
        %v2338 = vmul.f32 %v2324, %v426
        %v2339 = vmul.f32 %v2324, %v427
        %v2340 = vmul.f32 %v2324, %v428
        %v2341 = vmul.f32 %v2324, %v429
        %v2342 = vmul.f32 %v2324, %v430
        %v2343 = vmul.f32 %v2324, %v431
        %v2344 = vmul.f32 %v2328, %v426
        %v2345 = vmul.f32 %v2328, %v427
        %v2346 = vmul.f32 %v2328, %v428
        %v2347 = vmul.f32 %v2328, %v429
        %v2348 = vmul.f32 %v2328, %v430
        %v2349 = vmul.f32 %v2328, %v431
        %v2350 = vmul.f32 %v2332, %v433
        %v2351 = vmul.f32 %v2332, %v434
        %v2352 = vmul.f32 %v2332, %v435
        %v2353 = vmul.f32 %v2332, %v436
        %v2354 = vmul.f32 %v2332, %v437
        %v2355 = vmul.f32 %v2332, %v438
        %v2356 = vmul.f32 %v2336, %v433
        %v2357 = vmul.f32 %v2336, %v434
        %v2358 = vmul.f32 %v2336, %v435
        %v2359 = vmul.f32 %v2336, %v436
        %v2360 = vmul.f32 %v2336, %v437
        %v2361 = vmul.f32 %v2336, %v438
        %2386 = vrot.lane.b32.xlu0 %v2338, 117
        %v2387 = vpop.permute.xlu0 %2386
        %2388 = vrot.lane.b32.xlu0 %v2339, 117
        %v2389 = vpop.permute.xlu0 %2388
        %2390 = vrot.lane.b32.xlu0 %v2340, 117
        %v2391 = vpop.permute.xlu0 %2390
        %2392 = vrot.lane.b32.xlu0 %v2341, 117
        %v2393 = vpop.permute.xlu0 %2392
        %2394 = vrot.lane.b32.xlu0 %v2342, 117
        %v2395 = vpop.permute.xlu0 %2394
        %2396 = vrot.lane.b32.xlu0 %v2343, 117
        %v2397 = vpop.permute.xlu0 %2396
        %2398 = vrot.lane.b32.xlu0 %v2344, 117
        %v2399 = vpop.permute.xlu0 %2398
        %2400 = vrot.lane.b32.xlu0 %v2345, 117
        %v2401 = vpop.permute.xlu0 %2400
        %2402 = vrot.lane.b32.xlu0 %v2346, 117
        %v2403 = vpop.permute.xlu0 %2402
        %2404 = vrot.lane.b32.xlu0 %v2347, 117
        %v2405 = vpop.permute.xlu0 %2404
        %2406 = vrot.lane.b32.xlu0 %v2348, 117
        %v2407 = vpop.permute.xlu0 %2406
        %2408 = vrot.lane.b32.xlu0 %v2349, 117
        %v2409 = vpop.permute.xlu0 %2408
        %2410 = vrot.lane.b32.xlu0 %v2350, 117
        %v2411 = vpop.permute.xlu0 %2410
        %2412 = vrot.lane.b32.xlu0 %v2351, 117
        %v2413 = vpop.permute.xlu0 %2412
        %2414 = vrot.lane.b32.xlu0 %v2352, 117
        %v2415 = vpop.permute.xlu0 %2414
        %2416 = vrot.lane.b32.xlu0 %v2353, 117
        %v2417 = vpop.permute.xlu0 %2416
        %2418 = vrot.lane.b32.xlu0 %v2354, 117
        %v2419 = vpop.permute.xlu0 %2418
        %2420 = vrot.lane.b32.xlu0 %v2355, 117
        %v2421 = vpop.permute.xlu0 %2420
        %2422 = vrot.lane.b32.xlu0 %v2356, 117
        %v2423 = vpop.permute.xlu0 %2422
        %2424 = vrot.lane.b32.xlu0 %v2357, 117
        %v2425 = vpop.permute.xlu0 %2424
        %2426 = vrot.lane.b32.xlu0 %v2358, 117
        %v2427 = vpop.permute.xlu0 %2426
        %2428 = vrot.lane.b32.xlu0 %v2359, 117
        %v2429 = vpop.permute.xlu0 %2428
        %2430 = vrot.lane.b32.xlu0 %v2360, 117
        %v2431 = vpop.permute.xlu0 %2430
        %2432 = vrot.lane.b32.xlu0 %v2361, 117
        %v2433 = vpop.permute.xlu0 %2432
        %vm2434 = vcmask 957440
        %v2435 = vsel %vm2434, %v2387, %v2389
        %v2436 = vsel %vm2434, %v2389, %v2391
        %v2437 = vsel %vm2434, %v2391, %v2393
        %v2438 = vsel %vm2434, %v2393, %v2395
        %v2439 = vsel %vm2434, %v2395, %v2397
        %v2440 = vsel %vm2434, %v2399, %v2401
        %v2441 = vsel %vm2434, %v2401, %v2403
        %v2442 = vsel %vm2434, %v2403, %v2405
        %v2443 = vsel %vm2434, %v2405, %v2407
        %v2444 = vsel %vm2434, %v2407, %v2409
        %v2445 = vsel %vm2434, %v2411, %v2413
        %v2446 = vsel %vm2434, %v2413, %v2415
        %v2447 = vsel %vm2434, %v2415, %v2417
        %v2448 = vsel %vm2434, %v2417, %v2419
        %v2449 = vsel %vm2434, %v2419, %v2421
        %v2450 = vsel %vm2434, %v2423, %v2425
        %v2451 = vsel %vm2434, %v2425, %v2427
        %v2452 = vsel %vm2434, %v2427, %v2429
        %v2453 = vsel %vm2434, %v2429, %v2431
        %v2454 = vsel %vm2434, %v2431, %v2433
        %v2479 = vadd.f32 %v2298, %v2435
        %v2480 = vadd.f32 %v2299, %v2436
        %v2481 = vadd.f32 %v2300, %v2437
        %v2482 = vadd.f32 %v2301, %v2438
        %v2483 = vadd.f32 %v2302, %v2439
        %v2484 = vadd.f32 %v2303, %v2397
        %v2485 = vadd.f32 %v2304, %v2440
        %v2486 = vadd.f32 %v2305, %v2441
        %v2487 = vadd.f32 %v2306, %v2442
        %v2488 = vadd.f32 %v2307, %v2443
        %v2489 = vadd.f32 %v2308, %v2444
        %v2490 = vadd.f32 %v2309, %v2409
        %v2491 = vadd.f32 %v2310, %v2445
        %v2492 = vadd.f32 %v2311, %v2446
        %v2493 = vadd.f32 %v2312, %v2447
        %v2494 = vadd.f32 %v2313, %v2448
        %v2495 = vadd.f32 %v2314, %v2449
        %v2496 = vadd.f32 %v2315, %v2421
        %v2497 = vadd.f32 %v2316, %v2450
        %v2498 = vadd.f32 %v2317, %v2451
        %v2499 = vadd.f32 %v2318, %v2452
        %v2500 = vadd.f32 %v2319, %v2453
        %v2501 = vadd.f32 %v2320, %v2454
        %v2502 = vadd.f32 %v2321, %v2433
        %2503 = vset.pattern.permute.xlu0 12
        %2504 = vperm.xlu0 %2503, %v440
        %v2505 = vpop.permute.xlu0 %2504
        %2507 = vset.pattern.permute.xlu0 12
        %2508 = vperm.xlu0 %2507, %v441
        %v2509 = vpop.permute.xlu0 %2508
        %2511 = vset.pattern.permute.xlu0 12
        %2512 = vperm.xlu0 %2511, %v442
        %v2513 = vpop.permute.xlu0 %2512
        %2515 = vset.pattern.permute.xlu0 12
        %2516 = vperm.xlu0 %2515, %v443
        %v2517 = vpop.permute.xlu0 %2516
        %v2519 = vmul.f32 %v2505, %v426
        %v2520 = vmul.f32 %v2505, %v427
        %v2521 = vmul.f32 %v2505, %v428
        %v2522 = vmul.f32 %v2505, %v429
        %v2523 = vmul.f32 %v2505, %v430
        %v2524 = vmul.f32 %v2505, %v431
        %v2525 = vmul.f32 %v2509, %v426
        %v2526 = vmul.f32 %v2509, %v427
        %v2527 = vmul.f32 %v2509, %v428
        %v2528 = vmul.f32 %v2509, %v429
        %v2529 = vmul.f32 %v2509, %v430
        %v2530 = vmul.f32 %v2509, %v431
        %v2531 = vmul.f32 %v2513, %v433
        %v2532 = vmul.f32 %v2513, %v434
        %v2533 = vmul.f32 %v2513, %v435
        %v2534 = vmul.f32 %v2513, %v436
        %v2535 = vmul.f32 %v2513, %v437
        %v2536 = vmul.f32 %v2513, %v438
        %v2537 = vmul.f32 %v2517, %v433
        %v2538 = vmul.f32 %v2517, %v434
        %v2539 = vmul.f32 %v2517, %v435
        %v2540 = vmul.f32 %v2517, %v436
        %v2541 = vmul.f32 %v2517, %v437
        %v2542 = vmul.f32 %v2517, %v438
        %2567 = vrot.lane.b32.xlu0 %v2519, 116
        %v2568 = vpop.permute.xlu0 %2567
        %2569 = vrot.lane.b32.xlu0 %v2520, 116
        %v2570 = vpop.permute.xlu0 %2569
        %2571 = vrot.lane.b32.xlu0 %v2521, 116
        %v2572 = vpop.permute.xlu0 %2571
        %2573 = vrot.lane.b32.xlu0 %v2522, 116
        %v2574 = vpop.permute.xlu0 %2573
        %2575 = vrot.lane.b32.xlu0 %v2523, 116
        %v2576 = vpop.permute.xlu0 %2575
        %2577 = vrot.lane.b32.xlu0 %v2524, 116
        %v2578 = vpop.permute.xlu0 %2577
        %2579 = vrot.lane.b32.xlu0 %v2525, 116
        %v2580 = vpop.permute.xlu0 %2579
        %2581 = vrot.lane.b32.xlu0 %v2526, 116
        %v2582 = vpop.permute.xlu0 %2581
        %2583 = vrot.lane.b32.xlu0 %v2527, 116
        %v2584 = vpop.permute.xlu0 %2583
        %2585 = vrot.lane.b32.xlu0 %v2528, 116
        %v2586 = vpop.permute.xlu0 %2585
        %2587 = vrot.lane.b32.xlu0 %v2529, 116
        %v2588 = vpop.permute.xlu0 %2587
        %2589 = vrot.lane.b32.xlu0 %v2530, 116
        %v2590 = vpop.permute.xlu0 %2589
        %2591 = vrot.lane.b32.xlu0 %v2531, 116
        %v2592 = vpop.permute.xlu0 %2591
        %2593 = vrot.lane.b32.xlu0 %v2532, 116
        %v2594 = vpop.permute.xlu0 %2593
        %2595 = vrot.lane.b32.xlu0 %v2533, 116
        %v2596 = vpop.permute.xlu0 %2595
        %2597 = vrot.lane.b32.xlu0 %v2534, 116
        %v2598 = vpop.permute.xlu0 %2597
        %2599 = vrot.lane.b32.xlu0 %v2535, 116
        %v2600 = vpop.permute.xlu0 %2599
        %2601 = vrot.lane.b32.xlu0 %v2536, 116
        %v2602 = vpop.permute.xlu0 %2601
        %2603 = vrot.lane.b32.xlu0 %v2537, 116
        %v2604 = vpop.permute.xlu0 %2603
        %2605 = vrot.lane.b32.xlu0 %v2538, 116
        %v2606 = vpop.permute.xlu0 %2605
        %2607 = vrot.lane.b32.xlu0 %v2539, 116
        %v2608 = vpop.permute.xlu0 %2607
        %2609 = vrot.lane.b32.xlu0 %v2540, 116
        %v2610 = vpop.permute.xlu0 %2609
        %2611 = vrot.lane.b32.xlu0 %v2541, 116
        %v2612 = vpop.permute.xlu0 %2611
        %2613 = vrot.lane.b32.xlu0 %v2542, 116
        %v2614 = vpop.permute.xlu0 %2613
        %vm2615 = vcmask 949248
        %v2616 = vsel %vm2615, %v2568, %v2570
        %v2617 = vsel %vm2615, %v2570, %v2572
        %v2618 = vsel %vm2615, %v2572, %v2574
        %v2619 = vsel %vm2615, %v2574, %v2576
        %v2620 = vsel %vm2615, %v2576, %v2578
        %v2621 = vsel %vm2615, %v2580, %v2582
        %v2622 = vsel %vm2615, %v2582, %v2584
        %v2623 = vsel %vm2615, %v2584, %v2586
        %v2624 = vsel %vm2615, %v2586, %v2588
        %v2625 = vsel %vm2615, %v2588, %v2590
        %v2626 = vsel %vm2615, %v2592, %v2594
        %v2627 = vsel %vm2615, %v2594, %v2596
        %v2628 = vsel %vm2615, %v2596, %v2598
        %v2629 = vsel %vm2615, %v2598, %v2600
        %v2630 = vsel %vm2615, %v2600, %v2602
        %v2631 = vsel %vm2615, %v2604, %v2606
        %v2632 = vsel %vm2615, %v2606, %v2608
        %v2633 = vsel %vm2615, %v2608, %v2610
        %v2634 = vsel %vm2615, %v2610, %v2612
        %v2635 = vsel %vm2615, %v2612, %v2614
        %v2660 = vadd.f32 %v2479, %v2616
        %v2661 = vadd.f32 %v2480, %v2617
        %v2662 = vadd.f32 %v2481, %v2618
        %v2663 = vadd.f32 %v2482, %v2619
        %v2664 = vadd.f32 %v2483, %v2620
        %v2665 = vadd.f32 %v2484, %v2578
        %v2666 = vadd.f32 %v2485, %v2621
        %v2667 = vadd.f32 %v2486, %v2622
        %v2668 = vadd.f32 %v2487, %v2623
        %v2669 = vadd.f32 %v2488, %v2624
        %v2670 = vadd.f32 %v2489, %v2625
        %v2671 = vadd.f32 %v2490, %v2590
        %v2672 = vadd.f32 %v2491, %v2626
        %v2673 = vadd.f32 %v2492, %v2627
        %v2674 = vadd.f32 %v2493, %v2628
        %v2675 = vadd.f32 %v2494, %v2629
        %v2676 = vadd.f32 %v2495, %v2630
        %v2677 = vadd.f32 %v2496, %v2602
        %v2678 = vadd.f32 %v2497, %v2631
        %v2679 = vadd.f32 %v2498, %v2632
        %v2680 = vadd.f32 %v2499, %v2633
        %v2681 = vadd.f32 %v2500, %v2634
        %v2682 = vadd.f32 %v2501, %v2635
        %v2683 = vadd.f32 %v2502, %v2614
        %2684 = vset.pattern.permute.xlu0 13
        %2685 = vperm.xlu0 %2684, %v440
        %v2686 = vpop.permute.xlu0 %2685
        %2688 = vset.pattern.permute.xlu0 13
        %2689 = vperm.xlu0 %2688, %v441
        %v2690 = vpop.permute.xlu0 %2689
        %2692 = vset.pattern.permute.xlu0 13
        %2693 = vperm.xlu0 %2692, %v442
        %v2694 = vpop.permute.xlu0 %2693
        %2696 = vset.pattern.permute.xlu0 13
        %2697 = vperm.xlu0 %2696, %v443
        %v2698 = vpop.permute.xlu0 %2697
        %v2700 = vmul.f32 %v2686, %v426
        %v2701 = vmul.f32 %v2686, %v427
        %v2702 = vmul.f32 %v2686, %v428
        %v2703 = vmul.f32 %v2686, %v429
        %v2704 = vmul.f32 %v2686, %v430
        %v2705 = vmul.f32 %v2686, %v431
        %v2706 = vmul.f32 %v2690, %v426
        %v2707 = vmul.f32 %v2690, %v427
        %v2708 = vmul.f32 %v2690, %v428
        %v2709 = vmul.f32 %v2690, %v429
        %v2710 = vmul.f32 %v2690, %v430
        %v2711 = vmul.f32 %v2690, %v431
        %v2712 = vmul.f32 %v2694, %v433
        %v2713 = vmul.f32 %v2694, %v434
        %v2714 = vmul.f32 %v2694, %v435
        %v2715 = vmul.f32 %v2694, %v436
        %v2716 = vmul.f32 %v2694, %v437
        %v2717 = vmul.f32 %v2694, %v438
        %v2718 = vmul.f32 %v2698, %v433
        %v2719 = vmul.f32 %v2698, %v434
        %v2720 = vmul.f32 %v2698, %v435
        %v2721 = vmul.f32 %v2698, %v436
        %v2722 = vmul.f32 %v2698, %v437
        %v2723 = vmul.f32 %v2698, %v438
        %2748 = vrot.lane.b32.xlu0 %v2700, 115
        %v2749 = vpop.permute.xlu0 %2748
        %2750 = vrot.lane.b32.xlu0 %v2701, 115
        %v2751 = vpop.permute.xlu0 %2750
        %2752 = vrot.lane.b32.xlu0 %v2702, 115
        %v2753 = vpop.permute.xlu0 %2752
        %2754 = vrot.lane.b32.xlu0 %v2703, 115
        %v2755 = vpop.permute.xlu0 %2754
        %2756 = vrot.lane.b32.xlu0 %v2704, 115
        %v2757 = vpop.permute.xlu0 %2756
        %2758 = vrot.lane.b32.xlu0 %v2705, 115
        %v2759 = vpop.permute.xlu0 %2758
        %2760 = vrot.lane.b32.xlu0 %v2706, 115
        %v2761 = vpop.permute.xlu0 %2760
        %2762 = vrot.lane.b32.xlu0 %v2707, 115
        %v2763 = vpop.permute.xlu0 %2762
        %2764 = vrot.lane.b32.xlu0 %v2708, 115
        %v2765 = vpop.permute.xlu0 %2764
        %2766 = vrot.lane.b32.xlu0 %v2709, 115
        %v2767 = vpop.permute.xlu0 %2766
        %2768 = vrot.lane.b32.xlu0 %v2710, 115
        %v2769 = vpop.permute.xlu0 %2768
        %2770 = vrot.lane.b32.xlu0 %v2711, 115
        %v2771 = vpop.permute.xlu0 %2770
        %2772 = vrot.lane.b32.xlu0 %v2712, 115
        %v2773 = vpop.permute.xlu0 %2772
        %2774 = vrot.lane.b32.xlu0 %v2713, 115
        %v2775 = vpop.permute.xlu0 %2774
        %2776 = vrot.lane.b32.xlu0 %v2714, 115
        %v2777 = vpop.permute.xlu0 %2776
        %2778 = vrot.lane.b32.xlu0 %v2715, 115
        %v2779 = vpop.permute.xlu0 %2778
        %2780 = vrot.lane.b32.xlu0 %v2716, 115
        %v2781 = vpop.permute.xlu0 %2780
        %2782 = vrot.lane.b32.xlu0 %v2717, 115
        %v2783 = vpop.permute.xlu0 %2782
        %2784 = vrot.lane.b32.xlu0 %v2718, 115
        %v2785 = vpop.permute.xlu0 %2784
        %2786 = vrot.lane.b32.xlu0 %v2719, 115
        %v2787 = vpop.permute.xlu0 %2786
        %2788 = vrot.lane.b32.xlu0 %v2720, 115
        %v2789 = vpop.permute.xlu0 %2788
        %2790 = vrot.lane.b32.xlu0 %v2721, 115
        %v2791 = vpop.permute.xlu0 %2790
        %2792 = vrot.lane.b32.xlu0 %v2722, 115
        %v2793 = vpop.permute.xlu0 %2792
        %2794 = vrot.lane.b32.xlu0 %v2723, 115
        %v2795 = vpop.permute.xlu0 %2794
        %vm2796 = vcmask 941056
        %v2797 = vsel %vm2796, %v2749, %v2751
        %v2798 = vsel %vm2796, %v2751, %v2753
        %v2799 = vsel %vm2796, %v2753, %v2755
        %v2800 = vsel %vm2796, %v2755, %v2757
        %v2801 = vsel %vm2796, %v2757, %v2759
        %v2802 = vsel %vm2796, %v2761, %v2763
        %v2803 = vsel %vm2796, %v2763, %v2765
        %v2804 = vsel %vm2796, %v2765, %v2767
        %v2805 = vsel %vm2796, %v2767, %v2769
        %v2806 = vsel %vm2796, %v2769, %v2771
        %v2807 = vsel %vm2796, %v2773, %v2775
        %v2808 = vsel %vm2796, %v2775, %v2777
        %v2809 = vsel %vm2796, %v2777, %v2779
        %v2810 = vsel %vm2796, %v2779, %v2781
        %v2811 = vsel %vm2796, %v2781, %v2783
        %v2812 = vsel %vm2796, %v2785, %v2787
        %v2813 = vsel %vm2796, %v2787, %v2789
        %v2814 = vsel %vm2796, %v2789, %v2791
        %v2815 = vsel %vm2796, %v2791, %v2793
        %v2816 = vsel %vm2796, %v2793, %v2795
        %v2841 = vadd.f32 %v2660, %v2797
        %v2842 = vadd.f32 %v2661, %v2798
        %v2843 = vadd.f32 %v2662, %v2799
        %v2844 = vadd.f32 %v2663, %v2800
        %v2845 = vadd.f32 %v2664, %v2801
        %v2846 = vadd.f32 %v2665, %v2759
        %v2847 = vadd.f32 %v2666, %v2802
        %v2848 = vadd.f32 %v2667, %v2803
        %v2849 = vadd.f32 %v2668, %v2804
        %v2850 = vadd.f32 %v2669, %v2805
        %v2851 = vadd.f32 %v2670, %v2806
        %v2852 = vadd.f32 %v2671, %v2771
        %v2853 = vadd.f32 %v2672, %v2807
        %v2854 = vadd.f32 %v2673, %v2808
        %v2855 = vadd.f32 %v2674, %v2809
        %v2856 = vadd.f32 %v2675, %v2810
        %v2857 = vadd.f32 %v2676, %v2811
        %v2858 = vadd.f32 %v2677, %v2783
        %v2859 = vadd.f32 %v2678, %v2812
        %v2860 = vadd.f32 %v2679, %v2813
        %v2861 = vadd.f32 %v2680, %v2814
        %v2862 = vadd.f32 %v2681, %v2815
        %v2863 = vadd.f32 %v2682, %v2816
        %v2864 = vadd.f32 %v2683, %v2795
        %2865 = vset.pattern.permute.xlu0 14
        %2866 = vperm.xlu0 %2865, %v440
        %v2867 = vpop.permute.xlu0 %2866
        %2869 = vset.pattern.permute.xlu0 14
        %2870 = vperm.xlu0 %2869, %v441
        %v2871 = vpop.permute.xlu0 %2870
        %2873 = vset.pattern.permute.xlu0 14
        %2874 = vperm.xlu0 %2873, %v442
        %v2875 = vpop.permute.xlu0 %2874
        %2877 = vset.pattern.permute.xlu0 14
        %2878 = vperm.xlu0 %2877, %v443
        %v2879 = vpop.permute.xlu0 %2878
        %v2881 = vmul.f32 %v2867, %v426
        %v2882 = vmul.f32 %v2867, %v427
        %v2883 = vmul.f32 %v2867, %v428
        %v2884 = vmul.f32 %v2867, %v429
        %v2885 = vmul.f32 %v2867, %v430
        %v2886 = vmul.f32 %v2867, %v431
        %v2887 = vmul.f32 %v2871, %v426
        %v2888 = vmul.f32 %v2871, %v427
        %v2889 = vmul.f32 %v2871, %v428
        %v2890 = vmul.f32 %v2871, %v429
        %v2891 = vmul.f32 %v2871, %v430
        %v2892 = vmul.f32 %v2871, %v431
        %v2893 = vmul.f32 %v2875, %v433
        %v2894 = vmul.f32 %v2875, %v434
        %v2895 = vmul.f32 %v2875, %v435
        %v2896 = vmul.f32 %v2875, %v436
        %v2897 = vmul.f32 %v2875, %v437
        %v2898 = vmul.f32 %v2875, %v438
        %v2899 = vmul.f32 %v2879, %v433
        %v2900 = vmul.f32 %v2879, %v434
        %v2901 = vmul.f32 %v2879, %v435
        %v2902 = vmul.f32 %v2879, %v436
        %v2903 = vmul.f32 %v2879, %v437
        %v2904 = vmul.f32 %v2879, %v438
        %2929 = vrot.lane.b32.xlu0 %v2881, 114
        %v2930 = vpop.permute.xlu0 %2929
        %2931 = vrot.lane.b32.xlu0 %v2882, 114
        %v2932 = vpop.permute.xlu0 %2931
        %2933 = vrot.lane.b32.xlu0 %v2883, 114
        %v2934 = vpop.permute.xlu0 %2933
        %2935 = vrot.lane.b32.xlu0 %v2884, 114
        %v2936 = vpop.permute.xlu0 %2935
        %2937 = vrot.lane.b32.xlu0 %v2885, 114
        %v2938 = vpop.permute.xlu0 %2937
        %2939 = vrot.lane.b32.xlu0 %v2886, 114
        %v2940 = vpop.permute.xlu0 %2939
        %2941 = vrot.lane.b32.xlu0 %v2887, 114
        %v2942 = vpop.permute.xlu0 %2941
        %2943 = vrot.lane.b32.xlu0 %v2888, 114
        %v2944 = vpop.permute.xlu0 %2943
        %2945 = vrot.lane.b32.xlu0 %v2889, 114
        %v2946 = vpop.permute.xlu0 %2945
        %2947 = vrot.lane.b32.xlu0 %v2890, 114
        %v2948 = vpop.permute.xlu0 %2947
        %2949 = vrot.lane.b32.xlu0 %v2891, 114
        %v2950 = vpop.permute.xlu0 %2949
        %2951 = vrot.lane.b32.xlu0 %v2892, 114
        %v2952 = vpop.permute.xlu0 %2951
        %2953 = vrot.lane.b32.xlu0 %v2893, 114
        %v2954 = vpop.permute.xlu0 %2953
        %2955 = vrot.lane.b32.xlu0 %v2894, 114
        %v2956 = vpop.permute.xlu0 %2955
        %2957 = vrot.lane.b32.xlu0 %v2895, 114
        %v2958 = vpop.permute.xlu0 %2957
        %2959 = vrot.lane.b32.xlu0 %v2896, 114
        %v2960 = vpop.permute.xlu0 %2959
        %2961 = vrot.lane.b32.xlu0 %v2897, 114
        %v2962 = vpop.permute.xlu0 %2961
        %2963 = vrot.lane.b32.xlu0 %v2898, 114
        %v2964 = vpop.permute.xlu0 %2963
        %2965 = vrot.lane.b32.xlu0 %v2899, 114
        %v2966 = vpop.permute.xlu0 %2965
        %2967 = vrot.lane.b32.xlu0 %v2900, 114
        %v2968 = vpop.permute.xlu0 %2967
        %2969 = vrot.lane.b32.xlu0 %v2901, 114
        %v2970 = vpop.permute.xlu0 %2969
        %2971 = vrot.lane.b32.xlu0 %v2902, 114
        %v2972 = vpop.permute.xlu0 %2971
        %2973 = vrot.lane.b32.xlu0 %v2903, 114
        %v2974 = vpop.permute.xlu0 %2973
        %2975 = vrot.lane.b32.xlu0 %v2904, 114
        %v2976 = vpop.permute.xlu0 %2975
        %vm2977 = vcmask 932864
        %v2978 = vsel %vm2977, %v2930, %v2932
        %v2979 = vsel %vm2977, %v2932, %v2934
        %v2980 = vsel %vm2977, %v2934, %v2936
        %v2981 = vsel %vm2977, %v2936, %v2938
        %v2982 = vsel %vm2977, %v2938, %v2940
        %v2983 = vsel %vm2977, %v2942, %v2944
        %v2984 = vsel %vm2977, %v2944, %v2946
        %v2985 = vsel %vm2977, %v2946, %v2948
        %v2986 = vsel %vm2977, %v2948, %v2950
        %v2987 = vsel %vm2977, %v2950, %v2952
        %v2988 = vsel %vm2977, %v2954, %v2956
        %v2989 = vsel %vm2977, %v2956, %v2958
        %v2990 = vsel %vm2977, %v2958, %v2960
        %v2991 = vsel %vm2977, %v2960, %v2962
        %v2992 = vsel %vm2977, %v2962, %v2964
        %v2993 = vsel %vm2977, %v2966, %v2968
        %v2994 = vsel %vm2977, %v2968, %v2970
        %v2995 = vsel %vm2977, %v2970, %v2972
        %v2996 = vsel %vm2977, %v2972, %v2974
        %v2997 = vsel %vm2977, %v2974, %v2976
        %v3022 = vadd.f32 %v2841, %v2978
        %v3023 = vadd.f32 %v2842, %v2979
        %v3024 = vadd.f32 %v2843, %v2980
        %v3025 = vadd.f32 %v2844, %v2981
        %v3026 = vadd.f32 %v2845, %v2982
        %v3027 = vadd.f32 %v2846, %v2940
        %v3028 = vadd.f32 %v2847, %v2983
        %v3029 = vadd.f32 %v2848, %v2984
        %v3030 = vadd.f32 %v2849, %v2985
        %v3031 = vadd.f32 %v2850, %v2986
        %v3032 = vadd.f32 %v2851, %v2987
        %v3033 = vadd.f32 %v2852, %v2952
        %v3034 = vadd.f32 %v2853, %v2988
        %v3035 = vadd.f32 %v2854, %v2989
        %v3036 = vadd.f32 %v2855, %v2990
        %v3037 = vadd.f32 %v2856, %v2991
        %v3038 = vadd.f32 %v2857, %v2992
        %v3039 = vadd.f32 %v2858, %v2964
        %v3040 = vadd.f32 %v2859, %v2993
        %v3041 = vadd.f32 %v2860, %v2994
        %v3042 = vadd.f32 %v2861, %v2995
        %v3043 = vadd.f32 %v2862, %v2996
        %v3044 = vadd.f32 %v2863, %v2997
        %v3045 = vadd.f32 %v2864, %v2976
        %3046 = vset.pattern.permute.xlu0 15
        %3047 = vperm.xlu0 %3046, %v440
        %v3048 = vpop.permute.xlu0 %3047
        %3050 = vset.pattern.permute.xlu0 15
        %3051 = vperm.xlu0 %3050, %v441
        %v3052 = vpop.permute.xlu0 %3051
        %3054 = vset.pattern.permute.xlu0 15
        %3055 = vperm.xlu0 %3054, %v442
        %v3056 = vpop.permute.xlu0 %3055
        %3058 = vset.pattern.permute.xlu0 15
        %3059 = vperm.xlu0 %3058, %v443
        %v3060 = vpop.permute.xlu0 %3059
        %v3062 = vmul.f32 %v3048, %v426
        %v3063 = vmul.f32 %v3048, %v427
        %v3064 = vmul.f32 %v3048, %v428
        %v3065 = vmul.f32 %v3048, %v429
        %v3066 = vmul.f32 %v3048, %v430
        %v3067 = vmul.f32 %v3048, %v431
        %v3068 = vmul.f32 %v3052, %v426
        %v3069 = vmul.f32 %v3052, %v427
        %v3070 = vmul.f32 %v3052, %v428
        %v3071 = vmul.f32 %v3052, %v429
        %v3072 = vmul.f32 %v3052, %v430
        %v3073 = vmul.f32 %v3052, %v431
        %v3074 = vmul.f32 %v3056, %v433
        %v3075 = vmul.f32 %v3056, %v434
        %v3076 = vmul.f32 %v3056, %v435
        %v3077 = vmul.f32 %v3056, %v436
        %v3078 = vmul.f32 %v3056, %v437
        %v3079 = vmul.f32 %v3056, %v438
        %v3080 = vmul.f32 %v3060, %v433
        %v3081 = vmul.f32 %v3060, %v434
        %v3082 = vmul.f32 %v3060, %v435
        %v3083 = vmul.f32 %v3060, %v436
        %v3084 = vmul.f32 %v3060, %v437
        %v3085 = vmul.f32 %v3060, %v438
        %3110 = vrot.lane.b32.xlu0 %v3062, 113
        %v3111 = vpop.permute.xlu0 %3110
        %3112 = vrot.lane.b32.xlu0 %v3063, 113
        %v3113 = vpop.permute.xlu0 %3112
        %3114 = vrot.lane.b32.xlu0 %v3064, 113
        %v3115 = vpop.permute.xlu0 %3114
        %3116 = vrot.lane.b32.xlu0 %v3065, 113
        %v3117 = vpop.permute.xlu0 %3116
        %3118 = vrot.lane.b32.xlu0 %v3066, 113
        %v3119 = vpop.permute.xlu0 %3118
        %3120 = vrot.lane.b32.xlu0 %v3067, 113
        %v3121 = vpop.permute.xlu0 %3120
        %3122 = vrot.lane.b32.xlu0 %v3068, 113
        %v3123 = vpop.permute.xlu0 %3122
        %3124 = vrot.lane.b32.xlu0 %v3069, 113
        %v3125 = vpop.permute.xlu0 %3124
        %3126 = vrot.lane.b32.xlu0 %v3070, 113
        %v3127 = vpop.permute.xlu0 %3126
        %3128 = vrot.lane.b32.xlu0 %v3071, 113
        %v3129 = vpop.permute.xlu0 %3128
        %3130 = vrot.lane.b32.xlu0 %v3072, 113
        %v3131 = vpop.permute.xlu0 %3130
        %3132 = vrot.lane.b32.xlu0 %v3073, 113
        %v3133 = vpop.permute.xlu0 %3132
        %3134 = vrot.lane.b32.xlu0 %v3074, 113
        %v3135 = vpop.permute.xlu0 %3134
        %3136 = vrot.lane.b32.xlu0 %v3075, 113
        %v3137 = vpop.permute.xlu0 %3136
        %3138 = vrot.lane.b32.xlu0 %v3076, 113
        %v3139 = vpop.permute.xlu0 %3138
        %3140 = vrot.lane.b32.xlu0 %v3077, 113
        %v3141 = vpop.permute.xlu0 %3140
        %3142 = vrot.lane.b32.xlu0 %v3078, 113
        %v3143 = vpop.permute.xlu0 %3142
        %3144 = vrot.lane.b32.xlu0 %v3079, 113
        %v3145 = vpop.permute.xlu0 %3144
        %3146 = vrot.lane.b32.xlu0 %v3080, 113
        %v3147 = vpop.permute.xlu0 %3146
        %3148 = vrot.lane.b32.xlu0 %v3081, 113
        %v3149 = vpop.permute.xlu0 %3148
        %3150 = vrot.lane.b32.xlu0 %v3082, 113
        %v3151 = vpop.permute.xlu0 %3150
        %3152 = vrot.lane.b32.xlu0 %v3083, 113
        %v3153 = vpop.permute.xlu0 %3152
        %3154 = vrot.lane.b32.xlu0 %v3084, 113
        %v3155 = vpop.permute.xlu0 %3154
        %3156 = vrot.lane.b32.xlu0 %v3085, 113
        %v3157 = vpop.permute.xlu0 %3156
        %vm3158 = vcmask 924672
        %v3159 = vsel %vm3158, %v3111, %v3113
        %v3160 = vsel %vm3158, %v3113, %v3115
        %v3161 = vsel %vm3158, %v3115, %v3117
        %v3162 = vsel %vm3158, %v3117, %v3119
        %v3163 = vsel %vm3158, %v3119, %v3121
        %v3164 = vsel %vm3158, %v3123, %v3125
        %v3165 = vsel %vm3158, %v3125, %v3127
        %v3166 = vsel %vm3158, %v3127, %v3129
        %v3167 = vsel %vm3158, %v3129, %v3131
        %v3168 = vsel %vm3158, %v3131, %v3133
        %v3169 = vsel %vm3158, %v3135, %v3137
        %v3170 = vsel %vm3158, %v3137, %v3139
        %v3171 = vsel %vm3158, %v3139, %v3141
        %v3172 = vsel %vm3158, %v3141, %v3143
        %v3173 = vsel %vm3158, %v3143, %v3145
        %v3174 = vsel %vm3158, %v3147, %v3149
        %v3175 = vsel %vm3158, %v3149, %v3151
        %v3176 = vsel %vm3158, %v3151, %v3153
        %v3177 = vsel %vm3158, %v3153, %v3155
        %v3178 = vsel %vm3158, %v3155, %v3157
        %v3203 = vadd.f32 %v3022, %v3159
        %v3204 = vadd.f32 %v3023, %v3160
        %v3205 = vadd.f32 %v3024, %v3161
        %v3206 = vadd.f32 %v3025, %v3162
        %v3207 = vadd.f32 %v3026, %v3163
        %v3208 = vadd.f32 %v3027, %v3121
        %v3209 = vadd.f32 %v3028, %v3164
        %v3210 = vadd.f32 %v3029, %v3165
        %v3211 = vadd.f32 %v3030, %v3166
        %v3212 = vadd.f32 %v3031, %v3167
        %v3213 = vadd.f32 %v3032, %v3168
        %v3214 = vadd.f32 %v3033, %v3133
        %v3215 = vadd.f32 %v3034, %v3169
        %v3216 = vadd.f32 %v3035, %v3170
        %v3217 = vadd.f32 %v3036, %v3171
        %v3218 = vadd.f32 %v3037, %v3172
        %v3219 = vadd.f32 %v3038, %v3173
        %v3220 = vadd.f32 %v3039, %v3145
        %v3221 = vadd.f32 %v3040, %v3174
        %v3222 = vadd.f32 %v3041, %v3175
        %v3223 = vadd.f32 %v3042, %v3176
        %v3224 = vadd.f32 %v3043, %v3177
        %v3225 = vadd.f32 %v3044, %v3178
        %v3226 = vadd.f32 %v3045, %v3157
        %3227 = vset.pattern.permute.xlu0 16
        %3228 = vperm.xlu0 %3227, %v440
        %v3229 = vpop.permute.xlu0 %3228
        %3231 = vset.pattern.permute.xlu0 16
        %3232 = vperm.xlu0 %3231, %v441
        %v3233 = vpop.permute.xlu0 %3232
        %3235 = vset.pattern.permute.xlu0 16
        %3236 = vperm.xlu0 %3235, %v442
        %v3237 = vpop.permute.xlu0 %3236
        %3239 = vset.pattern.permute.xlu0 16
        %3240 = vperm.xlu0 %3239, %v443
        %v3241 = vpop.permute.xlu0 %3240
        %v3243 = vmul.f32 %v3229, %v426
        %v3244 = vmul.f32 %v3229, %v427
        %v3245 = vmul.f32 %v3229, %v428
        %v3246 = vmul.f32 %v3229, %v429
        %v3247 = vmul.f32 %v3229, %v430
        %v3248 = vmul.f32 %v3229, %v431
        %v3249 = vmul.f32 %v3233, %v426
        %v3250 = vmul.f32 %v3233, %v427
        %v3251 = vmul.f32 %v3233, %v428
        %v3252 = vmul.f32 %v3233, %v429
        %v3253 = vmul.f32 %v3233, %v430
        %v3254 = vmul.f32 %v3233, %v431
        %v3255 = vmul.f32 %v3237, %v433
        %v3256 = vmul.f32 %v3237, %v434
        %v3257 = vmul.f32 %v3237, %v435
        %v3258 = vmul.f32 %v3237, %v436
        %v3259 = vmul.f32 %v3237, %v437
        %v3260 = vmul.f32 %v3237, %v438
        %v3261 = vmul.f32 %v3241, %v433
        %v3262 = vmul.f32 %v3241, %v434
        %v3263 = vmul.f32 %v3241, %v435
        %v3264 = vmul.f32 %v3241, %v436
        %v3265 = vmul.f32 %v3241, %v437
        %v3266 = vmul.f32 %v3241, %v438
        %3291 = vrot.lane.b32.xlu0 %v3243, 112
        %v3292 = vpop.permute.xlu0 %3291
        %3293 = vrot.lane.b32.xlu0 %v3244, 112
        %v3294 = vpop.permute.xlu0 %3293
        %3295 = vrot.lane.b32.xlu0 %v3245, 112
        %v3296 = vpop.permute.xlu0 %3295
        %3297 = vrot.lane.b32.xlu0 %v3246, 112
        %v3298 = vpop.permute.xlu0 %3297
        %3299 = vrot.lane.b32.xlu0 %v3247, 112
        %v3300 = vpop.permute.xlu0 %3299
        %3301 = vrot.lane.b32.xlu0 %v3248, 112
        %v3302 = vpop.permute.xlu0 %3301
        %3303 = vrot.lane.b32.xlu0 %v3249, 112
        %v3304 = vpop.permute.xlu0 %3303
        %3305 = vrot.lane.b32.xlu0 %v3250, 112
        %v3306 = vpop.permute.xlu0 %3305
        %3307 = vrot.lane.b32.xlu0 %v3251, 112
        %v3308 = vpop.permute.xlu0 %3307
        %3309 = vrot.lane.b32.xlu0 %v3252, 112
        %v3310 = vpop.permute.xlu0 %3309
        %3311 = vrot.lane.b32.xlu0 %v3253, 112
        %v3312 = vpop.permute.xlu0 %3311
        %3313 = vrot.lane.b32.xlu0 %v3254, 112
        %v3314 = vpop.permute.xlu0 %3313
        %3315 = vrot.lane.b32.xlu0 %v3255, 112
        %v3316 = vpop.permute.xlu0 %3315
        %3317 = vrot.lane.b32.xlu0 %v3256, 112
        %v3318 = vpop.permute.xlu0 %3317
        %3319 = vrot.lane.b32.xlu0 %v3257, 112
        %v3320 = vpop.permute.xlu0 %3319
        %3321 = vrot.lane.b32.xlu0 %v3258, 112
        %v3322 = vpop.permute.xlu0 %3321
        %3323 = vrot.lane.b32.xlu0 %v3259, 112
        %v3324 = vpop.permute.xlu0 %3323
        %3325 = vrot.lane.b32.xlu0 %v3260, 112
        %v3326 = vpop.permute.xlu0 %3325
        %3327 = vrot.lane.b32.xlu0 %v3261, 112
        %v3328 = vpop.permute.xlu0 %3327
        %3329 = vrot.lane.b32.xlu0 %v3262, 112
        %v3330 = vpop.permute.xlu0 %3329
        %3331 = vrot.lane.b32.xlu0 %v3263, 112
        %v3332 = vpop.permute.xlu0 %3331
        %3333 = vrot.lane.b32.xlu0 %v3264, 112
        %v3334 = vpop.permute.xlu0 %3333
        %3335 = vrot.lane.b32.xlu0 %v3265, 112
        %v3336 = vpop.permute.xlu0 %3335
        %3337 = vrot.lane.b32.xlu0 %v3266, 112
        %v3338 = vpop.permute.xlu0 %3337
        %vm3339 = vcmask 916480
        %v3340 = vsel %vm3339, %v3292, %v3294
        %v3341 = vsel %vm3339, %v3294, %v3296
        %v3342 = vsel %vm3339, %v3296, %v3298
        %v3343 = vsel %vm3339, %v3298, %v3300
        %v3344 = vsel %vm3339, %v3300, %v3302
        %v3345 = vsel %vm3339, %v3304, %v3306
        %v3346 = vsel %vm3339, %v3306, %v3308
        %v3347 = vsel %vm3339, %v3308, %v3310
        %v3348 = vsel %vm3339, %v3310, %v3312
        %v3349 = vsel %vm3339, %v3312, %v3314
        %v3350 = vsel %vm3339, %v3316, %v3318
        %v3351 = vsel %vm3339, %v3318, %v3320
        %v3352 = vsel %vm3339, %v3320, %v3322
        %v3353 = vsel %vm3339, %v3322, %v3324
        %v3354 = vsel %vm3339, %v3324, %v3326
        %v3355 = vsel %vm3339, %v3328, %v3330
        %v3356 = vsel %vm3339, %v3330, %v3332
        %v3357 = vsel %vm3339, %v3332, %v3334
        %v3358 = vsel %vm3339, %v3334, %v3336
        %v3359 = vsel %vm3339, %v3336, %v3338
        %v3384 = vadd.f32 %v3203, %v3340
        %v3385 = vadd.f32 %v3204, %v3341
        %v3386 = vadd.f32 %v3205, %v3342
        %v3387 = vadd.f32 %v3206, %v3343
        %v3388 = vadd.f32 %v3207, %v3344
        %v3389 = vadd.f32 %v3208, %v3302
        %v3390 = vadd.f32 %v3209, %v3345
        %v3391 = vadd.f32 %v3210, %v3346
        %v3392 = vadd.f32 %v3211, %v3347
        %v3393 = vadd.f32 %v3212, %v3348
        %v3394 = vadd.f32 %v3213, %v3349
        %v3395 = vadd.f32 %v3214, %v3314
        %v3396 = vadd.f32 %v3215, %v3350
        %v3397 = vadd.f32 %v3216, %v3351
        %v3398 = vadd.f32 %v3217, %v3352
        %v3399 = vadd.f32 %v3218, %v3353
        %v3400 = vadd.f32 %v3219, %v3354
        %v3401 = vadd.f32 %v3220, %v3326
        %v3402 = vadd.f32 %v3221, %v3355
        %v3403 = vadd.f32 %v3222, %v3356
        %v3404 = vadd.f32 %v3223, %v3357
        %v3405 = vadd.f32 %v3224, %v3358
        %v3406 = vadd.f32 %v3225, %v3359
        %v3407 = vadd.f32 %v3226, %v3338
        %3408 = vset.pattern.permute.xlu0 17
        %3409 = vperm.xlu0 %3408, %v440
        %v3410 = vpop.permute.xlu0 %3409
        %3412 = vset.pattern.permute.xlu0 17
        %3413 = vperm.xlu0 %3412, %v441
        %v3414 = vpop.permute.xlu0 %3413
        %3416 = vset.pattern.permute.xlu0 17
        %3417 = vperm.xlu0 %3416, %v442
        %v3418 = vpop.permute.xlu0 %3417
        %3420 = vset.pattern.permute.xlu0 17
        %3421 = vperm.xlu0 %3420, %v443
        %v3422 = vpop.permute.xlu0 %3421
        %v3424 = vmul.f32 %v3410, %v426
        %v3425 = vmul.f32 %v3410, %v427
        %v3426 = vmul.f32 %v3410, %v428
        %v3427 = vmul.f32 %v3410, %v429
        %v3428 = vmul.f32 %v3410, %v430
        %v3429 = vmul.f32 %v3410, %v431
        %v3430 = vmul.f32 %v3414, %v426
        %v3431 = vmul.f32 %v3414, %v427
        %v3432 = vmul.f32 %v3414, %v428
        %v3433 = vmul.f32 %v3414, %v429
        %v3434 = vmul.f32 %v3414, %v430
        %v3435 = vmul.f32 %v3414, %v431
        %v3436 = vmul.f32 %v3418, %v433
        %v3437 = vmul.f32 %v3418, %v434
        %v3438 = vmul.f32 %v3418, %v435
        %v3439 = vmul.f32 %v3418, %v436
        %v3440 = vmul.f32 %v3418, %v437
        %v3441 = vmul.f32 %v3418, %v438
        %v3442 = vmul.f32 %v3422, %v433
        %v3443 = vmul.f32 %v3422, %v434
        %v3444 = vmul.f32 %v3422, %v435
        %v3445 = vmul.f32 %v3422, %v436
        %v3446 = vmul.f32 %v3422, %v437
        %v3447 = vmul.f32 %v3422, %v438
        %3472 = vrot.lane.b32.xlu0 %v3424, 111
        %v3473 = vpop.permute.xlu0 %3472
        %3474 = vrot.lane.b32.xlu0 %v3425, 111
        %v3475 = vpop.permute.xlu0 %3474
        %3476 = vrot.lane.b32.xlu0 %v3426, 111
        %v3477 = vpop.permute.xlu0 %3476
        %3478 = vrot.lane.b32.xlu0 %v3427, 111
        %v3479 = vpop.permute.xlu0 %3478
        %3480 = vrot.lane.b32.xlu0 %v3428, 111
        %v3481 = vpop.permute.xlu0 %3480
        %3482 = vrot.lane.b32.xlu0 %v3429, 111
        %v3483 = vpop.permute.xlu0 %3482
        %3484 = vrot.lane.b32.xlu0 %v3430, 111
        %v3485 = vpop.permute.xlu0 %3484
        %3486 = vrot.lane.b32.xlu0 %v3431, 111
        %v3487 = vpop.permute.xlu0 %3486
        %3488 = vrot.lane.b32.xlu0 %v3432, 111
        %v3489 = vpop.permute.xlu0 %3488
        %3490 = vrot.lane.b32.xlu0 %v3433, 111
        %v3491 = vpop.permute.xlu0 %3490
        %3492 = vrot.lane.b32.xlu0 %v3434, 111
        %v3493 = vpop.permute.xlu0 %3492
        %3494 = vrot.lane.b32.xlu0 %v3435, 111
        %v3495 = vpop.permute.xlu0 %3494
        %3496 = vrot.lane.b32.xlu0 %v3436, 111
        %v3497 = vpop.permute.xlu0 %3496
        %3498 = vrot.lane.b32.xlu0 %v3437, 111
        %v3499 = vpop.permute.xlu0 %3498
        %3500 = vrot.lane.b32.xlu0 %v3438, 111
        %v3501 = vpop.permute.xlu0 %3500
        %3502 = vrot.lane.b32.xlu0 %v3439, 111
        %v3503 = vpop.permute.xlu0 %3502
        %3504 = vrot.lane.b32.xlu0 %v3440, 111
        %v3505 = vpop.permute.xlu0 %3504
        %3506 = vrot.lane.b32.xlu0 %v3441, 111
        %v3507 = vpop.permute.xlu0 %3506
        %3508 = vrot.lane.b32.xlu0 %v3442, 111
        %v3509 = vpop.permute.xlu0 %3508
        %3510 = vrot.lane.b32.xlu0 %v3443, 111
        %v3511 = vpop.permute.xlu0 %3510
        %3512 = vrot.lane.b32.xlu0 %v3444, 111
        %v3513 = vpop.permute.xlu0 %3512
        %3514 = vrot.lane.b32.xlu0 %v3445, 111
        %v3515 = vpop.permute.xlu0 %3514
        %3516 = vrot.lane.b32.xlu0 %v3446, 111
        %v3517 = vpop.permute.xlu0 %3516
        %3518 = vrot.lane.b32.xlu0 %v3447, 111
        %v3519 = vpop.permute.xlu0 %3518
        %vm3520 = vcmask 908288
        %v3521 = vsel %vm3520, %v3473, %v3475
        %v3522 = vsel %vm3520, %v3475, %v3477
        %v3523 = vsel %vm3520, %v3477, %v3479
        %v3524 = vsel %vm3520, %v3479, %v3481
        %v3525 = vsel %vm3520, %v3481, %v3483
        %v3526 = vsel %vm3520, %v3485, %v3487
        %v3527 = vsel %vm3520, %v3487, %v3489
        %v3528 = vsel %vm3520, %v3489, %v3491
        %v3529 = vsel %vm3520, %v3491, %v3493
        %v3530 = vsel %vm3520, %v3493, %v3495
        %v3531 = vsel %vm3520, %v3497, %v3499
        %v3532 = vsel %vm3520, %v3499, %v3501
        %v3533 = vsel %vm3520, %v3501, %v3503
        %v3534 = vsel %vm3520, %v3503, %v3505
        %v3535 = vsel %vm3520, %v3505, %v3507
        %v3536 = vsel %vm3520, %v3509, %v3511
        %v3537 = vsel %vm3520, %v3511, %v3513
        %v3538 = vsel %vm3520, %v3513, %v3515
        %v3539 = vsel %vm3520, %v3515, %v3517
        %v3540 = vsel %vm3520, %v3517, %v3519
        %v3565 = vadd.f32 %v3384, %v3521
        %v3566 = vadd.f32 %v3385, %v3522
        %v3567 = vadd.f32 %v3386, %v3523
        %v3568 = vadd.f32 %v3387, %v3524
        %v3569 = vadd.f32 %v3388, %v3525
        %v3570 = vadd.f32 %v3389, %v3483
        %v3571 = vadd.f32 %v3390, %v3526
        %v3572 = vadd.f32 %v3391, %v3527
        %v3573 = vadd.f32 %v3392, %v3528
        %v3574 = vadd.f32 %v3393, %v3529
        %v3575 = vadd.f32 %v3394, %v3530
        %v3576 = vadd.f32 %v3395, %v3495
        %v3577 = vadd.f32 %v3396, %v3531
        %v3578 = vadd.f32 %v3397, %v3532
        %v3579 = vadd.f32 %v3398, %v3533
        %v3580 = vadd.f32 %v3399, %v3534
        %v3581 = vadd.f32 %v3400, %v3535
        %v3582 = vadd.f32 %v3401, %v3507
        %v3583 = vadd.f32 %v3402, %v3536
        %v3584 = vadd.f32 %v3403, %v3537
        %v3585 = vadd.f32 %v3404, %v3538
        %v3586 = vadd.f32 %v3405, %v3539
        %v3587 = vadd.f32 %v3406, %v3540
        %v3588 = vadd.f32 %v3407, %v3519
        %3589 = vset.pattern.permute.xlu0 18
        %3590 = vperm.xlu0 %3589, %v440
        %v3591 = vpop.permute.xlu0 %3590
        %3593 = vset.pattern.permute.xlu0 18
        %3594 = vperm.xlu0 %3593, %v441
        %v3595 = vpop.permute.xlu0 %3594
        %3597 = vset.pattern.permute.xlu0 18
        %3598 = vperm.xlu0 %3597, %v442
        %v3599 = vpop.permute.xlu0 %3598
        %3601 = vset.pattern.permute.xlu0 18
        %3602 = vperm.xlu0 %3601, %v443
        %v3603 = vpop.permute.xlu0 %3602
        %v3605 = vmul.f32 %v3591, %v426
        %v3606 = vmul.f32 %v3591, %v427
        %v3607 = vmul.f32 %v3591, %v428
        %v3608 = vmul.f32 %v3591, %v429
        %v3609 = vmul.f32 %v3591, %v430
        %v3610 = vmul.f32 %v3591, %v431
        %v3611 = vmul.f32 %v3595, %v426
        %v3612 = vmul.f32 %v3595, %v427
        %v3613 = vmul.f32 %v3595, %v428
        %v3614 = vmul.f32 %v3595, %v429
        %v3615 = vmul.f32 %v3595, %v430
        %v3616 = vmul.f32 %v3595, %v431
        %v3617 = vmul.f32 %v3599, %v433
        %v3618 = vmul.f32 %v3599, %v434
        %v3619 = vmul.f32 %v3599, %v435
        %v3620 = vmul.f32 %v3599, %v436
        %v3621 = vmul.f32 %v3599, %v437
        %v3622 = vmul.f32 %v3599, %v438
        %v3623 = vmul.f32 %v3603, %v433
        %v3624 = vmul.f32 %v3603, %v434
        %v3625 = vmul.f32 %v3603, %v435
        %v3626 = vmul.f32 %v3603, %v436
        %v3627 = vmul.f32 %v3603, %v437
        %v3628 = vmul.f32 %v3603, %v438
        %3653 = vrot.lane.b32.xlu0 %v3605, 110
        %v3654 = vpop.permute.xlu0 %3653
        %3655 = vrot.lane.b32.xlu0 %v3606, 110
        %v3656 = vpop.permute.xlu0 %3655
        %3657 = vrot.lane.b32.xlu0 %v3607, 110
        %v3658 = vpop.permute.xlu0 %3657
        %3659 = vrot.lane.b32.xlu0 %v3608, 110
        %v3660 = vpop.permute.xlu0 %3659
        %3661 = vrot.lane.b32.xlu0 %v3609, 110
        %v3662 = vpop.permute.xlu0 %3661
        %3663 = vrot.lane.b32.xlu0 %v3610, 110
        %v3664 = vpop.permute.xlu0 %3663
        %3665 = vrot.lane.b32.xlu0 %v3611, 110
        %v3666 = vpop.permute.xlu0 %3665
        %3667 = vrot.lane.b32.xlu0 %v3612, 110
        %v3668 = vpop.permute.xlu0 %3667
        %3669 = vrot.lane.b32.xlu0 %v3613, 110
        %v3670 = vpop.permute.xlu0 %3669
        %3671 = vrot.lane.b32.xlu0 %v3614, 110
        %v3672 = vpop.permute.xlu0 %3671
        %3673 = vrot.lane.b32.xlu0 %v3615, 110
        %v3674 = vpop.permute.xlu0 %3673
        %3675 = vrot.lane.b32.xlu0 %v3616, 110
        %v3676 = vpop.permute.xlu0 %3675
        %3677 = vrot.lane.b32.xlu0 %v3617, 110
        %v3678 = vpop.permute.xlu0 %3677
        %3679 = vrot.lane.b32.xlu0 %v3618, 110
        %v3680 = vpop.permute.xlu0 %3679
        %3681 = vrot.lane.b32.xlu0 %v3619, 110
        %v3682 = vpop.permute.xlu0 %3681
        %3683 = vrot.lane.b32.xlu0 %v3620, 110
        %v3684 = vpop.permute.xlu0 %3683
        %3685 = vrot.lane.b32.xlu0 %v3621, 110
        %v3686 = vpop.permute.xlu0 %3685
        %3687 = vrot.lane.b32.xlu0 %v3622, 110
        %v3688 = vpop.permute.xlu0 %3687
        %3689 = vrot.lane.b32.xlu0 %v3623, 110
        %v3690 = vpop.permute.xlu0 %3689
        %3691 = vrot.lane.b32.xlu0 %v3624, 110
        %v3692 = vpop.permute.xlu0 %3691
        %3693 = vrot.lane.b32.xlu0 %v3625, 110
        %v3694 = vpop.permute.xlu0 %3693
        %3695 = vrot.lane.b32.xlu0 %v3626, 110
        %v3696 = vpop.permute.xlu0 %3695
        %3697 = vrot.lane.b32.xlu0 %v3627, 110
        %v3698 = vpop.permute.xlu0 %3697
        %3699 = vrot.lane.b32.xlu0 %v3628, 110
        %v3700 = vpop.permute.xlu0 %3699
        %vm3701 = vcmask 900096
        %v3702 = vsel %vm3701, %v3654, %v3656
        %v3703 = vsel %vm3701, %v3656, %v3658
        %v3704 = vsel %vm3701, %v3658, %v3660
        %v3705 = vsel %vm3701, %v3660, %v3662
        %v3706 = vsel %vm3701, %v3662, %v3664
        %v3707 = vsel %vm3701, %v3666, %v3668
        %v3708 = vsel %vm3701, %v3668, %v3670
        %v3709 = vsel %vm3701, %v3670, %v3672
        %v3710 = vsel %vm3701, %v3672, %v3674
        %v3711 = vsel %vm3701, %v3674, %v3676
        %v3712 = vsel %vm3701, %v3678, %v3680
        %v3713 = vsel %vm3701, %v3680, %v3682
        %v3714 = vsel %vm3701, %v3682, %v3684
        %v3715 = vsel %vm3701, %v3684, %v3686
        %v3716 = vsel %vm3701, %v3686, %v3688
        %v3717 = vsel %vm3701, %v3690, %v3692
        %v3718 = vsel %vm3701, %v3692, %v3694
        %v3719 = vsel %vm3701, %v3694, %v3696
        %v3720 = vsel %vm3701, %v3696, %v3698
        %v3721 = vsel %vm3701, %v3698, %v3700
        %v3746 = vadd.f32 %v3565, %v3702
        %v3747 = vadd.f32 %v3566, %v3703
        %v3748 = vadd.f32 %v3567, %v3704
        %v3749 = vadd.f32 %v3568, %v3705
        %v3750 = vadd.f32 %v3569, %v3706
        %v3751 = vadd.f32 %v3570, %v3664
        %v3752 = vadd.f32 %v3571, %v3707
        %v3753 = vadd.f32 %v3572, %v3708
        %v3754 = vadd.f32 %v3573, %v3709
        %v3755 = vadd.f32 %v3574, %v3710
        %v3756 = vadd.f32 %v3575, %v3711
        %v3757 = vadd.f32 %v3576, %v3676
        %v3758 = vadd.f32 %v3577, %v3712
        %v3759 = vadd.f32 %v3578, %v3713
        %v3760 = vadd.f32 %v3579, %v3714
        %v3761 = vadd.f32 %v3580, %v3715
        %v3762 = vadd.f32 %v3581, %v3716
        %v3763 = vadd.f32 %v3582, %v3688
        %v3764 = vadd.f32 %v3583, %v3717
        %v3765 = vadd.f32 %v3584, %v3718
        %v3766 = vadd.f32 %v3585, %v3719
        %v3767 = vadd.f32 %v3586, %v3720
        %v3768 = vadd.f32 %v3587, %v3721
        %v3769 = vadd.f32 %v3588, %v3700
        %3770 = vset.pattern.permute.xlu0 19
        %3771 = vperm.xlu0 %3770, %v440
        %v3772 = vpop.permute.xlu0 %3771
        %3774 = vset.pattern.permute.xlu0 19
        %3775 = vperm.xlu0 %3774, %v441
        %v3776 = vpop.permute.xlu0 %3775
        %3778 = vset.pattern.permute.xlu0 19
        %3779 = vperm.xlu0 %3778, %v442
        %v3780 = vpop.permute.xlu0 %3779
        %3782 = vset.pattern.permute.xlu0 19
        %3783 = vperm.xlu0 %3782, %v443
        %v3784 = vpop.permute.xlu0 %3783
        %v3786 = vmul.f32 %v3772, %v426
        %v3787 = vmul.f32 %v3772, %v427
        %v3788 = vmul.f32 %v3772, %v428
        %v3789 = vmul.f32 %v3772, %v429
        %v3790 = vmul.f32 %v3772, %v430
        %v3791 = vmul.f32 %v3772, %v431
        %v3792 = vmul.f32 %v3772, %v432
        %v3793 = vmul.f32 %v3776, %v426
        %v3794 = vmul.f32 %v3776, %v427
        %v3795 = vmul.f32 %v3776, %v428
        %v3796 = vmul.f32 %v3776, %v429
        %v3797 = vmul.f32 %v3776, %v430
        %v3798 = vmul.f32 %v3776, %v431
        %v3799 = vmul.f32 %v3776, %v432
        %v3800 = vmul.f32 %v3780, %v433
        %v3801 = vmul.f32 %v3780, %v434
        %v3802 = vmul.f32 %v3780, %v435
        %v3803 = vmul.f32 %v3780, %v436
        %v3804 = vmul.f32 %v3780, %v437
        %v3805 = vmul.f32 %v3780, %v438
        %v3806 = vmul.f32 %v3780, %v439
        %v3807 = vmul.f32 %v3784, %v433
        %v3808 = vmul.f32 %v3784, %v434
        %v3809 = vmul.f32 %v3784, %v435
        %v3810 = vmul.f32 %v3784, %v436
        %v3811 = vmul.f32 %v3784, %v437
        %v3812 = vmul.f32 %v3784, %v438
        %v3813 = vmul.f32 %v3784, %v439
        %3842 = vrot.lane.b32.xlu0 %v3786, 109
        %v3843 = vpop.permute.xlu0 %3842
        %3844 = vrot.lane.b32.xlu0 %v3787, 109
        %v3845 = vpop.permute.xlu0 %3844
        %3846 = vrot.lane.b32.xlu0 %v3788, 109
        %v3847 = vpop.permute.xlu0 %3846
        %3848 = vrot.lane.b32.xlu0 %v3789, 109
        %v3849 = vpop.permute.xlu0 %3848
        %3850 = vrot.lane.b32.xlu0 %v3790, 109
        %v3851 = vpop.permute.xlu0 %3850
        %3852 = vrot.lane.b32.xlu0 %v3791, 109
        %v3853 = vpop.permute.xlu0 %3852
        %3854 = vrot.lane.b32.xlu0 %v3792, 109
        %v3855 = vpop.permute.xlu0 %3854
        %3856 = vrot.lane.b32.xlu0 %v3793, 109
        %v3857 = vpop.permute.xlu0 %3856
        %3858 = vrot.lane.b32.xlu0 %v3794, 109
        %v3859 = vpop.permute.xlu0 %3858
        %3860 = vrot.lane.b32.xlu0 %v3795, 109
        %v3861 = vpop.permute.xlu0 %3860
        %3862 = vrot.lane.b32.xlu0 %v3796, 109
        %v3863 = vpop.permute.xlu0 %3862
        %3864 = vrot.lane.b32.xlu0 %v3797, 109
        %v3865 = vpop.permute.xlu0 %3864
        %3866 = vrot.lane.b32.xlu0 %v3798, 109
        %v3867 = vpop.permute.xlu0 %3866
        %3868 = vrot.lane.b32.xlu0 %v3799, 109
        %v3869 = vpop.permute.xlu0 %3868
        %3870 = vrot.lane.b32.xlu0 %v3800, 109
        %v3871 = vpop.permute.xlu0 %3870
        %3872 = vrot.lane.b32.xlu0 %v3801, 109
        %v3873 = vpop.permute.xlu0 %3872
        %3874 = vrot.lane.b32.xlu0 %v3802, 109
        %v3875 = vpop.permute.xlu0 %3874
        %3876 = vrot.lane.b32.xlu0 %v3803, 109
        %v3877 = vpop.permute.xlu0 %3876
        %3878 = vrot.lane.b32.xlu0 %v3804, 109
        %v3879 = vpop.permute.xlu0 %3878
        %3880 = vrot.lane.b32.xlu0 %v3805, 109
        %v3881 = vpop.permute.xlu0 %3880
        %3882 = vrot.lane.b32.xlu0 %v3806, 109
        %v3883 = vpop.permute.xlu0 %3882
        %3884 = vrot.lane.b32.xlu0 %v3807, 109
        %v3885 = vpop.permute.xlu0 %3884
        %3886 = vrot.lane.b32.xlu0 %v3808, 109
        %v3887 = vpop.permute.xlu0 %3886
        %3888 = vrot.lane.b32.xlu0 %v3809, 109
        %v3889 = vpop.permute.xlu0 %3888
        %3890 = vrot.lane.b32.xlu0 %v3810, 109
        %v3891 = vpop.permute.xlu0 %3890
        %3892 = vrot.lane.b32.xlu0 %v3811, 109
        %v3893 = vpop.permute.xlu0 %3892
        %3894 = vrot.lane.b32.xlu0 %v3812, 109
        %v3895 = vpop.permute.xlu0 %3894
        %3896 = vrot.lane.b32.xlu0 %v3813, 109
        %v3897 = vpop.permute.xlu0 %3896
        %vm3898 = vcmask 891904
        %v3899 = vsel %vm3898, %v3843, %v3845
        %v3900 = vsel %vm3898, %v3845, %v3847
        %v3901 = vsel %vm3898, %v3847, %v3849
        %v3902 = vsel %vm3898, %v3849, %v3851
        %v3903 = vsel %vm3898, %v3851, %v3853
        %v3904 = vsel %vm3898, %v3853, %v3855
        %v3905 = vsel %vm3898, %v3857, %v3859
        %v3906 = vsel %vm3898, %v3859, %v3861
        %v3907 = vsel %vm3898, %v3861, %v3863
        %v3908 = vsel %vm3898, %v3863, %v3865
        %v3909 = vsel %vm3898, %v3865, %v3867
        %v3910 = vsel %vm3898, %v3867, %v3869
        %v3911 = vsel %vm3898, %v3871, %v3873
        %v3912 = vsel %vm3898, %v3873, %v3875
        %v3913 = vsel %vm3898, %v3875, %v3877
        %v3914 = vsel %vm3898, %v3877, %v3879
        %v3915 = vsel %vm3898, %v3879, %v3881
        %v3916 = vsel %vm3898, %v3881, %v3883
        %v3917 = vsel %vm3898, %v3885, %v3887
        %v3918 = vsel %vm3898, %v3887, %v3889
        %v3919 = vsel %vm3898, %v3889, %v3891
        %v3920 = vsel %vm3898, %v3891, %v3893
        %v3921 = vsel %vm3898, %v3893, %v3895
        %v3922 = vsel %vm3898, %v3895, %v3897
        %v3947 = vadd.f32 %v3746, %v3899
        %v3948 = vadd.f32 %v3747, %v3900
        %v3949 = vadd.f32 %v3748, %v3901
        %v3950 = vadd.f32 %v3749, %v3902
        %v3951 = vadd.f32 %v3750, %v3903
        %v3952 = vadd.f32 %v3751, %v3904
        %v3953 = vadd.f32 %v3752, %v3905
        %v3954 = vadd.f32 %v3753, %v3906
        %v3955 = vadd.f32 %v3754, %v3907
        %v3956 = vadd.f32 %v3755, %v3908
        %v3957 = vadd.f32 %v3756, %v3909
        %v3958 = vadd.f32 %v3757, %v3910
        %v3959 = vadd.f32 %v3758, %v3911
        %v3960 = vadd.f32 %v3759, %v3912
        %v3961 = vadd.f32 %v3760, %v3913
        %v3962 = vadd.f32 %v3761, %v3914
        %v3963 = vadd.f32 %v3762, %v3915
        %v3964 = vadd.f32 %v3763, %v3916
        %v3965 = vadd.f32 %v3764, %v3917
        %v3966 = vadd.f32 %v3765, %v3918
        %v3967 = vadd.f32 %v3766, %v3919
        %v3968 = vadd.f32 %v3767, %v3920
        %v3969 = vadd.f32 %v3768, %v3921
        %v3970 = vadd.f32 %v3769, %v3922
        %3971 = vset.pattern.permute.xlu0 20
        %3972 = vperm.xlu0 %3971, %v440
        %v3973 = vpop.permute.xlu0 %3972
        %3975 = vset.pattern.permute.xlu0 20
        %3976 = vperm.xlu0 %3975, %v441
        %v3977 = vpop.permute.xlu0 %3976
        %3979 = vset.pattern.permute.xlu0 20
        %3980 = vperm.xlu0 %3979, %v442
        %v3981 = vpop.permute.xlu0 %3980
        %3983 = vset.pattern.permute.xlu0 20
        %3984 = vperm.xlu0 %3983, %v443
        %v3985 = vpop.permute.xlu0 %3984
        %v3987 = vmul.f32 %v3973, %v426
        %v3988 = vmul.f32 %v3973, %v427
        %v3989 = vmul.f32 %v3973, %v428
        %v3990 = vmul.f32 %v3973, %v429
        %v3991 = vmul.f32 %v3973, %v430
        %v3992 = vmul.f32 %v3973, %v431
        %v3993 = vmul.f32 %v3973, %v432
        %v3994 = vmul.f32 %v3977, %v426
        %v3995 = vmul.f32 %v3977, %v427
        %v3996 = vmul.f32 %v3977, %v428
        %v3997 = vmul.f32 %v3977, %v429
        %v3998 = vmul.f32 %v3977, %v430
        %v3999 = vmul.f32 %v3977, %v431
        %v4000 = vmul.f32 %v3977, %v432
        %v4001 = vmul.f32 %v3981, %v433
        %v4002 = vmul.f32 %v3981, %v434
        %v4003 = vmul.f32 %v3981, %v435
        %v4004 = vmul.f32 %v3981, %v436
        %v4005 = vmul.f32 %v3981, %v437
        %v4006 = vmul.f32 %v3981, %v438
        %v4007 = vmul.f32 %v3981, %v439
        %v4008 = vmul.f32 %v3985, %v433
        %v4009 = vmul.f32 %v3985, %v434
        %v4010 = vmul.f32 %v3985, %v435
        %v4011 = vmul.f32 %v3985, %v436
        %v4012 = vmul.f32 %v3985, %v437
        %v4013 = vmul.f32 %v3985, %v438
        %v4014 = vmul.f32 %v3985, %v439
        %4043 = vrot.lane.b32.xlu0 %v3987, 108
        %v4044 = vpop.permute.xlu0 %4043
        %4045 = vrot.lane.b32.xlu0 %v3988, 108
        %v4046 = vpop.permute.xlu0 %4045
        %4047 = vrot.lane.b32.xlu0 %v3989, 108
        %v4048 = vpop.permute.xlu0 %4047
        %4049 = vrot.lane.b32.xlu0 %v3990, 108
        %v4050 = vpop.permute.xlu0 %4049
        %4051 = vrot.lane.b32.xlu0 %v3991, 108
        %v4052 = vpop.permute.xlu0 %4051
        %4053 = vrot.lane.b32.xlu0 %v3992, 108
        %v4054 = vpop.permute.xlu0 %4053
        %4055 = vrot.lane.b32.xlu0 %v3993, 108
        %v4056 = vpop.permute.xlu0 %4055
        %4057 = vrot.lane.b32.xlu0 %v3994, 108
        %v4058 = vpop.permute.xlu0 %4057
        %4059 = vrot.lane.b32.xlu0 %v3995, 108
        %v4060 = vpop.permute.xlu0 %4059
        %4061 = vrot.lane.b32.xlu0 %v3996, 108
        %v4062 = vpop.permute.xlu0 %4061
        %4063 = vrot.lane.b32.xlu0 %v3997, 108
        %v4064 = vpop.permute.xlu0 %4063
        %4065 = vrot.lane.b32.xlu0 %v3998, 108
        %v4066 = vpop.permute.xlu0 %4065
        %4067 = vrot.lane.b32.xlu0 %v3999, 108
        %v4068 = vpop.permute.xlu0 %4067
        %4069 = vrot.lane.b32.xlu0 %v4000, 108
        %v4070 = vpop.permute.xlu0 %4069
        %4071 = vrot.lane.b32.xlu0 %v4001, 108
        %v4072 = vpop.permute.xlu0 %4071
        %4073 = vrot.lane.b32.xlu0 %v4002, 108
        %v4074 = vpop.permute.xlu0 %4073
        %4075 = vrot.lane.b32.xlu0 %v4003, 108
        %v4076 = vpop.permute.xlu0 %4075
        %4077 = vrot.lane.b32.xlu0 %v4004, 108
        %v4078 = vpop.permute.xlu0 %4077
        %4079 = vrot.lane.b32.xlu0 %v4005, 108
        %v4080 = vpop.permute.xlu0 %4079
        %4081 = vrot.lane.b32.xlu0 %v4006, 108
        %v4082 = vpop.permute.xlu0 %4081
        %4083 = vrot.lane.b32.xlu0 %v4007, 108
        %v4084 = vpop.permute.xlu0 %4083
        %4085 = vrot.lane.b32.xlu0 %v4008, 108
        %v4086 = vpop.permute.xlu0 %4085
        %4087 = vrot.lane.b32.xlu0 %v4009, 108
        %v4088 = vpop.permute.xlu0 %4087
        %4089 = vrot.lane.b32.xlu0 %v4010, 108
        %v4090 = vpop.permute.xlu0 %4089
        %4091 = vrot.lane.b32.xlu0 %v4011, 108
        %v4092 = vpop.permute.xlu0 %4091
        %4093 = vrot.lane.b32.xlu0 %v4012, 108
        %v4094 = vpop.permute.xlu0 %4093
        %4095 = vrot.lane.b32.xlu0 %v4013, 108
        %v4096 = vpop.permute.xlu0 %4095
        %4097 = vrot.lane.b32.xlu0 %v4014, 108
        %v4098 = vpop.permute.xlu0 %4097
        %vm4099 = vcmask 883712
        %v4100 = vsel %vm4099, %v4044, %v4046
        %v4101 = vsel %vm4099, %v4046, %v4048
        %v4102 = vsel %vm4099, %v4048, %v4050
        %v4103 = vsel %vm4099, %v4050, %v4052
        %v4104 = vsel %vm4099, %v4052, %v4054
        %v4105 = vsel %vm4099, %v4054, %v4056
        %v4106 = vsel %vm4099, %v4058, %v4060
        %v4107 = vsel %vm4099, %v4060, %v4062
        %v4108 = vsel %vm4099, %v4062, %v4064
        %v4109 = vsel %vm4099, %v4064, %v4066
        %v4110 = vsel %vm4099, %v4066, %v4068
        %v4111 = vsel %vm4099, %v4068, %v4070
        %v4112 = vsel %vm4099, %v4072, %v4074
        %v4113 = vsel %vm4099, %v4074, %v4076
        %v4114 = vsel %vm4099, %v4076, %v4078
        %v4115 = vsel %vm4099, %v4078, %v4080
        %v4116 = vsel %vm4099, %v4080, %v4082
        %v4117 = vsel %vm4099, %v4082, %v4084
        %v4118 = vsel %vm4099, %v4086, %v4088
        %v4119 = vsel %vm4099, %v4088, %v4090
        %v4120 = vsel %vm4099, %v4090, %v4092
        %v4121 = vsel %vm4099, %v4092, %v4094
        %v4122 = vsel %vm4099, %v4094, %v4096
        %v4123 = vsel %vm4099, %v4096, %v4098
        %v4148 = vadd.f32 %v3947, %v4100
        %v4149 = vadd.f32 %v3948, %v4101
        %v4150 = vadd.f32 %v3949, %v4102
        %v4151 = vadd.f32 %v3950, %v4103
        %v4152 = vadd.f32 %v3951, %v4104
        %v4153 = vadd.f32 %v3952, %v4105
        %v4154 = vadd.f32 %v3953, %v4106
        %v4155 = vadd.f32 %v3954, %v4107
        %v4156 = vadd.f32 %v3955, %v4108
        %v4157 = vadd.f32 %v3956, %v4109
        %v4158 = vadd.f32 %v3957, %v4110
        %v4159 = vadd.f32 %v3958, %v4111
        %v4160 = vadd.f32 %v3959, %v4112
        %v4161 = vadd.f32 %v3960, %v4113
        %v4162 = vadd.f32 %v3961, %v4114
        %v4163 = vadd.f32 %v3962, %v4115
        %v4164 = vadd.f32 %v3963, %v4116
        %v4165 = vadd.f32 %v3964, %v4117
        %v4166 = vadd.f32 %v3965, %v4118
        %v4167 = vadd.f32 %v3966, %v4119
        %v4168 = vadd.f32 %v3967, %v4120
        %v4169 = vadd.f32 %v3968, %v4121
        %v4170 = vadd.f32 %v3969, %v4122
        %v4171 = vadd.f32 %v3970, %v4123
        %4172 = vset.pattern.permute.xlu0 21
        %4173 = vperm.xlu0 %4172, %v440
        %v4174 = vpop.permute.xlu0 %4173
        %4176 = vset.pattern.permute.xlu0 21
        %4177 = vperm.xlu0 %4176, %v441
        %v4178 = vpop.permute.xlu0 %4177
        %4180 = vset.pattern.permute.xlu0 21
        %4181 = vperm.xlu0 %4180, %v442
        %v4182 = vpop.permute.xlu0 %4181
        %4184 = vset.pattern.permute.xlu0 21
        %4185 = vperm.xlu0 %4184, %v443
        %v4186 = vpop.permute.xlu0 %4185
        %v4188 = vmul.f32 %v4174, %v426
        %v4189 = vmul.f32 %v4174, %v427
        %v4190 = vmul.f32 %v4174, %v428
        %v4191 = vmul.f32 %v4174, %v429
        %v4192 = vmul.f32 %v4174, %v430
        %v4193 = vmul.f32 %v4174, %v431
        %v4194 = vmul.f32 %v4174, %v432
        %v4195 = vmul.f32 %v4178, %v426
        %v4196 = vmul.f32 %v4178, %v427
        %v4197 = vmul.f32 %v4178, %v428
        %v4198 = vmul.f32 %v4178, %v429
        %v4199 = vmul.f32 %v4178, %v430
        %v4200 = vmul.f32 %v4178, %v431
        %v4201 = vmul.f32 %v4178, %v432
        %v4202 = vmul.f32 %v4182, %v433
        %v4203 = vmul.f32 %v4182, %v434
        %v4204 = vmul.f32 %v4182, %v435
        %v4205 = vmul.f32 %v4182, %v436
        %v4206 = vmul.f32 %v4182, %v437
        %v4207 = vmul.f32 %v4182, %v438
        %v4208 = vmul.f32 %v4182, %v439
        %v4209 = vmul.f32 %v4186, %v433
        %v4210 = vmul.f32 %v4186, %v434
        %v4211 = vmul.f32 %v4186, %v435
        %v4212 = vmul.f32 %v4186, %v436
        %v4213 = vmul.f32 %v4186, %v437
        %v4214 = vmul.f32 %v4186, %v438
        %v4215 = vmul.f32 %v4186, %v439
        %4244 = vrot.lane.b32.xlu0 %v4188, 107
        %v4245 = vpop.permute.xlu0 %4244
        %4246 = vrot.lane.b32.xlu0 %v4189, 107
        %v4247 = vpop.permute.xlu0 %4246
        %4248 = vrot.lane.b32.xlu0 %v4190, 107
        %v4249 = vpop.permute.xlu0 %4248
        %4250 = vrot.lane.b32.xlu0 %v4191, 107
        %v4251 = vpop.permute.xlu0 %4250
        %4252 = vrot.lane.b32.xlu0 %v4192, 107
        %v4253 = vpop.permute.xlu0 %4252
        %4254 = vrot.lane.b32.xlu0 %v4193, 107
        %v4255 = vpop.permute.xlu0 %4254
        %4256 = vrot.lane.b32.xlu0 %v4194, 107
        %v4257 = vpop.permute.xlu0 %4256
        %4258 = vrot.lane.b32.xlu0 %v4195, 107
        %v4259 = vpop.permute.xlu0 %4258
        %4260 = vrot.lane.b32.xlu0 %v4196, 107
        %v4261 = vpop.permute.xlu0 %4260
        %4262 = vrot.lane.b32.xlu0 %v4197, 107
        %v4263 = vpop.permute.xlu0 %4262
        %4264 = vrot.lane.b32.xlu0 %v4198, 107
        %v4265 = vpop.permute.xlu0 %4264
        %4266 = vrot.lane.b32.xlu0 %v4199, 107
        %v4267 = vpop.permute.xlu0 %4266
        %4268 = vrot.lane.b32.xlu0 %v4200, 107
        %v4269 = vpop.permute.xlu0 %4268
        %4270 = vrot.lane.b32.xlu0 %v4201, 107
        %v4271 = vpop.permute.xlu0 %4270
        %4272 = vrot.lane.b32.xlu0 %v4202, 107
        %v4273 = vpop.permute.xlu0 %4272
        %4274 = vrot.lane.b32.xlu0 %v4203, 107
        %v4275 = vpop.permute.xlu0 %4274
        %4276 = vrot.lane.b32.xlu0 %v4204, 107
        %v4277 = vpop.permute.xlu0 %4276
        %4278 = vrot.lane.b32.xlu0 %v4205, 107
        %v4279 = vpop.permute.xlu0 %4278
        %4280 = vrot.lane.b32.xlu0 %v4206, 107
        %v4281 = vpop.permute.xlu0 %4280
        %4282 = vrot.lane.b32.xlu0 %v4207, 107
        %v4283 = vpop.permute.xlu0 %4282
        %4284 = vrot.lane.b32.xlu0 %v4208, 107
        %v4285 = vpop.permute.xlu0 %4284
        %4286 = vrot.lane.b32.xlu0 %v4209, 107
        %v4287 = vpop.permute.xlu0 %4286
        %4288 = vrot.lane.b32.xlu0 %v4210, 107
        %v4289 = vpop.permute.xlu0 %4288
        %4290 = vrot.lane.b32.xlu0 %v4211, 107
        %v4291 = vpop.permute.xlu0 %4290
        %4292 = vrot.lane.b32.xlu0 %v4212, 107
        %v4293 = vpop.permute.xlu0 %4292
        %4294 = vrot.lane.b32.xlu0 %v4213, 107
        %v4295 = vpop.permute.xlu0 %4294
        %4296 = vrot.lane.b32.xlu0 %v4214, 107
        %v4297 = vpop.permute.xlu0 %4296
        %4298 = vrot.lane.b32.xlu0 %v4215, 107
        %v4299 = vpop.permute.xlu0 %4298
        %vm4300 = vcmask 875520
        %v4301 = vsel %vm4300, %v4245, %v4247
        %v4302 = vsel %vm4300, %v4247, %v4249
        %v4303 = vsel %vm4300, %v4249, %v4251
        %v4304 = vsel %vm4300, %v4251, %v4253
        %v4305 = vsel %vm4300, %v4253, %v4255
        %v4306 = vsel %vm4300, %v4255, %v4257
        %v4307 = vsel %vm4300, %v4259, %v4261
        %v4308 = vsel %vm4300, %v4261, %v4263
        %v4309 = vsel %vm4300, %v4263, %v4265
        %v4310 = vsel %vm4300, %v4265, %v4267
        %v4311 = vsel %vm4300, %v4267, %v4269
        %v4312 = vsel %vm4300, %v4269, %v4271
        %v4313 = vsel %vm4300, %v4273, %v4275
        %v4314 = vsel %vm4300, %v4275, %v4277
        %v4315 = vsel %vm4300, %v4277, %v4279
        %v4316 = vsel %vm4300, %v4279, %v4281
        %v4317 = vsel %vm4300, %v4281, %v4283
        %v4318 = vsel %vm4300, %v4283, %v4285
        %v4319 = vsel %vm4300, %v4287, %v4289
        %v4320 = vsel %vm4300, %v4289, %v4291
        %v4321 = vsel %vm4300, %v4291, %v4293
        %v4322 = vsel %vm4300, %v4293, %v4295
        %v4323 = vsel %vm4300, %v4295, %v4297
        %v4324 = vsel %vm4300, %v4297, %v4299
        %v4349 = vadd.f32 %v4148, %v4301
        %v4350 = vadd.f32 %v4149, %v4302
        %v4351 = vadd.f32 %v4150, %v4303
        %v4352 = vadd.f32 %v4151, %v4304
        %v4353 = vadd.f32 %v4152, %v4305
        %v4354 = vadd.f32 %v4153, %v4306
        %v4355 = vadd.f32 %v4154, %v4307
        %v4356 = vadd.f32 %v4155, %v4308
        %v4357 = vadd.f32 %v4156, %v4309
        %v4358 = vadd.f32 %v4157, %v4310
        %v4359 = vadd.f32 %v4158, %v4311
        %v4360 = vadd.f32 %v4159, %v4312
        %v4361 = vadd.f32 %v4160, %v4313
        %v4362 = vadd.f32 %v4161, %v4314
        %v4363 = vadd.f32 %v4162, %v4315
        %v4364 = vadd.f32 %v4163, %v4316
        %v4365 = vadd.f32 %v4164, %v4317
        %v4366 = vadd.f32 %v4165, %v4318
        %v4367 = vadd.f32 %v4166, %v4319
        %v4368 = vadd.f32 %v4167, %v4320
        %v4369 = vadd.f32 %v4168, %v4321
        %v4370 = vadd.f32 %v4169, %v4322
        %v4371 = vadd.f32 %v4170, %v4323
        %v4372 = vadd.f32 %v4171, %v4324
        %4373 = vset.pattern.permute.xlu0 22
        %4374 = vperm.xlu0 %4373, %v440
        %v4375 = vpop.permute.xlu0 %4374
        %4377 = vset.pattern.permute.xlu0 22
        %4378 = vperm.xlu0 %4377, %v441
        %v4379 = vpop.permute.xlu0 %4378
        %4381 = vset.pattern.permute.xlu0 22
        %4382 = vperm.xlu0 %4381, %v442
        %v4383 = vpop.permute.xlu0 %4382
        %4385 = vset.pattern.permute.xlu0 22
        %4386 = vperm.xlu0 %4385, %v443
        %v4387 = vpop.permute.xlu0 %4386
        %v4389 = vmul.f32 %v4375, %v426
        %v4390 = vmul.f32 %v4375, %v427
        %v4391 = vmul.f32 %v4375, %v428
        %v4392 = vmul.f32 %v4375, %v429
        %v4393 = vmul.f32 %v4375, %v430
        %v4394 = vmul.f32 %v4375, %v431
        %v4395 = vmul.f32 %v4375, %v432
        %v4396 = vmul.f32 %v4379, %v426
        %v4397 = vmul.f32 %v4379, %v427
        %v4398 = vmul.f32 %v4379, %v428
        %v4399 = vmul.f32 %v4379, %v429
        %v4400 = vmul.f32 %v4379, %v430
        %v4401 = vmul.f32 %v4379, %v431
        %v4402 = vmul.f32 %v4379, %v432
        %v4403 = vmul.f32 %v4383, %v433
        %v4404 = vmul.f32 %v4383, %v434
        %v4405 = vmul.f32 %v4383, %v435
        %v4406 = vmul.f32 %v4383, %v436
        %v4407 = vmul.f32 %v4383, %v437
        %v4408 = vmul.f32 %v4383, %v438
        %v4409 = vmul.f32 %v4383, %v439
        %v4410 = vmul.f32 %v4387, %v433
        %v4411 = vmul.f32 %v4387, %v434
        %v4412 = vmul.f32 %v4387, %v435
        %v4413 = vmul.f32 %v4387, %v436
        %v4414 = vmul.f32 %v4387, %v437
        %v4415 = vmul.f32 %v4387, %v438
        %v4416 = vmul.f32 %v4387, %v439
        %4445 = vrot.lane.b32.xlu0 %v4389, 106
        %v4446 = vpop.permute.xlu0 %4445
        %4447 = vrot.lane.b32.xlu0 %v4390, 106
        %v4448 = vpop.permute.xlu0 %4447
        %4449 = vrot.lane.b32.xlu0 %v4391, 106
        %v4450 = vpop.permute.xlu0 %4449
        %4451 = vrot.lane.b32.xlu0 %v4392, 106
        %v4452 = vpop.permute.xlu0 %4451
        %4453 = vrot.lane.b32.xlu0 %v4393, 106
        %v4454 = vpop.permute.xlu0 %4453
        %4455 = vrot.lane.b32.xlu0 %v4394, 106
        %v4456 = vpop.permute.xlu0 %4455
        %4457 = vrot.lane.b32.xlu0 %v4395, 106
        %v4458 = vpop.permute.xlu0 %4457
        %4459 = vrot.lane.b32.xlu0 %v4396, 106
        %v4460 = vpop.permute.xlu0 %4459
        %4461 = vrot.lane.b32.xlu0 %v4397, 106
        %v4462 = vpop.permute.xlu0 %4461
        %4463 = vrot.lane.b32.xlu0 %v4398, 106
        %v4464 = vpop.permute.xlu0 %4463
        %4465 = vrot.lane.b32.xlu0 %v4399, 106
        %v4466 = vpop.permute.xlu0 %4465
        %4467 = vrot.lane.b32.xlu0 %v4400, 106
        %v4468 = vpop.permute.xlu0 %4467
        %4469 = vrot.lane.b32.xlu0 %v4401, 106
        %v4470 = vpop.permute.xlu0 %4469
        %4471 = vrot.lane.b32.xlu0 %v4402, 106
        %v4472 = vpop.permute.xlu0 %4471
        %4473 = vrot.lane.b32.xlu0 %v4403, 106
        %v4474 = vpop.permute.xlu0 %4473
        %4475 = vrot.lane.b32.xlu0 %v4404, 106
        %v4476 = vpop.permute.xlu0 %4475
        %4477 = vrot.lane.b32.xlu0 %v4405, 106
        %v4478 = vpop.permute.xlu0 %4477
        %4479 = vrot.lane.b32.xlu0 %v4406, 106
        %v4480 = vpop.permute.xlu0 %4479
        %4481 = vrot.lane.b32.xlu0 %v4407, 106
        %v4482 = vpop.permute.xlu0 %4481
        %4483 = vrot.lane.b32.xlu0 %v4408, 106
        %v4484 = vpop.permute.xlu0 %4483
        %4485 = vrot.lane.b32.xlu0 %v4409, 106
        %v4486 = vpop.permute.xlu0 %4485
        %4487 = vrot.lane.b32.xlu0 %v4410, 106
        %v4488 = vpop.permute.xlu0 %4487
        %4489 = vrot.lane.b32.xlu0 %v4411, 106
        %v4490 = vpop.permute.xlu0 %4489
        %4491 = vrot.lane.b32.xlu0 %v4412, 106
        %v4492 = vpop.permute.xlu0 %4491
        %4493 = vrot.lane.b32.xlu0 %v4413, 106
        %v4494 = vpop.permute.xlu0 %4493
        %4495 = vrot.lane.b32.xlu0 %v4414, 106
        %v4496 = vpop.permute.xlu0 %4495
        %4497 = vrot.lane.b32.xlu0 %v4415, 106
        %v4498 = vpop.permute.xlu0 %4497
        %4499 = vrot.lane.b32.xlu0 %v4416, 106
        %v4500 = vpop.permute.xlu0 %4499
        %vm4501 = vcmask 867328
        %v4502 = vsel %vm4501, %v4446, %v4448
        %v4503 = vsel %vm4501, %v4448, %v4450
        %v4504 = vsel %vm4501, %v4450, %v4452
        %v4505 = vsel %vm4501, %v4452, %v4454
        %v4506 = vsel %vm4501, %v4454, %v4456
        %v4507 = vsel %vm4501, %v4456, %v4458
        %v4508 = vsel %vm4501, %v4460, %v4462
        %v4509 = vsel %vm4501, %v4462, %v4464
        %v4510 = vsel %vm4501, %v4464, %v4466
        %v4511 = vsel %vm4501, %v4466, %v4468
        %v4512 = vsel %vm4501, %v4468, %v4470
        %v4513 = vsel %vm4501, %v4470, %v4472
        %v4514 = vsel %vm4501, %v4474, %v4476
        %v4515 = vsel %vm4501, %v4476, %v4478
        %v4516 = vsel %vm4501, %v4478, %v4480
        %v4517 = vsel %vm4501, %v4480, %v4482
        %v4518 = vsel %vm4501, %v4482, %v4484
        %v4519 = vsel %vm4501, %v4484, %v4486
        %v4520 = vsel %vm4501, %v4488, %v4490
        %v4521 = vsel %vm4501, %v4490, %v4492
        %v4522 = vsel %vm4501, %v4492, %v4494
        %v4523 = vsel %vm4501, %v4494, %v4496
        %v4524 = vsel %vm4501, %v4496, %v4498
        %v4525 = vsel %vm4501, %v4498, %v4500
        %v4550 = vadd.f32 %v4349, %v4502
        %v4551 = vadd.f32 %v4350, %v4503
        %v4552 = vadd.f32 %v4351, %v4504
        %v4553 = vadd.f32 %v4352, %v4505
        %v4554 = vadd.f32 %v4353, %v4506
        %v4555 = vadd.f32 %v4354, %v4507
        %v4556 = vadd.f32 %v4355, %v4508
        %v4557 = vadd.f32 %v4356, %v4509
        %v4558 = vadd.f32 %v4357, %v4510
        %v4559 = vadd.f32 %v4358, %v4511
        %v4560 = vadd.f32 %v4359, %v4512
        %v4561 = vadd.f32 %v4360, %v4513
        %v4562 = vadd.f32 %v4361, %v4514
        %v4563 = vadd.f32 %v4362, %v4515
        %v4564 = vadd.f32 %v4363, %v4516
        %v4565 = vadd.f32 %v4364, %v4517
        %v4566 = vadd.f32 %v4365, %v4518
        %v4567 = vadd.f32 %v4366, %v4519
        %v4568 = vadd.f32 %v4367, %v4520
        %v4569 = vadd.f32 %v4368, %v4521
        %v4570 = vadd.f32 %v4369, %v4522
        %v4571 = vadd.f32 %v4370, %v4523
        %v4572 = vadd.f32 %v4371, %v4524
        %v4573 = vadd.f32 %v4372, %v4525
        %4574 = vset.pattern.permute.xlu0 23
        %4575 = vperm.xlu0 %4574, %v440
        %v4576 = vpop.permute.xlu0 %4575
        %4578 = vset.pattern.permute.xlu0 23
        %4579 = vperm.xlu0 %4578, %v441
        %v4580 = vpop.permute.xlu0 %4579
        %4582 = vset.pattern.permute.xlu0 23
        %4583 = vperm.xlu0 %4582, %v442
        %v4584 = vpop.permute.xlu0 %4583
        %4586 = vset.pattern.permute.xlu0 23
        %4587 = vperm.xlu0 %4586, %v443
        %v4588 = vpop.permute.xlu0 %4587
        %v4590 = vmul.f32 %v4576, %v426
        %v4591 = vmul.f32 %v4576, %v427
        %v4592 = vmul.f32 %v4576, %v428
        %v4593 = vmul.f32 %v4576, %v429
        %v4594 = vmul.f32 %v4576, %v430
        %v4595 = vmul.f32 %v4576, %v431
        %v4596 = vmul.f32 %v4576, %v432
        %v4597 = vmul.f32 %v4580, %v426
        %v4598 = vmul.f32 %v4580, %v427
        %v4599 = vmul.f32 %v4580, %v428
        %v4600 = vmul.f32 %v4580, %v429
        %v4601 = vmul.f32 %v4580, %v430
        %v4602 = vmul.f32 %v4580, %v431
        %v4603 = vmul.f32 %v4580, %v432
        %v4604 = vmul.f32 %v4584, %v433
        %v4605 = vmul.f32 %v4584, %v434
        %v4606 = vmul.f32 %v4584, %v435
        %v4607 = vmul.f32 %v4584, %v436
        %v4608 = vmul.f32 %v4584, %v437
        %v4609 = vmul.f32 %v4584, %v438
        %v4610 = vmul.f32 %v4584, %v439
        %v4611 = vmul.f32 %v4588, %v433
        %v4612 = vmul.f32 %v4588, %v434
        %v4613 = vmul.f32 %v4588, %v435
        %v4614 = vmul.f32 %v4588, %v436
        %v4615 = vmul.f32 %v4588, %v437
        %v4616 = vmul.f32 %v4588, %v438
        %v4617 = vmul.f32 %v4588, %v439
        %4646 = vrot.lane.b32.xlu0 %v4590, 105
        %v4647 = vpop.permute.xlu0 %4646
        %4648 = vrot.lane.b32.xlu0 %v4591, 105
        %v4649 = vpop.permute.xlu0 %4648
        %4650 = vrot.lane.b32.xlu0 %v4592, 105
        %v4651 = vpop.permute.xlu0 %4650
        %4652 = vrot.lane.b32.xlu0 %v4593, 105
        %v4653 = vpop.permute.xlu0 %4652
        %4654 = vrot.lane.b32.xlu0 %v4594, 105
        %v4655 = vpop.permute.xlu0 %4654
        %4656 = vrot.lane.b32.xlu0 %v4595, 105
        %v4657 = vpop.permute.xlu0 %4656
        %4658 = vrot.lane.b32.xlu0 %v4596, 105
        %v4659 = vpop.permute.xlu0 %4658
        %4660 = vrot.lane.b32.xlu0 %v4597, 105
        %v4661 = vpop.permute.xlu0 %4660
        %4662 = vrot.lane.b32.xlu0 %v4598, 105
        %v4663 = vpop.permute.xlu0 %4662
        %4664 = vrot.lane.b32.xlu0 %v4599, 105
        %v4665 = vpop.permute.xlu0 %4664
        %4666 = vrot.lane.b32.xlu0 %v4600, 105
        %v4667 = vpop.permute.xlu0 %4666
        %4668 = vrot.lane.b32.xlu0 %v4601, 105
        %v4669 = vpop.permute.xlu0 %4668
        %4670 = vrot.lane.b32.xlu0 %v4602, 105
        %v4671 = vpop.permute.xlu0 %4670
        %4672 = vrot.lane.b32.xlu0 %v4603, 105
        %v4673 = vpop.permute.xlu0 %4672
        %4674 = vrot.lane.b32.xlu0 %v4604, 105
        %v4675 = vpop.permute.xlu0 %4674
        %4676 = vrot.lane.b32.xlu0 %v4605, 105
        %v4677 = vpop.permute.xlu0 %4676
        %4678 = vrot.lane.b32.xlu0 %v4606, 105
        %v4679 = vpop.permute.xlu0 %4678
        %4680 = vrot.lane.b32.xlu0 %v4607, 105
        %v4681 = vpop.permute.xlu0 %4680
        %4682 = vrot.lane.b32.xlu0 %v4608, 105
        %v4683 = vpop.permute.xlu0 %4682
        %4684 = vrot.lane.b32.xlu0 %v4609, 105
        %v4685 = vpop.permute.xlu0 %4684
        %4686 = vrot.lane.b32.xlu0 %v4610, 105
        %v4687 = vpop.permute.xlu0 %4686
        %4688 = vrot.lane.b32.xlu0 %v4611, 105
        %v4689 = vpop.permute.xlu0 %4688
        %4690 = vrot.lane.b32.xlu0 %v4612, 105
        %v4691 = vpop.permute.xlu0 %4690
        %4692 = vrot.lane.b32.xlu0 %v4613, 105
        %v4693 = vpop.permute.xlu0 %4692
        %4694 = vrot.lane.b32.xlu0 %v4614, 105
        %v4695 = vpop.permute.xlu0 %4694
        %4696 = vrot.lane.b32.xlu0 %v4615, 105
        %v4697 = vpop.permute.xlu0 %4696
        %4698 = vrot.lane.b32.xlu0 %v4616, 105
        %v4699 = vpop.permute.xlu0 %4698
        %4700 = vrot.lane.b32.xlu0 %v4617, 105
        %v4701 = vpop.permute.xlu0 %4700
        %vm4702 = vcmask 859136
        %v4703 = vsel %vm4702, %v4647, %v4649
        %v4704 = vsel %vm4702, %v4649, %v4651
        %v4705 = vsel %vm4702, %v4651, %v4653
        %v4706 = vsel %vm4702, %v4653, %v4655
        %v4707 = vsel %vm4702, %v4655, %v4657
        %v4708 = vsel %vm4702, %v4657, %v4659
        %v4709 = vsel %vm4702, %v4661, %v4663
        %v4710 = vsel %vm4702, %v4663, %v4665
        %v4711 = vsel %vm4702, %v4665, %v4667
        %v4712 = vsel %vm4702, %v4667, %v4669
        %v4713 = vsel %vm4702, %v4669, %v4671
        %v4714 = vsel %vm4702, %v4671, %v4673
        %v4715 = vsel %vm4702, %v4675, %v4677
        %v4716 = vsel %vm4702, %v4677, %v4679
        %v4717 = vsel %vm4702, %v4679, %v4681
        %v4718 = vsel %vm4702, %v4681, %v4683
        %v4719 = vsel %vm4702, %v4683, %v4685
        %v4720 = vsel %vm4702, %v4685, %v4687
        %v4721 = vsel %vm4702, %v4689, %v4691
        %v4722 = vsel %vm4702, %v4691, %v4693
        %v4723 = vsel %vm4702, %v4693, %v4695
        %v4724 = vsel %vm4702, %v4695, %v4697
        %v4725 = vsel %vm4702, %v4697, %v4699
        %v4726 = vsel %vm4702, %v4699, %v4701
        %v4751 = vadd.f32 %v4550, %v4703
        %v4752 = vadd.f32 %v4551, %v4704
        %v4753 = vadd.f32 %v4552, %v4705
        %v4754 = vadd.f32 %v4553, %v4706
        %v4755 = vadd.f32 %v4554, %v4707
        %v4756 = vadd.f32 %v4555, %v4708
        %v4757 = vadd.f32 %v4556, %v4709
        %v4758 = vadd.f32 %v4557, %v4710
        %v4759 = vadd.f32 %v4558, %v4711
        %v4760 = vadd.f32 %v4559, %v4712
        %v4761 = vadd.f32 %v4560, %v4713
        %v4762 = vadd.f32 %v4561, %v4714
        %v4763 = vadd.f32 %v4562, %v4715
        %v4764 = vadd.f32 %v4563, %v4716
        %v4765 = vadd.f32 %v4564, %v4717
        %v4766 = vadd.f32 %v4565, %v4718
        %v4767 = vadd.f32 %v4566, %v4719
        %v4768 = vadd.f32 %v4567, %v4720
        %v4769 = vadd.f32 %v4568, %v4721
        %v4770 = vadd.f32 %v4569, %v4722
        %v4771 = vadd.f32 %v4570, %v4723
        %v4772 = vadd.f32 %v4571, %v4724
        %v4773 = vadd.f32 %v4572, %v4725
        %v4774 = vadd.f32 %v4573, %v4726
        %4775 = vset.pattern.permute.xlu0 24
        %4776 = vperm.xlu0 %4775, %v440
        %v4777 = vpop.permute.xlu0 %4776
        %4779 = vset.pattern.permute.xlu0 24
        %4780 = vperm.xlu0 %4779, %v441
        %v4781 = vpop.permute.xlu0 %4780
        %4783 = vset.pattern.permute.xlu0 24
        %4784 = vperm.xlu0 %4783, %v442
        %v4785 = vpop.permute.xlu0 %4784
        %4787 = vset.pattern.permute.xlu0 24
        %4788 = vperm.xlu0 %4787, %v443
        %v4789 = vpop.permute.xlu0 %4788
        %v4791 = vmul.f32 %v4777, %v426
        %v4792 = vmul.f32 %v4777, %v427
        %v4793 = vmul.f32 %v4777, %v428
        %v4794 = vmul.f32 %v4777, %v429
        %v4795 = vmul.f32 %v4777, %v430
        %v4796 = vmul.f32 %v4777, %v431
        %v4797 = vmul.f32 %v4777, %v432
        %v4798 = vmul.f32 %v4781, %v426
        %v4799 = vmul.f32 %v4781, %v427
        %v4800 = vmul.f32 %v4781, %v428
        %v4801 = vmul.f32 %v4781, %v429
        %v4802 = vmul.f32 %v4781, %v430
        %v4803 = vmul.f32 %v4781, %v431
        %v4804 = vmul.f32 %v4781, %v432
        %v4805 = vmul.f32 %v4785, %v433
        %v4806 = vmul.f32 %v4785, %v434
        %v4807 = vmul.f32 %v4785, %v435
        %v4808 = vmul.f32 %v4785, %v436
        %v4809 = vmul.f32 %v4785, %v437
        %v4810 = vmul.f32 %v4785, %v438
        %v4811 = vmul.f32 %v4785, %v439
        %v4812 = vmul.f32 %v4789, %v433
        %v4813 = vmul.f32 %v4789, %v434
        %v4814 = vmul.f32 %v4789, %v435
        %v4815 = vmul.f32 %v4789, %v436
        %v4816 = vmul.f32 %v4789, %v437
        %v4817 = vmul.f32 %v4789, %v438
        %v4818 = vmul.f32 %v4789, %v439
        %4847 = vrot.lane.b32.xlu0 %v4791, 104
        %v4848 = vpop.permute.xlu0 %4847
        %4849 = vrot.lane.b32.xlu0 %v4792, 104
        %v4850 = vpop.permute.xlu0 %4849
        %4851 = vrot.lane.b32.xlu0 %v4793, 104
        %v4852 = vpop.permute.xlu0 %4851
        %4853 = vrot.lane.b32.xlu0 %v4794, 104
        %v4854 = vpop.permute.xlu0 %4853
        %4855 = vrot.lane.b32.xlu0 %v4795, 104
        %v4856 = vpop.permute.xlu0 %4855
        %4857 = vrot.lane.b32.xlu0 %v4796, 104
        %v4858 = vpop.permute.xlu0 %4857
        %4859 = vrot.lane.b32.xlu0 %v4797, 104
        %v4860 = vpop.permute.xlu0 %4859
        %4861 = vrot.lane.b32.xlu0 %v4798, 104
        %v4862 = vpop.permute.xlu0 %4861
        %4863 = vrot.lane.b32.xlu0 %v4799, 104
        %v4864 = vpop.permute.xlu0 %4863
        %4865 = vrot.lane.b32.xlu0 %v4800, 104
        %v4866 = vpop.permute.xlu0 %4865
        %4867 = vrot.lane.b32.xlu0 %v4801, 104
        %v4868 = vpop.permute.xlu0 %4867
        %4869 = vrot.lane.b32.xlu0 %v4802, 104
        %v4870 = vpop.permute.xlu0 %4869
        %4871 = vrot.lane.b32.xlu0 %v4803, 104
        %v4872 = vpop.permute.xlu0 %4871
        %4873 = vrot.lane.b32.xlu0 %v4804, 104
        %v4874 = vpop.permute.xlu0 %4873
        %4875 = vrot.lane.b32.xlu0 %v4805, 104
        %v4876 = vpop.permute.xlu0 %4875
        %4877 = vrot.lane.b32.xlu0 %v4806, 104
        %v4878 = vpop.permute.xlu0 %4877
        %4879 = vrot.lane.b32.xlu0 %v4807, 104
        %v4880 = vpop.permute.xlu0 %4879
        %4881 = vrot.lane.b32.xlu0 %v4808, 104
        %v4882 = vpop.permute.xlu0 %4881
        %4883 = vrot.lane.b32.xlu0 %v4809, 104
        %v4884 = vpop.permute.xlu0 %4883
        %4885 = vrot.lane.b32.xlu0 %v4810, 104
        %v4886 = vpop.permute.xlu0 %4885
        %4887 = vrot.lane.b32.xlu0 %v4811, 104
        %v4888 = vpop.permute.xlu0 %4887
        %4889 = vrot.lane.b32.xlu0 %v4812, 104
        %v4890 = vpop.permute.xlu0 %4889
        %4891 = vrot.lane.b32.xlu0 %v4813, 104
        %v4892 = vpop.permute.xlu0 %4891
        %4893 = vrot.lane.b32.xlu0 %v4814, 104
        %v4894 = vpop.permute.xlu0 %4893
        %4895 = vrot.lane.b32.xlu0 %v4815, 104
        %v4896 = vpop.permute.xlu0 %4895
        %4897 = vrot.lane.b32.xlu0 %v4816, 104
        %v4898 = vpop.permute.xlu0 %4897
        %4899 = vrot.lane.b32.xlu0 %v4817, 104
        %v4900 = vpop.permute.xlu0 %4899
        %4901 = vrot.lane.b32.xlu0 %v4818, 104
        %v4902 = vpop.permute.xlu0 %4901
        %vm4903 = vcmask 850944
        %v4904 = vsel %vm4903, %v4848, %v4850
        %v4905 = vsel %vm4903, %v4850, %v4852
        %v4906 = vsel %vm4903, %v4852, %v4854
        %v4907 = vsel %vm4903, %v4854, %v4856
        %v4908 = vsel %vm4903, %v4856, %v4858
        %v4909 = vsel %vm4903, %v4858, %v4860
        %v4910 = vsel %vm4903, %v4862, %v4864
        %v4911 = vsel %vm4903, %v4864, %v4866
        %v4912 = vsel %vm4903, %v4866, %v4868
        %v4913 = vsel %vm4903, %v4868, %v4870
        %v4914 = vsel %vm4903, %v4870, %v4872
        %v4915 = vsel %vm4903, %v4872, %v4874
        %v4916 = vsel %vm4903, %v4876, %v4878
        %v4917 = vsel %vm4903, %v4878, %v4880
        %v4918 = vsel %vm4903, %v4880, %v4882
        %v4919 = vsel %vm4903, %v4882, %v4884
        %v4920 = vsel %vm4903, %v4884, %v4886
        %v4921 = vsel %vm4903, %v4886, %v4888
        %v4922 = vsel %vm4903, %v4890, %v4892
        %v4923 = vsel %vm4903, %v4892, %v4894
        %v4924 = vsel %vm4903, %v4894, %v4896
        %v4925 = vsel %vm4903, %v4896, %v4898
        %v4926 = vsel %vm4903, %v4898, %v4900
        %v4927 = vsel %vm4903, %v4900, %v4902
        %v4952 = vadd.f32 %v4751, %v4904
        %v4953 = vadd.f32 %v4752, %v4905
        %v4954 = vadd.f32 %v4753, %v4906
        %v4955 = vadd.f32 %v4754, %v4907
        %v4956 = vadd.f32 %v4755, %v4908
        %v4957 = vadd.f32 %v4756, %v4909
        %v4958 = vadd.f32 %v4757, %v4910
        %v4959 = vadd.f32 %v4758, %v4911
        %v4960 = vadd.f32 %v4759, %v4912
        %v4961 = vadd.f32 %v4760, %v4913
        %v4962 = vadd.f32 %v4761, %v4914
        %v4963 = vadd.f32 %v4762, %v4915
        %v4964 = vadd.f32 %v4763, %v4916
        %v4965 = vadd.f32 %v4764, %v4917
        %v4966 = vadd.f32 %v4765, %v4918
        %v4967 = vadd.f32 %v4766, %v4919
        %v4968 = vadd.f32 %v4767, %v4920
        %v4969 = vadd.f32 %v4768, %v4921
        %v4970 = vadd.f32 %v4769, %v4922
        %v4971 = vadd.f32 %v4770, %v4923
        %v4972 = vadd.f32 %v4771, %v4924
        %v4973 = vadd.f32 %v4772, %v4925
        %v4974 = vadd.f32 %v4773, %v4926
        %v4975 = vadd.f32 %v4774, %v4927
        %4976 = vset.pattern.permute.xlu0 25
        %4977 = vperm.xlu0 %4976, %v440
        %v4978 = vpop.permute.xlu0 %4977
        %4980 = vset.pattern.permute.xlu0 25
        %4981 = vperm.xlu0 %4980, %v441
        %v4982 = vpop.permute.xlu0 %4981
        %4984 = vset.pattern.permute.xlu0 25
        %4985 = vperm.xlu0 %4984, %v442
        %v4986 = vpop.permute.xlu0 %4985
        %4988 = vset.pattern.permute.xlu0 25
        %4989 = vperm.xlu0 %4988, %v443
        %v4990 = vpop.permute.xlu0 %4989
        %v4992 = vmul.f32 %v4978, %v426
        %v4993 = vmul.f32 %v4978, %v427
        %v4994 = vmul.f32 %v4978, %v428
        %v4995 = vmul.f32 %v4978, %v429
        %v4996 = vmul.f32 %v4978, %v430
        %v4997 = vmul.f32 %v4978, %v431
        %v4998 = vmul.f32 %v4978, %v432
        %v4999 = vmul.f32 %v4982, %v426
        %v5000 = vmul.f32 %v4982, %v427
        %v5001 = vmul.f32 %v4982, %v428
        %v5002 = vmul.f32 %v4982, %v429
        %v5003 = vmul.f32 %v4982, %v430
        %v5004 = vmul.f32 %v4982, %v431
        %v5005 = vmul.f32 %v4982, %v432
        %v5006 = vmul.f32 %v4986, %v433
        %v5007 = vmul.f32 %v4986, %v434
        %v5008 = vmul.f32 %v4986, %v435
        %v5009 = vmul.f32 %v4986, %v436
        %v5010 = vmul.f32 %v4986, %v437
        %v5011 = vmul.f32 %v4986, %v438
        %v5012 = vmul.f32 %v4986, %v439
        %v5013 = vmul.f32 %v4990, %v433
        %v5014 = vmul.f32 %v4990, %v434
        %v5015 = vmul.f32 %v4990, %v435
        %v5016 = vmul.f32 %v4990, %v436
        %v5017 = vmul.f32 %v4990, %v437
        %v5018 = vmul.f32 %v4990, %v438
        %v5019 = vmul.f32 %v4990, %v439
        %5048 = vrot.lane.b32.xlu0 %v4992, 103
        %v5049 = vpop.permute.xlu0 %5048
        %5050 = vrot.lane.b32.xlu0 %v4993, 103
        %v5051 = vpop.permute.xlu0 %5050
        %5052 = vrot.lane.b32.xlu0 %v4994, 103
        %v5053 = vpop.permute.xlu0 %5052
        %5054 = vrot.lane.b32.xlu0 %v4995, 103
        %v5055 = vpop.permute.xlu0 %5054
        %5056 = vrot.lane.b32.xlu0 %v4996, 103
        %v5057 = vpop.permute.xlu0 %5056
        %5058 = vrot.lane.b32.xlu0 %v4997, 103
        %v5059 = vpop.permute.xlu0 %5058
        %5060 = vrot.lane.b32.xlu0 %v4998, 103
        %v5061 = vpop.permute.xlu0 %5060
        %5062 = vrot.lane.b32.xlu0 %v4999, 103
        %v5063 = vpop.permute.xlu0 %5062
        %5064 = vrot.lane.b32.xlu0 %v5000, 103
        %v5065 = vpop.permute.xlu0 %5064
        %5066 = vrot.lane.b32.xlu0 %v5001, 103
        %v5067 = vpop.permute.xlu0 %5066
        %5068 = vrot.lane.b32.xlu0 %v5002, 103
        %v5069 = vpop.permute.xlu0 %5068
        %5070 = vrot.lane.b32.xlu0 %v5003, 103
        %v5071 = vpop.permute.xlu0 %5070
        %5072 = vrot.lane.b32.xlu0 %v5004, 103
        %v5073 = vpop.permute.xlu0 %5072
        %5074 = vrot.lane.b32.xlu0 %v5005, 103
        %v5075 = vpop.permute.xlu0 %5074
        %5076 = vrot.lane.b32.xlu0 %v5006, 103
        %v5077 = vpop.permute.xlu0 %5076
        %5078 = vrot.lane.b32.xlu0 %v5007, 103
        %v5079 = vpop.permute.xlu0 %5078
        %5080 = vrot.lane.b32.xlu0 %v5008, 103
        %v5081 = vpop.permute.xlu0 %5080
        %5082 = vrot.lane.b32.xlu0 %v5009, 103
        %v5083 = vpop.permute.xlu0 %5082
        %5084 = vrot.lane.b32.xlu0 %v5010, 103
        %v5085 = vpop.permute.xlu0 %5084
        %5086 = vrot.lane.b32.xlu0 %v5011, 103
        %v5087 = vpop.permute.xlu0 %5086
        %5088 = vrot.lane.b32.xlu0 %v5012, 103
        %v5089 = vpop.permute.xlu0 %5088
        %5090 = vrot.lane.b32.xlu0 %v5013, 103
        %v5091 = vpop.permute.xlu0 %5090
        %5092 = vrot.lane.b32.xlu0 %v5014, 103
        %v5093 = vpop.permute.xlu0 %5092
        %5094 = vrot.lane.b32.xlu0 %v5015, 103
        %v5095 = vpop.permute.xlu0 %5094
        %5096 = vrot.lane.b32.xlu0 %v5016, 103
        %v5097 = vpop.permute.xlu0 %5096
        %5098 = vrot.lane.b32.xlu0 %v5017, 103
        %v5099 = vpop.permute.xlu0 %5098
        %5100 = vrot.lane.b32.xlu0 %v5018, 103
        %v5101 = vpop.permute.xlu0 %5100
        %5102 = vrot.lane.b32.xlu0 %v5019, 103
        %v5103 = vpop.permute.xlu0 %5102
        %vm5104 = vcmask 842752
        %v5105 = vsel %vm5104, %v5049, %v5051
        %v5106 = vsel %vm5104, %v5051, %v5053
        %v5107 = vsel %vm5104, %v5053, %v5055
        %v5108 = vsel %vm5104, %v5055, %v5057
        %v5109 = vsel %vm5104, %v5057, %v5059
        %v5110 = vsel %vm5104, %v5059, %v5061
        %v5111 = vsel %vm5104, %v5063, %v5065
        %v5112 = vsel %vm5104, %v5065, %v5067
        %v5113 = vsel %vm5104, %v5067, %v5069
        %v5114 = vsel %vm5104, %v5069, %v5071
        %v5115 = vsel %vm5104, %v5071, %v5073
        %v5116 = vsel %vm5104, %v5073, %v5075
        %v5117 = vsel %vm5104, %v5077, %v5079
        %v5118 = vsel %vm5104, %v5079, %v5081
        %v5119 = vsel %vm5104, %v5081, %v5083
        %v5120 = vsel %vm5104, %v5083, %v5085
        %v5121 = vsel %vm5104, %v5085, %v5087
        %v5122 = vsel %vm5104, %v5087, %v5089
        %v5123 = vsel %vm5104, %v5091, %v5093
        %v5124 = vsel %vm5104, %v5093, %v5095
        %v5125 = vsel %vm5104, %v5095, %v5097
        %v5126 = vsel %vm5104, %v5097, %v5099
        %v5127 = vsel %vm5104, %v5099, %v5101
        %v5128 = vsel %vm5104, %v5101, %v5103
        %v5153 = vadd.f32 %v4952, %v5105
        %v5154 = vadd.f32 %v4953, %v5106
        %v5155 = vadd.f32 %v4954, %v5107
        %v5156 = vadd.f32 %v4955, %v5108
        %v5157 = vadd.f32 %v4956, %v5109
        %v5158 = vadd.f32 %v4957, %v5110
        %v5159 = vadd.f32 %v4958, %v5111
        %v5160 = vadd.f32 %v4959, %v5112
        %v5161 = vadd.f32 %v4960, %v5113
        %v5162 = vadd.f32 %v4961, %v5114
        %v5163 = vadd.f32 %v4962, %v5115
        %v5164 = vadd.f32 %v4963, %v5116
        %v5165 = vadd.f32 %v4964, %v5117
        %v5166 = vadd.f32 %v4965, %v5118
        %v5167 = vadd.f32 %v4966, %v5119
        %v5168 = vadd.f32 %v4967, %v5120
        %v5169 = vadd.f32 %v4968, %v5121
        %v5170 = vadd.f32 %v4969, %v5122
        %v5171 = vadd.f32 %v4970, %v5123
        %v5172 = vadd.f32 %v4971, %v5124
        %v5173 = vadd.f32 %v4972, %v5125
        %v5174 = vadd.f32 %v4973, %v5126
        %v5175 = vadd.f32 %v4974, %v5127
        %v5176 = vadd.f32 %v4975, %v5128
        %5177 = vset.pattern.permute.xlu0 26
        %5178 = vperm.xlu0 %5177, %v440
        %v5179 = vpop.permute.xlu0 %5178
        %5181 = vset.pattern.permute.xlu0 26
        %5182 = vperm.xlu0 %5181, %v441
        %v5183 = vpop.permute.xlu0 %5182
        %5185 = vset.pattern.permute.xlu0 26
        %5186 = vperm.xlu0 %5185, %v442
        %v5187 = vpop.permute.xlu0 %5186
        %5189 = vset.pattern.permute.xlu0 26
        %5190 = vperm.xlu0 %5189, %v443
        %v5191 = vpop.permute.xlu0 %5190
        %v5193 = vmul.f32 %v5179, %v426
        %v5194 = vmul.f32 %v5179, %v427
        %v5195 = vmul.f32 %v5179, %v428
        %v5196 = vmul.f32 %v5179, %v429
        %v5197 = vmul.f32 %v5179, %v430
        %v5198 = vmul.f32 %v5179, %v431
        %v5199 = vmul.f32 %v5179, %v432
        %v5200 = vmul.f32 %v5183, %v426
        %v5201 = vmul.f32 %v5183, %v427
        %v5202 = vmul.f32 %v5183, %v428
        %v5203 = vmul.f32 %v5183, %v429
        %v5204 = vmul.f32 %v5183, %v430
        %v5205 = vmul.f32 %v5183, %v431
        %v5206 = vmul.f32 %v5183, %v432
        %v5207 = vmul.f32 %v5187, %v433
        %v5208 = vmul.f32 %v5187, %v434
        %v5209 = vmul.f32 %v5187, %v435
        %v5210 = vmul.f32 %v5187, %v436
        %v5211 = vmul.f32 %v5187, %v437
        %v5212 = vmul.f32 %v5187, %v438
        %v5213 = vmul.f32 %v5187, %v439
        %v5214 = vmul.f32 %v5191, %v433
        %v5215 = vmul.f32 %v5191, %v434
        %v5216 = vmul.f32 %v5191, %v435
        %v5217 = vmul.f32 %v5191, %v436
        %v5218 = vmul.f32 %v5191, %v437
        %v5219 = vmul.f32 %v5191, %v438
        %v5220 = vmul.f32 %v5191, %v439
        %5249 = vrot.lane.b32.xlu0 %v5193, 102
        %v5250 = vpop.permute.xlu0 %5249
        %5251 = vrot.lane.b32.xlu0 %v5194, 102
        %v5252 = vpop.permute.xlu0 %5251
        %5253 = vrot.lane.b32.xlu0 %v5195, 102
        %v5254 = vpop.permute.xlu0 %5253
        %5255 = vrot.lane.b32.xlu0 %v5196, 102
        %v5256 = vpop.permute.xlu0 %5255
        %5257 = vrot.lane.b32.xlu0 %v5197, 102
        %v5258 = vpop.permute.xlu0 %5257
        %5259 = vrot.lane.b32.xlu0 %v5198, 102
        %v5260 = vpop.permute.xlu0 %5259
        %5261 = vrot.lane.b32.xlu0 %v5199, 102
        %v5262 = vpop.permute.xlu0 %5261
        %5263 = vrot.lane.b32.xlu0 %v5200, 102
        %v5264 = vpop.permute.xlu0 %5263
        %5265 = vrot.lane.b32.xlu0 %v5201, 102
        %v5266 = vpop.permute.xlu0 %5265
        %5267 = vrot.lane.b32.xlu0 %v5202, 102
        %v5268 = vpop.permute.xlu0 %5267
        %5269 = vrot.lane.b32.xlu0 %v5203, 102
        %v5270 = vpop.permute.xlu0 %5269
        %5271 = vrot.lane.b32.xlu0 %v5204, 102
        %v5272 = vpop.permute.xlu0 %5271
        %5273 = vrot.lane.b32.xlu0 %v5205, 102
        %v5274 = vpop.permute.xlu0 %5273
        %5275 = vrot.lane.b32.xlu0 %v5206, 102
        %v5276 = vpop.permute.xlu0 %5275
        %5277 = vrot.lane.b32.xlu0 %v5207, 102
        %v5278 = vpop.permute.xlu0 %5277
        %5279 = vrot.lane.b32.xlu0 %v5208, 102
        %v5280 = vpop.permute.xlu0 %5279
        %5281 = vrot.lane.b32.xlu0 %v5209, 102
        %v5282 = vpop.permute.xlu0 %5281
        %5283 = vrot.lane.b32.xlu0 %v5210, 102
        %v5284 = vpop.permute.xlu0 %5283
        %5285 = vrot.lane.b32.xlu0 %v5211, 102
        %v5286 = vpop.permute.xlu0 %5285
        %5287 = vrot.lane.b32.xlu0 %v5212, 102
        %v5288 = vpop.permute.xlu0 %5287
        %5289 = vrot.lane.b32.xlu0 %v5213, 102
        %v5290 = vpop.permute.xlu0 %5289
        %5291 = vrot.lane.b32.xlu0 %v5214, 102
        %v5292 = vpop.permute.xlu0 %5291
        %5293 = vrot.lane.b32.xlu0 %v5215, 102
        %v5294 = vpop.permute.xlu0 %5293
        %5295 = vrot.lane.b32.xlu0 %v5216, 102
        %v5296 = vpop.permute.xlu0 %5295
        %5297 = vrot.lane.b32.xlu0 %v5217, 102
        %v5298 = vpop.permute.xlu0 %5297
        %5299 = vrot.lane.b32.xlu0 %v5218, 102
        %v5300 = vpop.permute.xlu0 %5299
        %5301 = vrot.lane.b32.xlu0 %v5219, 102
        %v5302 = vpop.permute.xlu0 %5301
        %5303 = vrot.lane.b32.xlu0 %v5220, 102
        %v5304 = vpop.permute.xlu0 %5303
        %vm5305 = vcmask 834560
        %v5306 = vsel %vm5305, %v5250, %v5252
        %v5307 = vsel %vm5305, %v5252, %v5254
        %v5308 = vsel %vm5305, %v5254, %v5256
        %v5309 = vsel %vm5305, %v5256, %v5258
        %v5310 = vsel %vm5305, %v5258, %v5260
        %v5311 = vsel %vm5305, %v5260, %v5262
        %v5312 = vsel %vm5305, %v5264, %v5266
        %v5313 = vsel %vm5305, %v5266, %v5268
        %v5314 = vsel %vm5305, %v5268, %v5270
        %v5315 = vsel %vm5305, %v5270, %v5272
        %v5316 = vsel %vm5305, %v5272, %v5274
        %v5317 = vsel %vm5305, %v5274, %v5276
        %v5318 = vsel %vm5305, %v5278, %v5280
        %v5319 = vsel %vm5305, %v5280, %v5282
        %v5320 = vsel %vm5305, %v5282, %v5284
        %v5321 = vsel %vm5305, %v5284, %v5286
        %v5322 = vsel %vm5305, %v5286, %v5288
        %v5323 = vsel %vm5305, %v5288, %v5290
        %v5324 = vsel %vm5305, %v5292, %v5294
        %v5325 = vsel %vm5305, %v5294, %v5296
        %v5326 = vsel %vm5305, %v5296, %v5298
        %v5327 = vsel %vm5305, %v5298, %v5300
        %v5328 = vsel %vm5305, %v5300, %v5302
        %v5329 = vsel %vm5305, %v5302, %v5304
        %v5354 = vadd.f32 %v5153, %v5306
        %v5355 = vadd.f32 %v5154, %v5307
        %v5356 = vadd.f32 %v5155, %v5308
        %v5357 = vadd.f32 %v5156, %v5309
        %v5358 = vadd.f32 %v5157, %v5310
        %v5359 = vadd.f32 %v5158, %v5311
        %v5360 = vadd.f32 %v5159, %v5312
        %v5361 = vadd.f32 %v5160, %v5313
        %v5362 = vadd.f32 %v5161, %v5314
        %v5363 = vadd.f32 %v5162, %v5315
        %v5364 = vadd.f32 %v5163, %v5316
        %v5365 = vadd.f32 %v5164, %v5317
        %v5366 = vadd.f32 %v5165, %v5318
        %v5367 = vadd.f32 %v5166, %v5319
        %v5368 = vadd.f32 %v5167, %v5320
        %v5369 = vadd.f32 %v5168, %v5321
        %v5370 = vadd.f32 %v5169, %v5322
        %v5371 = vadd.f32 %v5170, %v5323
        %v5372 = vadd.f32 %v5171, %v5324
        %v5373 = vadd.f32 %v5172, %v5325
        %v5374 = vadd.f32 %v5173, %v5326
        %v5375 = vadd.f32 %v5174, %v5327
        %v5376 = vadd.f32 %v5175, %v5328
        %v5377 = vadd.f32 %v5176, %v5329
        %5378 = vset.pattern.permute.xlu0 27
        %5379 = vperm.xlu0 %5378, %v440
        %v5380 = vpop.permute.xlu0 %5379
        %5382 = vset.pattern.permute.xlu0 27
        %5383 = vperm.xlu0 %5382, %v441
        %v5384 = vpop.permute.xlu0 %5383
        %5386 = vset.pattern.permute.xlu0 27
        %5387 = vperm.xlu0 %5386, %v442
        %v5388 = vpop.permute.xlu0 %5387
        %5390 = vset.pattern.permute.xlu0 27
        %5391 = vperm.xlu0 %5390, %v443
        %v5392 = vpop.permute.xlu0 %5391
        %v5394 = vmul.f32 %v5380, %v426
        %v5395 = vmul.f32 %v5380, %v427
        %v5396 = vmul.f32 %v5380, %v428
        %v5397 = vmul.f32 %v5380, %v429
        %v5398 = vmul.f32 %v5380, %v430
        %v5399 = vmul.f32 %v5380, %v431
        %v5400 = vmul.f32 %v5380, %v432
        %v5401 = vmul.f32 %v5384, %v426
        %v5402 = vmul.f32 %v5384, %v427
        %v5403 = vmul.f32 %v5384, %v428
        %v5404 = vmul.f32 %v5384, %v429
        %v5405 = vmul.f32 %v5384, %v430
        %v5406 = vmul.f32 %v5384, %v431
        %v5407 = vmul.f32 %v5384, %v432
        %v5408 = vmul.f32 %v5388, %v433
        %v5409 = vmul.f32 %v5388, %v434
        %v5410 = vmul.f32 %v5388, %v435
        %v5411 = vmul.f32 %v5388, %v436
        %v5412 = vmul.f32 %v5388, %v437
        %v5413 = vmul.f32 %v5388, %v438
        %v5414 = vmul.f32 %v5388, %v439
        %v5415 = vmul.f32 %v5392, %v433
        %v5416 = vmul.f32 %v5392, %v434
        %v5417 = vmul.f32 %v5392, %v435
        %v5418 = vmul.f32 %v5392, %v436
        %v5419 = vmul.f32 %v5392, %v437
        %v5420 = vmul.f32 %v5392, %v438
        %v5421 = vmul.f32 %v5392, %v439
        %5450 = vrot.lane.b32.xlu0 %v5394, 101
        %v5451 = vpop.permute.xlu0 %5450
        %5452 = vrot.lane.b32.xlu0 %v5395, 101
        %v5453 = vpop.permute.xlu0 %5452
        %5454 = vrot.lane.b32.xlu0 %v5396, 101
        %v5455 = vpop.permute.xlu0 %5454
        %5456 = vrot.lane.b32.xlu0 %v5397, 101
        %v5457 = vpop.permute.xlu0 %5456
        %5458 = vrot.lane.b32.xlu0 %v5398, 101
        %v5459 = vpop.permute.xlu0 %5458
        %5460 = vrot.lane.b32.xlu0 %v5399, 101
        %v5461 = vpop.permute.xlu0 %5460
        %5462 = vrot.lane.b32.xlu0 %v5400, 101
        %v5463 = vpop.permute.xlu0 %5462
        %5464 = vrot.lane.b32.xlu0 %v5401, 101
        %v5465 = vpop.permute.xlu0 %5464
        %5466 = vrot.lane.b32.xlu0 %v5402, 101
        %v5467 = vpop.permute.xlu0 %5466
        %5468 = vrot.lane.b32.xlu0 %v5403, 101
        %v5469 = vpop.permute.xlu0 %5468
        %5470 = vrot.lane.b32.xlu0 %v5404, 101
        %v5471 = vpop.permute.xlu0 %5470
        %5472 = vrot.lane.b32.xlu0 %v5405, 101
        %v5473 = vpop.permute.xlu0 %5472
        %5474 = vrot.lane.b32.xlu0 %v5406, 101
        %v5475 = vpop.permute.xlu0 %5474
        %5476 = vrot.lane.b32.xlu0 %v5407, 101
        %v5477 = vpop.permute.xlu0 %5476
        %5478 = vrot.lane.b32.xlu0 %v5408, 101
        %v5479 = vpop.permute.xlu0 %5478
        %5480 = vrot.lane.b32.xlu0 %v5409, 101
        %v5481 = vpop.permute.xlu0 %5480
        %5482 = vrot.lane.b32.xlu0 %v5410, 101
        %v5483 = vpop.permute.xlu0 %5482
        %5484 = vrot.lane.b32.xlu0 %v5411, 101
        %v5485 = vpop.permute.xlu0 %5484
        %5486 = vrot.lane.b32.xlu0 %v5412, 101
        %v5487 = vpop.permute.xlu0 %5486
        %5488 = vrot.lane.b32.xlu0 %v5413, 101
        %v5489 = vpop.permute.xlu0 %5488
        %5490 = vrot.lane.b32.xlu0 %v5414, 101
        %v5491 = vpop.permute.xlu0 %5490
        %5492 = vrot.lane.b32.xlu0 %v5415, 101
        %v5493 = vpop.permute.xlu0 %5492
        %5494 = vrot.lane.b32.xlu0 %v5416, 101
        %v5495 = vpop.permute.xlu0 %5494
        %5496 = vrot.lane.b32.xlu0 %v5417, 101
        %v5497 = vpop.permute.xlu0 %5496
        %5498 = vrot.lane.b32.xlu0 %v5418, 101
        %v5499 = vpop.permute.xlu0 %5498
        %5500 = vrot.lane.b32.xlu0 %v5419, 101
        %v5501 = vpop.permute.xlu0 %5500
        %5502 = vrot.lane.b32.xlu0 %v5420, 101
        %v5503 = vpop.permute.xlu0 %5502
        %5504 = vrot.lane.b32.xlu0 %v5421, 101
        %v5505 = vpop.permute.xlu0 %5504
        %vm5506 = vcmask 826368
        %v5507 = vsel %vm5506, %v5451, %v5453
        %v5508 = vsel %vm5506, %v5453, %v5455
        %v5509 = vsel %vm5506, %v5455, %v5457
        %v5510 = vsel %vm5506, %v5457, %v5459
        %v5511 = vsel %vm5506, %v5459, %v5461
        %v5512 = vsel %vm5506, %v5461, %v5463
        %v5513 = vsel %vm5506, %v5465, %v5467
        %v5514 = vsel %vm5506, %v5467, %v5469
        %v5515 = vsel %vm5506, %v5469, %v5471
        %v5516 = vsel %vm5506, %v5471, %v5473
        %v5517 = vsel %vm5506, %v5473, %v5475
        %v5518 = vsel %vm5506, %v5475, %v5477
        %v5519 = vsel %vm5506, %v5479, %v5481
        %v5520 = vsel %vm5506, %v5481, %v5483
        %v5521 = vsel %vm5506, %v5483, %v5485
        %v5522 = vsel %vm5506, %v5485, %v5487
        %v5523 = vsel %vm5506, %v5487, %v5489
        %v5524 = vsel %vm5506, %v5489, %v5491
        %v5525 = vsel %vm5506, %v5493, %v5495
        %v5526 = vsel %vm5506, %v5495, %v5497
        %v5527 = vsel %vm5506, %v5497, %v5499
        %v5528 = vsel %vm5506, %v5499, %v5501
        %v5529 = vsel %vm5506, %v5501, %v5503
        %v5530 = vsel %vm5506, %v5503, %v5505
        %v5555 = vadd.f32 %v5354, %v5507
        %v5556 = vadd.f32 %v5355, %v5508
        %v5557 = vadd.f32 %v5356, %v5509
        %v5558 = vadd.f32 %v5357, %v5510
        %v5559 = vadd.f32 %v5358, %v5511
        %v5560 = vadd.f32 %v5359, %v5512
        %v5561 = vadd.f32 %v5360, %v5513
        %v5562 = vadd.f32 %v5361, %v5514
        %v5563 = vadd.f32 %v5362, %v5515
        %v5564 = vadd.f32 %v5363, %v5516
        %v5565 = vadd.f32 %v5364, %v5517
        %v5566 = vadd.f32 %v5365, %v5518
        %v5567 = vadd.f32 %v5366, %v5519
        %v5568 = vadd.f32 %v5367, %v5520
        %v5569 = vadd.f32 %v5368, %v5521
        %v5570 = vadd.f32 %v5369, %v5522
        %v5571 = vadd.f32 %v5370, %v5523
        %v5572 = vadd.f32 %v5371, %v5524
        %v5573 = vadd.f32 %v5372, %v5525
        %v5574 = vadd.f32 %v5373, %v5526
        %v5575 = vadd.f32 %v5374, %v5527
        %v5576 = vadd.f32 %v5375, %v5528
        %v5577 = vadd.f32 %v5376, %v5529
        %v5578 = vadd.f32 %v5377, %v5530
        %5579 = vset.pattern.permute.xlu0 28
        %5580 = vperm.xlu0 %5579, %v440
        %v5581 = vpop.permute.xlu0 %5580
        %5583 = vset.pattern.permute.xlu0 28
        %5584 = vperm.xlu0 %5583, %v441
        %v5585 = vpop.permute.xlu0 %5584
        %5587 = vset.pattern.permute.xlu0 28
        %5588 = vperm.xlu0 %5587, %v442
        %v5589 = vpop.permute.xlu0 %5588
        %5591 = vset.pattern.permute.xlu0 28
        %5592 = vperm.xlu0 %5591, %v443
        %v5593 = vpop.permute.xlu0 %5592
        %v5595 = vmul.f32 %v5581, %v426
        %v5596 = vmul.f32 %v5581, %v427
        %v5597 = vmul.f32 %v5581, %v428
        %v5598 = vmul.f32 %v5581, %v429
        %v5599 = vmul.f32 %v5581, %v430
        %v5600 = vmul.f32 %v5581, %v431
        %v5601 = vmul.f32 %v5581, %v432
        %v5602 = vmul.f32 %v5585, %v426
        %v5603 = vmul.f32 %v5585, %v427
        %v5604 = vmul.f32 %v5585, %v428
        %v5605 = vmul.f32 %v5585, %v429
        %v5606 = vmul.f32 %v5585, %v430
        %v5607 = vmul.f32 %v5585, %v431
        %v5608 = vmul.f32 %v5585, %v432
        %v5609 = vmul.f32 %v5589, %v433
        %v5610 = vmul.f32 %v5589, %v434
        %v5611 = vmul.f32 %v5589, %v435
        %v5612 = vmul.f32 %v5589, %v436
        %v5613 = vmul.f32 %v5589, %v437
        %v5614 = vmul.f32 %v5589, %v438
        %v5615 = vmul.f32 %v5589, %v439
        %v5616 = vmul.f32 %v5593, %v433
        %v5617 = vmul.f32 %v5593, %v434
        %v5618 = vmul.f32 %v5593, %v435
        %v5619 = vmul.f32 %v5593, %v436
        %v5620 = vmul.f32 %v5593, %v437
        %v5621 = vmul.f32 %v5593, %v438
        %v5622 = vmul.f32 %v5593, %v439
        %5651 = vrot.lane.b32.xlu0 %v5595, 100
        %v5652 = vpop.permute.xlu0 %5651
        %5653 = vrot.lane.b32.xlu0 %v5596, 100
        %v5654 = vpop.permute.xlu0 %5653
        %5655 = vrot.lane.b32.xlu0 %v5597, 100
        %v5656 = vpop.permute.xlu0 %5655
        %5657 = vrot.lane.b32.xlu0 %v5598, 100
        %v5658 = vpop.permute.xlu0 %5657
        %5659 = vrot.lane.b32.xlu0 %v5599, 100
        %v5660 = vpop.permute.xlu0 %5659
        %5661 = vrot.lane.b32.xlu0 %v5600, 100
        %v5662 = vpop.permute.xlu0 %5661
        %5663 = vrot.lane.b32.xlu0 %v5601, 100
        %v5664 = vpop.permute.xlu0 %5663
        %5665 = vrot.lane.b32.xlu0 %v5602, 100
        %v5666 = vpop.permute.xlu0 %5665
        %5667 = vrot.lane.b32.xlu0 %v5603, 100
        %v5668 = vpop.permute.xlu0 %5667
        %5669 = vrot.lane.b32.xlu0 %v5604, 100
        %v5670 = vpop.permute.xlu0 %5669
        %5671 = vrot.lane.b32.xlu0 %v5605, 100
        %v5672 = vpop.permute.xlu0 %5671
        %5673 = vrot.lane.b32.xlu0 %v5606, 100
        %v5674 = vpop.permute.xlu0 %5673
        %5675 = vrot.lane.b32.xlu0 %v5607, 100
        %v5676 = vpop.permute.xlu0 %5675
        %5677 = vrot.lane.b32.xlu0 %v5608, 100
        %v5678 = vpop.permute.xlu0 %5677
        %5679 = vrot.lane.b32.xlu0 %v5609, 100
        %v5680 = vpop.permute.xlu0 %5679
        %5681 = vrot.lane.b32.xlu0 %v5610, 100
        %v5682 = vpop.permute.xlu0 %5681
        %5683 = vrot.lane.b32.xlu0 %v5611, 100
        %v5684 = vpop.permute.xlu0 %5683
        %5685 = vrot.lane.b32.xlu0 %v5612, 100
        %v5686 = vpop.permute.xlu0 %5685
        %5687 = vrot.lane.b32.xlu0 %v5613, 100
        %v5688 = vpop.permute.xlu0 %5687
        %5689 = vrot.lane.b32.xlu0 %v5614, 100
        %v5690 = vpop.permute.xlu0 %5689
        %5691 = vrot.lane.b32.xlu0 %v5615, 100
        %v5692 = vpop.permute.xlu0 %5691
        %5693 = vrot.lane.b32.xlu0 %v5616, 100
        %v5694 = vpop.permute.xlu0 %5693
        %5695 = vrot.lane.b32.xlu0 %v5617, 100
        %v5696 = vpop.permute.xlu0 %5695
        %5697 = vrot.lane.b32.xlu0 %v5618, 100
        %v5698 = vpop.permute.xlu0 %5697
        %5699 = vrot.lane.b32.xlu0 %v5619, 100
        %v5700 = vpop.permute.xlu0 %5699
        %5701 = vrot.lane.b32.xlu0 %v5620, 100
        %v5702 = vpop.permute.xlu0 %5701
        %5703 = vrot.lane.b32.xlu0 %v5621, 100
        %v5704 = vpop.permute.xlu0 %5703
        %5705 = vrot.lane.b32.xlu0 %v5622, 100
        %v5706 = vpop.permute.xlu0 %5705
        %vm5707 = vcmask 818176
        %v5708 = vsel %vm5707, %v5652, %v5654
        %v5709 = vsel %vm5707, %v5654, %v5656
        %v5710 = vsel %vm5707, %v5656, %v5658
        %v5711 = vsel %vm5707, %v5658, %v5660
        %v5712 = vsel %vm5707, %v5660, %v5662
        %v5713 = vsel %vm5707, %v5662, %v5664
        %v5714 = vsel %vm5707, %v5666, %v5668
        %v5715 = vsel %vm5707, %v5668, %v5670
        %v5716 = vsel %vm5707, %v5670, %v5672
        %v5717 = vsel %vm5707, %v5672, %v5674
        %v5718 = vsel %vm5707, %v5674, %v5676
        %v5719 = vsel %vm5707, %v5676, %v5678
        %v5720 = vsel %vm5707, %v5680, %v5682
        %v5721 = vsel %vm5707, %v5682, %v5684
        %v5722 = vsel %vm5707, %v5684, %v5686
        %v5723 = vsel %vm5707, %v5686, %v5688
        %v5724 = vsel %vm5707, %v5688, %v5690
        %v5725 = vsel %vm5707, %v5690, %v5692
        %v5726 = vsel %vm5707, %v5694, %v5696
        %v5727 = vsel %vm5707, %v5696, %v5698
        %v5728 = vsel %vm5707, %v5698, %v5700
        %v5729 = vsel %vm5707, %v5700, %v5702
        %v5730 = vsel %vm5707, %v5702, %v5704
        %v5731 = vsel %vm5707, %v5704, %v5706
        %v5756 = vadd.f32 %v5555, %v5708
        %v5757 = vadd.f32 %v5556, %v5709
        %v5758 = vadd.f32 %v5557, %v5710
        %v5759 = vadd.f32 %v5558, %v5711
        %v5760 = vadd.f32 %v5559, %v5712
        %v5761 = vadd.f32 %v5560, %v5713
        %v5762 = vadd.f32 %v5561, %v5714
        %v5763 = vadd.f32 %v5562, %v5715
        %v5764 = vadd.f32 %v5563, %v5716
        %v5765 = vadd.f32 %v5564, %v5717
        %v5766 = vadd.f32 %v5565, %v5718
        %v5767 = vadd.f32 %v5566, %v5719
        %v5768 = vadd.f32 %v5567, %v5720
        %v5769 = vadd.f32 %v5568, %v5721
        %v5770 = vadd.f32 %v5569, %v5722
        %v5771 = vadd.f32 %v5570, %v5723
        %v5772 = vadd.f32 %v5571, %v5724
        %v5773 = vadd.f32 %v5572, %v5725
        %v5774 = vadd.f32 %v5573, %v5726
        %v5775 = vadd.f32 %v5574, %v5727
        %v5776 = vadd.f32 %v5575, %v5728
        %v5777 = vadd.f32 %v5576, %v5729
        %v5778 = vadd.f32 %v5577, %v5730
        %v5779 = vadd.f32 %v5578, %v5731
        %5780 = vset.pattern.permute.xlu0 29
        %5781 = vperm.xlu0 %5780, %v440
        %v5782 = vpop.permute.xlu0 %5781
        %5784 = vset.pattern.permute.xlu0 29
        %5785 = vperm.xlu0 %5784, %v441
        %v5786 = vpop.permute.xlu0 %5785
        %5788 = vset.pattern.permute.xlu0 29
        %5789 = vperm.xlu0 %5788, %v442
        %v5790 = vpop.permute.xlu0 %5789
        %5792 = vset.pattern.permute.xlu0 29
        %5793 = vperm.xlu0 %5792, %v443
        %v5794 = vpop.permute.xlu0 %5793
        %v5796 = vmul.f32 %v5782, %v426
        %v5797 = vmul.f32 %v5782, %v427
        %v5798 = vmul.f32 %v5782, %v428
        %v5799 = vmul.f32 %v5782, %v429
        %v5800 = vmul.f32 %v5782, %v430
        %v5801 = vmul.f32 %v5782, %v431
        %v5802 = vmul.f32 %v5782, %v432
        %v5803 = vmul.f32 %v5786, %v426
        %v5804 = vmul.f32 %v5786, %v427
        %v5805 = vmul.f32 %v5786, %v428
        %v5806 = vmul.f32 %v5786, %v429
        %v5807 = vmul.f32 %v5786, %v430
        %v5808 = vmul.f32 %v5786, %v431
        %v5809 = vmul.f32 %v5786, %v432
        %v5810 = vmul.f32 %v5790, %v433
        %v5811 = vmul.f32 %v5790, %v434
        %v5812 = vmul.f32 %v5790, %v435
        %v5813 = vmul.f32 %v5790, %v436
        %v5814 = vmul.f32 %v5790, %v437
        %v5815 = vmul.f32 %v5790, %v438
        %v5816 = vmul.f32 %v5790, %v439
        %v5817 = vmul.f32 %v5794, %v433
        %v5818 = vmul.f32 %v5794, %v434
        %v5819 = vmul.f32 %v5794, %v435
        %v5820 = vmul.f32 %v5794, %v436
        %v5821 = vmul.f32 %v5794, %v437
        %v5822 = vmul.f32 %v5794, %v438
        %v5823 = vmul.f32 %v5794, %v439
        %5852 = vrot.lane.b32.xlu0 %v5796, 99
        %v5853 = vpop.permute.xlu0 %5852
        %5854 = vrot.lane.b32.xlu0 %v5797, 99
        %v5855 = vpop.permute.xlu0 %5854
        %5856 = vrot.lane.b32.xlu0 %v5798, 99
        %v5857 = vpop.permute.xlu0 %5856
        %5858 = vrot.lane.b32.xlu0 %v5799, 99
        %v5859 = vpop.permute.xlu0 %5858
        %5860 = vrot.lane.b32.xlu0 %v5800, 99
        %v5861 = vpop.permute.xlu0 %5860
        %5862 = vrot.lane.b32.xlu0 %v5801, 99
        %v5863 = vpop.permute.xlu0 %5862
        %5864 = vrot.lane.b32.xlu0 %v5802, 99
        %v5865 = vpop.permute.xlu0 %5864
        %5866 = vrot.lane.b32.xlu0 %v5803, 99
        %v5867 = vpop.permute.xlu0 %5866
        %5868 = vrot.lane.b32.xlu0 %v5804, 99
        %v5869 = vpop.permute.xlu0 %5868
        %5870 = vrot.lane.b32.xlu0 %v5805, 99
        %v5871 = vpop.permute.xlu0 %5870
        %5872 = vrot.lane.b32.xlu0 %v5806, 99
        %v5873 = vpop.permute.xlu0 %5872
        %5874 = vrot.lane.b32.xlu0 %v5807, 99
        %v5875 = vpop.permute.xlu0 %5874
        %5876 = vrot.lane.b32.xlu0 %v5808, 99
        %v5877 = vpop.permute.xlu0 %5876
        %5878 = vrot.lane.b32.xlu0 %v5809, 99
        %v5879 = vpop.permute.xlu0 %5878
        %5880 = vrot.lane.b32.xlu0 %v5810, 99
        %v5881 = vpop.permute.xlu0 %5880
        %5882 = vrot.lane.b32.xlu0 %v5811, 99
        %v5883 = vpop.permute.xlu0 %5882
        %5884 = vrot.lane.b32.xlu0 %v5812, 99
        %v5885 = vpop.permute.xlu0 %5884
        %5886 = vrot.lane.b32.xlu0 %v5813, 99
        %v5887 = vpop.permute.xlu0 %5886
        %5888 = vrot.lane.b32.xlu0 %v5814, 99
        %v5889 = vpop.permute.xlu0 %5888
        %5890 = vrot.lane.b32.xlu0 %v5815, 99
        %v5891 = vpop.permute.xlu0 %5890
        %5892 = vrot.lane.b32.xlu0 %v5816, 99
        %v5893 = vpop.permute.xlu0 %5892
        %5894 = vrot.lane.b32.xlu0 %v5817, 99
        %v5895 = vpop.permute.xlu0 %5894
        %5896 = vrot.lane.b32.xlu0 %v5818, 99
        %v5897 = vpop.permute.xlu0 %5896
        %5898 = vrot.lane.b32.xlu0 %v5819, 99
        %v5899 = vpop.permute.xlu0 %5898
        %5900 = vrot.lane.b32.xlu0 %v5820, 99
        %v5901 = vpop.permute.xlu0 %5900
        %5902 = vrot.lane.b32.xlu0 %v5821, 99
        %v5903 = vpop.permute.xlu0 %5902
        %5904 = vrot.lane.b32.xlu0 %v5822, 99
        %v5905 = vpop.permute.xlu0 %5904
        %5906 = vrot.lane.b32.xlu0 %v5823, 99
        %v5907 = vpop.permute.xlu0 %5906
        %vm5908 = vcmask 809984
        %v5909 = vsel %vm5908, %v5853, %v5855
        %v5910 = vsel %vm5908, %v5855, %v5857
        %v5911 = vsel %vm5908, %v5857, %v5859
        %v5912 = vsel %vm5908, %v5859, %v5861
        %v5913 = vsel %vm5908, %v5861, %v5863
        %v5914 = vsel %vm5908, %v5863, %v5865
        %v5915 = vsel %vm5908, %v5867, %v5869
        %v5916 = vsel %vm5908, %v5869, %v5871
        %v5917 = vsel %vm5908, %v5871, %v5873
        %v5918 = vsel %vm5908, %v5873, %v5875
        %v5919 = vsel %vm5908, %v5875, %v5877
        %v5920 = vsel %vm5908, %v5877, %v5879
        %v5921 = vsel %vm5908, %v5881, %v5883
        %v5922 = vsel %vm5908, %v5883, %v5885
        %v5923 = vsel %vm5908, %v5885, %v5887
        %v5924 = vsel %vm5908, %v5887, %v5889
        %v5925 = vsel %vm5908, %v5889, %v5891
        %v5926 = vsel %vm5908, %v5891, %v5893
        %v5927 = vsel %vm5908, %v5895, %v5897
        %v5928 = vsel %vm5908, %v5897, %v5899
        %v5929 = vsel %vm5908, %v5899, %v5901
        %v5930 = vsel %vm5908, %v5901, %v5903
        %v5931 = vsel %vm5908, %v5903, %v5905
        %v5932 = vsel %vm5908, %v5905, %v5907
        %v5957 = vadd.f32 %v5756, %v5909
        %v5958 = vadd.f32 %v5757, %v5910
        %v5959 = vadd.f32 %v5758, %v5911
        %v5960 = vadd.f32 %v5759, %v5912
        %v5961 = vadd.f32 %v5760, %v5913
        %v5962 = vadd.f32 %v5761, %v5914
        %v5963 = vadd.f32 %v5762, %v5915
        %v5964 = vadd.f32 %v5763, %v5916
        %v5965 = vadd.f32 %v5764, %v5917
        %v5966 = vadd.f32 %v5765, %v5918
        %v5967 = vadd.f32 %v5766, %v5919
        %v5968 = vadd.f32 %v5767, %v5920
        %v5969 = vadd.f32 %v5768, %v5921
        %v5970 = vadd.f32 %v5769, %v5922
        %v5971 = vadd.f32 %v5770, %v5923
        %v5972 = vadd.f32 %v5771, %v5924
        %v5973 = vadd.f32 %v5772, %v5925
        %v5974 = vadd.f32 %v5773, %v5926
        %v5975 = vadd.f32 %v5774, %v5927
        %v5976 = vadd.f32 %v5775, %v5928
        %v5977 = vadd.f32 %v5776, %v5929
        %v5978 = vadd.f32 %v5777, %v5930
        %v5979 = vadd.f32 %v5778, %v5931
        %v5980 = vadd.f32 %v5779, %v5932
        %5981 = vset.pattern.permute.xlu0 30
        %5982 = vperm.xlu0 %5981, %v440
        %v5983 = vpop.permute.xlu0 %5982
        %5985 = vset.pattern.permute.xlu0 30
        %5986 = vperm.xlu0 %5985, %v441
        %v5987 = vpop.permute.xlu0 %5986
        %5989 = vset.pattern.permute.xlu0 30
        %5990 = vperm.xlu0 %5989, %v442
        %v5991 = vpop.permute.xlu0 %5990
        %5993 = vset.pattern.permute.xlu0 30
        %5994 = vperm.xlu0 %5993, %v443
        %v5995 = vpop.permute.xlu0 %5994
        %v5997 = vmul.f32 %v5983, %v426
        %v5998 = vmul.f32 %v5983, %v427
        %v5999 = vmul.f32 %v5983, %v428
        %v6000 = vmul.f32 %v5983, %v429
        %v6001 = vmul.f32 %v5983, %v430
        %v6002 = vmul.f32 %v5983, %v431
        %v6003 = vmul.f32 %v5983, %v432
        %v6004 = vmul.f32 %v5987, %v426
        %v6005 = vmul.f32 %v5987, %v427
        %v6006 = vmul.f32 %v5987, %v428
        %v6007 = vmul.f32 %v5987, %v429
        %v6008 = vmul.f32 %v5987, %v430
        %v6009 = vmul.f32 %v5987, %v431
        %v6010 = vmul.f32 %v5987, %v432
        %v6011 = vmul.f32 %v5991, %v433
        %v6012 = vmul.f32 %v5991, %v434
        %v6013 = vmul.f32 %v5991, %v435
        %v6014 = vmul.f32 %v5991, %v436
        %v6015 = vmul.f32 %v5991, %v437
        %v6016 = vmul.f32 %v5991, %v438
        %v6017 = vmul.f32 %v5991, %v439
        %v6018 = vmul.f32 %v5995, %v433
        %v6019 = vmul.f32 %v5995, %v434
        %v6020 = vmul.f32 %v5995, %v435
        %v6021 = vmul.f32 %v5995, %v436
        %v6022 = vmul.f32 %v5995, %v437
        %v6023 = vmul.f32 %v5995, %v438
        %v6024 = vmul.f32 %v5995, %v439
        %6053 = vrot.lane.b32.xlu0 %v5997, 98
        %v6054 = vpop.permute.xlu0 %6053
        %6055 = vrot.lane.b32.xlu0 %v5998, 98
        %v6056 = vpop.permute.xlu0 %6055
        %6057 = vrot.lane.b32.xlu0 %v5999, 98
        %v6058 = vpop.permute.xlu0 %6057
        %6059 = vrot.lane.b32.xlu0 %v6000, 98
        %v6060 = vpop.permute.xlu0 %6059
        %6061 = vrot.lane.b32.xlu0 %v6001, 98
        %v6062 = vpop.permute.xlu0 %6061
        %6063 = vrot.lane.b32.xlu0 %v6002, 98
        %v6064 = vpop.permute.xlu0 %6063
        %6065 = vrot.lane.b32.xlu0 %v6003, 98
        %v6066 = vpop.permute.xlu0 %6065
        %6067 = vrot.lane.b32.xlu0 %v6004, 98
        %v6068 = vpop.permute.xlu0 %6067
        %6069 = vrot.lane.b32.xlu0 %v6005, 98
        %v6070 = vpop.permute.xlu0 %6069
        %6071 = vrot.lane.b32.xlu0 %v6006, 98
        %v6072 = vpop.permute.xlu0 %6071
        %6073 = vrot.lane.b32.xlu0 %v6007, 98
        %v6074 = vpop.permute.xlu0 %6073
        %6075 = vrot.lane.b32.xlu0 %v6008, 98
        %v6076 = vpop.permute.xlu0 %6075
        %6077 = vrot.lane.b32.xlu0 %v6009, 98
        %v6078 = vpop.permute.xlu0 %6077
        %6079 = vrot.lane.b32.xlu0 %v6010, 98
        %v6080 = vpop.permute.xlu0 %6079
        %6081 = vrot.lane.b32.xlu0 %v6011, 98
        %v6082 = vpop.permute.xlu0 %6081
        %6083 = vrot.lane.b32.xlu0 %v6012, 98
        %v6084 = vpop.permute.xlu0 %6083
        %6085 = vrot.lane.b32.xlu0 %v6013, 98
        %v6086 = vpop.permute.xlu0 %6085
        %6087 = vrot.lane.b32.xlu0 %v6014, 98
        %v6088 = vpop.permute.xlu0 %6087
        %6089 = vrot.lane.b32.xlu0 %v6015, 98
        %v6090 = vpop.permute.xlu0 %6089
        %6091 = vrot.lane.b32.xlu0 %v6016, 98
        %v6092 = vpop.permute.xlu0 %6091
        %6093 = vrot.lane.b32.xlu0 %v6017, 98
        %v6094 = vpop.permute.xlu0 %6093
        %6095 = vrot.lane.b32.xlu0 %v6018, 98
        %v6096 = vpop.permute.xlu0 %6095
        %6097 = vrot.lane.b32.xlu0 %v6019, 98
        %v6098 = vpop.permute.xlu0 %6097
        %6099 = vrot.lane.b32.xlu0 %v6020, 98
        %v6100 = vpop.permute.xlu0 %6099
        %6101 = vrot.lane.b32.xlu0 %v6021, 98
        %v6102 = vpop.permute.xlu0 %6101
        %6103 = vrot.lane.b32.xlu0 %v6022, 98
        %v6104 = vpop.permute.xlu0 %6103
        %6105 = vrot.lane.b32.xlu0 %v6023, 98
        %v6106 = vpop.permute.xlu0 %6105
        %6107 = vrot.lane.b32.xlu0 %v6024, 98
        %v6108 = vpop.permute.xlu0 %6107
        %vm6109 = vcmask 801792
        %v6110 = vsel %vm6109, %v6054, %v6056
        %v6111 = vsel %vm6109, %v6056, %v6058
        %v6112 = vsel %vm6109, %v6058, %v6060
        %v6113 = vsel %vm6109, %v6060, %v6062
        %v6114 = vsel %vm6109, %v6062, %v6064
        %v6115 = vsel %vm6109, %v6064, %v6066
        %v6116 = vsel %vm6109, %v6068, %v6070
        %v6117 = vsel %vm6109, %v6070, %v6072
        %v6118 = vsel %vm6109, %v6072, %v6074
        %v6119 = vsel %vm6109, %v6074, %v6076
        %v6120 = vsel %vm6109, %v6076, %v6078
        %v6121 = vsel %vm6109, %v6078, %v6080
        %v6122 = vsel %vm6109, %v6082, %v6084
        %v6123 = vsel %vm6109, %v6084, %v6086
        %v6124 = vsel %vm6109, %v6086, %v6088
        %v6125 = vsel %vm6109, %v6088, %v6090
        %v6126 = vsel %vm6109, %v6090, %v6092
        %v6127 = vsel %vm6109, %v6092, %v6094
        %v6128 = vsel %vm6109, %v6096, %v6098
        %v6129 = vsel %vm6109, %v6098, %v6100
        %v6130 = vsel %vm6109, %v6100, %v6102
        %v6131 = vsel %vm6109, %v6102, %v6104
        %v6132 = vsel %vm6109, %v6104, %v6106
        %v6133 = vsel %vm6109, %v6106, %v6108
        %v6158 = vadd.f32 %v5957, %v6110
        %v6159 = vadd.f32 %v5958, %v6111
        %v6160 = vadd.f32 %v5959, %v6112
        %v6161 = vadd.f32 %v5960, %v6113
        %v6162 = vadd.f32 %v5961, %v6114
        %v6163 = vadd.f32 %v5962, %v6115
        %v6164 = vadd.f32 %v5963, %v6116
        %v6165 = vadd.f32 %v5964, %v6117
        %v6166 = vadd.f32 %v5965, %v6118
        %v6167 = vadd.f32 %v5966, %v6119
        %v6168 = vadd.f32 %v5967, %v6120
        %v6169 = vadd.f32 %v5968, %v6121
        %v6170 = vadd.f32 %v5969, %v6122
        %v6171 = vadd.f32 %v5970, %v6123
        %v6172 = vadd.f32 %v5971, %v6124
        %v6173 = vadd.f32 %v5972, %v6125
        %v6174 = vadd.f32 %v5973, %v6126
        %v6175 = vadd.f32 %v5974, %v6127
        %v6176 = vadd.f32 %v5975, %v6128
        %v6177 = vadd.f32 %v5976, %v6129
        %v6178 = vadd.f32 %v5977, %v6130
        %v6179 = vadd.f32 %v5978, %v6131
        %v6180 = vadd.f32 %v5979, %v6132
        %v6181 = vadd.f32 %v5980, %v6133
        %6182 = vset.pattern.permute.xlu0 31
        %6183 = vperm.xlu0 %6182, %v440
        %v6184 = vpop.permute.xlu0 %6183
        %6186 = vset.pattern.permute.xlu0 31
        %6187 = vperm.xlu0 %6186, %v441
        %v6188 = vpop.permute.xlu0 %6187
        %6190 = vset.pattern.permute.xlu0 31
        %6191 = vperm.xlu0 %6190, %v442
        %v6192 = vpop.permute.xlu0 %6191
        %6194 = vset.pattern.permute.xlu0 31
        %6195 = vperm.xlu0 %6194, %v443
        %v6196 = vpop.permute.xlu0 %6195
        %v6198 = vmul.f32 %v6184, %v426
        %v6199 = vmul.f32 %v6184, %v427
        %v6200 = vmul.f32 %v6184, %v428
        %v6201 = vmul.f32 %v6184, %v429
        %v6202 = vmul.f32 %v6184, %v430
        %v6203 = vmul.f32 %v6184, %v431
        %v6204 = vmul.f32 %v6184, %v432
        %v6205 = vmul.f32 %v6188, %v426
        %v6206 = vmul.f32 %v6188, %v427
        %v6207 = vmul.f32 %v6188, %v428
        %v6208 = vmul.f32 %v6188, %v429
        %v6209 = vmul.f32 %v6188, %v430
        %v6210 = vmul.f32 %v6188, %v431
        %v6211 = vmul.f32 %v6188, %v432
        %v6212 = vmul.f32 %v6192, %v433
        %v6213 = vmul.f32 %v6192, %v434
        %v6214 = vmul.f32 %v6192, %v435
        %v6215 = vmul.f32 %v6192, %v436
        %v6216 = vmul.f32 %v6192, %v437
        %v6217 = vmul.f32 %v6192, %v438
        %v6218 = vmul.f32 %v6192, %v439
        %v6219 = vmul.f32 %v6196, %v433
        %v6220 = vmul.f32 %v6196, %v434
        %v6221 = vmul.f32 %v6196, %v435
        %v6222 = vmul.f32 %v6196, %v436
        %v6223 = vmul.f32 %v6196, %v437
        %v6224 = vmul.f32 %v6196, %v438
        %v6225 = vmul.f32 %v6196, %v439
        %6254 = vrot.lane.b32.xlu0 %v6198, 97
        %v6255 = vpop.permute.xlu0 %6254
        %6256 = vrot.lane.b32.xlu0 %v6199, 97
        %v6257 = vpop.permute.xlu0 %6256
        %6258 = vrot.lane.b32.xlu0 %v6200, 97
        %v6259 = vpop.permute.xlu0 %6258
        %6260 = vrot.lane.b32.xlu0 %v6201, 97
        %v6261 = vpop.permute.xlu0 %6260
        %6262 = vrot.lane.b32.xlu0 %v6202, 97
        %v6263 = vpop.permute.xlu0 %6262
        %6264 = vrot.lane.b32.xlu0 %v6203, 97
        %v6265 = vpop.permute.xlu0 %6264
        %6266 = vrot.lane.b32.xlu0 %v6204, 97
        %v6267 = vpop.permute.xlu0 %6266
        %6268 = vrot.lane.b32.xlu0 %v6205, 97
        %v6269 = vpop.permute.xlu0 %6268
        %6270 = vrot.lane.b32.xlu0 %v6206, 97
        %v6271 = vpop.permute.xlu0 %6270
        %6272 = vrot.lane.b32.xlu0 %v6207, 97
        %v6273 = vpop.permute.xlu0 %6272
        %6274 = vrot.lane.b32.xlu0 %v6208, 97
        %v6275 = vpop.permute.xlu0 %6274
        %6276 = vrot.lane.b32.xlu0 %v6209, 97
        %v6277 = vpop.permute.xlu0 %6276
        %6278 = vrot.lane.b32.xlu0 %v6210, 97
        %v6279 = vpop.permute.xlu0 %6278
        %6280 = vrot.lane.b32.xlu0 %v6211, 97
        %v6281 = vpop.permute.xlu0 %6280
        %6282 = vrot.lane.b32.xlu0 %v6212, 97
        %v6283 = vpop.permute.xlu0 %6282
        %6284 = vrot.lane.b32.xlu0 %v6213, 97
        %v6285 = vpop.permute.xlu0 %6284
        %6286 = vrot.lane.b32.xlu0 %v6214, 97
        %v6287 = vpop.permute.xlu0 %6286
        %6288 = vrot.lane.b32.xlu0 %v6215, 97
        %v6289 = vpop.permute.xlu0 %6288
        %6290 = vrot.lane.b32.xlu0 %v6216, 97
        %v6291 = vpop.permute.xlu0 %6290
        %6292 = vrot.lane.b32.xlu0 %v6217, 97
        %v6293 = vpop.permute.xlu0 %6292
        %6294 = vrot.lane.b32.xlu0 %v6218, 97
        %v6295 = vpop.permute.xlu0 %6294
        %6296 = vrot.lane.b32.xlu0 %v6219, 97
        %v6297 = vpop.permute.xlu0 %6296
        %6298 = vrot.lane.b32.xlu0 %v6220, 97
        %v6299 = vpop.permute.xlu0 %6298
        %6300 = vrot.lane.b32.xlu0 %v6221, 97
        %v6301 = vpop.permute.xlu0 %6300
        %6302 = vrot.lane.b32.xlu0 %v6222, 97
        %v6303 = vpop.permute.xlu0 %6302
        %6304 = vrot.lane.b32.xlu0 %v6223, 97
        %v6305 = vpop.permute.xlu0 %6304
        %6306 = vrot.lane.b32.xlu0 %v6224, 97
        %v6307 = vpop.permute.xlu0 %6306
        %6308 = vrot.lane.b32.xlu0 %v6225, 97
        %v6309 = vpop.permute.xlu0 %6308
        %vm6310 = vcmask 793600
        %v6311 = vsel %vm6310, %v6255, %v6257
        %v6312 = vsel %vm6310, %v6257, %v6259
        %v6313 = vsel %vm6310, %v6259, %v6261
        %v6314 = vsel %vm6310, %v6261, %v6263
        %v6315 = vsel %vm6310, %v6263, %v6265
        %v6316 = vsel %vm6310, %v6265, %v6267
        %v6317 = vsel %vm6310, %v6269, %v6271
        %v6318 = vsel %vm6310, %v6271, %v6273
        %v6319 = vsel %vm6310, %v6273, %v6275
        %v6320 = vsel %vm6310, %v6275, %v6277
        %v6321 = vsel %vm6310, %v6277, %v6279
        %v6322 = vsel %vm6310, %v6279, %v6281
        %v6323 = vsel %vm6310, %v6283, %v6285
        %v6324 = vsel %vm6310, %v6285, %v6287
        %v6325 = vsel %vm6310, %v6287, %v6289
        %v6326 = vsel %vm6310, %v6289, %v6291
        %v6327 = vsel %vm6310, %v6291, %v6293
        %v6328 = vsel %vm6310, %v6293, %v6295
        %v6329 = vsel %vm6310, %v6297, %v6299
        %v6330 = vsel %vm6310, %v6299, %v6301
        %v6331 = vsel %vm6310, %v6301, %v6303
        %v6332 = vsel %vm6310, %v6303, %v6305
        %v6333 = vsel %vm6310, %v6305, %v6307
        %v6334 = vsel %vm6310, %v6307, %v6309
        %v6359 = vadd.f32 %v6158, %v6311
        %v6360 = vadd.f32 %v6159, %v6312
        %v6361 = vadd.f32 %v6160, %v6313
        %v6362 = vadd.f32 %v6161, %v6314
        %v6363 = vadd.f32 %v6162, %v6315
        %v6364 = vadd.f32 %v6163, %v6316
        %v6365 = vadd.f32 %v6164, %v6317
        %v6366 = vadd.f32 %v6165, %v6318
        %v6367 = vadd.f32 %v6166, %v6319
        %v6368 = vadd.f32 %v6167, %v6320
        %v6369 = vadd.f32 %v6168, %v6321
        %v6370 = vadd.f32 %v6169, %v6322
        %v6371 = vadd.f32 %v6170, %v6323
        %v6372 = vadd.f32 %v6171, %v6324
        %v6373 = vadd.f32 %v6172, %v6325
        %v6374 = vadd.f32 %v6173, %v6326
        %v6375 = vadd.f32 %v6174, %v6327
        %v6376 = vadd.f32 %v6175, %v6328
        %v6377 = vadd.f32 %v6176, %v6329
        %v6378 = vadd.f32 %v6177, %v6330
        %v6379 = vadd.f32 %v6178, %v6331
        %v6380 = vadd.f32 %v6179, %v6332
        %v6381 = vadd.f32 %v6180, %v6333
        %v6382 = vadd.f32 %v6181, %v6334
        %6383 = vset.pattern.permute.xlu0 32
        %6384 = vperm.xlu0 %6383, %v440
        %v6385 = vpop.permute.xlu0 %6384
        %6387 = vset.pattern.permute.xlu0 32
        %6388 = vperm.xlu0 %6387, %v441
        %v6389 = vpop.permute.xlu0 %6388
        %6391 = vset.pattern.permute.xlu0 32
        %6392 = vperm.xlu0 %6391, %v442
        %v6393 = vpop.permute.xlu0 %6392
        %6395 = vset.pattern.permute.xlu0 32
        %6396 = vperm.xlu0 %6395, %v443
        %v6397 = vpop.permute.xlu0 %6396
        %v6399 = vmul.f32 %v6385, %v426
        %v6400 = vmul.f32 %v6385, %v427
        %v6401 = vmul.f32 %v6385, %v428
        %v6402 = vmul.f32 %v6385, %v429
        %v6403 = vmul.f32 %v6385, %v430
        %v6404 = vmul.f32 %v6385, %v431
        %v6405 = vmul.f32 %v6385, %v432
        %v6406 = vmul.f32 %v6389, %v426
        %v6407 = vmul.f32 %v6389, %v427
        %v6408 = vmul.f32 %v6389, %v428
        %v6409 = vmul.f32 %v6389, %v429
        %v6410 = vmul.f32 %v6389, %v430
        %v6411 = vmul.f32 %v6389, %v431
        %v6412 = vmul.f32 %v6389, %v432
        %v6413 = vmul.f32 %v6393, %v433
        %v6414 = vmul.f32 %v6393, %v434
        %v6415 = vmul.f32 %v6393, %v435
        %v6416 = vmul.f32 %v6393, %v436
        %v6417 = vmul.f32 %v6393, %v437
        %v6418 = vmul.f32 %v6393, %v438
        %v6419 = vmul.f32 %v6393, %v439
        %v6420 = vmul.f32 %v6397, %v433
        %v6421 = vmul.f32 %v6397, %v434
        %v6422 = vmul.f32 %v6397, %v435
        %v6423 = vmul.f32 %v6397, %v436
        %v6424 = vmul.f32 %v6397, %v437
        %v6425 = vmul.f32 %v6397, %v438
        %v6426 = vmul.f32 %v6397, %v439
        %6455 = vrot.lane.b32.xlu0 %v6399, 96
        %v6456 = vpop.permute.xlu0 %6455
        %6457 = vrot.lane.b32.xlu0 %v6400, 96
        %v6458 = vpop.permute.xlu0 %6457
        %6459 = vrot.lane.b32.xlu0 %v6401, 96
        %v6460 = vpop.permute.xlu0 %6459
        %6461 = vrot.lane.b32.xlu0 %v6402, 96
        %v6462 = vpop.permute.xlu0 %6461
        %6463 = vrot.lane.b32.xlu0 %v6403, 96
        %v6464 = vpop.permute.xlu0 %6463
        %6465 = vrot.lane.b32.xlu0 %v6404, 96
        %v6466 = vpop.permute.xlu0 %6465
        %6467 = vrot.lane.b32.xlu0 %v6405, 96
        %v6468 = vpop.permute.xlu0 %6467
        %6469 = vrot.lane.b32.xlu0 %v6406, 96
        %v6470 = vpop.permute.xlu0 %6469
        %6471 = vrot.lane.b32.xlu0 %v6407, 96
        %v6472 = vpop.permute.xlu0 %6471
        %6473 = vrot.lane.b32.xlu0 %v6408, 96
        %v6474 = vpop.permute.xlu0 %6473
        %6475 = vrot.lane.b32.xlu0 %v6409, 96
        %v6476 = vpop.permute.xlu0 %6475
        %6477 = vrot.lane.b32.xlu0 %v6410, 96
        %v6478 = vpop.permute.xlu0 %6477
        %6479 = vrot.lane.b32.xlu0 %v6411, 96
        %v6480 = vpop.permute.xlu0 %6479
        %6481 = vrot.lane.b32.xlu0 %v6412, 96
        %v6482 = vpop.permute.xlu0 %6481
        %6483 = vrot.lane.b32.xlu0 %v6413, 96
        %v6484 = vpop.permute.xlu0 %6483
        %6485 = vrot.lane.b32.xlu0 %v6414, 96
        %v6486 = vpop.permute.xlu0 %6485
        %6487 = vrot.lane.b32.xlu0 %v6415, 96
        %v6488 = vpop.permute.xlu0 %6487
        %6489 = vrot.lane.b32.xlu0 %v6416, 96
        %v6490 = vpop.permute.xlu0 %6489
        %6491 = vrot.lane.b32.xlu0 %v6417, 96
        %v6492 = vpop.permute.xlu0 %6491
        %6493 = vrot.lane.b32.xlu0 %v6418, 96
        %v6494 = vpop.permute.xlu0 %6493
        %6495 = vrot.lane.b32.xlu0 %v6419, 96
        %v6496 = vpop.permute.xlu0 %6495
        %6497 = vrot.lane.b32.xlu0 %v6420, 96
        %v6498 = vpop.permute.xlu0 %6497
        %6499 = vrot.lane.b32.xlu0 %v6421, 96
        %v6500 = vpop.permute.xlu0 %6499
        %6501 = vrot.lane.b32.xlu0 %v6422, 96
        %v6502 = vpop.permute.xlu0 %6501
        %6503 = vrot.lane.b32.xlu0 %v6423, 96
        %v6504 = vpop.permute.xlu0 %6503
        %6505 = vrot.lane.b32.xlu0 %v6424, 96
        %v6506 = vpop.permute.xlu0 %6505
        %6507 = vrot.lane.b32.xlu0 %v6425, 96
        %v6508 = vpop.permute.xlu0 %6507
        %6509 = vrot.lane.b32.xlu0 %v6426, 96
        %v6510 = vpop.permute.xlu0 %6509
        %vm6511 = vcmask 785408
        %v6512 = vsel %vm6511, %v6456, %v6458
        %v6513 = vsel %vm6511, %v6458, %v6460
        %v6514 = vsel %vm6511, %v6460, %v6462
        %v6515 = vsel %vm6511, %v6462, %v6464
        %v6516 = vsel %vm6511, %v6464, %v6466
        %v6517 = vsel %vm6511, %v6466, %v6468
        %v6518 = vsel %vm6511, %v6470, %v6472
        %v6519 = vsel %vm6511, %v6472, %v6474
        %v6520 = vsel %vm6511, %v6474, %v6476
        %v6521 = vsel %vm6511, %v6476, %v6478
        %v6522 = vsel %vm6511, %v6478, %v6480
        %v6523 = vsel %vm6511, %v6480, %v6482
        %v6524 = vsel %vm6511, %v6484, %v6486
        %v6525 = vsel %vm6511, %v6486, %v6488
        %v6526 = vsel %vm6511, %v6488, %v6490
        %v6527 = vsel %vm6511, %v6490, %v6492
        %v6528 = vsel %vm6511, %v6492, %v6494
        %v6529 = vsel %vm6511, %v6494, %v6496
        %v6530 = vsel %vm6511, %v6498, %v6500
        %v6531 = vsel %vm6511, %v6500, %v6502
        %v6532 = vsel %vm6511, %v6502, %v6504
        %v6533 = vsel %vm6511, %v6504, %v6506
        %v6534 = vsel %vm6511, %v6506, %v6508
        %v6535 = vsel %vm6511, %v6508, %v6510
        %v6560 = vadd.f32 %v6359, %v6512
        %v6561 = vadd.f32 %v6360, %v6513
        %v6562 = vadd.f32 %v6361, %v6514
        %v6563 = vadd.f32 %v6362, %v6515
        %v6564 = vadd.f32 %v6363, %v6516
        %v6565 = vadd.f32 %v6364, %v6517
        %v6566 = vadd.f32 %v6365, %v6518
        %v6567 = vadd.f32 %v6366, %v6519
        %v6568 = vadd.f32 %v6367, %v6520
        %v6569 = vadd.f32 %v6368, %v6521
        %v6570 = vadd.f32 %v6369, %v6522
        %v6571 = vadd.f32 %v6370, %v6523
        %v6572 = vadd.f32 %v6371, %v6524
        %v6573 = vadd.f32 %v6372, %v6525
        %v6574 = vadd.f32 %v6373, %v6526
        %v6575 = vadd.f32 %v6374, %v6527
        %v6576 = vadd.f32 %v6375, %v6528
        %v6577 = vadd.f32 %v6376, %v6529
        %v6578 = vadd.f32 %v6377, %v6530
        %v6579 = vadd.f32 %v6378, %v6531
        %v6580 = vadd.f32 %v6379, %v6532
        %v6581 = vadd.f32 %v6380, %v6533
        %v6582 = vadd.f32 %v6381, %v6534
        %v6583 = vadd.f32 %v6382, %v6535
        %6584 = vset.pattern.permute.xlu0 33
        %6585 = vperm.xlu0 %6584, %v440
        %v6586 = vpop.permute.xlu0 %6585
        %6588 = vset.pattern.permute.xlu0 33
        %6589 = vperm.xlu0 %6588, %v441
        %v6590 = vpop.permute.xlu0 %6589
        %6592 = vset.pattern.permute.xlu0 33
        %6593 = vperm.xlu0 %6592, %v442
        %v6594 = vpop.permute.xlu0 %6593
        %6596 = vset.pattern.permute.xlu0 33
        %6597 = vperm.xlu0 %6596, %v443
        %v6598 = vpop.permute.xlu0 %6597
        %v6600 = vmul.f32 %v6586, %v426
        %v6601 = vmul.f32 %v6586, %v427
        %v6602 = vmul.f32 %v6586, %v428
        %v6603 = vmul.f32 %v6586, %v429
        %v6604 = vmul.f32 %v6586, %v430
        %v6605 = vmul.f32 %v6586, %v431
        %v6606 = vmul.f32 %v6586, %v432
        %v6607 = vmul.f32 %v6590, %v426
        %v6608 = vmul.f32 %v6590, %v427
        %v6609 = vmul.f32 %v6590, %v428
        %v6610 = vmul.f32 %v6590, %v429
        %v6611 = vmul.f32 %v6590, %v430
        %v6612 = vmul.f32 %v6590, %v431
        %v6613 = vmul.f32 %v6590, %v432
        %v6614 = vmul.f32 %v6594, %v433
        %v6615 = vmul.f32 %v6594, %v434
        %v6616 = vmul.f32 %v6594, %v435
        %v6617 = vmul.f32 %v6594, %v436
        %v6618 = vmul.f32 %v6594, %v437
        %v6619 = vmul.f32 %v6594, %v438
        %v6620 = vmul.f32 %v6594, %v439
        %v6621 = vmul.f32 %v6598, %v433
        %v6622 = vmul.f32 %v6598, %v434
        %v6623 = vmul.f32 %v6598, %v435
        %v6624 = vmul.f32 %v6598, %v436
        %v6625 = vmul.f32 %v6598, %v437
        %v6626 = vmul.f32 %v6598, %v438
        %v6627 = vmul.f32 %v6598, %v439
        %6656 = vrot.lane.b32.xlu0 %v6600, 95
        %v6657 = vpop.permute.xlu0 %6656
        %6658 = vrot.lane.b32.xlu0 %v6601, 95
        %v6659 = vpop.permute.xlu0 %6658
        %6660 = vrot.lane.b32.xlu0 %v6602, 95
        %v6661 = vpop.permute.xlu0 %6660
        %6662 = vrot.lane.b32.xlu0 %v6603, 95
        %v6663 = vpop.permute.xlu0 %6662
        %6664 = vrot.lane.b32.xlu0 %v6604, 95
        %v6665 = vpop.permute.xlu0 %6664
        %6666 = vrot.lane.b32.xlu0 %v6605, 95
        %v6667 = vpop.permute.xlu0 %6666
        %6668 = vrot.lane.b32.xlu0 %v6606, 95
        %v6669 = vpop.permute.xlu0 %6668
        %6670 = vrot.lane.b32.xlu0 %v6607, 95
        %v6671 = vpop.permute.xlu0 %6670
        %6672 = vrot.lane.b32.xlu0 %v6608, 95
        %v6673 = vpop.permute.xlu0 %6672
        %6674 = vrot.lane.b32.xlu0 %v6609, 95
        %v6675 = vpop.permute.xlu0 %6674
        %6676 = vrot.lane.b32.xlu0 %v6610, 95
        %v6677 = vpop.permute.xlu0 %6676
        %6678 = vrot.lane.b32.xlu0 %v6611, 95
        %v6679 = vpop.permute.xlu0 %6678
        %6680 = vrot.lane.b32.xlu0 %v6612, 95
        %v6681 = vpop.permute.xlu0 %6680
        %6682 = vrot.lane.b32.xlu0 %v6613, 95
        %v6683 = vpop.permute.xlu0 %6682
        %6684 = vrot.lane.b32.xlu0 %v6614, 95
        %v6685 = vpop.permute.xlu0 %6684
        %6686 = vrot.lane.b32.xlu0 %v6615, 95
        %v6687 = vpop.permute.xlu0 %6686
        %6688 = vrot.lane.b32.xlu0 %v6616, 95
        %v6689 = vpop.permute.xlu0 %6688
        %6690 = vrot.lane.b32.xlu0 %v6617, 95
        %v6691 = vpop.permute.xlu0 %6690
        %6692 = vrot.lane.b32.xlu0 %v6618, 95
        %v6693 = vpop.permute.xlu0 %6692
        %6694 = vrot.lane.b32.xlu0 %v6619, 95
        %v6695 = vpop.permute.xlu0 %6694
        %6696 = vrot.lane.b32.xlu0 %v6620, 95
        %v6697 = vpop.permute.xlu0 %6696
        %6698 = vrot.lane.b32.xlu0 %v6621, 95
        %v6699 = vpop.permute.xlu0 %6698
        %6700 = vrot.lane.b32.xlu0 %v6622, 95
        %v6701 = vpop.permute.xlu0 %6700
        %6702 = vrot.lane.b32.xlu0 %v6623, 95
        %v6703 = vpop.permute.xlu0 %6702
        %6704 = vrot.lane.b32.xlu0 %v6624, 95
        %v6705 = vpop.permute.xlu0 %6704
        %6706 = vrot.lane.b32.xlu0 %v6625, 95
        %v6707 = vpop.permute.xlu0 %6706
        %6708 = vrot.lane.b32.xlu0 %v6626, 95
        %v6709 = vpop.permute.xlu0 %6708
        %6710 = vrot.lane.b32.xlu0 %v6627, 95
        %v6711 = vpop.permute.xlu0 %6710
        %vm6712 = vcmask 777216
        %v6713 = vsel %vm6712, %v6657, %v6659
        %v6714 = vsel %vm6712, %v6659, %v6661
        %v6715 = vsel %vm6712, %v6661, %v6663
        %v6716 = vsel %vm6712, %v6663, %v6665
        %v6717 = vsel %vm6712, %v6665, %v6667
        %v6718 = vsel %vm6712, %v6667, %v6669
        %v6719 = vsel %vm6712, %v6671, %v6673
        %v6720 = vsel %vm6712, %v6673, %v6675
        %v6721 = vsel %vm6712, %v6675, %v6677
        %v6722 = vsel %vm6712, %v6677, %v6679
        %v6723 = vsel %vm6712, %v6679, %v6681
        %v6724 = vsel %vm6712, %v6681, %v6683
        %v6725 = vsel %vm6712, %v6685, %v6687
        %v6726 = vsel %vm6712, %v6687, %v6689
        %v6727 = vsel %vm6712, %v6689, %v6691
        %v6728 = vsel %vm6712, %v6691, %v6693
        %v6729 = vsel %vm6712, %v6693, %v6695
        %v6730 = vsel %vm6712, %v6695, %v6697
        %v6731 = vsel %vm6712, %v6699, %v6701
        %v6732 = vsel %vm6712, %v6701, %v6703
        %v6733 = vsel %vm6712, %v6703, %v6705
        %v6734 = vsel %vm6712, %v6705, %v6707
        %v6735 = vsel %vm6712, %v6707, %v6709
        %v6736 = vsel %vm6712, %v6709, %v6711
        %v6761 = vadd.f32 %v6560, %v6713
        %v6762 = vadd.f32 %v6561, %v6714
        %v6763 = vadd.f32 %v6562, %v6715
        %v6764 = vadd.f32 %v6563, %v6716
        %v6765 = vadd.f32 %v6564, %v6717
        %v6766 = vadd.f32 %v6565, %v6718
        %v6767 = vadd.f32 %v6566, %v6719
        %v6768 = vadd.f32 %v6567, %v6720
        %v6769 = vadd.f32 %v6568, %v6721
        %v6770 = vadd.f32 %v6569, %v6722
        %v6771 = vadd.f32 %v6570, %v6723
        %v6772 = vadd.f32 %v6571, %v6724
        %v6773 = vadd.f32 %v6572, %v6725
        %v6774 = vadd.f32 %v6573, %v6726
        %v6775 = vadd.f32 %v6574, %v6727
        %v6776 = vadd.f32 %v6575, %v6728
        %v6777 = vadd.f32 %v6576, %v6729
        %v6778 = vadd.f32 %v6577, %v6730
        %v6779 = vadd.f32 %v6578, %v6731
        %v6780 = vadd.f32 %v6579, %v6732
        %v6781 = vadd.f32 %v6580, %v6733
        %v6782 = vadd.f32 %v6581, %v6734
        %v6783 = vadd.f32 %v6582, %v6735
        %v6784 = vadd.f32 %v6583, %v6736
        %6785 = vset.pattern.permute.xlu0 34
        %6786 = vperm.xlu0 %6785, %v440
        %v6787 = vpop.permute.xlu0 %6786
        %6789 = vset.pattern.permute.xlu0 34
        %6790 = vperm.xlu0 %6789, %v441
        %v6791 = vpop.permute.xlu0 %6790
        %6793 = vset.pattern.permute.xlu0 34
        %6794 = vperm.xlu0 %6793, %v442
        %v6795 = vpop.permute.xlu0 %6794
        %6797 = vset.pattern.permute.xlu0 34
        %6798 = vperm.xlu0 %6797, %v443
        %v6799 = vpop.permute.xlu0 %6798
        %v6801 = vmul.f32 %v6787, %v426
        %v6802 = vmul.f32 %v6787, %v427
        %v6803 = vmul.f32 %v6787, %v428
        %v6804 = vmul.f32 %v6787, %v429
        %v6805 = vmul.f32 %v6787, %v430
        %v6806 = vmul.f32 %v6787, %v431
        %v6807 = vmul.f32 %v6787, %v432
        %v6808 = vmul.f32 %v6791, %v426
        %v6809 = vmul.f32 %v6791, %v427
        %v6810 = vmul.f32 %v6791, %v428
        %v6811 = vmul.f32 %v6791, %v429
        %v6812 = vmul.f32 %v6791, %v430
        %v6813 = vmul.f32 %v6791, %v431
        %v6814 = vmul.f32 %v6791, %v432
        %v6815 = vmul.f32 %v6795, %v433
        %v6816 = vmul.f32 %v6795, %v434
        %v6817 = vmul.f32 %v6795, %v435
        %v6818 = vmul.f32 %v6795, %v436
        %v6819 = vmul.f32 %v6795, %v437
        %v6820 = vmul.f32 %v6795, %v438
        %v6821 = vmul.f32 %v6795, %v439
        %v6822 = vmul.f32 %v6799, %v433
        %v6823 = vmul.f32 %v6799, %v434
        %v6824 = vmul.f32 %v6799, %v435
        %v6825 = vmul.f32 %v6799, %v436
        %v6826 = vmul.f32 %v6799, %v437
        %v6827 = vmul.f32 %v6799, %v438
        %v6828 = vmul.f32 %v6799, %v439
        %6857 = vrot.lane.b32.xlu0 %v6801, 94
        %v6858 = vpop.permute.xlu0 %6857
        %6859 = vrot.lane.b32.xlu0 %v6802, 94
        %v6860 = vpop.permute.xlu0 %6859
        %6861 = vrot.lane.b32.xlu0 %v6803, 94
        %v6862 = vpop.permute.xlu0 %6861
        %6863 = vrot.lane.b32.xlu0 %v6804, 94
        %v6864 = vpop.permute.xlu0 %6863
        %6865 = vrot.lane.b32.xlu0 %v6805, 94
        %v6866 = vpop.permute.xlu0 %6865
        %6867 = vrot.lane.b32.xlu0 %v6806, 94
        %v6868 = vpop.permute.xlu0 %6867
        %6869 = vrot.lane.b32.xlu0 %v6807, 94
        %v6870 = vpop.permute.xlu0 %6869
        %6871 = vrot.lane.b32.xlu0 %v6808, 94
        %v6872 = vpop.permute.xlu0 %6871
        %6873 = vrot.lane.b32.xlu0 %v6809, 94
        %v6874 = vpop.permute.xlu0 %6873
        %6875 = vrot.lane.b32.xlu0 %v6810, 94
        %v6876 = vpop.permute.xlu0 %6875
        %6877 = vrot.lane.b32.xlu0 %v6811, 94
        %v6878 = vpop.permute.xlu0 %6877
        %6879 = vrot.lane.b32.xlu0 %v6812, 94
        %v6880 = vpop.permute.xlu0 %6879
        %6881 = vrot.lane.b32.xlu0 %v6813, 94
        %v6882 = vpop.permute.xlu0 %6881
        %6883 = vrot.lane.b32.xlu0 %v6814, 94
        %v6884 = vpop.permute.xlu0 %6883
        %6885 = vrot.lane.b32.xlu0 %v6815, 94
        %v6886 = vpop.permute.xlu0 %6885
        %6887 = vrot.lane.b32.xlu0 %v6816, 94
        %v6888 = vpop.permute.xlu0 %6887
        %6889 = vrot.lane.b32.xlu0 %v6817, 94
        %v6890 = vpop.permute.xlu0 %6889
        %6891 = vrot.lane.b32.xlu0 %v6818, 94
        %v6892 = vpop.permute.xlu0 %6891
        %6893 = vrot.lane.b32.xlu0 %v6819, 94
        %v6894 = vpop.permute.xlu0 %6893
        %6895 = vrot.lane.b32.xlu0 %v6820, 94
        %v6896 = vpop.permute.xlu0 %6895
        %6897 = vrot.lane.b32.xlu0 %v6821, 94
        %v6898 = vpop.permute.xlu0 %6897
        %6899 = vrot.lane.b32.xlu0 %v6822, 94
        %v6900 = vpop.permute.xlu0 %6899
        %6901 = vrot.lane.b32.xlu0 %v6823, 94
        %v6902 = vpop.permute.xlu0 %6901
        %6903 = vrot.lane.b32.xlu0 %v6824, 94
        %v6904 = vpop.permute.xlu0 %6903
        %6905 = vrot.lane.b32.xlu0 %v6825, 94
        %v6906 = vpop.permute.xlu0 %6905
        %6907 = vrot.lane.b32.xlu0 %v6826, 94
        %v6908 = vpop.permute.xlu0 %6907
        %6909 = vrot.lane.b32.xlu0 %v6827, 94
        %v6910 = vpop.permute.xlu0 %6909
        %6911 = vrot.lane.b32.xlu0 %v6828, 94
        %v6912 = vpop.permute.xlu0 %6911
        %vm6913 = vcmask 769024
        %v6914 = vsel %vm6913, %v6858, %v6860
        %v6915 = vsel %vm6913, %v6860, %v6862
        %v6916 = vsel %vm6913, %v6862, %v6864
        %v6917 = vsel %vm6913, %v6864, %v6866
        %v6918 = vsel %vm6913, %v6866, %v6868
        %v6919 = vsel %vm6913, %v6868, %v6870
        %v6920 = vsel %vm6913, %v6872, %v6874
        %v6921 = vsel %vm6913, %v6874, %v6876
        %v6922 = vsel %vm6913, %v6876, %v6878
        %v6923 = vsel %vm6913, %v6878, %v6880
        %v6924 = vsel %vm6913, %v6880, %v6882
        %v6925 = vsel %vm6913, %v6882, %v6884
        %v6926 = vsel %vm6913, %v6886, %v6888
        %v6927 = vsel %vm6913, %v6888, %v6890
        %v6928 = vsel %vm6913, %v6890, %v6892
        %v6929 = vsel %vm6913, %v6892, %v6894
        %v6930 = vsel %vm6913, %v6894, %v6896
        %v6931 = vsel %vm6913, %v6896, %v6898
        %v6932 = vsel %vm6913, %v6900, %v6902
        %v6933 = vsel %vm6913, %v6902, %v6904
        %v6934 = vsel %vm6913, %v6904, %v6906
        %v6935 = vsel %vm6913, %v6906, %v6908
        %v6936 = vsel %vm6913, %v6908, %v6910
        %v6937 = vsel %vm6913, %v6910, %v6912
        %v6962 = vadd.f32 %v6761, %v6914
        %v6963 = vadd.f32 %v6762, %v6915
        %v6964 = vadd.f32 %v6763, %v6916
        %v6965 = vadd.f32 %v6764, %v6917
        %v6966 = vadd.f32 %v6765, %v6918
        %v6967 = vadd.f32 %v6766, %v6919
        %v6968 = vadd.f32 %v6767, %v6920
        %v6969 = vadd.f32 %v6768, %v6921
        %v6970 = vadd.f32 %v6769, %v6922
        %v6971 = vadd.f32 %v6770, %v6923
        %v6972 = vadd.f32 %v6771, %v6924
        %v6973 = vadd.f32 %v6772, %v6925
        %v6974 = vadd.f32 %v6773, %v6926
        %v6975 = vadd.f32 %v6774, %v6927
        %v6976 = vadd.f32 %v6775, %v6928
        %v6977 = vadd.f32 %v6776, %v6929
        %v6978 = vadd.f32 %v6777, %v6930
        %v6979 = vadd.f32 %v6778, %v6931
        %v6980 = vadd.f32 %v6779, %v6932
        %v6981 = vadd.f32 %v6780, %v6933
        %v6982 = vadd.f32 %v6781, %v6934
        %v6983 = vadd.f32 %v6782, %v6935
        %v6984 = vadd.f32 %v6783, %v6936
        %v6985 = vadd.f32 %v6784, %v6937
        %6986 = vset.pattern.permute.xlu0 35
        %6987 = vperm.xlu0 %6986, %v440
        %v6988 = vpop.permute.xlu0 %6987
        %6990 = vset.pattern.permute.xlu0 35
        %6991 = vperm.xlu0 %6990, %v441
        %v6992 = vpop.permute.xlu0 %6991
        %6994 = vset.pattern.permute.xlu0 35
        %6995 = vperm.xlu0 %6994, %v442
        %v6996 = vpop.permute.xlu0 %6995
        %6998 = vset.pattern.permute.xlu0 35
        %6999 = vperm.xlu0 %6998, %v443
        %v7000 = vpop.permute.xlu0 %6999
        %v7002 = vmul.f32 %v6988, %v426
        %v7003 = vmul.f32 %v6988, %v427
        %v7004 = vmul.f32 %v6988, %v428
        %v7005 = vmul.f32 %v6988, %v429
        %v7006 = vmul.f32 %v6988, %v430
        %v7007 = vmul.f32 %v6988, %v431
        %v7008 = vmul.f32 %v6988, %v432
        %v7009 = vmul.f32 %v6992, %v426
        %v7010 = vmul.f32 %v6992, %v427
        %v7011 = vmul.f32 %v6992, %v428
        %v7012 = vmul.f32 %v6992, %v429
        %v7013 = vmul.f32 %v6992, %v430
        %v7014 = vmul.f32 %v6992, %v431
        %v7015 = vmul.f32 %v6992, %v432
        %v7016 = vmul.f32 %v6996, %v433
        %v7017 = vmul.f32 %v6996, %v434
        %v7018 = vmul.f32 %v6996, %v435
        %v7019 = vmul.f32 %v6996, %v436
        %v7020 = vmul.f32 %v6996, %v437
        %v7021 = vmul.f32 %v6996, %v438
        %v7022 = vmul.f32 %v6996, %v439
        %v7023 = vmul.f32 %v7000, %v433
        %v7024 = vmul.f32 %v7000, %v434
        %v7025 = vmul.f32 %v7000, %v435
        %v7026 = vmul.f32 %v7000, %v436
        %v7027 = vmul.f32 %v7000, %v437
        %v7028 = vmul.f32 %v7000, %v438
        %v7029 = vmul.f32 %v7000, %v439
        %7058 = vrot.lane.b32.xlu0 %v7002, 93
        %v7059 = vpop.permute.xlu0 %7058
        %7060 = vrot.lane.b32.xlu0 %v7003, 93
        %v7061 = vpop.permute.xlu0 %7060
        %7062 = vrot.lane.b32.xlu0 %v7004, 93
        %v7063 = vpop.permute.xlu0 %7062
        %7064 = vrot.lane.b32.xlu0 %v7005, 93
        %v7065 = vpop.permute.xlu0 %7064
        %7066 = vrot.lane.b32.xlu0 %v7006, 93
        %v7067 = vpop.permute.xlu0 %7066
        %7068 = vrot.lane.b32.xlu0 %v7007, 93
        %v7069 = vpop.permute.xlu0 %7068
        %7070 = vrot.lane.b32.xlu0 %v7008, 93
        %v7071 = vpop.permute.xlu0 %7070
        %7072 = vrot.lane.b32.xlu0 %v7009, 93
        %v7073 = vpop.permute.xlu0 %7072
        %7074 = vrot.lane.b32.xlu0 %v7010, 93
        %v7075 = vpop.permute.xlu0 %7074
        %7076 = vrot.lane.b32.xlu0 %v7011, 93
        %v7077 = vpop.permute.xlu0 %7076
        %7078 = vrot.lane.b32.xlu0 %v7012, 93
        %v7079 = vpop.permute.xlu0 %7078
        %7080 = vrot.lane.b32.xlu0 %v7013, 93
        %v7081 = vpop.permute.xlu0 %7080
        %7082 = vrot.lane.b32.xlu0 %v7014, 93
        %v7083 = vpop.permute.xlu0 %7082
        %7084 = vrot.lane.b32.xlu0 %v7015, 93
        %v7085 = vpop.permute.xlu0 %7084
        %7086 = vrot.lane.b32.xlu0 %v7016, 93
        %v7087 = vpop.permute.xlu0 %7086
        %7088 = vrot.lane.b32.xlu0 %v7017, 93
        %v7089 = vpop.permute.xlu0 %7088
        %7090 = vrot.lane.b32.xlu0 %v7018, 93
        %v7091 = vpop.permute.xlu0 %7090
        %7092 = vrot.lane.b32.xlu0 %v7019, 93
        %v7093 = vpop.permute.xlu0 %7092
        %7094 = vrot.lane.b32.xlu0 %v7020, 93
        %v7095 = vpop.permute.xlu0 %7094
        %7096 = vrot.lane.b32.xlu0 %v7021, 93
        %v7097 = vpop.permute.xlu0 %7096
        %7098 = vrot.lane.b32.xlu0 %v7022, 93
        %v7099 = vpop.permute.xlu0 %7098
        %7100 = vrot.lane.b32.xlu0 %v7023, 93
        %v7101 = vpop.permute.xlu0 %7100
        %7102 = vrot.lane.b32.xlu0 %v7024, 93
        %v7103 = vpop.permute.xlu0 %7102
        %7104 = vrot.lane.b32.xlu0 %v7025, 93
        %v7105 = vpop.permute.xlu0 %7104
        %7106 = vrot.lane.b32.xlu0 %v7026, 93
        %v7107 = vpop.permute.xlu0 %7106
        %7108 = vrot.lane.b32.xlu0 %v7027, 93
        %v7109 = vpop.permute.xlu0 %7108
        %7110 = vrot.lane.b32.xlu0 %v7028, 93
        %v7111 = vpop.permute.xlu0 %7110
        %7112 = vrot.lane.b32.xlu0 %v7029, 93
        %v7113 = vpop.permute.xlu0 %7112
        %vm7114 = vcmask 760832
        %v7115 = vsel %vm7114, %v7059, %v7061
        %v7116 = vsel %vm7114, %v7061, %v7063
        %v7117 = vsel %vm7114, %v7063, %v7065
        %v7118 = vsel %vm7114, %v7065, %v7067
        %v7119 = vsel %vm7114, %v7067, %v7069
        %v7120 = vsel %vm7114, %v7069, %v7071
        %v7121 = vsel %vm7114, %v7073, %v7075
        %v7122 = vsel %vm7114, %v7075, %v7077
        %v7123 = vsel %vm7114, %v7077, %v7079
        %v7124 = vsel %vm7114, %v7079, %v7081
        %v7125 = vsel %vm7114, %v7081, %v7083
        %v7126 = vsel %vm7114, %v7083, %v7085
        %v7127 = vsel %vm7114, %v7087, %v7089
        %v7128 = vsel %vm7114, %v7089, %v7091
        %v7129 = vsel %vm7114, %v7091, %v7093
        %v7130 = vsel %vm7114, %v7093, %v7095
        %v7131 = vsel %vm7114, %v7095, %v7097
        %v7132 = vsel %vm7114, %v7097, %v7099
        %v7133 = vsel %vm7114, %v7101, %v7103
        %v7134 = vsel %vm7114, %v7103, %v7105
        %v7135 = vsel %vm7114, %v7105, %v7107
        %v7136 = vsel %vm7114, %v7107, %v7109
        %v7137 = vsel %vm7114, %v7109, %v7111
        %v7138 = vsel %vm7114, %v7111, %v7113
        %v7163 = vadd.f32 %v6962, %v7115
        %v7164 = vadd.f32 %v6963, %v7116
        %v7165 = vadd.f32 %v6964, %v7117
        %v7166 = vadd.f32 %v6965, %v7118
        %v7167 = vadd.f32 %v6966, %v7119
        %v7168 = vadd.f32 %v6967, %v7120
        %v7169 = vadd.f32 %v6968, %v7121
        %v7170 = vadd.f32 %v6969, %v7122
        %v7171 = vadd.f32 %v6970, %v7123
        %v7172 = vadd.f32 %v6971, %v7124
        %v7173 = vadd.f32 %v6972, %v7125
        %v7174 = vadd.f32 %v6973, %v7126
        %v7175 = vadd.f32 %v6974, %v7127
        %v7176 = vadd.f32 %v6975, %v7128
        %v7177 = vadd.f32 %v6976, %v7129
        %v7178 = vadd.f32 %v6977, %v7130
        %v7179 = vadd.f32 %v6978, %v7131
        %v7180 = vadd.f32 %v6979, %v7132
        %v7181 = vadd.f32 %v6980, %v7133
        %v7182 = vadd.f32 %v6981, %v7134
        %v7183 = vadd.f32 %v6982, %v7135
        %v7184 = vadd.f32 %v6983, %v7136
        %v7185 = vadd.f32 %v6984, %v7137
        %v7186 = vadd.f32 %v6985, %v7138
        %7187 = vset.pattern.permute.xlu0 36
        %7188 = vperm.xlu0 %7187, %v440
        %v7189 = vpop.permute.xlu0 %7188
        %7191 = vset.pattern.permute.xlu0 36
        %7192 = vperm.xlu0 %7191, %v441
        %v7193 = vpop.permute.xlu0 %7192
        %7195 = vset.pattern.permute.xlu0 36
        %7196 = vperm.xlu0 %7195, %v442
        %v7197 = vpop.permute.xlu0 %7196
        %7199 = vset.pattern.permute.xlu0 36
        %7200 = vperm.xlu0 %7199, %v443
        %v7201 = vpop.permute.xlu0 %7200
        %v7203 = vmul.f32 %v7189, %v426
        %v7204 = vmul.f32 %v7189, %v427
        %v7205 = vmul.f32 %v7189, %v428
        %v7206 = vmul.f32 %v7189, %v429
        %v7207 = vmul.f32 %v7189, %v430
        %v7208 = vmul.f32 %v7189, %v431
        %v7209 = vmul.f32 %v7189, %v432
        %v7210 = vmul.f32 %v7193, %v426
        %v7211 = vmul.f32 %v7193, %v427
        %v7212 = vmul.f32 %v7193, %v428
        %v7213 = vmul.f32 %v7193, %v429
        %v7214 = vmul.f32 %v7193, %v430
        %v7215 = vmul.f32 %v7193, %v431
        %v7216 = vmul.f32 %v7193, %v432
        %v7217 = vmul.f32 %v7197, %v433
        %v7218 = vmul.f32 %v7197, %v434
        %v7219 = vmul.f32 %v7197, %v435
        %v7220 = vmul.f32 %v7197, %v436
        %v7221 = vmul.f32 %v7197, %v437
        %v7222 = vmul.f32 %v7197, %v438
        %v7223 = vmul.f32 %v7197, %v439
        %v7224 = vmul.f32 %v7201, %v433
        %v7225 = vmul.f32 %v7201, %v434
        %v7226 = vmul.f32 %v7201, %v435
        %v7227 = vmul.f32 %v7201, %v436
        %v7228 = vmul.f32 %v7201, %v437
        %v7229 = vmul.f32 %v7201, %v438
        %v7230 = vmul.f32 %v7201, %v439
        %7259 = vrot.lane.b32.xlu0 %v7203, 92
        %v7260 = vpop.permute.xlu0 %7259
        %7261 = vrot.lane.b32.xlu0 %v7204, 92
        %v7262 = vpop.permute.xlu0 %7261
        %7263 = vrot.lane.b32.xlu0 %v7205, 92
        %v7264 = vpop.permute.xlu0 %7263
        %7265 = vrot.lane.b32.xlu0 %v7206, 92
        %v7266 = vpop.permute.xlu0 %7265
        %7267 = vrot.lane.b32.xlu0 %v7207, 92
        %v7268 = vpop.permute.xlu0 %7267
        %7269 = vrot.lane.b32.xlu0 %v7208, 92
        %v7270 = vpop.permute.xlu0 %7269
        %7271 = vrot.lane.b32.xlu0 %v7209, 92
        %v7272 = vpop.permute.xlu0 %7271
        %7273 = vrot.lane.b32.xlu0 %v7210, 92
        %v7274 = vpop.permute.xlu0 %7273
        %7275 = vrot.lane.b32.xlu0 %v7211, 92
        %v7276 = vpop.permute.xlu0 %7275
        %7277 = vrot.lane.b32.xlu0 %v7212, 92
        %v7278 = vpop.permute.xlu0 %7277
        %7279 = vrot.lane.b32.xlu0 %v7213, 92
        %v7280 = vpop.permute.xlu0 %7279
        %7281 = vrot.lane.b32.xlu0 %v7214, 92
        %v7282 = vpop.permute.xlu0 %7281
        %7283 = vrot.lane.b32.xlu0 %v7215, 92
        %v7284 = vpop.permute.xlu0 %7283
        %7285 = vrot.lane.b32.xlu0 %v7216, 92
        %v7286 = vpop.permute.xlu0 %7285
        %7287 = vrot.lane.b32.xlu0 %v7217, 92
        %v7288 = vpop.permute.xlu0 %7287
        %7289 = vrot.lane.b32.xlu0 %v7218, 92
        %v7290 = vpop.permute.xlu0 %7289
        %7291 = vrot.lane.b32.xlu0 %v7219, 92
        %v7292 = vpop.permute.xlu0 %7291
        %7293 = vrot.lane.b32.xlu0 %v7220, 92
        %v7294 = vpop.permute.xlu0 %7293
        %7295 = vrot.lane.b32.xlu0 %v7221, 92
        %v7296 = vpop.permute.xlu0 %7295
        %7297 = vrot.lane.b32.xlu0 %v7222, 92
        %v7298 = vpop.permute.xlu0 %7297
        %7299 = vrot.lane.b32.xlu0 %v7223, 92
        %v7300 = vpop.permute.xlu0 %7299
        %7301 = vrot.lane.b32.xlu0 %v7224, 92
        %v7302 = vpop.permute.xlu0 %7301
        %7303 = vrot.lane.b32.xlu0 %v7225, 92
        %v7304 = vpop.permute.xlu0 %7303
        %7305 = vrot.lane.b32.xlu0 %v7226, 92
        %v7306 = vpop.permute.xlu0 %7305
        %7307 = vrot.lane.b32.xlu0 %v7227, 92
        %v7308 = vpop.permute.xlu0 %7307
        %7309 = vrot.lane.b32.xlu0 %v7228, 92
        %v7310 = vpop.permute.xlu0 %7309
        %7311 = vrot.lane.b32.xlu0 %v7229, 92
        %v7312 = vpop.permute.xlu0 %7311
        %7313 = vrot.lane.b32.xlu0 %v7230, 92
        %v7314 = vpop.permute.xlu0 %7313
        %vm7315 = vcmask 752640
        %v7316 = vsel %vm7315, %v7260, %v7262
        %v7317 = vsel %vm7315, %v7262, %v7264
        %v7318 = vsel %vm7315, %v7264, %v7266
        %v7319 = vsel %vm7315, %v7266, %v7268
        %v7320 = vsel %vm7315, %v7268, %v7270
        %v7321 = vsel %vm7315, %v7270, %v7272
        %v7322 = vsel %vm7315, %v7274, %v7276
        %v7323 = vsel %vm7315, %v7276, %v7278
        %v7324 = vsel %vm7315, %v7278, %v7280
        %v7325 = vsel %vm7315, %v7280, %v7282
        %v7326 = vsel %vm7315, %v7282, %v7284
        %v7327 = vsel %vm7315, %v7284, %v7286
        %v7328 = vsel %vm7315, %v7288, %v7290
        %v7329 = vsel %vm7315, %v7290, %v7292
        %v7330 = vsel %vm7315, %v7292, %v7294
        %v7331 = vsel %vm7315, %v7294, %v7296
        %v7332 = vsel %vm7315, %v7296, %v7298
        %v7333 = vsel %vm7315, %v7298, %v7300
        %v7334 = vsel %vm7315, %v7302, %v7304
        %v7335 = vsel %vm7315, %v7304, %v7306
        %v7336 = vsel %vm7315, %v7306, %v7308
        %v7337 = vsel %vm7315, %v7308, %v7310
        %v7338 = vsel %vm7315, %v7310, %v7312
        %v7339 = vsel %vm7315, %v7312, %v7314
        %v7364 = vadd.f32 %v7163, %v7316
        %v7365 = vadd.f32 %v7164, %v7317
        %v7366 = vadd.f32 %v7165, %v7318
        %v7367 = vadd.f32 %v7166, %v7319
        %v7368 = vadd.f32 %v7167, %v7320
        %v7369 = vadd.f32 %v7168, %v7321
        %v7370 = vadd.f32 %v7169, %v7322
        %v7371 = vadd.f32 %v7170, %v7323
        %v7372 = vadd.f32 %v7171, %v7324
        %v7373 = vadd.f32 %v7172, %v7325
        %v7374 = vadd.f32 %v7173, %v7326
        %v7375 = vadd.f32 %v7174, %v7327
        %v7376 = vadd.f32 %v7175, %v7328
        %v7377 = vadd.f32 %v7176, %v7329
        %v7378 = vadd.f32 %v7177, %v7330
        %v7379 = vadd.f32 %v7178, %v7331
        %v7380 = vadd.f32 %v7179, %v7332
        %v7381 = vadd.f32 %v7180, %v7333
        %v7382 = vadd.f32 %v7181, %v7334
        %v7383 = vadd.f32 %v7182, %v7335
        %v7384 = vadd.f32 %v7183, %v7336
        %v7385 = vadd.f32 %v7184, %v7337
        %v7386 = vadd.f32 %v7185, %v7338
        %v7387 = vadd.f32 %v7186, %v7339
        %7388 = vset.pattern.permute.xlu0 37
        %7389 = vperm.xlu0 %7388, %v440
        %v7390 = vpop.permute.xlu0 %7389
        %7392 = vset.pattern.permute.xlu0 37
        %7393 = vperm.xlu0 %7392, %v441
        %v7394 = vpop.permute.xlu0 %7393
        %7396 = vset.pattern.permute.xlu0 37
        %7397 = vperm.xlu0 %7396, %v442
        %v7398 = vpop.permute.xlu0 %7397
        %7400 = vset.pattern.permute.xlu0 37
        %7401 = vperm.xlu0 %7400, %v443
        %v7402 = vpop.permute.xlu0 %7401
        %v7404 = vmul.f32 %v7390, %v426
        %v7405 = vmul.f32 %v7390, %v427
        %v7406 = vmul.f32 %v7390, %v428
        %v7407 = vmul.f32 %v7390, %v429
        %v7408 = vmul.f32 %v7390, %v430
        %v7409 = vmul.f32 %v7390, %v431
        %v7410 = vmul.f32 %v7390, %v432
        %v7411 = vmul.f32 %v7394, %v426
        %v7412 = vmul.f32 %v7394, %v427
        %v7413 = vmul.f32 %v7394, %v428
        %v7414 = vmul.f32 %v7394, %v429
        %v7415 = vmul.f32 %v7394, %v430
        %v7416 = vmul.f32 %v7394, %v431
        %v7417 = vmul.f32 %v7394, %v432
        %v7418 = vmul.f32 %v7398, %v433
        %v7419 = vmul.f32 %v7398, %v434
        %v7420 = vmul.f32 %v7398, %v435
        %v7421 = vmul.f32 %v7398, %v436
        %v7422 = vmul.f32 %v7398, %v437
        %v7423 = vmul.f32 %v7398, %v438
        %v7424 = vmul.f32 %v7398, %v439
        %v7425 = vmul.f32 %v7402, %v433
        %v7426 = vmul.f32 %v7402, %v434
        %v7427 = vmul.f32 %v7402, %v435
        %v7428 = vmul.f32 %v7402, %v436
        %v7429 = vmul.f32 %v7402, %v437
        %v7430 = vmul.f32 %v7402, %v438
        %v7431 = vmul.f32 %v7402, %v439
        %7460 = vrot.lane.b32.xlu0 %v7404, 91
        %v7461 = vpop.permute.xlu0 %7460
        %7462 = vrot.lane.b32.xlu0 %v7405, 91
        %v7463 = vpop.permute.xlu0 %7462
        %7464 = vrot.lane.b32.xlu0 %v7406, 91
        %v7465 = vpop.permute.xlu0 %7464
        %7466 = vrot.lane.b32.xlu0 %v7407, 91
        %v7467 = vpop.permute.xlu0 %7466
        %7468 = vrot.lane.b32.xlu0 %v7408, 91
        %v7469 = vpop.permute.xlu0 %7468
        %7470 = vrot.lane.b32.xlu0 %v7409, 91
        %v7471 = vpop.permute.xlu0 %7470
        %7472 = vrot.lane.b32.xlu0 %v7410, 91
        %v7473 = vpop.permute.xlu0 %7472
        %7474 = vrot.lane.b32.xlu0 %v7411, 91
        %v7475 = vpop.permute.xlu0 %7474
        %7476 = vrot.lane.b32.xlu0 %v7412, 91
        %v7477 = vpop.permute.xlu0 %7476
        %7478 = vrot.lane.b32.xlu0 %v7413, 91
        %v7479 = vpop.permute.xlu0 %7478
        %7480 = vrot.lane.b32.xlu0 %v7414, 91
        %v7481 = vpop.permute.xlu0 %7480
        %7482 = vrot.lane.b32.xlu0 %v7415, 91
        %v7483 = vpop.permute.xlu0 %7482
        %7484 = vrot.lane.b32.xlu0 %v7416, 91
        %v7485 = vpop.permute.xlu0 %7484
        %7486 = vrot.lane.b32.xlu0 %v7417, 91
        %v7487 = vpop.permute.xlu0 %7486
        %7488 = vrot.lane.b32.xlu0 %v7418, 91
        %v7489 = vpop.permute.xlu0 %7488
        %7490 = vrot.lane.b32.xlu0 %v7419, 91
        %v7491 = vpop.permute.xlu0 %7490
        %7492 = vrot.lane.b32.xlu0 %v7420, 91
        %v7493 = vpop.permute.xlu0 %7492
        %7494 = vrot.lane.b32.xlu0 %v7421, 91
        %v7495 = vpop.permute.xlu0 %7494
        %7496 = vrot.lane.b32.xlu0 %v7422, 91
        %v7497 = vpop.permute.xlu0 %7496
        %7498 = vrot.lane.b32.xlu0 %v7423, 91
        %v7499 = vpop.permute.xlu0 %7498
        %7500 = vrot.lane.b32.xlu0 %v7424, 91
        %v7501 = vpop.permute.xlu0 %7500
        %7502 = vrot.lane.b32.xlu0 %v7425, 91
        %v7503 = vpop.permute.xlu0 %7502
        %7504 = vrot.lane.b32.xlu0 %v7426, 91
        %v7505 = vpop.permute.xlu0 %7504
        %7506 = vrot.lane.b32.xlu0 %v7427, 91
        %v7507 = vpop.permute.xlu0 %7506
        %7508 = vrot.lane.b32.xlu0 %v7428, 91
        %v7509 = vpop.permute.xlu0 %7508
        %7510 = vrot.lane.b32.xlu0 %v7429, 91
        %v7511 = vpop.permute.xlu0 %7510
        %7512 = vrot.lane.b32.xlu0 %v7430, 91
        %v7513 = vpop.permute.xlu0 %7512
        %7514 = vrot.lane.b32.xlu0 %v7431, 91
        %v7515 = vpop.permute.xlu0 %7514
        %vm7516 = vcmask 744448
        %v7517 = vsel %vm7516, %v7461, %v7463
        %v7518 = vsel %vm7516, %v7463, %v7465
        %v7519 = vsel %vm7516, %v7465, %v7467
        %v7520 = vsel %vm7516, %v7467, %v7469
        %v7521 = vsel %vm7516, %v7469, %v7471
        %v7522 = vsel %vm7516, %v7471, %v7473
        %v7523 = vsel %vm7516, %v7475, %v7477
        %v7524 = vsel %vm7516, %v7477, %v7479
        %v7525 = vsel %vm7516, %v7479, %v7481
        %v7526 = vsel %vm7516, %v7481, %v7483
        %v7527 = vsel %vm7516, %v7483, %v7485
        %v7528 = vsel %vm7516, %v7485, %v7487
        %v7529 = vsel %vm7516, %v7489, %v7491
        %v7530 = vsel %vm7516, %v7491, %v7493
        %v7531 = vsel %vm7516, %v7493, %v7495
        %v7532 = vsel %vm7516, %v7495, %v7497
        %v7533 = vsel %vm7516, %v7497, %v7499
        %v7534 = vsel %vm7516, %v7499, %v7501
        %v7535 = vsel %vm7516, %v7503, %v7505
        %v7536 = vsel %vm7516, %v7505, %v7507
        %v7537 = vsel %vm7516, %v7507, %v7509
        %v7538 = vsel %vm7516, %v7509, %v7511
        %v7539 = vsel %vm7516, %v7511, %v7513
        %v7540 = vsel %vm7516, %v7513, %v7515
        %v7565 = vadd.f32 %v7364, %v7517
        %v7566 = vadd.f32 %v7365, %v7518
        %v7567 = vadd.f32 %v7366, %v7519
        %v7568 = vadd.f32 %v7367, %v7520
        %v7569 = vadd.f32 %v7368, %v7521
        %v7570 = vadd.f32 %v7369, %v7522
        %v7571 = vadd.f32 %v7370, %v7523
        %v7572 = vadd.f32 %v7371, %v7524
        %v7573 = vadd.f32 %v7372, %v7525
        %v7574 = vadd.f32 %v7373, %v7526
        %v7575 = vadd.f32 %v7374, %v7527
        %v7576 = vadd.f32 %v7375, %v7528
        %v7577 = vadd.f32 %v7376, %v7529
        %v7578 = vadd.f32 %v7377, %v7530
        %v7579 = vadd.f32 %v7378, %v7531
        %v7580 = vadd.f32 %v7379, %v7532
        %v7581 = vadd.f32 %v7380, %v7533
        %v7582 = vadd.f32 %v7381, %v7534
        %v7583 = vadd.f32 %v7382, %v7535
        %v7584 = vadd.f32 %v7383, %v7536
        %v7585 = vadd.f32 %v7384, %v7537
        %v7586 = vadd.f32 %v7385, %v7538
        %v7587 = vadd.f32 %v7386, %v7539
        %v7588 = vadd.f32 %v7387, %v7540
        %7589 = vset.pattern.permute.xlu0 38
        %7590 = vperm.xlu0 %7589, %v440
        %v7591 = vpop.permute.xlu0 %7590
        %7593 = vset.pattern.permute.xlu0 38
        %7594 = vperm.xlu0 %7593, %v441
        %v7595 = vpop.permute.xlu0 %7594
        %7597 = vset.pattern.permute.xlu0 38
        %7598 = vperm.xlu0 %7597, %v442
        %v7599 = vpop.permute.xlu0 %7598
        %7601 = vset.pattern.permute.xlu0 38
        %7602 = vperm.xlu0 %7601, %v443
        %v7603 = vpop.permute.xlu0 %7602
        %v7605 = vmul.f32 %v7591, %v426
        %v7606 = vmul.f32 %v7591, %v427
        %v7607 = vmul.f32 %v7591, %v428
        %v7608 = vmul.f32 %v7591, %v429
        %v7609 = vmul.f32 %v7591, %v430
        %v7610 = vmul.f32 %v7591, %v431
        %v7611 = vmul.f32 %v7591, %v432
        %v7612 = vmul.f32 %v7595, %v426
        %v7613 = vmul.f32 %v7595, %v427
        %v7614 = vmul.f32 %v7595, %v428
        %v7615 = vmul.f32 %v7595, %v429
        %v7616 = vmul.f32 %v7595, %v430
        %v7617 = vmul.f32 %v7595, %v431
        %v7618 = vmul.f32 %v7595, %v432
        %v7619 = vmul.f32 %v7599, %v433
        %v7620 = vmul.f32 %v7599, %v434
        %v7621 = vmul.f32 %v7599, %v435
        %v7622 = vmul.f32 %v7599, %v436
        %v7623 = vmul.f32 %v7599, %v437
        %v7624 = vmul.f32 %v7599, %v438
        %v7625 = vmul.f32 %v7599, %v439
        %v7626 = vmul.f32 %v7603, %v433
        %v7627 = vmul.f32 %v7603, %v434
        %v7628 = vmul.f32 %v7603, %v435
        %v7629 = vmul.f32 %v7603, %v436
        %v7630 = vmul.f32 %v7603, %v437
        %v7631 = vmul.f32 %v7603, %v438
        %v7632 = vmul.f32 %v7603, %v439
        %7661 = vrot.lane.b32.xlu0 %v7605, 90
        %v7662 = vpop.permute.xlu0 %7661
        %7663 = vrot.lane.b32.xlu0 %v7606, 90
        %v7664 = vpop.permute.xlu0 %7663
        %7665 = vrot.lane.b32.xlu0 %v7607, 90
        %v7666 = vpop.permute.xlu0 %7665
        %7667 = vrot.lane.b32.xlu0 %v7608, 90
        %v7668 = vpop.permute.xlu0 %7667
        %7669 = vrot.lane.b32.xlu0 %v7609, 90
        %v7670 = vpop.permute.xlu0 %7669
        %7671 = vrot.lane.b32.xlu0 %v7610, 90
        %v7672 = vpop.permute.xlu0 %7671
        %7673 = vrot.lane.b32.xlu0 %v7611, 90
        %v7674 = vpop.permute.xlu0 %7673
        %7675 = vrot.lane.b32.xlu0 %v7612, 90
        %v7676 = vpop.permute.xlu0 %7675
        %7677 = vrot.lane.b32.xlu0 %v7613, 90
        %v7678 = vpop.permute.xlu0 %7677
        %7679 = vrot.lane.b32.xlu0 %v7614, 90
        %v7680 = vpop.permute.xlu0 %7679
        %7681 = vrot.lane.b32.xlu0 %v7615, 90
        %v7682 = vpop.permute.xlu0 %7681
        %7683 = vrot.lane.b32.xlu0 %v7616, 90
        %v7684 = vpop.permute.xlu0 %7683
        %7685 = vrot.lane.b32.xlu0 %v7617, 90
        %v7686 = vpop.permute.xlu0 %7685
        %7687 = vrot.lane.b32.xlu0 %v7618, 90
        %v7688 = vpop.permute.xlu0 %7687
        %7689 = vrot.lane.b32.xlu0 %v7619, 90
        %v7690 = vpop.permute.xlu0 %7689
        %7691 = vrot.lane.b32.xlu0 %v7620, 90
        %v7692 = vpop.permute.xlu0 %7691
        %7693 = vrot.lane.b32.xlu0 %v7621, 90
        %v7694 = vpop.permute.xlu0 %7693
        %7695 = vrot.lane.b32.xlu0 %v7622, 90
        %v7696 = vpop.permute.xlu0 %7695
        %7697 = vrot.lane.b32.xlu0 %v7623, 90
        %v7698 = vpop.permute.xlu0 %7697
        %7699 = vrot.lane.b32.xlu0 %v7624, 90
        %v7700 = vpop.permute.xlu0 %7699
        %7701 = vrot.lane.b32.xlu0 %v7625, 90
        %v7702 = vpop.permute.xlu0 %7701
        %7703 = vrot.lane.b32.xlu0 %v7626, 90
        %v7704 = vpop.permute.xlu0 %7703
        %7705 = vrot.lane.b32.xlu0 %v7627, 90
        %v7706 = vpop.permute.xlu0 %7705
        %7707 = vrot.lane.b32.xlu0 %v7628, 90
        %v7708 = vpop.permute.xlu0 %7707
        %7709 = vrot.lane.b32.xlu0 %v7629, 90
        %v7710 = vpop.permute.xlu0 %7709
        %7711 = vrot.lane.b32.xlu0 %v7630, 90
        %v7712 = vpop.permute.xlu0 %7711
        %7713 = vrot.lane.b32.xlu0 %v7631, 90
        %v7714 = vpop.permute.xlu0 %7713
        %7715 = vrot.lane.b32.xlu0 %v7632, 90
        %v7716 = vpop.permute.xlu0 %7715
        %vm7717 = vcmask 736256
        %v7718 = vsel %vm7717, %v7662, %v7664
        %v7719 = vsel %vm7717, %v7664, %v7666
        %v7720 = vsel %vm7717, %v7666, %v7668
        %v7721 = vsel %vm7717, %v7668, %v7670
        %v7722 = vsel %vm7717, %v7670, %v7672
        %v7723 = vsel %vm7717, %v7672, %v7674
        %v7724 = vsel %vm7717, %v7676, %v7678
        %v7725 = vsel %vm7717, %v7678, %v7680
        %v7726 = vsel %vm7717, %v7680, %v7682
        %v7727 = vsel %vm7717, %v7682, %v7684
        %v7728 = vsel %vm7717, %v7684, %v7686
        %v7729 = vsel %vm7717, %v7686, %v7688
        %v7730 = vsel %vm7717, %v7690, %v7692
        %v7731 = vsel %vm7717, %v7692, %v7694
        %v7732 = vsel %vm7717, %v7694, %v7696
        %v7733 = vsel %vm7717, %v7696, %v7698
        %v7734 = vsel %vm7717, %v7698, %v7700
        %v7735 = vsel %vm7717, %v7700, %v7702
        %v7736 = vsel %vm7717, %v7704, %v7706
        %v7737 = vsel %vm7717, %v7706, %v7708
        %v7738 = vsel %vm7717, %v7708, %v7710
        %v7739 = vsel %vm7717, %v7710, %v7712
        %v7740 = vsel %vm7717, %v7712, %v7714
        %v7741 = vsel %vm7717, %v7714, %v7716
        %v7766 = vadd.f32 %v7565, %v7718
        %v7767 = vadd.f32 %v7566, %v7719
        %v7768 = vadd.f32 %v7567, %v7720
        %v7769 = vadd.f32 %v7568, %v7721
        %v7770 = vadd.f32 %v7569, %v7722
        %v7771 = vadd.f32 %v7570, %v7723
        %v7772 = vadd.f32 %v7571, %v7724
        %v7773 = vadd.f32 %v7572, %v7725
        %v7774 = vadd.f32 %v7573, %v7726
        %v7775 = vadd.f32 %v7574, %v7727
        %v7776 = vadd.f32 %v7575, %v7728
        %v7777 = vadd.f32 %v7576, %v7729
        %v7778 = vadd.f32 %v7577, %v7730
        %v7779 = vadd.f32 %v7578, %v7731
        %v7780 = vadd.f32 %v7579, %v7732
        %v7781 = vadd.f32 %v7580, %v7733
        %v7782 = vadd.f32 %v7581, %v7734
        %v7783 = vadd.f32 %v7582, %v7735
        %v7784 = vadd.f32 %v7583, %v7736
        %v7785 = vadd.f32 %v7584, %v7737
        %v7786 = vadd.f32 %v7585, %v7738
        %v7787 = vadd.f32 %v7586, %v7739
        %v7788 = vadd.f32 %v7587, %v7740
        %v7789 = vadd.f32 %v7588, %v7741
        %7790 = vset.pattern.permute.xlu0 39
        %7791 = vperm.xlu0 %7790, %v440
        %v7792 = vpop.permute.xlu0 %7791
        %7794 = vset.pattern.permute.xlu0 39
        %7795 = vperm.xlu0 %7794, %v441
        %v7796 = vpop.permute.xlu0 %7795
        %7798 = vset.pattern.permute.xlu0 39
        %7799 = vperm.xlu0 %7798, %v442
        %v7800 = vpop.permute.xlu0 %7799
        %7802 = vset.pattern.permute.xlu0 39
        %7803 = vperm.xlu0 %7802, %v443
        %v7804 = vpop.permute.xlu0 %7803
        %v7806 = vmul.f32 %v7792, %v426
        %v7807 = vmul.f32 %v7792, %v427
        %v7808 = vmul.f32 %v7792, %v428
        %v7809 = vmul.f32 %v7792, %v429
        %v7810 = vmul.f32 %v7792, %v430
        %v7811 = vmul.f32 %v7792, %v431
        %v7812 = vmul.f32 %v7792, %v432
        %v7813 = vmul.f32 %v7796, %v426
        %v7814 = vmul.f32 %v7796, %v427
        %v7815 = vmul.f32 %v7796, %v428
        %v7816 = vmul.f32 %v7796, %v429
        %v7817 = vmul.f32 %v7796, %v430
        %v7818 = vmul.f32 %v7796, %v431
        %v7819 = vmul.f32 %v7796, %v432
        %v7820 = vmul.f32 %v7800, %v433
        %v7821 = vmul.f32 %v7800, %v434
        %v7822 = vmul.f32 %v7800, %v435
        %v7823 = vmul.f32 %v7800, %v436
        %v7824 = vmul.f32 %v7800, %v437
        %v7825 = vmul.f32 %v7800, %v438
        %v7826 = vmul.f32 %v7800, %v439
        %v7827 = vmul.f32 %v7804, %v433
        %v7828 = vmul.f32 %v7804, %v434
        %v7829 = vmul.f32 %v7804, %v435
        %v7830 = vmul.f32 %v7804, %v436
        %v7831 = vmul.f32 %v7804, %v437
        %v7832 = vmul.f32 %v7804, %v438
        %v7833 = vmul.f32 %v7804, %v439
        %7862 = vrot.lane.b32.xlu0 %v7806, 89
        %v7863 = vpop.permute.xlu0 %7862
        %7864 = vrot.lane.b32.xlu0 %v7807, 89
        %v7865 = vpop.permute.xlu0 %7864
        %7866 = vrot.lane.b32.xlu0 %v7808, 89
        %v7867 = vpop.permute.xlu0 %7866
        %7868 = vrot.lane.b32.xlu0 %v7809, 89
        %v7869 = vpop.permute.xlu0 %7868
        %7870 = vrot.lane.b32.xlu0 %v7810, 89
        %v7871 = vpop.permute.xlu0 %7870
        %7872 = vrot.lane.b32.xlu0 %v7811, 89
        %v7873 = vpop.permute.xlu0 %7872
        %7874 = vrot.lane.b32.xlu0 %v7812, 89
        %v7875 = vpop.permute.xlu0 %7874
        %7876 = vrot.lane.b32.xlu0 %v7813, 89
        %v7877 = vpop.permute.xlu0 %7876
        %7878 = vrot.lane.b32.xlu0 %v7814, 89
        %v7879 = vpop.permute.xlu0 %7878
        %7880 = vrot.lane.b32.xlu0 %v7815, 89
        %v7881 = vpop.permute.xlu0 %7880
        %7882 = vrot.lane.b32.xlu0 %v7816, 89
        %v7883 = vpop.permute.xlu0 %7882
        %7884 = vrot.lane.b32.xlu0 %v7817, 89
        %v7885 = vpop.permute.xlu0 %7884
        %7886 = vrot.lane.b32.xlu0 %v7818, 89
        %v7887 = vpop.permute.xlu0 %7886
        %7888 = vrot.lane.b32.xlu0 %v7819, 89
        %v7889 = vpop.permute.xlu0 %7888
        %7890 = vrot.lane.b32.xlu0 %v7820, 89
        %v7891 = vpop.permute.xlu0 %7890
        %7892 = vrot.lane.b32.xlu0 %v7821, 89
        %v7893 = vpop.permute.xlu0 %7892
        %7894 = vrot.lane.b32.xlu0 %v7822, 89
        %v7895 = vpop.permute.xlu0 %7894
        %7896 = vrot.lane.b32.xlu0 %v7823, 89
        %v7897 = vpop.permute.xlu0 %7896
        %7898 = vrot.lane.b32.xlu0 %v7824, 89
        %v7899 = vpop.permute.xlu0 %7898
        %7900 = vrot.lane.b32.xlu0 %v7825, 89
        %v7901 = vpop.permute.xlu0 %7900
        %7902 = vrot.lane.b32.xlu0 %v7826, 89
        %v7903 = vpop.permute.xlu0 %7902
        %7904 = vrot.lane.b32.xlu0 %v7827, 89
        %v7905 = vpop.permute.xlu0 %7904
        %7906 = vrot.lane.b32.xlu0 %v7828, 89
        %v7907 = vpop.permute.xlu0 %7906
        %7908 = vrot.lane.b32.xlu0 %v7829, 89
        %v7909 = vpop.permute.xlu0 %7908
        %7910 = vrot.lane.b32.xlu0 %v7830, 89
        %v7911 = vpop.permute.xlu0 %7910
        %7912 = vrot.lane.b32.xlu0 %v7831, 89
        %v7913 = vpop.permute.xlu0 %7912
        %7914 = vrot.lane.b32.xlu0 %v7832, 89
        %v7915 = vpop.permute.xlu0 %7914
        %7916 = vrot.lane.b32.xlu0 %v7833, 89
        %v7917 = vpop.permute.xlu0 %7916
        %vm7918 = vcmask 728064
        %v7919 = vsel %vm7918, %v7863, %v7865
        %v7920 = vsel %vm7918, %v7865, %v7867
        %v7921 = vsel %vm7918, %v7867, %v7869
        %v7922 = vsel %vm7918, %v7869, %v7871
        %v7923 = vsel %vm7918, %v7871, %v7873
        %v7924 = vsel %vm7918, %v7873, %v7875
        %v7925 = vsel %vm7918, %v7877, %v7879
        %v7926 = vsel %vm7918, %v7879, %v7881
        %v7927 = vsel %vm7918, %v7881, %v7883
        %v7928 = vsel %vm7918, %v7883, %v7885
        %v7929 = vsel %vm7918, %v7885, %v7887
        %v7930 = vsel %vm7918, %v7887, %v7889
        %v7931 = vsel %vm7918, %v7891, %v7893
        %v7932 = vsel %vm7918, %v7893, %v7895
        %v7933 = vsel %vm7918, %v7895, %v7897
        %v7934 = vsel %vm7918, %v7897, %v7899
        %v7935 = vsel %vm7918, %v7899, %v7901
        %v7936 = vsel %vm7918, %v7901, %v7903
        %v7937 = vsel %vm7918, %v7905, %v7907
        %v7938 = vsel %vm7918, %v7907, %v7909
        %v7939 = vsel %vm7918, %v7909, %v7911
        %v7940 = vsel %vm7918, %v7911, %v7913
        %v7941 = vsel %vm7918, %v7913, %v7915
        %v7942 = vsel %vm7918, %v7915, %v7917
        %v7967 = vadd.f32 %v7766, %v7919
        %v7968 = vadd.f32 %v7767, %v7920
        %v7969 = vadd.f32 %v7768, %v7921
        %v7970 = vadd.f32 %v7769, %v7922
        %v7971 = vadd.f32 %v7770, %v7923
        %v7972 = vadd.f32 %v7771, %v7924
        %v7973 = vadd.f32 %v7772, %v7925
        %v7974 = vadd.f32 %v7773, %v7926
        %v7975 = vadd.f32 %v7774, %v7927
        %v7976 = vadd.f32 %v7775, %v7928
        %v7977 = vadd.f32 %v7776, %v7929
        %v7978 = vadd.f32 %v7777, %v7930
        %v7979 = vadd.f32 %v7778, %v7931
        %v7980 = vadd.f32 %v7779, %v7932
        %v7981 = vadd.f32 %v7780, %v7933
        %v7982 = vadd.f32 %v7781, %v7934
        %v7983 = vadd.f32 %v7782, %v7935
        %v7984 = vadd.f32 %v7783, %v7936
        %v7985 = vadd.f32 %v7784, %v7937
        %v7986 = vadd.f32 %v7785, %v7938
        %v7987 = vadd.f32 %v7786, %v7939
        %v7988 = vadd.f32 %v7787, %v7940
        %v7989 = vadd.f32 %v7788, %v7941
        %v7990 = vadd.f32 %v7789, %v7942
        %7991 = vset.pattern.permute.xlu0 40
        %7992 = vperm.xlu0 %7991, %v440
        %v7993 = vpop.permute.xlu0 %7992
        %7995 = vset.pattern.permute.xlu0 40
        %7996 = vperm.xlu0 %7995, %v441
        %v7997 = vpop.permute.xlu0 %7996
        %7999 = vset.pattern.permute.xlu0 40
        %8000 = vperm.xlu0 %7999, %v442
        %v8001 = vpop.permute.xlu0 %8000
        %8003 = vset.pattern.permute.xlu0 40
        %8004 = vperm.xlu0 %8003, %v443
        %v8005 = vpop.permute.xlu0 %8004
        %v8007 = vmul.f32 %v7993, %v426
        %v8008 = vmul.f32 %v7993, %v427
        %v8009 = vmul.f32 %v7993, %v428
        %v8010 = vmul.f32 %v7993, %v429
        %v8011 = vmul.f32 %v7993, %v430
        %v8012 = vmul.f32 %v7993, %v431
        %v8013 = vmul.f32 %v7993, %v432
        %v8014 = vmul.f32 %v7997, %v426
        %v8015 = vmul.f32 %v7997, %v427
        %v8016 = vmul.f32 %v7997, %v428
        %v8017 = vmul.f32 %v7997, %v429
        %v8018 = vmul.f32 %v7997, %v430
        %v8019 = vmul.f32 %v7997, %v431
        %v8020 = vmul.f32 %v7997, %v432
        %v8021 = vmul.f32 %v8001, %v433
        %v8022 = vmul.f32 %v8001, %v434
        %v8023 = vmul.f32 %v8001, %v435
        %v8024 = vmul.f32 %v8001, %v436
        %v8025 = vmul.f32 %v8001, %v437
        %v8026 = vmul.f32 %v8001, %v438
        %v8027 = vmul.f32 %v8001, %v439
        %v8028 = vmul.f32 %v8005, %v433
        %v8029 = vmul.f32 %v8005, %v434
        %v8030 = vmul.f32 %v8005, %v435
        %v8031 = vmul.f32 %v8005, %v436
        %v8032 = vmul.f32 %v8005, %v437
        %v8033 = vmul.f32 %v8005, %v438
        %v8034 = vmul.f32 %v8005, %v439
        %8063 = vrot.lane.b32.xlu0 %v8007, 88
        %v8064 = vpop.permute.xlu0 %8063
        %8065 = vrot.lane.b32.xlu0 %v8008, 88
        %v8066 = vpop.permute.xlu0 %8065
        %8067 = vrot.lane.b32.xlu0 %v8009, 88
        %v8068 = vpop.permute.xlu0 %8067
        %8069 = vrot.lane.b32.xlu0 %v8010, 88
        %v8070 = vpop.permute.xlu0 %8069
        %8071 = vrot.lane.b32.xlu0 %v8011, 88
        %v8072 = vpop.permute.xlu0 %8071
        %8073 = vrot.lane.b32.xlu0 %v8012, 88
        %v8074 = vpop.permute.xlu0 %8073
        %8075 = vrot.lane.b32.xlu0 %v8013, 88
        %v8076 = vpop.permute.xlu0 %8075
        %8077 = vrot.lane.b32.xlu0 %v8014, 88
        %v8078 = vpop.permute.xlu0 %8077
        %8079 = vrot.lane.b32.xlu0 %v8015, 88
        %v8080 = vpop.permute.xlu0 %8079
        %8081 = vrot.lane.b32.xlu0 %v8016, 88
        %v8082 = vpop.permute.xlu0 %8081
        %8083 = vrot.lane.b32.xlu0 %v8017, 88
        %v8084 = vpop.permute.xlu0 %8083
        %8085 = vrot.lane.b32.xlu0 %v8018, 88
        %v8086 = vpop.permute.xlu0 %8085
        %8087 = vrot.lane.b32.xlu0 %v8019, 88
        %v8088 = vpop.permute.xlu0 %8087
        %8089 = vrot.lane.b32.xlu0 %v8020, 88
        %v8090 = vpop.permute.xlu0 %8089
        %8091 = vrot.lane.b32.xlu0 %v8021, 88
        %v8092 = vpop.permute.xlu0 %8091
        %8093 = vrot.lane.b32.xlu0 %v8022, 88
        %v8094 = vpop.permute.xlu0 %8093
        %8095 = vrot.lane.b32.xlu0 %v8023, 88
        %v8096 = vpop.permute.xlu0 %8095
        %8097 = vrot.lane.b32.xlu0 %v8024, 88
        %v8098 = vpop.permute.xlu0 %8097
        %8099 = vrot.lane.b32.xlu0 %v8025, 88
        %v8100 = vpop.permute.xlu0 %8099
        %8101 = vrot.lane.b32.xlu0 %v8026, 88
        %v8102 = vpop.permute.xlu0 %8101
        %8103 = vrot.lane.b32.xlu0 %v8027, 88
        %v8104 = vpop.permute.xlu0 %8103
        %8105 = vrot.lane.b32.xlu0 %v8028, 88
        %v8106 = vpop.permute.xlu0 %8105
        %8107 = vrot.lane.b32.xlu0 %v8029, 88
        %v8108 = vpop.permute.xlu0 %8107
        %8109 = vrot.lane.b32.xlu0 %v8030, 88
        %v8110 = vpop.permute.xlu0 %8109
        %8111 = vrot.lane.b32.xlu0 %v8031, 88
        %v8112 = vpop.permute.xlu0 %8111
        %8113 = vrot.lane.b32.xlu0 %v8032, 88
        %v8114 = vpop.permute.xlu0 %8113
        %8115 = vrot.lane.b32.xlu0 %v8033, 88
        %v8116 = vpop.permute.xlu0 %8115
        %8117 = vrot.lane.b32.xlu0 %v8034, 88
        %v8118 = vpop.permute.xlu0 %8117
        %vm8119 = vcmask 719872
        %v8120 = vsel %vm8119, %v8064, %v8066
        %v8121 = vsel %vm8119, %v8066, %v8068
        %v8122 = vsel %vm8119, %v8068, %v8070
        %v8123 = vsel %vm8119, %v8070, %v8072
        %v8124 = vsel %vm8119, %v8072, %v8074
        %v8125 = vsel %vm8119, %v8074, %v8076
        %v8126 = vsel %vm8119, %v8078, %v8080
        %v8127 = vsel %vm8119, %v8080, %v8082
        %v8128 = vsel %vm8119, %v8082, %v8084
        %v8129 = vsel %vm8119, %v8084, %v8086
        %v8130 = vsel %vm8119, %v8086, %v8088
        %v8131 = vsel %vm8119, %v8088, %v8090
        %v8132 = vsel %vm8119, %v8092, %v8094
        %v8133 = vsel %vm8119, %v8094, %v8096
        %v8134 = vsel %vm8119, %v8096, %v8098
        %v8135 = vsel %vm8119, %v8098, %v8100
        %v8136 = vsel %vm8119, %v8100, %v8102
        %v8137 = vsel %vm8119, %v8102, %v8104
        %v8138 = vsel %vm8119, %v8106, %v8108
        %v8139 = vsel %vm8119, %v8108, %v8110
        %v8140 = vsel %vm8119, %v8110, %v8112
        %v8141 = vsel %vm8119, %v8112, %v8114
        %v8142 = vsel %vm8119, %v8114, %v8116
        %v8143 = vsel %vm8119, %v8116, %v8118
        %v8168 = vadd.f32 %v7967, %v8120
        %v8169 = vadd.f32 %v7968, %v8121
        %v8170 = vadd.f32 %v7969, %v8122
        %v8171 = vadd.f32 %v7970, %v8123
        %v8172 = vadd.f32 %v7971, %v8124
        %v8173 = vadd.f32 %v7972, %v8125
        %v8174 = vadd.f32 %v7973, %v8126
        %v8175 = vadd.f32 %v7974, %v8127
        %v8176 = vadd.f32 %v7975, %v8128
        %v8177 = vadd.f32 %v7976, %v8129
        %v8178 = vadd.f32 %v7977, %v8130
        %v8179 = vadd.f32 %v7978, %v8131
        %v8180 = vadd.f32 %v7979, %v8132
        %v8181 = vadd.f32 %v7980, %v8133
        %v8182 = vadd.f32 %v7981, %v8134
        %v8183 = vadd.f32 %v7982, %v8135
        %v8184 = vadd.f32 %v7983, %v8136
        %v8185 = vadd.f32 %v7984, %v8137
        %v8186 = vadd.f32 %v7985, %v8138
        %v8187 = vadd.f32 %v7986, %v8139
        %v8188 = vadd.f32 %v7987, %v8140
        %v8189 = vadd.f32 %v7988, %v8141
        %v8190 = vadd.f32 %v7989, %v8142
        %v8191 = vadd.f32 %v7990, %v8143
        %8192 = vset.pattern.permute.xlu0 41
        %8193 = vperm.xlu0 %8192, %v440
        %v8194 = vpop.permute.xlu0 %8193
        %8196 = vset.pattern.permute.xlu0 41
        %8197 = vperm.xlu0 %8196, %v441
        %v8198 = vpop.permute.xlu0 %8197
        %8200 = vset.pattern.permute.xlu0 41
        %8201 = vperm.xlu0 %8200, %v442
        %v8202 = vpop.permute.xlu0 %8201
        %8204 = vset.pattern.permute.xlu0 41
        %8205 = vperm.xlu0 %8204, %v443
        %v8206 = vpop.permute.xlu0 %8205
        %v8208 = vmul.f32 %v8194, %v426
        %v8209 = vmul.f32 %v8194, %v427
        %v8210 = vmul.f32 %v8194, %v428
        %v8211 = vmul.f32 %v8194, %v429
        %v8212 = vmul.f32 %v8194, %v430
        %v8213 = vmul.f32 %v8194, %v431
        %v8214 = vmul.f32 %v8194, %v432
        %v8215 = vmul.f32 %v8198, %v426
        %v8216 = vmul.f32 %v8198, %v427
        %v8217 = vmul.f32 %v8198, %v428
        %v8218 = vmul.f32 %v8198, %v429
        %v8219 = vmul.f32 %v8198, %v430
        %v8220 = vmul.f32 %v8198, %v431
        %v8221 = vmul.f32 %v8198, %v432
        %v8222 = vmul.f32 %v8202, %v433
        %v8223 = vmul.f32 %v8202, %v434
        %v8224 = vmul.f32 %v8202, %v435
        %v8225 = vmul.f32 %v8202, %v436
        %v8226 = vmul.f32 %v8202, %v437
        %v8227 = vmul.f32 %v8202, %v438
        %v8228 = vmul.f32 %v8202, %v439
        %v8229 = vmul.f32 %v8206, %v433
        %v8230 = vmul.f32 %v8206, %v434
        %v8231 = vmul.f32 %v8206, %v435
        %v8232 = vmul.f32 %v8206, %v436
        %v8233 = vmul.f32 %v8206, %v437
        %v8234 = vmul.f32 %v8206, %v438
        %v8235 = vmul.f32 %v8206, %v439
        %8264 = vrot.lane.b32.xlu0 %v8208, 87
        %v8265 = vpop.permute.xlu0 %8264
        %8266 = vrot.lane.b32.xlu0 %v8209, 87
        %v8267 = vpop.permute.xlu0 %8266
        %8268 = vrot.lane.b32.xlu0 %v8210, 87
        %v8269 = vpop.permute.xlu0 %8268
        %8270 = vrot.lane.b32.xlu0 %v8211, 87
        %v8271 = vpop.permute.xlu0 %8270
        %8272 = vrot.lane.b32.xlu0 %v8212, 87
        %v8273 = vpop.permute.xlu0 %8272
        %8274 = vrot.lane.b32.xlu0 %v8213, 87
        %v8275 = vpop.permute.xlu0 %8274
        %8276 = vrot.lane.b32.xlu0 %v8214, 87
        %v8277 = vpop.permute.xlu0 %8276
        %8278 = vrot.lane.b32.xlu0 %v8215, 87
        %v8279 = vpop.permute.xlu0 %8278
        %8280 = vrot.lane.b32.xlu0 %v8216, 87
        %v8281 = vpop.permute.xlu0 %8280
        %8282 = vrot.lane.b32.xlu0 %v8217, 87
        %v8283 = vpop.permute.xlu0 %8282
        %8284 = vrot.lane.b32.xlu0 %v8218, 87
        %v8285 = vpop.permute.xlu0 %8284
        %8286 = vrot.lane.b32.xlu0 %v8219, 87
        %v8287 = vpop.permute.xlu0 %8286
        %8288 = vrot.lane.b32.xlu0 %v8220, 87
        %v8289 = vpop.permute.xlu0 %8288
        %8290 = vrot.lane.b32.xlu0 %v8221, 87
        %v8291 = vpop.permute.xlu0 %8290
        %8292 = vrot.lane.b32.xlu0 %v8222, 87
        %v8293 = vpop.permute.xlu0 %8292
        %8294 = vrot.lane.b32.xlu0 %v8223, 87
        %v8295 = vpop.permute.xlu0 %8294
        %8296 = vrot.lane.b32.xlu0 %v8224, 87
        %v8297 = vpop.permute.xlu0 %8296
        %8298 = vrot.lane.b32.xlu0 %v8225, 87
        %v8299 = vpop.permute.xlu0 %8298
        %8300 = vrot.lane.b32.xlu0 %v8226, 87
        %v8301 = vpop.permute.xlu0 %8300
        %8302 = vrot.lane.b32.xlu0 %v8227, 87
        %v8303 = vpop.permute.xlu0 %8302
        %8304 = vrot.lane.b32.xlu0 %v8228, 87
        %v8305 = vpop.permute.xlu0 %8304
        %8306 = vrot.lane.b32.xlu0 %v8229, 87
        %v8307 = vpop.permute.xlu0 %8306
        %8308 = vrot.lane.b32.xlu0 %v8230, 87
        %v8309 = vpop.permute.xlu0 %8308
        %8310 = vrot.lane.b32.xlu0 %v8231, 87
        %v8311 = vpop.permute.xlu0 %8310
        %8312 = vrot.lane.b32.xlu0 %v8232, 87
        %v8313 = vpop.permute.xlu0 %8312
        %8314 = vrot.lane.b32.xlu0 %v8233, 87
        %v8315 = vpop.permute.xlu0 %8314
        %8316 = vrot.lane.b32.xlu0 %v8234, 87
        %v8317 = vpop.permute.xlu0 %8316
        %8318 = vrot.lane.b32.xlu0 %v8235, 87
        %v8319 = vpop.permute.xlu0 %8318
        %vm8320 = vcmask 711680
        %v8321 = vsel %vm8320, %v8265, %v8267
        %v8322 = vsel %vm8320, %v8267, %v8269
        %v8323 = vsel %vm8320, %v8269, %v8271
        %v8324 = vsel %vm8320, %v8271, %v8273
        %v8325 = vsel %vm8320, %v8273, %v8275
        %v8326 = vsel %vm8320, %v8275, %v8277
        %v8327 = vsel %vm8320, %v8279, %v8281
        %v8328 = vsel %vm8320, %v8281, %v8283
        %v8329 = vsel %vm8320, %v8283, %v8285
        %v8330 = vsel %vm8320, %v8285, %v8287
        %v8331 = vsel %vm8320, %v8287, %v8289
        %v8332 = vsel %vm8320, %v8289, %v8291
        %v8333 = vsel %vm8320, %v8293, %v8295
        %v8334 = vsel %vm8320, %v8295, %v8297
        %v8335 = vsel %vm8320, %v8297, %v8299
        %v8336 = vsel %vm8320, %v8299, %v8301
        %v8337 = vsel %vm8320, %v8301, %v8303
        %v8338 = vsel %vm8320, %v8303, %v8305
        %v8339 = vsel %vm8320, %v8307, %v8309
        %v8340 = vsel %vm8320, %v8309, %v8311
        %v8341 = vsel %vm8320, %v8311, %v8313
        %v8342 = vsel %vm8320, %v8313, %v8315
        %v8343 = vsel %vm8320, %v8315, %v8317
        %v8344 = vsel %vm8320, %v8317, %v8319
        %v8369 = vadd.f32 %v8168, %v8321
        %v8370 = vadd.f32 %v8169, %v8322
        %v8371 = vadd.f32 %v8170, %v8323
        %v8372 = vadd.f32 %v8171, %v8324
        %v8373 = vadd.f32 %v8172, %v8325
        %v8374 = vadd.f32 %v8173, %v8326
        %v8375 = vadd.f32 %v8174, %v8327
        %v8376 = vadd.f32 %v8175, %v8328
        %v8377 = vadd.f32 %v8176, %v8329
        %v8378 = vadd.f32 %v8177, %v8330
        %v8379 = vadd.f32 %v8178, %v8331
        %v8380 = vadd.f32 %v8179, %v8332
        %v8381 = vadd.f32 %v8180, %v8333
        %v8382 = vadd.f32 %v8181, %v8334
        %v8383 = vadd.f32 %v8182, %v8335
        %v8384 = vadd.f32 %v8183, %v8336
        %v8385 = vadd.f32 %v8184, %v8337
        %v8386 = vadd.f32 %v8185, %v8338
        %v8387 = vadd.f32 %v8186, %v8339
        %v8388 = vadd.f32 %v8187, %v8340
        %v8389 = vadd.f32 %v8188, %v8341
        %v8390 = vadd.f32 %v8189, %v8342
        %v8391 = vadd.f32 %v8190, %v8343
        %v8392 = vadd.f32 %v8191, %v8344
        %8393 = vset.pattern.permute.xlu0 42
        %8394 = vperm.xlu0 %8393, %v440
        %v8395 = vpop.permute.xlu0 %8394
        %8397 = vset.pattern.permute.xlu0 42
        %8398 = vperm.xlu0 %8397, %v441
        %v8399 = vpop.permute.xlu0 %8398
        %8401 = vset.pattern.permute.xlu0 42
        %8402 = vperm.xlu0 %8401, %v442
        %v8403 = vpop.permute.xlu0 %8402
        %8405 = vset.pattern.permute.xlu0 42
        %8406 = vperm.xlu0 %8405, %v443
        %v8407 = vpop.permute.xlu0 %8406
        %v8409 = vmul.f32 %v8395, %v426
        %v8410 = vmul.f32 %v8395, %v427
        %v8411 = vmul.f32 %v8395, %v428
        %v8412 = vmul.f32 %v8395, %v429
        %v8413 = vmul.f32 %v8395, %v430
        %v8414 = vmul.f32 %v8395, %v431
        %v8415 = vmul.f32 %v8395, %v432
        %v8416 = vmul.f32 %v8399, %v426
        %v8417 = vmul.f32 %v8399, %v427
        %v8418 = vmul.f32 %v8399, %v428
        %v8419 = vmul.f32 %v8399, %v429
        %v8420 = vmul.f32 %v8399, %v430
        %v8421 = vmul.f32 %v8399, %v431
        %v8422 = vmul.f32 %v8399, %v432
        %v8423 = vmul.f32 %v8403, %v433
        %v8424 = vmul.f32 %v8403, %v434
        %v8425 = vmul.f32 %v8403, %v435
        %v8426 = vmul.f32 %v8403, %v436
        %v8427 = vmul.f32 %v8403, %v437
        %v8428 = vmul.f32 %v8403, %v438
        %v8429 = vmul.f32 %v8403, %v439
        %v8430 = vmul.f32 %v8407, %v433
        %v8431 = vmul.f32 %v8407, %v434
        %v8432 = vmul.f32 %v8407, %v435
        %v8433 = vmul.f32 %v8407, %v436
        %v8434 = vmul.f32 %v8407, %v437
        %v8435 = vmul.f32 %v8407, %v438
        %v8436 = vmul.f32 %v8407, %v439
        %8465 = vrot.lane.b32.xlu0 %v8409, 86
        %v8466 = vpop.permute.xlu0 %8465
        %8467 = vrot.lane.b32.xlu0 %v8410, 86
        %v8468 = vpop.permute.xlu0 %8467
        %8469 = vrot.lane.b32.xlu0 %v8411, 86
        %v8470 = vpop.permute.xlu0 %8469
        %8471 = vrot.lane.b32.xlu0 %v8412, 86
        %v8472 = vpop.permute.xlu0 %8471
        %8473 = vrot.lane.b32.xlu0 %v8413, 86
        %v8474 = vpop.permute.xlu0 %8473
        %8475 = vrot.lane.b32.xlu0 %v8414, 86
        %v8476 = vpop.permute.xlu0 %8475
        %8477 = vrot.lane.b32.xlu0 %v8415, 86
        %v8478 = vpop.permute.xlu0 %8477
        %8479 = vrot.lane.b32.xlu0 %v8416, 86
        %v8480 = vpop.permute.xlu0 %8479
        %8481 = vrot.lane.b32.xlu0 %v8417, 86
        %v8482 = vpop.permute.xlu0 %8481
        %8483 = vrot.lane.b32.xlu0 %v8418, 86
        %v8484 = vpop.permute.xlu0 %8483
        %8485 = vrot.lane.b32.xlu0 %v8419, 86
        %v8486 = vpop.permute.xlu0 %8485
        %8487 = vrot.lane.b32.xlu0 %v8420, 86
        %v8488 = vpop.permute.xlu0 %8487
        %8489 = vrot.lane.b32.xlu0 %v8421, 86
        %v8490 = vpop.permute.xlu0 %8489
        %8491 = vrot.lane.b32.xlu0 %v8422, 86
        %v8492 = vpop.permute.xlu0 %8491
        %8493 = vrot.lane.b32.xlu0 %v8423, 86
        %v8494 = vpop.permute.xlu0 %8493
        %8495 = vrot.lane.b32.xlu0 %v8424, 86
        %v8496 = vpop.permute.xlu0 %8495
        %8497 = vrot.lane.b32.xlu0 %v8425, 86
        %v8498 = vpop.permute.xlu0 %8497
        %8499 = vrot.lane.b32.xlu0 %v8426, 86
        %v8500 = vpop.permute.xlu0 %8499
        %8501 = vrot.lane.b32.xlu0 %v8427, 86
        %v8502 = vpop.permute.xlu0 %8501
        %8503 = vrot.lane.b32.xlu0 %v8428, 86
        %v8504 = vpop.permute.xlu0 %8503
        %8505 = vrot.lane.b32.xlu0 %v8429, 86
        %v8506 = vpop.permute.xlu0 %8505
        %8507 = vrot.lane.b32.xlu0 %v8430, 86
        %v8508 = vpop.permute.xlu0 %8507
        %8509 = vrot.lane.b32.xlu0 %v8431, 86
        %v8510 = vpop.permute.xlu0 %8509
        %8511 = vrot.lane.b32.xlu0 %v8432, 86
        %v8512 = vpop.permute.xlu0 %8511
        %8513 = vrot.lane.b32.xlu0 %v8433, 86
        %v8514 = vpop.permute.xlu0 %8513
        %8515 = vrot.lane.b32.xlu0 %v8434, 86
        %v8516 = vpop.permute.xlu0 %8515
        %8517 = vrot.lane.b32.xlu0 %v8435, 86
        %v8518 = vpop.permute.xlu0 %8517
        %8519 = vrot.lane.b32.xlu0 %v8436, 86
        %v8520 = vpop.permute.xlu0 %8519
        %vm8521 = vcmask 703488
        %v8522 = vsel %vm8521, %v8466, %v8468
        %v8523 = vsel %vm8521, %v8468, %v8470
        %v8524 = vsel %vm8521, %v8470, %v8472
        %v8525 = vsel %vm8521, %v8472, %v8474
        %v8526 = vsel %vm8521, %v8474, %v8476
        %v8527 = vsel %vm8521, %v8476, %v8478
        %v8528 = vsel %vm8521, %v8480, %v8482
        %v8529 = vsel %vm8521, %v8482, %v8484
        %v8530 = vsel %vm8521, %v8484, %v8486
        %v8531 = vsel %vm8521, %v8486, %v8488
        %v8532 = vsel %vm8521, %v8488, %v8490
        %v8533 = vsel %vm8521, %v8490, %v8492
        %v8534 = vsel %vm8521, %v8494, %v8496
        %v8535 = vsel %vm8521, %v8496, %v8498
        %v8536 = vsel %vm8521, %v8498, %v8500
        %v8537 = vsel %vm8521, %v8500, %v8502
        %v8538 = vsel %vm8521, %v8502, %v8504
        %v8539 = vsel %vm8521, %v8504, %v8506
        %v8540 = vsel %vm8521, %v8508, %v8510
        %v8541 = vsel %vm8521, %v8510, %v8512
        %v8542 = vsel %vm8521, %v8512, %v8514
        %v8543 = vsel %vm8521, %v8514, %v8516
        %v8544 = vsel %vm8521, %v8516, %v8518
        %v8545 = vsel %vm8521, %v8518, %v8520
        %v8570 = vadd.f32 %v8369, %v8522
        %v8571 = vadd.f32 %v8370, %v8523
        %v8572 = vadd.f32 %v8371, %v8524
        %v8573 = vadd.f32 %v8372, %v8525
        %v8574 = vadd.f32 %v8373, %v8526
        %v8575 = vadd.f32 %v8374, %v8527
        %v8576 = vadd.f32 %v8375, %v8528
        %v8577 = vadd.f32 %v8376, %v8529
        %v8578 = vadd.f32 %v8377, %v8530
        %v8579 = vadd.f32 %v8378, %v8531
        %v8580 = vadd.f32 %v8379, %v8532
        %v8581 = vadd.f32 %v8380, %v8533
        %v8582 = vadd.f32 %v8381, %v8534
        %v8583 = vadd.f32 %v8382, %v8535
        %v8584 = vadd.f32 %v8383, %v8536
        %v8585 = vadd.f32 %v8384, %v8537
        %v8586 = vadd.f32 %v8385, %v8538
        %v8587 = vadd.f32 %v8386, %v8539
        %v8588 = vadd.f32 %v8387, %v8540
        %v8589 = vadd.f32 %v8388, %v8541
        %v8590 = vadd.f32 %v8389, %v8542
        %v8591 = vadd.f32 %v8390, %v8543
        %v8592 = vadd.f32 %v8391, %v8544
        %v8593 = vadd.f32 %v8392, %v8545
        %8594 = vset.pattern.permute.xlu0 43
        %8595 = vperm.xlu0 %8594, %v440
        %v8596 = vpop.permute.xlu0 %8595
        %8598 = vset.pattern.permute.xlu0 43
        %8599 = vperm.xlu0 %8598, %v441
        %v8600 = vpop.permute.xlu0 %8599
        %8602 = vset.pattern.permute.xlu0 43
        %8603 = vperm.xlu0 %8602, %v442
        %v8604 = vpop.permute.xlu0 %8603
        %8606 = vset.pattern.permute.xlu0 43
        %8607 = vperm.xlu0 %8606, %v443
        %v8608 = vpop.permute.xlu0 %8607
        %v8610 = vmul.f32 %v8596, %v426
        %v8611 = vmul.f32 %v8596, %v427
        %v8612 = vmul.f32 %v8596, %v428
        %v8613 = vmul.f32 %v8596, %v429
        %v8614 = vmul.f32 %v8596, %v430
        %v8615 = vmul.f32 %v8596, %v431
        %v8616 = vmul.f32 %v8596, %v432
        %v8617 = vmul.f32 %v8600, %v426
        %v8618 = vmul.f32 %v8600, %v427
        %v8619 = vmul.f32 %v8600, %v428
        %v8620 = vmul.f32 %v8600, %v429
        %v8621 = vmul.f32 %v8600, %v430
        %v8622 = vmul.f32 %v8600, %v431
        %v8623 = vmul.f32 %v8600, %v432
        %v8624 = vmul.f32 %v8604, %v433
        %v8625 = vmul.f32 %v8604, %v434
        %v8626 = vmul.f32 %v8604, %v435
        %v8627 = vmul.f32 %v8604, %v436
        %v8628 = vmul.f32 %v8604, %v437
        %v8629 = vmul.f32 %v8604, %v438
        %v8630 = vmul.f32 %v8604, %v439
        %v8631 = vmul.f32 %v8608, %v433
        %v8632 = vmul.f32 %v8608, %v434
        %v8633 = vmul.f32 %v8608, %v435
        %v8634 = vmul.f32 %v8608, %v436
        %v8635 = vmul.f32 %v8608, %v437
        %v8636 = vmul.f32 %v8608, %v438
        %v8637 = vmul.f32 %v8608, %v439
        %8666 = vrot.lane.b32.xlu0 %v8610, 85
        %v8667 = vpop.permute.xlu0 %8666
        %8668 = vrot.lane.b32.xlu0 %v8611, 85
        %v8669 = vpop.permute.xlu0 %8668
        %8670 = vrot.lane.b32.xlu0 %v8612, 85
        %v8671 = vpop.permute.xlu0 %8670
        %8672 = vrot.lane.b32.xlu0 %v8613, 85
        %v8673 = vpop.permute.xlu0 %8672
        %8674 = vrot.lane.b32.xlu0 %v8614, 85
        %v8675 = vpop.permute.xlu0 %8674
        %8676 = vrot.lane.b32.xlu0 %v8615, 85
        %v8677 = vpop.permute.xlu0 %8676
        %8678 = vrot.lane.b32.xlu0 %v8616, 85
        %v8679 = vpop.permute.xlu0 %8678
        %8680 = vrot.lane.b32.xlu0 %v8617, 85
        %v8681 = vpop.permute.xlu0 %8680
        %8682 = vrot.lane.b32.xlu0 %v8618, 85
        %v8683 = vpop.permute.xlu0 %8682
        %8684 = vrot.lane.b32.xlu0 %v8619, 85
        %v8685 = vpop.permute.xlu0 %8684
        %8686 = vrot.lane.b32.xlu0 %v8620, 85
        %v8687 = vpop.permute.xlu0 %8686
        %8688 = vrot.lane.b32.xlu0 %v8621, 85
        %v8689 = vpop.permute.xlu0 %8688
        %8690 = vrot.lane.b32.xlu0 %v8622, 85
        %v8691 = vpop.permute.xlu0 %8690
        %8692 = vrot.lane.b32.xlu0 %v8623, 85
        %v8693 = vpop.permute.xlu0 %8692
        %8694 = vrot.lane.b32.xlu0 %v8624, 85
        %v8695 = vpop.permute.xlu0 %8694
        %8696 = vrot.lane.b32.xlu0 %v8625, 85
        %v8697 = vpop.permute.xlu0 %8696
        %8698 = vrot.lane.b32.xlu0 %v8626, 85
        %v8699 = vpop.permute.xlu0 %8698
        %8700 = vrot.lane.b32.xlu0 %v8627, 85
        %v8701 = vpop.permute.xlu0 %8700
        %8702 = vrot.lane.b32.xlu0 %v8628, 85
        %v8703 = vpop.permute.xlu0 %8702
        %8704 = vrot.lane.b32.xlu0 %v8629, 85
        %v8705 = vpop.permute.xlu0 %8704
        %8706 = vrot.lane.b32.xlu0 %v8630, 85
        %v8707 = vpop.permute.xlu0 %8706
        %8708 = vrot.lane.b32.xlu0 %v8631, 85
        %v8709 = vpop.permute.xlu0 %8708
        %8710 = vrot.lane.b32.xlu0 %v8632, 85
        %v8711 = vpop.permute.xlu0 %8710
        %8712 = vrot.lane.b32.xlu0 %v8633, 85
        %v8713 = vpop.permute.xlu0 %8712
        %8714 = vrot.lane.b32.xlu0 %v8634, 85
        %v8715 = vpop.permute.xlu0 %8714
        %8716 = vrot.lane.b32.xlu0 %v8635, 85
        %v8717 = vpop.permute.xlu0 %8716
        %8718 = vrot.lane.b32.xlu0 %v8636, 85
        %v8719 = vpop.permute.xlu0 %8718
        %8720 = vrot.lane.b32.xlu0 %v8637, 85
        %v8721 = vpop.permute.xlu0 %8720
        %vm8722 = vcmask 695296
        %v8723 = vsel %vm8722, %v8667, %v8669
        %v8724 = vsel %vm8722, %v8669, %v8671
        %v8725 = vsel %vm8722, %v8671, %v8673
        %v8726 = vsel %vm8722, %v8673, %v8675
        %v8727 = vsel %vm8722, %v8675, %v8677
        %v8728 = vsel %vm8722, %v8677, %v8679
        %v8729 = vsel %vm8722, %v8681, %v8683
        %v8730 = vsel %vm8722, %v8683, %v8685
        %v8731 = vsel %vm8722, %v8685, %v8687
        %v8732 = vsel %vm8722, %v8687, %v8689
        %v8733 = vsel %vm8722, %v8689, %v8691
        %v8734 = vsel %vm8722, %v8691, %v8693
        %v8735 = vsel %vm8722, %v8695, %v8697
        %v8736 = vsel %vm8722, %v8697, %v8699
        %v8737 = vsel %vm8722, %v8699, %v8701
        %v8738 = vsel %vm8722, %v8701, %v8703
        %v8739 = vsel %vm8722, %v8703, %v8705
        %v8740 = vsel %vm8722, %v8705, %v8707
        %v8741 = vsel %vm8722, %v8709, %v8711
        %v8742 = vsel %vm8722, %v8711, %v8713
        %v8743 = vsel %vm8722, %v8713, %v8715
        %v8744 = vsel %vm8722, %v8715, %v8717
        %v8745 = vsel %vm8722, %v8717, %v8719
        %v8746 = vsel %vm8722, %v8719, %v8721
        %v8771 = vadd.f32 %v8570, %v8723
        %v8772 = vadd.f32 %v8571, %v8724
        %v8773 = vadd.f32 %v8572, %v8725
        %v8774 = vadd.f32 %v8573, %v8726
        %v8775 = vadd.f32 %v8574, %v8727
        %v8776 = vadd.f32 %v8575, %v8728
        %v8777 = vadd.f32 %v8576, %v8729
        %v8778 = vadd.f32 %v8577, %v8730
        %v8779 = vadd.f32 %v8578, %v8731
        %v8780 = vadd.f32 %v8579, %v8732
        %v8781 = vadd.f32 %v8580, %v8733
        %v8782 = vadd.f32 %v8581, %v8734
        %v8783 = vadd.f32 %v8582, %v8735
        %v8784 = vadd.f32 %v8583, %v8736
        %v8785 = vadd.f32 %v8584, %v8737
        %v8786 = vadd.f32 %v8585, %v8738
        %v8787 = vadd.f32 %v8586, %v8739
        %v8788 = vadd.f32 %v8587, %v8740
        %v8789 = vadd.f32 %v8588, %v8741
        %v8790 = vadd.f32 %v8589, %v8742
        %v8791 = vadd.f32 %v8590, %v8743
        %v8792 = vadd.f32 %v8591, %v8744
        %v8793 = vadd.f32 %v8592, %v8745
        %v8794 = vadd.f32 %v8593, %v8746
        %8795 = vset.pattern.permute.xlu0 44
        %8796 = vperm.xlu0 %8795, %v440
        %v8797 = vpop.permute.xlu0 %8796
        %8799 = vset.pattern.permute.xlu0 44
        %8800 = vperm.xlu0 %8799, %v441
        %v8801 = vpop.permute.xlu0 %8800
        %8803 = vset.pattern.permute.xlu0 44
        %8804 = vperm.xlu0 %8803, %v442
        %v8805 = vpop.permute.xlu0 %8804
        %8807 = vset.pattern.permute.xlu0 44
        %8808 = vperm.xlu0 %8807, %v443
        %v8809 = vpop.permute.xlu0 %8808
        %v8811 = vmul.f32 %v8797, %v426
        %v8812 = vmul.f32 %v8797, %v427
        %v8813 = vmul.f32 %v8797, %v428
        %v8814 = vmul.f32 %v8797, %v429
        %v8815 = vmul.f32 %v8797, %v430
        %v8816 = vmul.f32 %v8797, %v431
        %v8817 = vmul.f32 %v8797, %v432
        %v8818 = vmul.f32 %v8801, %v426
        %v8819 = vmul.f32 %v8801, %v427
        %v8820 = vmul.f32 %v8801, %v428
        %v8821 = vmul.f32 %v8801, %v429
        %v8822 = vmul.f32 %v8801, %v430
        %v8823 = vmul.f32 %v8801, %v431
        %v8824 = vmul.f32 %v8801, %v432
        %v8825 = vmul.f32 %v8805, %v433
        %v8826 = vmul.f32 %v8805, %v434
        %v8827 = vmul.f32 %v8805, %v435
        %v8828 = vmul.f32 %v8805, %v436
        %v8829 = vmul.f32 %v8805, %v437
        %v8830 = vmul.f32 %v8805, %v438
        %v8831 = vmul.f32 %v8805, %v439
        %v8832 = vmul.f32 %v8809, %v433
        %v8833 = vmul.f32 %v8809, %v434
        %v8834 = vmul.f32 %v8809, %v435
        %v8835 = vmul.f32 %v8809, %v436
        %v8836 = vmul.f32 %v8809, %v437
        %v8837 = vmul.f32 %v8809, %v438
        %v8838 = vmul.f32 %v8809, %v439
        %8867 = vrot.lane.b32.xlu0 %v8811, 84
        %v8868 = vpop.permute.xlu0 %8867
        %8869 = vrot.lane.b32.xlu0 %v8812, 84
        %v8870 = vpop.permute.xlu0 %8869
        %8871 = vrot.lane.b32.xlu0 %v8813, 84
        %v8872 = vpop.permute.xlu0 %8871
        %8873 = vrot.lane.b32.xlu0 %v8814, 84
        %v8874 = vpop.permute.xlu0 %8873
        %8875 = vrot.lane.b32.xlu0 %v8815, 84
        %v8876 = vpop.permute.xlu0 %8875
        %8877 = vrot.lane.b32.xlu0 %v8816, 84
        %v8878 = vpop.permute.xlu0 %8877
        %8879 = vrot.lane.b32.xlu0 %v8817, 84
        %v8880 = vpop.permute.xlu0 %8879
        %8881 = vrot.lane.b32.xlu0 %v8818, 84
        %v8882 = vpop.permute.xlu0 %8881
        %8883 = vrot.lane.b32.xlu0 %v8819, 84
        %v8884 = vpop.permute.xlu0 %8883
        %8885 = vrot.lane.b32.xlu0 %v8820, 84
        %v8886 = vpop.permute.xlu0 %8885
        %8887 = vrot.lane.b32.xlu0 %v8821, 84
        %v8888 = vpop.permute.xlu0 %8887
        %8889 = vrot.lane.b32.xlu0 %v8822, 84
        %v8890 = vpop.permute.xlu0 %8889
        %8891 = vrot.lane.b32.xlu0 %v8823, 84
        %v8892 = vpop.permute.xlu0 %8891
        %8893 = vrot.lane.b32.xlu0 %v8824, 84
        %v8894 = vpop.permute.xlu0 %8893
        %8895 = vrot.lane.b32.xlu0 %v8825, 84
        %v8896 = vpop.permute.xlu0 %8895
        %8897 = vrot.lane.b32.xlu0 %v8826, 84
        %v8898 = vpop.permute.xlu0 %8897
        %8899 = vrot.lane.b32.xlu0 %v8827, 84
        %v8900 = vpop.permute.xlu0 %8899
        %8901 = vrot.lane.b32.xlu0 %v8828, 84
        %v8902 = vpop.permute.xlu0 %8901
        %8903 = vrot.lane.b32.xlu0 %v8829, 84
        %v8904 = vpop.permute.xlu0 %8903
        %8905 = vrot.lane.b32.xlu0 %v8830, 84
        %v8906 = vpop.permute.xlu0 %8905
        %8907 = vrot.lane.b32.xlu0 %v8831, 84
        %v8908 = vpop.permute.xlu0 %8907
        %8909 = vrot.lane.b32.xlu0 %v8832, 84
        %v8910 = vpop.permute.xlu0 %8909
        %8911 = vrot.lane.b32.xlu0 %v8833, 84
        %v8912 = vpop.permute.xlu0 %8911
        %8913 = vrot.lane.b32.xlu0 %v8834, 84
        %v8914 = vpop.permute.xlu0 %8913
        %8915 = vrot.lane.b32.xlu0 %v8835, 84
        %v8916 = vpop.permute.xlu0 %8915
        %8917 = vrot.lane.b32.xlu0 %v8836, 84
        %v8918 = vpop.permute.xlu0 %8917
        %8919 = vrot.lane.b32.xlu0 %v8837, 84
        %v8920 = vpop.permute.xlu0 %8919
        %8921 = vrot.lane.b32.xlu0 %v8838, 84
        %v8922 = vpop.permute.xlu0 %8921
        %vm8923 = vcmask 687104
        %v8924 = vsel %vm8923, %v8868, %v8870
        %v8925 = vsel %vm8923, %v8870, %v8872
        %v8926 = vsel %vm8923, %v8872, %v8874
        %v8927 = vsel %vm8923, %v8874, %v8876
        %v8928 = vsel %vm8923, %v8876, %v8878
        %v8929 = vsel %vm8923, %v8878, %v8880
        %v8930 = vsel %vm8923, %v8882, %v8884
        %v8931 = vsel %vm8923, %v8884, %v8886
        %v8932 = vsel %vm8923, %v8886, %v8888
        %v8933 = vsel %vm8923, %v8888, %v8890
        %v8934 = vsel %vm8923, %v8890, %v8892
        %v8935 = vsel %vm8923, %v8892, %v8894
        %v8936 = vsel %vm8923, %v8896, %v8898
        %v8937 = vsel %vm8923, %v8898, %v8900
        %v8938 = vsel %vm8923, %v8900, %v8902
        %v8939 = vsel %vm8923, %v8902, %v8904
        %v8940 = vsel %vm8923, %v8904, %v8906
        %v8941 = vsel %vm8923, %v8906, %v8908
        %v8942 = vsel %vm8923, %v8910, %v8912
        %v8943 = vsel %vm8923, %v8912, %v8914
        %v8944 = vsel %vm8923, %v8914, %v8916
        %v8945 = vsel %vm8923, %v8916, %v8918
        %v8946 = vsel %vm8923, %v8918, %v8920
        %v8947 = vsel %vm8923, %v8920, %v8922
        %v8972 = vadd.f32 %v8771, %v8924
        %v8973 = vadd.f32 %v8772, %v8925
        %v8974 = vadd.f32 %v8773, %v8926
        %v8975 = vadd.f32 %v8774, %v8927
        %v8976 = vadd.f32 %v8775, %v8928
        %v8977 = vadd.f32 %v8776, %v8929
        %v8978 = vadd.f32 %v8777, %v8930
        %v8979 = vadd.f32 %v8778, %v8931
        %v8980 = vadd.f32 %v8779, %v8932
        %v8981 = vadd.f32 %v8780, %v8933
        %v8982 = vadd.f32 %v8781, %v8934
        %v8983 = vadd.f32 %v8782, %v8935
        %v8984 = vadd.f32 %v8783, %v8936
        %v8985 = vadd.f32 %v8784, %v8937
        %v8986 = vadd.f32 %v8785, %v8938
        %v8987 = vadd.f32 %v8786, %v8939
        %v8988 = vadd.f32 %v8787, %v8940
        %v8989 = vadd.f32 %v8788, %v8941
        %v8990 = vadd.f32 %v8789, %v8942
        %v8991 = vadd.f32 %v8790, %v8943
        %v8992 = vadd.f32 %v8791, %v8944
        %v8993 = vadd.f32 %v8792, %v8945
        %v8994 = vadd.f32 %v8793, %v8946
        %v8995 = vadd.f32 %v8794, %v8947
        %8996 = vset.pattern.permute.xlu0 45
        %8997 = vperm.xlu0 %8996, %v440
        %v8998 = vpop.permute.xlu0 %8997
        %9000 = vset.pattern.permute.xlu0 45
        %9001 = vperm.xlu0 %9000, %v441
        %v9002 = vpop.permute.xlu0 %9001
        %9004 = vset.pattern.permute.xlu0 45
        %9005 = vperm.xlu0 %9004, %v442
        %v9006 = vpop.permute.xlu0 %9005
        %9008 = vset.pattern.permute.xlu0 45
        %9009 = vperm.xlu0 %9008, %v443
        %v9010 = vpop.permute.xlu0 %9009
        %v9012 = vmul.f32 %v8998, %v426
        %v9013 = vmul.f32 %v8998, %v427
        %v9014 = vmul.f32 %v8998, %v428
        %v9015 = vmul.f32 %v8998, %v429
        %v9016 = vmul.f32 %v8998, %v430
        %v9017 = vmul.f32 %v8998, %v431
        %v9018 = vmul.f32 %v8998, %v432
        %v9019 = vmul.f32 %v9002, %v426
        %v9020 = vmul.f32 %v9002, %v427
        %v9021 = vmul.f32 %v9002, %v428
        %v9022 = vmul.f32 %v9002, %v429
        %v9023 = vmul.f32 %v9002, %v430
        %v9024 = vmul.f32 %v9002, %v431
        %v9025 = vmul.f32 %v9002, %v432
        %v9026 = vmul.f32 %v9006, %v433
        %v9027 = vmul.f32 %v9006, %v434
        %v9028 = vmul.f32 %v9006, %v435
        %v9029 = vmul.f32 %v9006, %v436
        %v9030 = vmul.f32 %v9006, %v437
        %v9031 = vmul.f32 %v9006, %v438
        %v9032 = vmul.f32 %v9006, %v439
        %v9033 = vmul.f32 %v9010, %v433
        %v9034 = vmul.f32 %v9010, %v434
        %v9035 = vmul.f32 %v9010, %v435
        %v9036 = vmul.f32 %v9010, %v436
        %v9037 = vmul.f32 %v9010, %v437
        %v9038 = vmul.f32 %v9010, %v438
        %v9039 = vmul.f32 %v9010, %v439
        %9068 = vrot.lane.b32.xlu0 %v9012, 83
        %v9069 = vpop.permute.xlu0 %9068
        %9070 = vrot.lane.b32.xlu0 %v9013, 83
        %v9071 = vpop.permute.xlu0 %9070
        %9072 = vrot.lane.b32.xlu0 %v9014, 83
        %v9073 = vpop.permute.xlu0 %9072
        %9074 = vrot.lane.b32.xlu0 %v9015, 83
        %v9075 = vpop.permute.xlu0 %9074
        %9076 = vrot.lane.b32.xlu0 %v9016, 83
        %v9077 = vpop.permute.xlu0 %9076
        %9078 = vrot.lane.b32.xlu0 %v9017, 83
        %v9079 = vpop.permute.xlu0 %9078
        %9080 = vrot.lane.b32.xlu0 %v9018, 83
        %v9081 = vpop.permute.xlu0 %9080
        %9082 = vrot.lane.b32.xlu0 %v9019, 83
        %v9083 = vpop.permute.xlu0 %9082
        %9084 = vrot.lane.b32.xlu0 %v9020, 83
        %v9085 = vpop.permute.xlu0 %9084
        %9086 = vrot.lane.b32.xlu0 %v9021, 83
        %v9087 = vpop.permute.xlu0 %9086
        %9088 = vrot.lane.b32.xlu0 %v9022, 83
        %v9089 = vpop.permute.xlu0 %9088
        %9090 = vrot.lane.b32.xlu0 %v9023, 83
        %v9091 = vpop.permute.xlu0 %9090
        %9092 = vrot.lane.b32.xlu0 %v9024, 83
        %v9093 = vpop.permute.xlu0 %9092
        %9094 = vrot.lane.b32.xlu0 %v9025, 83
        %v9095 = vpop.permute.xlu0 %9094
        %9096 = vrot.lane.b32.xlu0 %v9026, 83
        %v9097 = vpop.permute.xlu0 %9096
        %9098 = vrot.lane.b32.xlu0 %v9027, 83
        %v9099 = vpop.permute.xlu0 %9098
        %9100 = vrot.lane.b32.xlu0 %v9028, 83
        %v9101 = vpop.permute.xlu0 %9100
        %9102 = vrot.lane.b32.xlu0 %v9029, 83
        %v9103 = vpop.permute.xlu0 %9102
        %9104 = vrot.lane.b32.xlu0 %v9030, 83
        %v9105 = vpop.permute.xlu0 %9104
        %9106 = vrot.lane.b32.xlu0 %v9031, 83
        %v9107 = vpop.permute.xlu0 %9106
        %9108 = vrot.lane.b32.xlu0 %v9032, 83
        %v9109 = vpop.permute.xlu0 %9108
        %9110 = vrot.lane.b32.xlu0 %v9033, 83
        %v9111 = vpop.permute.xlu0 %9110
        %9112 = vrot.lane.b32.xlu0 %v9034, 83
        %v9113 = vpop.permute.xlu0 %9112
        %9114 = vrot.lane.b32.xlu0 %v9035, 83
        %v9115 = vpop.permute.xlu0 %9114
        %9116 = vrot.lane.b32.xlu0 %v9036, 83
        %v9117 = vpop.permute.xlu0 %9116
        %9118 = vrot.lane.b32.xlu0 %v9037, 83
        %v9119 = vpop.permute.xlu0 %9118
        %9120 = vrot.lane.b32.xlu0 %v9038, 83
        %v9121 = vpop.permute.xlu0 %9120
        %9122 = vrot.lane.b32.xlu0 %v9039, 83
        %v9123 = vpop.permute.xlu0 %9122
        %vm9124 = vcmask 678912
        %v9125 = vsel %vm9124, %v9069, %v9071
        %v9126 = vsel %vm9124, %v9071, %v9073
        %v9127 = vsel %vm9124, %v9073, %v9075
        %v9128 = vsel %vm9124, %v9075, %v9077
        %v9129 = vsel %vm9124, %v9077, %v9079
        %v9130 = vsel %vm9124, %v9079, %v9081
        %v9131 = vsel %vm9124, %v9083, %v9085
        %v9132 = vsel %vm9124, %v9085, %v9087
        %v9133 = vsel %vm9124, %v9087, %v9089
        %v9134 = vsel %vm9124, %v9089, %v9091
        %v9135 = vsel %vm9124, %v9091, %v9093
        %v9136 = vsel %vm9124, %v9093, %v9095
        %v9137 = vsel %vm9124, %v9097, %v9099
        %v9138 = vsel %vm9124, %v9099, %v9101
        %v9139 = vsel %vm9124, %v9101, %v9103
        %v9140 = vsel %vm9124, %v9103, %v9105
        %v9141 = vsel %vm9124, %v9105, %v9107
        %v9142 = vsel %vm9124, %v9107, %v9109
        %v9143 = vsel %vm9124, %v9111, %v9113
        %v9144 = vsel %vm9124, %v9113, %v9115
        %v9145 = vsel %vm9124, %v9115, %v9117
        %v9146 = vsel %vm9124, %v9117, %v9119
        %v9147 = vsel %vm9124, %v9119, %v9121
        %v9148 = vsel %vm9124, %v9121, %v9123
        %v9173 = vadd.f32 %v8972, %v9125
        %v9174 = vadd.f32 %v8973, %v9126
        %v9175 = vadd.f32 %v8974, %v9127
        %v9176 = vadd.f32 %v8975, %v9128
        %v9177 = vadd.f32 %v8976, %v9129
        %v9178 = vadd.f32 %v8977, %v9130
        %v9179 = vadd.f32 %v8978, %v9131
        %v9180 = vadd.f32 %v8979, %v9132
        %v9181 = vadd.f32 %v8980, %v9133
        %v9182 = vadd.f32 %v8981, %v9134
        %v9183 = vadd.f32 %v8982, %v9135
        %v9184 = vadd.f32 %v8983, %v9136
        %v9185 = vadd.f32 %v8984, %v9137
        %v9186 = vadd.f32 %v8985, %v9138
        %v9187 = vadd.f32 %v8986, %v9139
        %v9188 = vadd.f32 %v8987, %v9140
        %v9189 = vadd.f32 %v8988, %v9141
        %v9190 = vadd.f32 %v8989, %v9142
        %v9191 = vadd.f32 %v8990, %v9143
        %v9192 = vadd.f32 %v8991, %v9144
        %v9193 = vadd.f32 %v8992, %v9145
        %v9194 = vadd.f32 %v8993, %v9146
        %v9195 = vadd.f32 %v8994, %v9147
        %v9196 = vadd.f32 %v8995, %v9148
        %9197 = vset.pattern.permute.xlu0 46
        %9198 = vperm.xlu0 %9197, %v440
        %v9199 = vpop.permute.xlu0 %9198
        %9201 = vset.pattern.permute.xlu0 46
        %9202 = vperm.xlu0 %9201, %v441
        %v9203 = vpop.permute.xlu0 %9202
        %9205 = vset.pattern.permute.xlu0 46
        %9206 = vperm.xlu0 %9205, %v442
        %v9207 = vpop.permute.xlu0 %9206
        %9209 = vset.pattern.permute.xlu0 46
        %9210 = vperm.xlu0 %9209, %v443
        %v9211 = vpop.permute.xlu0 %9210
        %v9213 = vmul.f32 %v9199, %v426
        %v9214 = vmul.f32 %v9199, %v427
        %v9215 = vmul.f32 %v9199, %v428
        %v9216 = vmul.f32 %v9199, %v429
        %v9217 = vmul.f32 %v9199, %v430
        %v9218 = vmul.f32 %v9199, %v431
        %v9219 = vmul.f32 %v9199, %v432
        %v9220 = vmul.f32 %v9203, %v426
        %v9221 = vmul.f32 %v9203, %v427
        %v9222 = vmul.f32 %v9203, %v428
        %v9223 = vmul.f32 %v9203, %v429
        %v9224 = vmul.f32 %v9203, %v430
        %v9225 = vmul.f32 %v9203, %v431
        %v9226 = vmul.f32 %v9203, %v432
        %v9227 = vmul.f32 %v9207, %v433
        %v9228 = vmul.f32 %v9207, %v434
        %v9229 = vmul.f32 %v9207, %v435
        %v9230 = vmul.f32 %v9207, %v436
        %v9231 = vmul.f32 %v9207, %v437
        %v9232 = vmul.f32 %v9207, %v438
        %v9233 = vmul.f32 %v9207, %v439
        %v9234 = vmul.f32 %v9211, %v433
        %v9235 = vmul.f32 %v9211, %v434
        %v9236 = vmul.f32 %v9211, %v435
        %v9237 = vmul.f32 %v9211, %v436
        %v9238 = vmul.f32 %v9211, %v437
        %v9239 = vmul.f32 %v9211, %v438
        %v9240 = vmul.f32 %v9211, %v439
        %9269 = vrot.lane.b32.xlu0 %v9213, 82
        %v9270 = vpop.permute.xlu0 %9269
        %9271 = vrot.lane.b32.xlu0 %v9214, 82
        %v9272 = vpop.permute.xlu0 %9271
        %9273 = vrot.lane.b32.xlu0 %v9215, 82
        %v9274 = vpop.permute.xlu0 %9273
        %9275 = vrot.lane.b32.xlu0 %v9216, 82
        %v9276 = vpop.permute.xlu0 %9275
        %9277 = vrot.lane.b32.xlu0 %v9217, 82
        %v9278 = vpop.permute.xlu0 %9277
        %9279 = vrot.lane.b32.xlu0 %v9218, 82
        %v9280 = vpop.permute.xlu0 %9279
        %9281 = vrot.lane.b32.xlu0 %v9219, 82
        %v9282 = vpop.permute.xlu0 %9281
        %9283 = vrot.lane.b32.xlu0 %v9220, 82
        %v9284 = vpop.permute.xlu0 %9283
        %9285 = vrot.lane.b32.xlu0 %v9221, 82
        %v9286 = vpop.permute.xlu0 %9285
        %9287 = vrot.lane.b32.xlu0 %v9222, 82
        %v9288 = vpop.permute.xlu0 %9287
        %9289 = vrot.lane.b32.xlu0 %v9223, 82
        %v9290 = vpop.permute.xlu0 %9289
        %9291 = vrot.lane.b32.xlu0 %v9224, 82
        %v9292 = vpop.permute.xlu0 %9291
        %9293 = vrot.lane.b32.xlu0 %v9225, 82
        %v9294 = vpop.permute.xlu0 %9293
        %9295 = vrot.lane.b32.xlu0 %v9226, 82
        %v9296 = vpop.permute.xlu0 %9295
        %9297 = vrot.lane.b32.xlu0 %v9227, 82
        %v9298 = vpop.permute.xlu0 %9297
        %9299 = vrot.lane.b32.xlu0 %v9228, 82
        %v9300 = vpop.permute.xlu0 %9299
        %9301 = vrot.lane.b32.xlu0 %v9229, 82
        %v9302 = vpop.permute.xlu0 %9301
        %9303 = vrot.lane.b32.xlu0 %v9230, 82
        %v9304 = vpop.permute.xlu0 %9303
        %9305 = vrot.lane.b32.xlu0 %v9231, 82
        %v9306 = vpop.permute.xlu0 %9305
        %9307 = vrot.lane.b32.xlu0 %v9232, 82
        %v9308 = vpop.permute.xlu0 %9307
        %9309 = vrot.lane.b32.xlu0 %v9233, 82
        %v9310 = vpop.permute.xlu0 %9309
        %9311 = vrot.lane.b32.xlu0 %v9234, 82
        %v9312 = vpop.permute.xlu0 %9311
        %9313 = vrot.lane.b32.xlu0 %v9235, 82
        %v9314 = vpop.permute.xlu0 %9313
        %9315 = vrot.lane.b32.xlu0 %v9236, 82
        %v9316 = vpop.permute.xlu0 %9315
        %9317 = vrot.lane.b32.xlu0 %v9237, 82
        %v9318 = vpop.permute.xlu0 %9317
        %9319 = vrot.lane.b32.xlu0 %v9238, 82
        %v9320 = vpop.permute.xlu0 %9319
        %9321 = vrot.lane.b32.xlu0 %v9239, 82
        %v9322 = vpop.permute.xlu0 %9321
        %9323 = vrot.lane.b32.xlu0 %v9240, 82
        %v9324 = vpop.permute.xlu0 %9323
        %vm9325 = vcmask 670720
        %v9326 = vsel %vm9325, %v9270, %v9272
        %v9327 = vsel %vm9325, %v9272, %v9274
        %v9328 = vsel %vm9325, %v9274, %v9276
        %v9329 = vsel %vm9325, %v9276, %v9278
        %v9330 = vsel %vm9325, %v9278, %v9280
        %v9331 = vsel %vm9325, %v9280, %v9282
        %v9332 = vsel %vm9325, %v9284, %v9286
        %v9333 = vsel %vm9325, %v9286, %v9288
        %v9334 = vsel %vm9325, %v9288, %v9290
        %v9335 = vsel %vm9325, %v9290, %v9292
        %v9336 = vsel %vm9325, %v9292, %v9294
        %v9337 = vsel %vm9325, %v9294, %v9296
        %v9338 = vsel %vm9325, %v9298, %v9300
        %v9339 = vsel %vm9325, %v9300, %v9302
        %v9340 = vsel %vm9325, %v9302, %v9304
        %v9341 = vsel %vm9325, %v9304, %v9306
        %v9342 = vsel %vm9325, %v9306, %v9308
        %v9343 = vsel %vm9325, %v9308, %v9310
        %v9344 = vsel %vm9325, %v9312, %v9314
        %v9345 = vsel %vm9325, %v9314, %v9316
        %v9346 = vsel %vm9325, %v9316, %v9318
        %v9347 = vsel %vm9325, %v9318, %v9320
        %v9348 = vsel %vm9325, %v9320, %v9322
        %v9349 = vsel %vm9325, %v9322, %v9324
        %v9374 = vadd.f32 %v9173, %v9326
        %v9375 = vadd.f32 %v9174, %v9327
        %v9376 = vadd.f32 %v9175, %v9328
        %v9377 = vadd.f32 %v9176, %v9329
        %v9378 = vadd.f32 %v9177, %v9330
        %v9379 = vadd.f32 %v9178, %v9331
        %v9380 = vadd.f32 %v9179, %v9332
        %v9381 = vadd.f32 %v9180, %v9333
        %v9382 = vadd.f32 %v9181, %v9334
        %v9383 = vadd.f32 %v9182, %v9335
        %v9384 = vadd.f32 %v9183, %v9336
        %v9385 = vadd.f32 %v9184, %v9337
        %v9386 = vadd.f32 %v9185, %v9338
        %v9387 = vadd.f32 %v9186, %v9339
        %v9388 = vadd.f32 %v9187, %v9340
        %v9389 = vadd.f32 %v9188, %v9341
        %v9390 = vadd.f32 %v9189, %v9342
        %v9391 = vadd.f32 %v9190, %v9343
        %v9392 = vadd.f32 %v9191, %v9344
        %v9393 = vadd.f32 %v9192, %v9345
        %v9394 = vadd.f32 %v9193, %v9346
        %v9395 = vadd.f32 %v9194, %v9347
        %v9396 = vadd.f32 %v9195, %v9348
        %v9397 = vadd.f32 %v9196, %v9349
        %9398 = vset.pattern.permute.xlu0 47
        %9399 = vperm.xlu0 %9398, %v440
        %v9400 = vpop.permute.xlu0 %9399
        %9402 = vset.pattern.permute.xlu0 47
        %9403 = vperm.xlu0 %9402, %v441
        %v9404 = vpop.permute.xlu0 %9403
        %9406 = vset.pattern.permute.xlu0 47
        %9407 = vperm.xlu0 %9406, %v442
        %v9408 = vpop.permute.xlu0 %9407
        %9410 = vset.pattern.permute.xlu0 47
        %9411 = vperm.xlu0 %9410, %v443
        %v9412 = vpop.permute.xlu0 %9411
        %v9414 = vmul.f32 %v9400, %v426
        %v9415 = vmul.f32 %v9400, %v427
        %v9416 = vmul.f32 %v9400, %v428
        %v9417 = vmul.f32 %v9400, %v429
        %v9418 = vmul.f32 %v9400, %v430
        %v9419 = vmul.f32 %v9400, %v431
        %v9420 = vmul.f32 %v9400, %v432
        %v9421 = vmul.f32 %v9404, %v426
        %v9422 = vmul.f32 %v9404, %v427
        %v9423 = vmul.f32 %v9404, %v428
        %v9424 = vmul.f32 %v9404, %v429
        %v9425 = vmul.f32 %v9404, %v430
        %v9426 = vmul.f32 %v9404, %v431
        %v9427 = vmul.f32 %v9404, %v432
        %v9428 = vmul.f32 %v9408, %v433
        %v9429 = vmul.f32 %v9408, %v434
        %v9430 = vmul.f32 %v9408, %v435
        %v9431 = vmul.f32 %v9408, %v436
        %v9432 = vmul.f32 %v9408, %v437
        %v9433 = vmul.f32 %v9408, %v438
        %v9434 = vmul.f32 %v9408, %v439
        %v9435 = vmul.f32 %v9412, %v433
        %v9436 = vmul.f32 %v9412, %v434
        %v9437 = vmul.f32 %v9412, %v435
        %v9438 = vmul.f32 %v9412, %v436
        %v9439 = vmul.f32 %v9412, %v437
        %v9440 = vmul.f32 %v9412, %v438
        %v9441 = vmul.f32 %v9412, %v439
        %9470 = vrot.lane.b32.xlu0 %v9414, 81
        %v9471 = vpop.permute.xlu0 %9470
        %9472 = vrot.lane.b32.xlu0 %v9415, 81
        %v9473 = vpop.permute.xlu0 %9472
        %9474 = vrot.lane.b32.xlu0 %v9416, 81
        %v9475 = vpop.permute.xlu0 %9474
        %9476 = vrot.lane.b32.xlu0 %v9417, 81
        %v9477 = vpop.permute.xlu0 %9476
        %9478 = vrot.lane.b32.xlu0 %v9418, 81
        %v9479 = vpop.permute.xlu0 %9478
        %9480 = vrot.lane.b32.xlu0 %v9419, 81
        %v9481 = vpop.permute.xlu0 %9480
        %9482 = vrot.lane.b32.xlu0 %v9420, 81
        %v9483 = vpop.permute.xlu0 %9482
        %9484 = vrot.lane.b32.xlu0 %v9421, 81
        %v9485 = vpop.permute.xlu0 %9484
        %9486 = vrot.lane.b32.xlu0 %v9422, 81
        %v9487 = vpop.permute.xlu0 %9486
        %9488 = vrot.lane.b32.xlu0 %v9423, 81
        %v9489 = vpop.permute.xlu0 %9488
        %9490 = vrot.lane.b32.xlu0 %v9424, 81
        %v9491 = vpop.permute.xlu0 %9490
        %9492 = vrot.lane.b32.xlu0 %v9425, 81
        %v9493 = vpop.permute.xlu0 %9492
        %9494 = vrot.lane.b32.xlu0 %v9426, 81
        %v9495 = vpop.permute.xlu0 %9494
        %9496 = vrot.lane.b32.xlu0 %v9427, 81
        %v9497 = vpop.permute.xlu0 %9496
        %9498 = vrot.lane.b32.xlu0 %v9428, 81
        %v9499 = vpop.permute.xlu0 %9498
        %9500 = vrot.lane.b32.xlu0 %v9429, 81
        %v9501 = vpop.permute.xlu0 %9500
        %9502 = vrot.lane.b32.xlu0 %v9430, 81
        %v9503 = vpop.permute.xlu0 %9502
        %9504 = vrot.lane.b32.xlu0 %v9431, 81
        %v9505 = vpop.permute.xlu0 %9504
        %9506 = vrot.lane.b32.xlu0 %v9432, 81
        %v9507 = vpop.permute.xlu0 %9506
        %9508 = vrot.lane.b32.xlu0 %v9433, 81
        %v9509 = vpop.permute.xlu0 %9508
        %9510 = vrot.lane.b32.xlu0 %v9434, 81
        %v9511 = vpop.permute.xlu0 %9510
        %9512 = vrot.lane.b32.xlu0 %v9435, 81
        %v9513 = vpop.permute.xlu0 %9512
        %9514 = vrot.lane.b32.xlu0 %v9436, 81
        %v9515 = vpop.permute.xlu0 %9514
        %9516 = vrot.lane.b32.xlu0 %v9437, 81
        %v9517 = vpop.permute.xlu0 %9516
        %9518 = vrot.lane.b32.xlu0 %v9438, 81
        %v9519 = vpop.permute.xlu0 %9518
        %9520 = vrot.lane.b32.xlu0 %v9439, 81
        %v9521 = vpop.permute.xlu0 %9520
        %9522 = vrot.lane.b32.xlu0 %v9440, 81
        %v9523 = vpop.permute.xlu0 %9522
        %9524 = vrot.lane.b32.xlu0 %v9441, 81
        %v9525 = vpop.permute.xlu0 %9524
        %vm9526 = vcmask 662528
        %v9527 = vsel %vm9526, %v9471, %v9473
        %v9528 = vsel %vm9526, %v9473, %v9475
        %v9529 = vsel %vm9526, %v9475, %v9477
        %v9530 = vsel %vm9526, %v9477, %v9479
        %v9531 = vsel %vm9526, %v9479, %v9481
        %v9532 = vsel %vm9526, %v9481, %v9483
        %v9533 = vsel %vm9526, %v9485, %v9487
        %v9534 = vsel %vm9526, %v9487, %v9489
        %v9535 = vsel %vm9526, %v9489, %v9491
        %v9536 = vsel %vm9526, %v9491, %v9493
        %v9537 = vsel %vm9526, %v9493, %v9495
        %v9538 = vsel %vm9526, %v9495, %v9497
        %v9539 = vsel %vm9526, %v9499, %v9501
        %v9540 = vsel %vm9526, %v9501, %v9503
        %v9541 = vsel %vm9526, %v9503, %v9505
        %v9542 = vsel %vm9526, %v9505, %v9507
        %v9543 = vsel %vm9526, %v9507, %v9509
        %v9544 = vsel %vm9526, %v9509, %v9511
        %v9545 = vsel %vm9526, %v9513, %v9515
        %v9546 = vsel %vm9526, %v9515, %v9517
        %v9547 = vsel %vm9526, %v9517, %v9519
        %v9548 = vsel %vm9526, %v9519, %v9521
        %v9549 = vsel %vm9526, %v9521, %v9523
        %v9550 = vsel %vm9526, %v9523, %v9525
        %v9575 = vadd.f32 %v9374, %v9527
        %v9576 = vadd.f32 %v9375, %v9528
        %v9577 = vadd.f32 %v9376, %v9529
        %v9578 = vadd.f32 %v9377, %v9530
        %v9579 = vadd.f32 %v9378, %v9531
        %v9580 = vadd.f32 %v9379, %v9532
        %v9581 = vadd.f32 %v9380, %v9533
        %v9582 = vadd.f32 %v9381, %v9534
        %v9583 = vadd.f32 %v9382, %v9535
        %v9584 = vadd.f32 %v9383, %v9536
        %v9585 = vadd.f32 %v9384, %v9537
        %v9586 = vadd.f32 %v9385, %v9538
        %v9587 = vadd.f32 %v9386, %v9539
        %v9588 = vadd.f32 %v9387, %v9540
        %v9589 = vadd.f32 %v9388, %v9541
        %v9590 = vadd.f32 %v9389, %v9542
        %v9591 = vadd.f32 %v9390, %v9543
        %v9592 = vadd.f32 %v9391, %v9544
        %v9593 = vadd.f32 %v9392, %v9545
        %v9594 = vadd.f32 %v9393, %v9546
        %v9595 = vadd.f32 %v9394, %v9547
        %v9596 = vadd.f32 %v9395, %v9548
        %v9597 = vadd.f32 %v9396, %v9549
        %v9598 = vadd.f32 %v9397, %v9550
        %9599 = vset.pattern.permute.xlu0 48
        %9600 = vperm.xlu0 %9599, %v440
        %v9601 = vpop.permute.xlu0 %9600
        %9603 = vset.pattern.permute.xlu0 48
        %9604 = vperm.xlu0 %9603, %v441
        %v9605 = vpop.permute.xlu0 %9604
        %9607 = vset.pattern.permute.xlu0 48
        %9608 = vperm.xlu0 %9607, %v442
        %v9609 = vpop.permute.xlu0 %9608
        %9611 = vset.pattern.permute.xlu0 48
        %9612 = vperm.xlu0 %9611, %v443
        %v9613 = vpop.permute.xlu0 %9612
        %v9615 = vmul.f32 %v9601, %v426
        %v9616 = vmul.f32 %v9601, %v427
        %v9617 = vmul.f32 %v9601, %v428
        %v9618 = vmul.f32 %v9601, %v429
        %v9619 = vmul.f32 %v9601, %v430
        %v9620 = vmul.f32 %v9601, %v431
        %v9621 = vmul.f32 %v9601, %v432
        %v9622 = vmul.f32 %v9605, %v426
        %v9623 = vmul.f32 %v9605, %v427
        %v9624 = vmul.f32 %v9605, %v428
        %v9625 = vmul.f32 %v9605, %v429
        %v9626 = vmul.f32 %v9605, %v430
        %v9627 = vmul.f32 %v9605, %v431
        %v9628 = vmul.f32 %v9605, %v432
        %v9629 = vmul.f32 %v9609, %v433
        %v9630 = vmul.f32 %v9609, %v434
        %v9631 = vmul.f32 %v9609, %v435
        %v9632 = vmul.f32 %v9609, %v436
        %v9633 = vmul.f32 %v9609, %v437
        %v9634 = vmul.f32 %v9609, %v438
        %v9635 = vmul.f32 %v9609, %v439
        %v9636 = vmul.f32 %v9613, %v433
        %v9637 = vmul.f32 %v9613, %v434
        %v9638 = vmul.f32 %v9613, %v435
        %v9639 = vmul.f32 %v9613, %v436
        %v9640 = vmul.f32 %v9613, %v437
        %v9641 = vmul.f32 %v9613, %v438
        %v9642 = vmul.f32 %v9613, %v439
        %9671 = vrot.lane.b32.xlu0 %v9615, 80
        %v9672 = vpop.permute.xlu0 %9671
        %9673 = vrot.lane.b32.xlu0 %v9616, 80
        %v9674 = vpop.permute.xlu0 %9673
        %9675 = vrot.lane.b32.xlu0 %v9617, 80
        %v9676 = vpop.permute.xlu0 %9675
        %9677 = vrot.lane.b32.xlu0 %v9618, 80
        %v9678 = vpop.permute.xlu0 %9677
        %9679 = vrot.lane.b32.xlu0 %v9619, 80
        %v9680 = vpop.permute.xlu0 %9679
        %9681 = vrot.lane.b32.xlu0 %v9620, 80
        %v9682 = vpop.permute.xlu0 %9681
        %9683 = vrot.lane.b32.xlu0 %v9621, 80
        %v9684 = vpop.permute.xlu0 %9683
        %9685 = vrot.lane.b32.xlu0 %v9622, 80
        %v9686 = vpop.permute.xlu0 %9685
        %9687 = vrot.lane.b32.xlu0 %v9623, 80
        %v9688 = vpop.permute.xlu0 %9687
        %9689 = vrot.lane.b32.xlu0 %v9624, 80
        %v9690 = vpop.permute.xlu0 %9689
        %9691 = vrot.lane.b32.xlu0 %v9625, 80
        %v9692 = vpop.permute.xlu0 %9691
        %9693 = vrot.lane.b32.xlu0 %v9626, 80
        %v9694 = vpop.permute.xlu0 %9693
        %9695 = vrot.lane.b32.xlu0 %v9627, 80
        %v9696 = vpop.permute.xlu0 %9695
        %9697 = vrot.lane.b32.xlu0 %v9628, 80
        %v9698 = vpop.permute.xlu0 %9697
        %9699 = vrot.lane.b32.xlu0 %v9629, 80
        %v9700 = vpop.permute.xlu0 %9699
        %9701 = vrot.lane.b32.xlu0 %v9630, 80
        %v9702 = vpop.permute.xlu0 %9701
        %9703 = vrot.lane.b32.xlu0 %v9631, 80
        %v9704 = vpop.permute.xlu0 %9703
        %9705 = vrot.lane.b32.xlu0 %v9632, 80
        %v9706 = vpop.permute.xlu0 %9705
        %9707 = vrot.lane.b32.xlu0 %v9633, 80
        %v9708 = vpop.permute.xlu0 %9707
        %9709 = vrot.lane.b32.xlu0 %v9634, 80
        %v9710 = vpop.permute.xlu0 %9709
        %9711 = vrot.lane.b32.xlu0 %v9635, 80
        %v9712 = vpop.permute.xlu0 %9711
        %9713 = vrot.lane.b32.xlu0 %v9636, 80
        %v9714 = vpop.permute.xlu0 %9713
        %9715 = vrot.lane.b32.xlu0 %v9637, 80
        %v9716 = vpop.permute.xlu0 %9715
        %9717 = vrot.lane.b32.xlu0 %v9638, 80
        %v9718 = vpop.permute.xlu0 %9717
        %9719 = vrot.lane.b32.xlu0 %v9639, 80
        %v9720 = vpop.permute.xlu0 %9719
        %9721 = vrot.lane.b32.xlu0 %v9640, 80
        %v9722 = vpop.permute.xlu0 %9721
        %9723 = vrot.lane.b32.xlu0 %v9641, 80
        %v9724 = vpop.permute.xlu0 %9723
        %9725 = vrot.lane.b32.xlu0 %v9642, 80
        %v9726 = vpop.permute.xlu0 %9725
        %vm9727 = vcmask 654336
        %v9728 = vsel %vm9727, %v9672, %v9674
        %v9729 = vsel %vm9727, %v9674, %v9676
        %v9730 = vsel %vm9727, %v9676, %v9678
        %v9731 = vsel %vm9727, %v9678, %v9680
        %v9732 = vsel %vm9727, %v9680, %v9682
        %v9733 = vsel %vm9727, %v9682, %v9684
        %v9734 = vsel %vm9727, %v9686, %v9688
        %v9735 = vsel %vm9727, %v9688, %v9690
        %v9736 = vsel %vm9727, %v9690, %v9692
        %v9737 = vsel %vm9727, %v9692, %v9694
        %v9738 = vsel %vm9727, %v9694, %v9696
        %v9739 = vsel %vm9727, %v9696, %v9698
        %v9740 = vsel %vm9727, %v9700, %v9702
        %v9741 = vsel %vm9727, %v9702, %v9704
        %v9742 = vsel %vm9727, %v9704, %v9706
        %v9743 = vsel %vm9727, %v9706, %v9708
        %v9744 = vsel %vm9727, %v9708, %v9710
        %v9745 = vsel %vm9727, %v9710, %v9712
        %v9746 = vsel %vm9727, %v9714, %v9716
        %v9747 = vsel %vm9727, %v9716, %v9718
        %v9748 = vsel %vm9727, %v9718, %v9720
        %v9749 = vsel %vm9727, %v9720, %v9722
        %v9750 = vsel %vm9727, %v9722, %v9724
        %v9751 = vsel %vm9727, %v9724, %v9726
        %v9776 = vadd.f32 %v9575, %v9728
        %v9777 = vadd.f32 %v9576, %v9729
        %v9778 = vadd.f32 %v9577, %v9730
        %v9779 = vadd.f32 %v9578, %v9731
        %v9780 = vadd.f32 %v9579, %v9732
        %v9781 = vadd.f32 %v9580, %v9733
        %v9782 = vadd.f32 %v9581, %v9734
        %v9783 = vadd.f32 %v9582, %v9735
        %v9784 = vadd.f32 %v9583, %v9736
        %v9785 = vadd.f32 %v9584, %v9737
        %v9786 = vadd.f32 %v9585, %v9738
        %v9787 = vadd.f32 %v9586, %v9739
        %v9788 = vadd.f32 %v9587, %v9740
        %v9789 = vadd.f32 %v9588, %v9741
        %v9790 = vadd.f32 %v9589, %v9742
        %v9791 = vadd.f32 %v9590, %v9743
        %v9792 = vadd.f32 %v9591, %v9744
        %v9793 = vadd.f32 %v9592, %v9745
        %v9794 = vadd.f32 %v9593, %v9746
        %v9795 = vadd.f32 %v9594, %v9747
        %v9796 = vadd.f32 %v9595, %v9748
        %v9797 = vadd.f32 %v9596, %v9749
        %v9798 = vadd.f32 %v9597, %v9750
        %v9799 = vadd.f32 %v9598, %v9751
        %9800 = vset.pattern.permute.xlu0 49
        %9801 = vperm.xlu0 %9800, %v440
        %v9802 = vpop.permute.xlu0 %9801
        %9804 = vset.pattern.permute.xlu0 49
        %9805 = vperm.xlu0 %9804, %v441
        %v9806 = vpop.permute.xlu0 %9805
        %9808 = vset.pattern.permute.xlu0 49
        %9809 = vperm.xlu0 %9808, %v442
        %v9810 = vpop.permute.xlu0 %9809
        %9812 = vset.pattern.permute.xlu0 49
        %9813 = vperm.xlu0 %9812, %v443
        %v9814 = vpop.permute.xlu0 %9813
        %v9816 = vmul.f32 %v9802, %v426
        %v9817 = vmul.f32 %v9802, %v427
        %v9818 = vmul.f32 %v9802, %v428
        %v9819 = vmul.f32 %v9802, %v429
        %v9820 = vmul.f32 %v9802, %v430
        %v9821 = vmul.f32 %v9802, %v431
        %v9822 = vmul.f32 %v9802, %v432
        %v9823 = vmul.f32 %v9806, %v426
        %v9824 = vmul.f32 %v9806, %v427
        %v9825 = vmul.f32 %v9806, %v428
        %v9826 = vmul.f32 %v9806, %v429
        %v9827 = vmul.f32 %v9806, %v430
        %v9828 = vmul.f32 %v9806, %v431
        %v9829 = vmul.f32 %v9806, %v432
        %v9830 = vmul.f32 %v9810, %v433
        %v9831 = vmul.f32 %v9810, %v434
        %v9832 = vmul.f32 %v9810, %v435
        %v9833 = vmul.f32 %v9810, %v436
        %v9834 = vmul.f32 %v9810, %v437
        %v9835 = vmul.f32 %v9810, %v438
        %v9836 = vmul.f32 %v9810, %v439
        %v9837 = vmul.f32 %v9814, %v433
        %v9838 = vmul.f32 %v9814, %v434
        %v9839 = vmul.f32 %v9814, %v435
        %v9840 = vmul.f32 %v9814, %v436
        %v9841 = vmul.f32 %v9814, %v437
        %v9842 = vmul.f32 %v9814, %v438
        %v9843 = vmul.f32 %v9814, %v439
        %9872 = vrot.lane.b32.xlu0 %v9816, 79
        %v9873 = vpop.permute.xlu0 %9872
        %9874 = vrot.lane.b32.xlu0 %v9817, 79
        %v9875 = vpop.permute.xlu0 %9874
        %9876 = vrot.lane.b32.xlu0 %v9818, 79
        %v9877 = vpop.permute.xlu0 %9876
        %9878 = vrot.lane.b32.xlu0 %v9819, 79
        %v9879 = vpop.permute.xlu0 %9878
        %9880 = vrot.lane.b32.xlu0 %v9820, 79
        %v9881 = vpop.permute.xlu0 %9880
        %9882 = vrot.lane.b32.xlu0 %v9821, 79
        %v9883 = vpop.permute.xlu0 %9882
        %9884 = vrot.lane.b32.xlu0 %v9822, 79
        %v9885 = vpop.permute.xlu0 %9884
        %9886 = vrot.lane.b32.xlu0 %v9823, 79
        %v9887 = vpop.permute.xlu0 %9886
        %9888 = vrot.lane.b32.xlu0 %v9824, 79
        %v9889 = vpop.permute.xlu0 %9888
        %9890 = vrot.lane.b32.xlu0 %v9825, 79
        %v9891 = vpop.permute.xlu0 %9890
        %9892 = vrot.lane.b32.xlu0 %v9826, 79
        %v9893 = vpop.permute.xlu0 %9892
        %9894 = vrot.lane.b32.xlu0 %v9827, 79
        %v9895 = vpop.permute.xlu0 %9894
        %9896 = vrot.lane.b32.xlu0 %v9828, 79
        %v9897 = vpop.permute.xlu0 %9896
        %9898 = vrot.lane.b32.xlu0 %v9829, 79
        %v9899 = vpop.permute.xlu0 %9898
        %9900 = vrot.lane.b32.xlu0 %v9830, 79
        %v9901 = vpop.permute.xlu0 %9900
        %9902 = vrot.lane.b32.xlu0 %v9831, 79
        %v9903 = vpop.permute.xlu0 %9902
        %9904 = vrot.lane.b32.xlu0 %v9832, 79
        %v9905 = vpop.permute.xlu0 %9904
        %9906 = vrot.lane.b32.xlu0 %v9833, 79
        %v9907 = vpop.permute.xlu0 %9906
        %9908 = vrot.lane.b32.xlu0 %v9834, 79
        %v9909 = vpop.permute.xlu0 %9908
        %9910 = vrot.lane.b32.xlu0 %v9835, 79
        %v9911 = vpop.permute.xlu0 %9910
        %9912 = vrot.lane.b32.xlu0 %v9836, 79
        %v9913 = vpop.permute.xlu0 %9912
        %9914 = vrot.lane.b32.xlu0 %v9837, 79
        %v9915 = vpop.permute.xlu0 %9914
        %9916 = vrot.lane.b32.xlu0 %v9838, 79
        %v9917 = vpop.permute.xlu0 %9916
        %9918 = vrot.lane.b32.xlu0 %v9839, 79
        %v9919 = vpop.permute.xlu0 %9918
        %9920 = vrot.lane.b32.xlu0 %v9840, 79
        %v9921 = vpop.permute.xlu0 %9920
        %9922 = vrot.lane.b32.xlu0 %v9841, 79
        %v9923 = vpop.permute.xlu0 %9922
        %9924 = vrot.lane.b32.xlu0 %v9842, 79
        %v9925 = vpop.permute.xlu0 %9924
        %9926 = vrot.lane.b32.xlu0 %v9843, 79
        %v9927 = vpop.permute.xlu0 %9926
        %vm9928 = vcmask 646144
        %v9929 = vsel %vm9928, %v9873, %v9875
        %v9930 = vsel %vm9928, %v9875, %v9877
        %v9931 = vsel %vm9928, %v9877, %v9879
        %v9932 = vsel %vm9928, %v9879, %v9881
        %v9933 = vsel %vm9928, %v9881, %v9883
        %v9934 = vsel %vm9928, %v9883, %v9885
        %v9935 = vsel %vm9928, %v9887, %v9889
        %v9936 = vsel %vm9928, %v9889, %v9891
        %v9937 = vsel %vm9928, %v9891, %v9893
        %v9938 = vsel %vm9928, %v9893, %v9895
        %v9939 = vsel %vm9928, %v9895, %v9897
        %v9940 = vsel %vm9928, %v9897, %v9899
        %v9941 = vsel %vm9928, %v9901, %v9903
        %v9942 = vsel %vm9928, %v9903, %v9905
        %v9943 = vsel %vm9928, %v9905, %v9907
        %v9944 = vsel %vm9928, %v9907, %v9909
        %v9945 = vsel %vm9928, %v9909, %v9911
        %v9946 = vsel %vm9928, %v9911, %v9913
        %v9947 = vsel %vm9928, %v9915, %v9917
        %v9948 = vsel %vm9928, %v9917, %v9919
        %v9949 = vsel %vm9928, %v9919, %v9921
        %v9950 = vsel %vm9928, %v9921, %v9923
        %v9951 = vsel %vm9928, %v9923, %v9925
        %v9952 = vsel %vm9928, %v9925, %v9927
        %v9977 = vadd.f32 %v9776, %v9929
        %v9978 = vadd.f32 %v9777, %v9930
        %v9979 = vadd.f32 %v9778, %v9931
        %v9980 = vadd.f32 %v9779, %v9932
        %v9981 = vadd.f32 %v9780, %v9933
        %v9982 = vadd.f32 %v9781, %v9934
        %v9983 = vadd.f32 %v9782, %v9935
        %v9984 = vadd.f32 %v9783, %v9936
        %v9985 = vadd.f32 %v9784, %v9937
        %v9986 = vadd.f32 %v9785, %v9938
        %v9987 = vadd.f32 %v9786, %v9939
        %v9988 = vadd.f32 %v9787, %v9940
        %v9989 = vadd.f32 %v9788, %v9941
        %v9990 = vadd.f32 %v9789, %v9942
        %v9991 = vadd.f32 %v9790, %v9943
        %v9992 = vadd.f32 %v9791, %v9944
        %v9993 = vadd.f32 %v9792, %v9945
        %v9994 = vadd.f32 %v9793, %v9946
        %v9995 = vadd.f32 %v9794, %v9947
        %v9996 = vadd.f32 %v9795, %v9948
        %v9997 = vadd.f32 %v9796, %v9949
        %v9998 = vadd.f32 %v9797, %v9950
        %v9999 = vadd.f32 %v9798, %v9951
        %v10000 = vadd.f32 %v9799, %v9952
        %10001 = vset.pattern.permute.xlu0 50
        %10002 = vperm.xlu0 %10001, %v440
        %v10003 = vpop.permute.xlu0 %10002
        %10005 = vset.pattern.permute.xlu0 50
        %10006 = vperm.xlu0 %10005, %v441
        %v10007 = vpop.permute.xlu0 %10006
        %10009 = vset.pattern.permute.xlu0 50
        %10010 = vperm.xlu0 %10009, %v442
        %v10011 = vpop.permute.xlu0 %10010
        %10013 = vset.pattern.permute.xlu0 50
        %10014 = vperm.xlu0 %10013, %v443
        %v10015 = vpop.permute.xlu0 %10014
        %v10017 = vmul.f32 %v10003, %v426
        %v10018 = vmul.f32 %v10003, %v427
        %v10019 = vmul.f32 %v10003, %v428
        %v10020 = vmul.f32 %v10003, %v429
        %v10021 = vmul.f32 %v10003, %v430
        %v10022 = vmul.f32 %v10003, %v431
        %v10023 = vmul.f32 %v10003, %v432
        %v10024 = vmul.f32 %v10007, %v426
        %v10025 = vmul.f32 %v10007, %v427
        %v10026 = vmul.f32 %v10007, %v428
        %v10027 = vmul.f32 %v10007, %v429
        %v10028 = vmul.f32 %v10007, %v430
        %v10029 = vmul.f32 %v10007, %v431
        %v10030 = vmul.f32 %v10007, %v432
        %v10031 = vmul.f32 %v10011, %v433
        %v10032 = vmul.f32 %v10011, %v434
        %v10033 = vmul.f32 %v10011, %v435
        %v10034 = vmul.f32 %v10011, %v436
        %v10035 = vmul.f32 %v10011, %v437
        %v10036 = vmul.f32 %v10011, %v438
        %v10037 = vmul.f32 %v10011, %v439
        %v10038 = vmul.f32 %v10015, %v433
        %v10039 = vmul.f32 %v10015, %v434
        %v10040 = vmul.f32 %v10015, %v435
        %v10041 = vmul.f32 %v10015, %v436
        %v10042 = vmul.f32 %v10015, %v437
        %v10043 = vmul.f32 %v10015, %v438
        %v10044 = vmul.f32 %v10015, %v439
        %10073 = vrot.lane.b32.xlu0 %v10017, 78
        %v10074 = vpop.permute.xlu0 %10073
        %10075 = vrot.lane.b32.xlu0 %v10018, 78
        %v10076 = vpop.permute.xlu0 %10075
        %10077 = vrot.lane.b32.xlu0 %v10019, 78
        %v10078 = vpop.permute.xlu0 %10077
        %10079 = vrot.lane.b32.xlu0 %v10020, 78
        %v10080 = vpop.permute.xlu0 %10079
        %10081 = vrot.lane.b32.xlu0 %v10021, 78
        %v10082 = vpop.permute.xlu0 %10081
        %10083 = vrot.lane.b32.xlu0 %v10022, 78
        %v10084 = vpop.permute.xlu0 %10083
        %10085 = vrot.lane.b32.xlu0 %v10023, 78
        %v10086 = vpop.permute.xlu0 %10085
        %10087 = vrot.lane.b32.xlu0 %v10024, 78
        %v10088 = vpop.permute.xlu0 %10087
        %10089 = vrot.lane.b32.xlu0 %v10025, 78
        %v10090 = vpop.permute.xlu0 %10089
        %10091 = vrot.lane.b32.xlu0 %v10026, 78
        %v10092 = vpop.permute.xlu0 %10091
        %10093 = vrot.lane.b32.xlu0 %v10027, 78
        %v10094 = vpop.permute.xlu0 %10093
        %10095 = vrot.lane.b32.xlu0 %v10028, 78
        %v10096 = vpop.permute.xlu0 %10095
        %10097 = vrot.lane.b32.xlu0 %v10029, 78
        %v10098 = vpop.permute.xlu0 %10097
        %10099 = vrot.lane.b32.xlu0 %v10030, 78
        %v10100 = vpop.permute.xlu0 %10099
        %10101 = vrot.lane.b32.xlu0 %v10031, 78
        %v10102 = vpop.permute.xlu0 %10101
        %10103 = vrot.lane.b32.xlu0 %v10032, 78
        %v10104 = vpop.permute.xlu0 %10103
        %10105 = vrot.lane.b32.xlu0 %v10033, 78
        %v10106 = vpop.permute.xlu0 %10105
        %10107 = vrot.lane.b32.xlu0 %v10034, 78
        %v10108 = vpop.permute.xlu0 %10107
        %10109 = vrot.lane.b32.xlu0 %v10035, 78
        %v10110 = vpop.permute.xlu0 %10109
        %10111 = vrot.lane.b32.xlu0 %v10036, 78
        %v10112 = vpop.permute.xlu0 %10111
        %10113 = vrot.lane.b32.xlu0 %v10037, 78
        %v10114 = vpop.permute.xlu0 %10113
        %10115 = vrot.lane.b32.xlu0 %v10038, 78
        %v10116 = vpop.permute.xlu0 %10115
        %10117 = vrot.lane.b32.xlu0 %v10039, 78
        %v10118 = vpop.permute.xlu0 %10117
        %10119 = vrot.lane.b32.xlu0 %v10040, 78
        %v10120 = vpop.permute.xlu0 %10119
        %10121 = vrot.lane.b32.xlu0 %v10041, 78
        %v10122 = vpop.permute.xlu0 %10121
        %10123 = vrot.lane.b32.xlu0 %v10042, 78
        %v10124 = vpop.permute.xlu0 %10123
        %10125 = vrot.lane.b32.xlu0 %v10043, 78
        %v10126 = vpop.permute.xlu0 %10125
        %10127 = vrot.lane.b32.xlu0 %v10044, 78
        %v10128 = vpop.permute.xlu0 %10127
        %vm10129 = vcmask 637952
        %v10130 = vsel %vm10129, %v10074, %v10076
        %v10131 = vsel %vm10129, %v10076, %v10078
        %v10132 = vsel %vm10129, %v10078, %v10080
        %v10133 = vsel %vm10129, %v10080, %v10082
        %v10134 = vsel %vm10129, %v10082, %v10084
        %v10135 = vsel %vm10129, %v10084, %v10086
        %v10136 = vsel %vm10129, %v10088, %v10090
        %v10137 = vsel %vm10129, %v10090, %v10092
        %v10138 = vsel %vm10129, %v10092, %v10094
        %v10139 = vsel %vm10129, %v10094, %v10096
        %v10140 = vsel %vm10129, %v10096, %v10098
        %v10141 = vsel %vm10129, %v10098, %v10100
        %v10142 = vsel %vm10129, %v10102, %v10104
        %v10143 = vsel %vm10129, %v10104, %v10106
        %v10144 = vsel %vm10129, %v10106, %v10108
        %v10145 = vsel %vm10129, %v10108, %v10110
        %v10146 = vsel %vm10129, %v10110, %v10112
        %v10147 = vsel %vm10129, %v10112, %v10114
        %v10148 = vsel %vm10129, %v10116, %v10118
        %v10149 = vsel %vm10129, %v10118, %v10120
        %v10150 = vsel %vm10129, %v10120, %v10122
        %v10151 = vsel %vm10129, %v10122, %v10124
        %v10152 = vsel %vm10129, %v10124, %v10126
        %v10153 = vsel %vm10129, %v10126, %v10128
        %v10178 = vadd.f32 %v9977, %v10130
        %v10179 = vadd.f32 %v9978, %v10131
        %v10180 = vadd.f32 %v9979, %v10132
        %v10181 = vadd.f32 %v9980, %v10133
        %v10182 = vadd.f32 %v9981, %v10134
        %v10183 = vadd.f32 %v9982, %v10135
        %v10184 = vadd.f32 %v9983, %v10136
        %v10185 = vadd.f32 %v9984, %v10137
        %v10186 = vadd.f32 %v9985, %v10138
        %v10187 = vadd.f32 %v9986, %v10139
        %v10188 = vadd.f32 %v9987, %v10140
        %v10189 = vadd.f32 %v9988, %v10141
        %v10190 = vadd.f32 %v9989, %v10142
        %v10191 = vadd.f32 %v9990, %v10143
        %v10192 = vadd.f32 %v9991, %v10144
        %v10193 = vadd.f32 %v9992, %v10145
        %v10194 = vadd.f32 %v9993, %v10146
        %v10195 = vadd.f32 %v9994, %v10147
        %v10196 = vadd.f32 %v9995, %v10148
        %v10197 = vadd.f32 %v9996, %v10149
        %v10198 = vadd.f32 %v9997, %v10150
        %v10199 = vadd.f32 %v9998, %v10151
        %v10200 = vadd.f32 %v9999, %v10152
        %v10201 = vadd.f32 %v10000, %v10153
        %v10202 = vld [vmem:[%s2] sm:$0xff]
        %v10203 = vld [vmem:[%s2 + $0x8] sm:$0xff]
        %v10204 = vld [vmem:[%s2 + $0x10] sm:$0xff]
        %v10205 = vld [vmem:[%s2 + $0x18] sm:$0xff]
        %v10206 = vld [vmem:[%s3] sm:$0xff]
        %v10207 = vld [vmem:[%s3 + $0x8] sm:$0xff]
        %v10208 = vld [vmem:[%s3 + $0x10] sm:$0xff]
        %v10209 = vld [vmem:[%s3 + $0x18] sm:$0xff]
        %10211 = vset.pattern.permute.xlu0 0
        %10212 = vperm.xlu0 %10211, %v10202
        %v10213 = vpop.permute.xlu0 %10212
        %10216 = vset.pattern.permute.xlu0 0
        %10217 = vperm.xlu0 %10216, %v10203
        %v10218 = vpop.permute.xlu0 %10217
        %v10220 = vmul.f32 %v10213, %v10178
        %v10221 = vmul.f32 %v10213, %v10179
        %v10222 = vmul.f32 %v10213, %v10180
        %v10223 = vmul.f32 %v10213, %v10181
        %v10224 = vmul.f32 %v10213, %v10182
        %v10225 = vmul.f32 %v10213, %v10183
        %v10226 = vmul.f32 %v10218, %v10184
        %v10227 = vmul.f32 %v10218, %v10185
        %v10228 = vmul.f32 %v10218, %v10186
        %v10229 = vmul.f32 %v10218, %v10187
        %v10230 = vmul.f32 %v10218, %v10188
        %v10231 = vmul.f32 %v10218, %v10189
        %10233 = vset.pattern.permute.xlu0 0
        %10234 = vperm.xlu0 %10233, %v10206
        %v10235 = vpop.permute.xlu0 %10234
        %10238 = vset.pattern.permute.xlu0 0
        %10239 = vperm.xlu0 %10238, %v10207
        %v10240 = vpop.permute.xlu0 %10239
        %v10242 = vmul.f32 %v10235, %v10190
        %v10243 = vmul.f32 %v10235, %v10191
        %v10244 = vmul.f32 %v10235, %v10192
        %v10245 = vmul.f32 %v10235, %v10193
        %v10246 = vmul.f32 %v10235, %v10194
        %v10247 = vmul.f32 %v10235, %v10195
        %v10248 = vmul.f32 %v10240, %v10196
        %v10249 = vmul.f32 %v10240, %v10197
        %v10250 = vmul.f32 %v10240, %v10198
        %v10251 = vmul.f32 %v10240, %v10199
        %v10252 = vmul.f32 %v10240, %v10200
        %v10253 = vmul.f32 %v10240, %v10201
        %v10254 = vadd.f32 %v10220, %v10242
        %v10255 = vadd.f32 %v10221, %v10243
        %v10256 = vadd.f32 %v10222, %v10244
        %v10257 = vadd.f32 %v10223, %v10245
        %v10258 = vadd.f32 %v10224, %v10246
        %v10259 = vadd.f32 %v10225, %v10247
        %v10260 = vadd.f32 %v10226, %v10248
        %v10261 = vadd.f32 %v10227, %v10249
        %v10262 = vadd.f32 %v10228, %v10250
        %v10263 = vadd.f32 %v10229, %v10251
        %v10264 = vadd.f32 %v10230, %v10252
        %v10265 = vadd.f32 %v10231, %v10253
        %10267 = vset.pattern.permute.xlu0 0
        %10268 = vperm.xlu0 %10267, %v10204
        %v10269 = vpop.permute.xlu0 %10268
        %10272 = vset.pattern.permute.xlu0 0
        %10273 = vperm.xlu0 %10272, %v10205
        %v10274 = vpop.permute.xlu0 %10273
        %v10276 = vmul.f32 %v10269, %v10178
        %v10277 = vmul.f32 %v10269, %v10179
        %v10278 = vmul.f32 %v10269, %v10180
        %v10279 = vmul.f32 %v10269, %v10181
        %v10280 = vmul.f32 %v10269, %v10182
        %v10281 = vmul.f32 %v10269, %v10183
        %v10282 = vmul.f32 %v10274, %v10184
        %v10283 = vmul.f32 %v10274, %v10185
        %v10284 = vmul.f32 %v10274, %v10186
        %v10285 = vmul.f32 %v10274, %v10187
        %v10286 = vmul.f32 %v10274, %v10188
        %v10287 = vmul.f32 %v10274, %v10189
        %10289 = vset.pattern.permute.xlu0 0
        %10290 = vperm.xlu0 %10289, %v10208
        %v10291 = vpop.permute.xlu0 %10290
        %10294 = vset.pattern.permute.xlu0 0
        %10295 = vperm.xlu0 %10294, %v10209
        %v10296 = vpop.permute.xlu0 %10295
        %v10298 = vmul.f32 %v10291, %v10190
        %v10299 = vmul.f32 %v10291, %v10191
        %v10300 = vmul.f32 %v10291, %v10192
        %v10301 = vmul.f32 %v10291, %v10193
        %v10302 = vmul.f32 %v10291, %v10194
        %v10303 = vmul.f32 %v10291, %v10195
        %v10304 = vmul.f32 %v10296, %v10196
        %v10305 = vmul.f32 %v10296, %v10197
        %v10306 = vmul.f32 %v10296, %v10198
        %v10307 = vmul.f32 %v10296, %v10199
        %v10308 = vmul.f32 %v10296, %v10200
        %v10309 = vmul.f32 %v10296, %v10201
        %v10310 = vadd.f32 %v10276, %v10298
        %v10311 = vadd.f32 %v10277, %v10299
        %v10312 = vadd.f32 %v10278, %v10300
        %v10313 = vadd.f32 %v10279, %v10301
        %v10314 = vadd.f32 %v10280, %v10302
        %v10315 = vadd.f32 %v10281, %v10303
        %v10316 = vadd.f32 %v10282, %v10304
        %v10317 = vadd.f32 %v10283, %v10305
        %v10318 = vadd.f32 %v10284, %v10306
        %v10319 = vadd.f32 %v10285, %v10307
        %v10320 = vadd.f32 %v10286, %v10308
        %v10321 = vadd.f32 %v10287, %v10309
        %v10322 = vld [vmem:[%s4] sm:$0xff]
        %v10323 = vld [vmem:[%s4 + $0x8] sm:$0xff]
        %v10324 = vld [vmem:[%s4 + $0x10] sm:$0xff]
        %v10325 = vld [vmem:[%s4 + $0x18] sm:$0xff]
        %10327 = vset.pattern.permute.xlu0 0
        %10328 = vperm.xlu0 %10327, %v10322
        %v10329 = vpop.permute.xlu0 %10328
        %10332 = vset.pattern.permute.xlu0 0
        %10333 = vperm.xlu0 %10332, %v10323
        %v10334 = vpop.permute.xlu0 %10333
        %10337 = vset.pattern.permute.xlu0 0
        %10338 = vperm.xlu0 %10337, %v10324
        %v10339 = vpop.permute.xlu0 %10338
        %10342 = vset.pattern.permute.xlu0 0
        %10343 = vperm.xlu0 %10342, %v10325
        %v10344 = vpop.permute.xlu0 %10343
        %v10346 = vadd.f32 %v10254, %v10329
        %v10347 = vadd.f32 %v10255, %v10329
        %v10348 = vadd.f32 %v10256, %v10329
        %v10349 = vadd.f32 %v10257, %v10329
        %v10350 = vadd.f32 %v10258, %v10329
        %v10351 = vadd.f32 %v10259, %v10329
        %v10352 = vadd.f32 %v10260, %v10334
        %v10353 = vadd.f32 %v10261, %v10334
        %v10354 = vadd.f32 %v10262, %v10334
        %v10355 = vadd.f32 %v10263, %v10334
        %v10356 = vadd.f32 %v10264, %v10334
        %v10357 = vadd.f32 %v10265, %v10334
        %v10358 = vadd.f32 %v10310, %v10339
        %v10359 = vadd.f32 %v10311, %v10339
        %v10360 = vadd.f32 %v10312, %v10339
        %v10361 = vadd.f32 %v10313, %v10339
        %v10362 = vadd.f32 %v10314, %v10339
        %v10363 = vadd.f32 %v10315, %v10339
        %v10364 = vadd.f32 %v10316, %v10344
        %v10365 = vadd.f32 %v10317, %v10344
        %v10366 = vadd.f32 %v10318, %v10344
        %v10367 = vadd.f32 %v10319, %v10344
        %v10368 = vadd.f32 %v10320, %v10344
        %v10369 = vadd.f32 %v10321, %v10344
        %vm10370 = vcmp.gt.f32.partialorder %v10346, 0.0
        %vm10371 = vcmp.gt.f32.partialorder %v10347, 0.0
        %vm10372 = vcmp.gt.f32.partialorder %v10348, 0.0
        %vm10373 = vcmp.gt.f32.partialorder %v10349, 0.0
        %vm10374 = vcmp.gt.f32.partialorder %v10350, 0.0
        %vm10375 = vcmp.gt.f32.partialorder %v10351, 0.0
        %vm10376 = vcmp.gt.f32.partialorder %v10352, 0.0
        %vm10377 = vcmp.gt.f32.partialorder %v10353, 0.0
        %vm10378 = vcmp.gt.f32.partialorder %v10354, 0.0
        %vm10379 = vcmp.gt.f32.partialorder %v10355, 0.0
        %vm10380 = vcmp.gt.f32.partialorder %v10356, 0.0
        %vm10381 = vcmp.gt.f32.partialorder %v10357, 0.0
        %vm10382 = vcmp.gt.f32.partialorder %v10358, 0.0
        %vm10383 = vcmp.gt.f32.partialorder %v10359, 0.0
        %vm10384 = vcmp.gt.f32.partialorder %v10360, 0.0
        %vm10385 = vcmp.gt.f32.partialorder %v10361, 0.0
        %vm10386 = vcmp.gt.f32.partialorder %v10362, 0.0
        %vm10387 = vcmp.gt.f32.partialorder %v10363, 0.0
        %vm10388 = vcmp.gt.f32.partialorder %v10364, 0.0
        %vm10389 = vcmp.gt.f32.partialorder %v10365, 0.0
        %vm10390 = vcmp.gt.f32.partialorder %v10366, 0.0
        %vm10391 = vcmp.gt.f32.partialorder %v10367, 0.0
        %vm10392 = vcmp.gt.f32.partialorder %v10368, 0.0
        %vm10393 = vcmp.gt.f32.partialorder %v10369, 0.0
        %v10394 = vmin.f32 %v10346, 0.0
        %v10395 = vmin.f32 %v10347, 0.0
        %v10396 = vmin.f32 %v10348, 0.0
        %v10397 = vmin.f32 %v10349, 0.0
        %v10398 = vmin.f32 %v10350, 0.0
        %v10399 = vmin.f32 %v10351, 0.0
        %v10400 = vmin.f32 %v10352, 0.0
        %v10401 = vmin.f32 %v10353, 0.0
        %v10402 = vmin.f32 %v10354, 0.0
        %v10403 = vmin.f32 %v10355, 0.0
        %v10404 = vmin.f32 %v10356, 0.0
        %v10405 = vmin.f32 %v10357, 0.0
        %v10406 = vmin.f32 %v10358, 0.0
        %v10407 = vmin.f32 %v10359, 0.0
        %v10408 = vmin.f32 %v10360, 0.0
        %v10409 = vmin.f32 %v10361, 0.0
        %v10410 = vmin.f32 %v10362, 0.0
        %v10411 = vmin.f32 %v10363, 0.0
        %v10412 = vmin.f32 %v10364, 0.0
        %v10413 = vmin.f32 %v10365, 0.0
        %v10414 = vmin.f32 %v10366, 0.0
        %v10415 = vmin.f32 %v10367, 0.0
        %v10416 = vmin.f32 %v10368, 0.0
        %v10417 = vmin.f32 %v10369, 0.0
        %v10418 = vmul.f32 %v10394, 1.442695
        %v10419 = vpow.pop %v10418
        %v10420 = vmul.f32 %v10395, 1.442695
        %v10421 = vpow.pop %v10420
        %v10422 = vmul.f32 %v10396, 1.442695
        %v10423 = vpow.pop %v10422
        %v10424 = vmul.f32 %v10397, 1.442695
        %v10425 = vpow.pop %v10424
        %v10426 = vmul.f32 %v10398, 1.442695
        %v10427 = vpow.pop %v10426
        %v10428 = vmul.f32 %v10399, 1.442695
        %v10429 = vpow.pop %v10428
        %v10430 = vmul.f32 %v10400, 1.442695
        %v10431 = vpow.pop %v10430
        %v10432 = vmul.f32 %v10401, 1.442695
        %v10433 = vpow.pop %v10432
        %v10434 = vmul.f32 %v10402, 1.442695
        %v10435 = vpow.pop %v10434
        %v10436 = vmul.f32 %v10403, 1.442695
        %v10437 = vpow.pop %v10436
        %v10438 = vmul.f32 %v10404, 1.442695
        %v10439 = vpow.pop %v10438
        %v10440 = vmul.f32 %v10405, 1.442695
        %v10441 = vpow.pop %v10440
        %v10442 = vmul.f32 %v10406, 1.442695
        %v10443 = vpow.pop %v10442
        %v10444 = vmul.f32 %v10407, 1.442695
        %v10445 = vpow.pop %v10444
        %v10446 = vmul.f32 %v10408, 1.442695
        %v10447 = vpow.pop %v10446
        %v10448 = vmul.f32 %v10409, 1.442695
        %v10449 = vpow.pop %v10448
        %v10450 = vmul.f32 %v10410, 1.442695
        %v10451 = vpow.pop %v10450
        %v10452 = vmul.f32 %v10411, 1.442695
        %v10453 = vpow.pop %v10452
        %v10454 = vmul.f32 %v10412, 1.442695
        %v10455 = vpow.pop %v10454
        %v10456 = vmul.f32 %v10413, 1.442695
        %v10457 = vpow.pop %v10456
        %v10458 = vmul.f32 %v10414, 1.442695
        %v10459 = vpow.pop %v10458
        %v10460 = vmul.f32 %v10415, 1.442695
        %v10461 = vpow.pop %v10460
        %v10462 = vmul.f32 %v10416, 1.442695
        %v10463 = vpow.pop %v10462
        %v10464 = vmul.f32 %v10417, 1.442695
        %v10465 = vpow.pop %v10464
        %v10466 = vsub.f32 %v10419, 1.0
        %v10467 = vsub.f32 %v10421, 1.0
        %v10468 = vsub.f32 %v10423, 1.0
        %v10469 = vsub.f32 %v10425, 1.0
        %v10470 = vsub.f32 %v10427, 1.0
        %v10471 = vsub.f32 %v10429, 1.0
        %v10472 = vsub.f32 %v10431, 1.0
        %v10473 = vsub.f32 %v10433, 1.0
        %v10474 = vsub.f32 %v10435, 1.0
        %v10475 = vsub.f32 %v10437, 1.0
        %v10476 = vsub.f32 %v10439, 1.0
        %v10477 = vsub.f32 %v10441, 1.0
        %v10478 = vsub.f32 %v10443, 1.0
        %v10479 = vsub.f32 %v10445, 1.0
        %v10480 = vsub.f32 %v10447, 1.0
        %v10481 = vsub.f32 %v10449, 1.0
        %v10482 = vsub.f32 %v10451, 1.0
        %v10483 = vsub.f32 %v10453, 1.0
        %v10484 = vsub.f32 %v10455, 1.0
        %v10485 = vsub.f32 %v10457, 1.0
        %v10486 = vsub.f32 %v10459, 1.0
        %v10487 = vsub.f32 %v10461, 1.0
        %v10488 = vsub.f32 %v10463, 1.0
        %v10489 = vsub.f32 %v10465, 1.0
        %v10490 = vsel %vm10370, %v10346, %v10466
        %v10491 = vsel %vm10371, %v10347, %v10467
        %v10492 = vsel %vm10372, %v10348, %v10468
        %v10493 = vsel %vm10373, %v10349, %v10469
        %v10494 = vsel %vm10374, %v10350, %v10470
        %v10495 = vsel %vm10375, %v10351, %v10471
        %v10496 = vsel %vm10376, %v10352, %v10472
        %v10497 = vsel %vm10377, %v10353, %v10473
        %v10498 = vsel %vm10378, %v10354, %v10474
        %v10499 = vsel %vm10379, %v10355, %v10475
        %v10500 = vsel %vm10380, %v10356, %v10476
        %v10501 = vsel %vm10381, %v10357, %v10477
        %v10502 = vsel %vm10382, %v10358, %v10478
        %v10503 = vsel %vm10383, %v10359, %v10479
        %v10504 = vsel %vm10384, %v10360, %v10480
        %v10505 = vsel %vm10385, %v10361, %v10481
        %v10506 = vsel %vm10386, %v10362, %v10482
        %v10507 = vsel %vm10387, %v10363, %v10483
        %v10508 = vsel %vm10388, %v10364, %v10484
        %v10509 = vsel %vm10389, %v10365, %v10485
        %v10510 = vsel %vm10390, %v10366, %v10486
        %v10511 = vsel %vm10391, %v10367, %v10487
        %v10512 = vsel %vm10392, %v10368, %v10488
        %v10513 = vsel %vm10393, %v10369, %v10489
        %v10514 = vpack.c.bf16 %v10496, %v10490
        %v10515 = vpack.c.bf16 %v10497, %v10491
        %v10516 = vpack.c.bf16 %v10498, %v10492
        %v10517 = vpack.c.bf16 %v10499, %v10493
        %v10518 = vpack.c.bf16 %v10500, %v10494
        %v10519 = vpack.c.bf16 %v10501, %v10495
        %v10520 = vpack.c.bf16 %v10508, %v10502
        %v10521 = vpack.c.bf16 %v10509, %v10503
        %v10522 = vpack.c.bf16 %v10510, %v10504
        %v10523 = vpack.c.bf16 %v10511, %v10505
        %v10524 = vpack.c.bf16 %v10512, %v10506
        %v10525 = vpack.c.bf16 %v10513, %v10507
        %v10526 = vld [vmem:[%s5] sm:$0xff]
        %v10527 = vld [vmem:[%s5 + $0x8] sm:$0xff]
        %v10528 = vld [vmem:[%s5 + $0x10] sm:$0xff]
        %v10529 = vld [vmem:[%s5 + $0x18] sm:$0xff]
        %v10530 = vld [vmem:[%s5 + $0x20] sm:$0xff]
        %v10531 = vld [vmem:[%s5 + $0x28] sm:$0xff]
        %v10532 = vld [vmem:[%s5 + $0x30] sm:$0xff]
        %v10533 = vld [vmem:[%s5 + $0x38] sm:$0xff]
        %v10534 = vld [vmem:[%s5 + $0x40] sm:$0xff]
        %v10535 = vld [vmem:[%s5 + $0x48] sm:$0xff]
        %v10536 = vld [vmem:[%s5 + $0x50] sm:$0xff]
        %v10537 = vld [vmem:[%s5 + $0x58] sm:$0xff]
        %v10538 = vld [vmem:[%s5 + $0x60] sm:$0xff]
        %v10539 = vld [vmem:[%s5 + $0x68] sm:$0xff]
        %v10540 = vld [vmem:[%s5 + $0x70] sm:$0xff]
        %v10541 = vld [vmem:[%s5 + $0x78] sm:$0xff]
        %v10542 = vld [vmem:[%s5 + $0x80] sm:$0xff]
        %v10543 = vld [vmem:[%s5 + $0x88] sm:$0xff]
        %v10544 = vld [vmem:[%s5 + $0x90] sm:$0xff]
        %v10545 = vld [vmem:[%s5 + $0x98] sm:$0xff]
        %v10546 = vld [vmem:[%s5 + $0xa0] sm:$0xff]
        %v10547 = vld [vmem:[%s5 + $0xa8] sm:$0xff]
        %v10548 = vld [vmem:[%s5 + $0xb0] sm:$0xff]
        %v10549 = vld [vmem:[%s5 + $0xb8] sm:$0xff]
        %v10550 = vld [vmem:[%s5 + $0xc0] sm:$0xff]
        %v10551 = vld [vmem:[%s5 + $0xc8] sm:$0xff]
        %v10552 = vld [vmem:[%s5 + $0xd0] sm:$0xff]
        %v10553 = vld [vmem:[%s5 + $0xd8] sm:$0xff]
        %v10554 = vld [vmem:[%s5 + $0xe0] sm:$0xff]
        %v10555 = vld [vmem:[%s5 + $0xe8] sm:$0xff]
        %v10556 = vld [vmem:[%s5 + $0xf0] sm:$0xff]
        %v10557 = vld [vmem:[%s5 + $0xf8] sm:$0xff]
        %v10558 = vld [vmem:[%s5 + $0x100] sm:$0xff]
        %v10559 = vld [vmem:[%s5 + $0x108] sm:$0xff]
        %v10560 = vld [vmem:[%s5 + $0x110] sm:$0xff]
        %v10561 = vld [vmem:[%s5 + $0x118] sm:$0xff]
        %v10562 = vld [vmem:[%s5 + $0x120] sm:$0xff]
        %v10563 = vld [vmem:[%s5 + $0x128] sm:$0xff]
        %v10564 = vld [vmem:[%s5 + $0x130] sm:$0xff]
        %v10565 = vld [vmem:[%s5 + $0x138] sm:$0xff]
        %v10566 = vld [vmem:[%s5 + $0x140] sm:$0xff]
        %v10567 = vld [vmem:[%s5 + $0x148] sm:$0xff]
        %v10568 = vld [vmem:[%s5 + $0x150] sm:$0xff]
        %v10569 = vld [vmem:[%s5 + $0x158] sm:$0xff]
        %v10570 = vld [vmem:[%s5 + $0x160] sm:$0xff]
        %v10571 = vld [vmem:[%s5 + $0x168] sm:$0xff]
        %v10572 = vld [vmem:[%s5 + $0x170] sm:$0xff]
        %v10573 = vld [vmem:[%s5 + $0x178] sm:$0xff]
        %v10574 = vld [vmem:[%s5 + $0x180] sm:$0xff]
        %v10575 = vld [vmem:[%s5 + $0x188] sm:$0xff]
        %v10576 = vld [vmem:[%s5 + $0x190] sm:$0xff]
        %v10577 = vld [vmem:[%s5 + $0x198] sm:$0xff]
        %v10578 = vld [vmem:[%s5 + $0x1a0] sm:$0xff]
        %v10579 = vld [vmem:[%s5 + $0x1a8] sm:$0xff]
        %v10580 = vld [vmem:[%s5 + $0x1b0] sm:$0xff]
        %v10581 = vld [vmem:[%s5 + $0x1b8] sm:$0xff]
        %v10582 = vld [vmem:[%s5 + $0x1c0] sm:$0xff]
        %v10583 = vld [vmem:[%s5 + $0x1c8] sm:$0xff]
        %v10584 = vld [vmem:[%s5 + $0x1d0] sm:$0xff]
        %v10585 = vld [vmem:[%s5 + $0x1d8] sm:$0xff]
        %v10586 = vld [vmem:[%s5 + $0x1e0] sm:$0xff]
        %v10587 = vld [vmem:[%s5 + $0x1e8] sm:$0xff]
        %v10588 = vld [vmem:[%s5 + $0x1f0] sm:$0xff]
        %v10589 = vld [vmem:[%s5 + $0x1f8] sm:$0xff]
        %v10590 = vld [vmem:[%s5 + $0x200] sm:$0xff]
        %v10591 = vld [vmem:[%s5 + $0x208] sm:$0xff]
        %v10592 = vld [vmem:[%s5 + $0x210] sm:$0xff]
        %v10593 = vld [vmem:[%s5 + $0x218] sm:$0xff]
        %v10594 = vld [vmem:[%s5 + $0x220] sm:$0xff]
        %v10595 = vld [vmem:[%s5 + $0x228] sm:$0xff]
        %v10596 = vld [vmem:[%s5 + $0x230] sm:$0xff]
        %v10597 = vld [vmem:[%s5 + $0x238] sm:$0xff]
        %v10598 = vld [vmem:[%s5 + $0x240] sm:$0xff]
        %v10599 = vld [vmem:[%s5 + $0x248] sm:$0xff]
        %v10600 = vld [vmem:[%s5 + $0x250] sm:$0xff]
        %v10601 = vld [vmem:[%s5 + $0x258] sm:$0xff]
        %v10602 = vld [vmem:[%s5 + $0x260] sm:$0xff]
        %v10603 = vld [vmem:[%s5 + $0x268] sm:$0xff]
        %v10604 = vld [vmem:[%s5 + $0x270] sm:$0xff]
        %v10605 = vld [vmem:[%s5 + $0x278] sm:$0xff]
        %v10606 = vld [vmem:[%s5 + $0x280] sm:$0xff]
        %v10607 = vld [vmem:[%s5 + $0x288] sm:$0xff]
        %v10608 = vld [vmem:[%s5 + $0x290] sm:$0xff]
        %v10609 = vld [vmem:[%s5 + $0x298] sm:$0xff]
        %v10610 = vld [vmem:[%s5 + $0x2a0] sm:$0xff]
        %v10611 = vld [vmem:[%s5 + $0x2a8] sm:$0xff]
        %v10612 = vld [vmem:[%s5 + $0x2b0] sm:$0xff]
        %v10613 = vld [vmem:[%s5 + $0x2b8] sm:$0xff]
        %v10614 = vld [vmem:[%s5 + $0x2c0] sm:$0xff]
        %v10615 = vld [vmem:[%s5 + $0x2c8] sm:$0xff]
        %v10616 = vld [vmem:[%s5 + $0x2d0] sm:$0xff]
        %v10617 = vld [vmem:[%s5 + $0x2d8] sm:$0xff]
        %v10618 = vld [vmem:[%s5 + $0x2e0] sm:$0xff]
        %v10619 = vld [vmem:[%s5 + $0x2e8] sm:$0x33]
        %v10714 = vunpack.c.l.b16 %v10526
        %v10715 = vunpack.c.h.b16 %v10526
        %v10716 = vunpack.c.l.b16 %v10527
        %v10717 = vunpack.c.h.b16 %v10527
        %v10718 = vunpack.c.l.b16 %v10528
        %v10719 = vunpack.c.h.b16 %v10528
        %v10720 = vunpack.c.l.b16 %v10529
        %v10721 = vunpack.c.h.b16 %v10529
        %v10722 = vunpack.c.l.b16 %v10530
        %v10723 = vunpack.c.h.b16 %v10530
        %v10724 = vunpack.c.l.b16 %v10531
        %v10725 = vunpack.c.h.b16 %v10531
        %v10726 = vunpack.c.l.b16 %v10532
        %v10727 = vunpack.c.h.b16 %v10532
        %v10728 = vunpack.c.l.b16 %v10533
        %v10729 = vunpack.c.h.b16 %v10533
        %v10730 = vunpack.c.l.b16 %v10534
        %v10731 = vunpack.c.h.b16 %v10534
        %v10732 = vunpack.c.l.b16 %v10535
        %v10733 = vunpack.c.h.b16 %v10535
        %v10734 = vunpack.c.l.b16 %v10536
        %v10735 = vunpack.c.h.b16 %v10536
        %v10736 = vunpack.c.l.b16 %v10537
        %v10737 = vunpack.c.h.b16 %v10537
        %v10738 = vunpack.c.l.b16 %v10538
        %v10739 = vunpack.c.h.b16 %v10538
        %v10740 = vunpack.c.l.b16 %v10539
        %v10741 = vunpack.c.h.b16 %v10539
        %v10742 = vunpack.c.l.b16 %v10540
        %v10743 = vunpack.c.h.b16 %v10540
        %v10744 = vunpack.c.l.b16 %v10541
        %v10745 = vunpack.c.h.b16 %v10541
        %v10746 = vunpack.c.l.b16 %v10542
        %v10747 = vunpack.c.h.b16 %v10542
        %v10748 = vunpack.c.l.b16 %v10543
        %v10749 = vunpack.c.h.b16 %v10543
        %v10750 = vunpack.c.l.b16 %v10544
        %v10751 = vunpack.c.h.b16 %v10544
        %v10752 = vunpack.c.l.b16 %v10545
        %v10753 = vunpack.c.h.b16 %v10545
        %v10754 = vunpack.c.l.b16 %v10546
        %v10755 = vunpack.c.h.b16 %v10546
        %v10756 = vunpack.c.l.b16 %v10547
        %v10757 = vunpack.c.h.b16 %v10547
        %v10758 = vunpack.c.l.b16 %v10548
        %v10759 = vunpack.c.h.b16 %v10548
        %v10760 = vunpack.c.l.b16 %v10549
        %v10761 = vunpack.c.h.b16 %v10549
        %v10762 = vunpack.c.l.b16 %v10550
        %v10763 = vunpack.c.h.b16 %v10550
        %v10764 = vunpack.c.l.b16 %v10551
        %v10765 = vunpack.c.h.b16 %v10551
        %v10766 = vunpack.c.l.b16 %v10552
        %v10767 = vunpack.c.h.b16 %v10552
        %v10768 = vunpack.c.l.b16 %v10553
        %v10769 = vunpack.c.h.b16 %v10553
        %v10770 = vunpack.c.l.b16 %v10554
        %v10771 = vunpack.c.h.b16 %v10554
        %v10772 = vunpack.c.l.b16 %v10555
        %v10773 = vunpack.c.h.b16 %v10555
        %v10774 = vunpack.c.l.b16 %v10556
        %v10775 = vunpack.c.h.b16 %v10556
        %v10776 = vunpack.c.l.b16 %v10557
        %v10777 = vunpack.c.h.b16 %v10557
        %v10778 = vunpack.c.l.b16 %v10558
        %v10779 = vunpack.c.h.b16 %v10558
        %v10780 = vunpack.c.l.b16 %v10559
        %v10781 = vunpack.c.h.b16 %v10559
        %v10782 = vunpack.c.l.b16 %v10560
        %v10783 = vunpack.c.h.b16 %v10560
        %v10784 = vunpack.c.l.b16 %v10561
        %v10785 = vunpack.c.h.b16 %v10561
        %v10786 = vunpack.c.l.b16 %v10562
        %v10787 = vunpack.c.h.b16 %v10562
        %v10788 = vunpack.c.l.b16 %v10563
        %v10789 = vunpack.c.h.b16 %v10563
        %v10790 = vunpack.c.l.b16 %v10564
        %v10791 = vunpack.c.h.b16 %v10564
        %v10792 = vunpack.c.l.b16 %v10565
        %v10793 = vunpack.c.h.b16 %v10565
        %v10794 = vunpack.c.l.b16 %v10566
        %v10795 = vunpack.c.h.b16 %v10566
        %v10796 = vunpack.c.l.b16 %v10567
        %v10797 = vunpack.c.h.b16 %v10567
        %v10798 = vunpack.c.l.b16 %v10568
        %v10799 = vunpack.c.h.b16 %v10568
        %v10800 = vunpack.c.l.b16 %v10569
        %v10801 = vunpack.c.h.b16 %v10569
        %v10802 = vunpack.c.l.b16 %v10570
        %v10803 = vunpack.c.h.b16 %v10570
        %v10804 = vunpack.c.l.b16 %v10571
        %v10805 = vunpack.c.h.b16 %v10571
        %v10806 = vunpack.c.l.b16 %v10572
        %v10807 = vunpack.c.h.b16 %v10572
        %v10808 = vunpack.c.l.b16 %v10573
        %v10809 = vunpack.c.h.b16 %v10573
        %v10810 = vunpack.c.l.b16 %v10574
        %v10811 = vunpack.c.h.b16 %v10574
        %v10812 = vunpack.c.l.b16 %v10575
        %v10813 = vunpack.c.h.b16 %v10575
        %v10814 = vunpack.c.l.b16 %v10576
        %v10815 = vunpack.c.h.b16 %v10576
        %v10816 = vunpack.c.l.b16 %v10577
        %v10817 = vunpack.c.h.b16 %v10577
        %v10818 = vunpack.c.l.b16 %v10578
        %v10819 = vunpack.c.h.b16 %v10578
        %v10820 = vunpack.c.l.b16 %v10579
        %v10821 = vunpack.c.h.b16 %v10579
        %v10822 = vunpack.c.l.b16 %v10580
        %v10823 = vunpack.c.h.b16 %v10580
        %v10824 = vunpack.c.l.b16 %v10581
        %v10825 = vunpack.c.h.b16 %v10581
        %v10826 = vunpack.c.l.b16 %v10582
        %v10827 = vunpack.c.h.b16 %v10582
        %v10828 = vunpack.c.l.b16 %v10583
        %v10829 = vunpack.c.h.b16 %v10583
        %v10830 = vunpack.c.l.b16 %v10584
        %v10831 = vunpack.c.h.b16 %v10584
        %v10832 = vunpack.c.l.b16 %v10585
        %v10833 = vunpack.c.h.b16 %v10585
        %v10834 = vunpack.c.l.b16 %v10586
        %v10835 = vunpack.c.h.b16 %v10586
        %v10836 = vunpack.c.l.b16 %v10587
        %v10837 = vunpack.c.h.b16 %v10587
        %v10838 = vunpack.c.l.b16 %v10588
        %v10839 = vunpack.c.h.b16 %v10588
        %v10840 = vunpack.c.l.b16 %v10589
        %v10841 = vunpack.c.h.b16 %v10589
        %v10842 = vunpack.c.l.b16 %v10590
        %v10843 = vunpack.c.h.b16 %v10590
        %v10844 = vunpack.c.l.b16 %v10591
        %v10845 = vunpack.c.h.b16 %v10591
        %v10846 = vunpack.c.l.b16 %v10592
        %v10847 = vunpack.c.h.b16 %v10592
        %v10848 = vunpack.c.l.b16 %v10593
        %v10849 = vunpack.c.h.b16 %v10593
        %v10850 = vunpack.c.l.b16 %v10594
        %v10851 = vunpack.c.h.b16 %v10594
        %v10852 = vunpack.c.l.b16 %v10595
        %v10853 = vunpack.c.h.b16 %v10595
        %v10854 = vunpack.c.l.b16 %v10596
        %v10855 = vunpack.c.h.b16 %v10596
        %v10856 = vunpack.c.l.b16 %v10597
        %v10857 = vunpack.c.h.b16 %v10597
        %v10858 = vunpack.c.l.b16 %v10598
        %v10859 = vunpack.c.h.b16 %v10598
        %v10860 = vunpack.c.l.b16 %v10599
        %v10861 = vunpack.c.h.b16 %v10599
        %v10862 = vunpack.c.l.b16 %v10600
        %v10863 = vunpack.c.h.b16 %v10600
        %v10864 = vunpack.c.l.b16 %v10601
        %v10865 = vunpack.c.h.b16 %v10601
        %v10866 = vunpack.c.l.b16 %v10602
        %v10867 = vunpack.c.h.b16 %v10602
        %v10868 = vunpack.c.l.b16 %v10603
        %v10869 = vunpack.c.h.b16 %v10603
        %v10870 = vunpack.c.l.b16 %v10604
        %v10871 = vunpack.c.h.b16 %v10604
        %v10872 = vunpack.c.l.b16 %v10605
        %v10873 = vunpack.c.h.b16 %v10605
        %v10874 = vunpack.c.l.b16 %v10606
        %v10875 = vunpack.c.h.b16 %v10606
        %v10876 = vunpack.c.l.b16 %v10607
        %v10877 = vunpack.c.h.b16 %v10607
        %v10878 = vunpack.c.l.b16 %v10608
        %v10879 = vunpack.c.h.b16 %v10608
        %v10880 = vunpack.c.l.b16 %v10609
        %v10881 = vunpack.c.h.b16 %v10609
        %v10882 = vunpack.c.l.b16 %v10610
        %v10883 = vunpack.c.h.b16 %v10610
        %v10884 = vunpack.c.l.b16 %v10611
        %v10885 = vunpack.c.h.b16 %v10611
        %v10886 = vunpack.c.l.b16 %v10612
        %v10887 = vunpack.c.h.b16 %v10612
        %v10888 = vunpack.c.l.b16 %v10613
        %v10889 = vunpack.c.h.b16 %v10613
        %v10890 = vunpack.c.l.b16 %v10614
        %v10891 = vunpack.c.h.b16 %v10614
        %v10892 = vunpack.c.l.b16 %v10615
        %v10893 = vunpack.c.h.b16 %v10615
        %v10894 = vunpack.c.l.b16 %v10616
        %v10895 = vunpack.c.h.b16 %v10616
        %v10896 = vunpack.c.l.b16 %v10617
        %v10897 = vunpack.c.h.b16 %v10617
        %v10898 = vunpack.c.l.b16 %v10618
        %v10899 = vunpack.c.h.b16 %v10618
        %v10900 = vunpack.c.l.b16 %v10619
        %v10901 = vunpack.c.h.b16 %v10619
        %v10902 = vpack.c.b16 %v10716, %v10714
        %v10903 = vpack.c.b16 %v10717, %v10715
        %v10904 = vpack.c.b16 %v10720, %v10718
        %v10905 = vpack.c.b16 %v10721, %v10719
        %v10906 = vpack.c.b16 %v10724, %v10722
        %v10907 = vpack.c.b16 %v10725, %v10723
        %v10908 = vpack.c.b16 %v10728, %v10726
        %v10909 = vpack.c.b16 %v10729, %v10727
        %v10910 = vpack.c.b16 %v10732, %v10730
        %v10911 = vpack.c.b16 %v10733, %v10731
        %v10912 = vpack.c.b16 %v10736, %v10734
        %v10913 = vpack.c.b16 %v10737, %v10735
        %v10914 = vpack.c.b16 %v10740, %v10738
        %v10915 = vpack.c.b16 %v10741, %v10739
        %v10916 = vpack.c.b16 %v10744, %v10742
        %v10917 = vpack.c.b16 %v10745, %v10743
        %v10918 = vpack.c.b16 %v10748, %v10746
        %v10919 = vpack.c.b16 %v10749, %v10747
        %v10920 = vpack.c.b16 %v10752, %v10750
        %v10921 = vpack.c.b16 %v10753, %v10751
        %v10922 = vpack.c.b16 %v10756, %v10754
        %v10923 = vpack.c.b16 %v10757, %v10755
        %v10924 = vpack.c.b16 %v10760, %v10758
        %v10925 = vpack.c.b16 %v10761, %v10759
        %v10926 = vpack.c.b16 %v10764, %v10762
        %v10927 = vpack.c.b16 %v10765, %v10763
        %v10928 = vpack.c.b16 %v10768, %v10766
        %v10929 = vpack.c.b16 %v10769, %v10767
        %v10930 = vpack.c.b16 %v10772, %v10770
        %v10931 = vpack.c.b16 %v10773, %v10771
        %v10932 = vpack.c.b16 %v10776, %v10774
        %v10933 = vpack.c.b16 %v10777, %v10775
        %v10934 = vpack.c.b16 %v10780, %v10778
        %v10935 = vpack.c.b16 %v10781, %v10779
        %v10936 = vpack.c.b16 %v10784, %v10782
        %v10937 = vpack.c.b16 %v10785, %v10783
        %v10938 = vpack.c.b16 %v10788, %v10786
        %v10939 = vpack.c.b16 %v10789, %v10787
        %v10940 = vpack.c.b16 %v10792, %v10790
        %v10941 = vpack.c.b16 %v10793, %v10791
        %v10942 = vpack.c.b16 %v10796, %v10794
        %v10943 = vpack.c.b16 %v10797, %v10795
        %v10944 = vpack.c.b16 %v10800, %v10798
        %v10945 = vpack.c.b16 %v10801, %v10799
        %v10946 = vpack.c.b16 %v10804, %v10802
        %v10947 = vpack.c.b16 %v10805, %v10803
        %v10948 = vpack.c.b16 %v10808, %v10806
        %v10949 = vpack.c.b16 %v10809, %v10807
        %v10950 = vpack.c.b16 %v10812, %v10810
        %v10951 = vpack.c.b16 %v10813, %v10811
        %v10952 = vpack.c.b16 %v10816, %v10814
        %v10953 = vpack.c.b16 %v10817, %v10815
        %v10954 = vpack.c.b16 %v10820, %v10818
        %v10955 = vpack.c.b16 %v10821, %v10819
        %v10956 = vpack.c.b16 %v10824, %v10822
        %v10957 = vpack.c.b16 %v10825, %v10823
        %v10958 = vpack.c.b16 %v10828, %v10826
        %v10959 = vpack.c.b16 %v10829, %v10827
        %v10960 = vpack.c.b16 %v10832, %v10830
        %v10961 = vpack.c.b16 %v10833, %v10831
        %v10962 = vpack.c.b16 %v10836, %v10834
        %v10963 = vpack.c.b16 %v10837, %v10835
        %v10964 = vpack.c.b16 %v10840, %v10838
        %v10965 = vpack.c.b16 %v10841, %v10839
        %v10966 = vpack.c.b16 %v10844, %v10842
        %v10967 = vpack.c.b16 %v10845, %v10843
        %v10968 = vpack.c.b16 %v10848, %v10846
        %v10969 = vpack.c.b16 %v10849, %v10847
        %v10970 = vpack.c.b16 %v10852, %v10850
        %v10971 = vpack.c.b16 %v10853, %v10851
        %v10972 = vpack.c.b16 %v10856, %v10854
        %v10973 = vpack.c.b16 %v10857, %v10855
        %v10974 = vpack.c.b16 %v10860, %v10858
        %v10975 = vpack.c.b16 %v10861, %v10859
        %v10976 = vpack.c.b16 %v10864, %v10862
        %v10977 = vpack.c.b16 %v10865, %v10863
        %v10978 = vpack.c.b16 %v10868, %v10866
        %v10979 = vpack.c.b16 %v10869, %v10867
        %v10980 = vpack.c.b16 %v10872, %v10870
        %v10981 = vpack.c.b16 %v10873, %v10871
        %v10982 = vpack.c.b16 %v10876, %v10874
        %v10983 = vpack.c.b16 %v10877, %v10875
        %v10984 = vpack.c.b16 %v10880, %v10878
        %v10985 = vpack.c.b16 %v10881, %v10879
        %v10986 = vpack.c.b16 %v10884, %v10882
        %v10987 = vpack.c.b16 %v10885, %v10883
        %v10988 = vpack.c.b16 %v10888, %v10886
        %v10989 = vpack.c.b16 %v10889, %v10887
        %v10990 = vpack.c.b16 %v10892, %v10890
        %v10991 = vpack.c.b16 %v10893, %v10891
        %v10992 = vpack.c.b16 %v10896, %v10894
        %v10993 = vpack.c.b16 %v10897, %v10895
        %v10994 = vpack.c.b16 %v10900, %v10898
        %v10995 = vpack.c.b16 %v10901, %v10899
        %v11089 = vsel %vm4099, %v10519, 0
        %v11092 = vsel %vm4099, %v10525, 0
        %vm11094 = vcmask 1045504
        %v11096 = vsel %vm11094, %v10994, 0
        %v11099 = vsel %vm11094, %v10995, 0
        %11101 = vmatpush.bf16.msra.mxu0 %v10916
        %11102 = vmatpush.bf16.msra.mxu0 %v10914
        %11103 = vmatpush.bf16.msra.mxu0 %v10912
        %11104 = vmatpush.bf16.msra.mxu0 %v10910
        %11105 = vmatpush.bf16.msra.mxu0 %v10908
        %11106 = vmatpush.bf16.msra.mxu0 %v10906
        %11107 = vmatpush.bf16.msra.mxu0 %v10904
        %11108 = vmatpush.bf16.msra.mxu0 %v10902
        %11109 = vmatmul.bf16.gmra.mxu0 %v10514
        %v11110 = vpop.f32.mrf.mxu0
        %v11111 = vadd.f32 0.0, %v11110
        %v11112 = vpop.f32.mrf.mxu0
        %v11113 = vadd.f32 0.0, %v11112
        %11114 = vmatmul.bf16.gmra.mxu0 %v10520
        %v11115 = vpop.f32.mrf.mxu0
        %v11116 = vadd.f32 0.0, %v11115
        %v11117 = vpop.f32.mrf.mxu0
        %v11118 = vadd.f32 0.0, %v11117
        %11119 = vdwg.mxu0
        %11120 = vmatpush.bf16.msra.mxu0 %v10932
        %11121 = vmatpush.bf16.msra.mxu0 %v10930
        %11122 = vmatpush.bf16.msra.mxu0 %v10928
        %11123 = vmatpush.bf16.msra.mxu0 %v10926
        %11124 = vmatpush.bf16.msra.mxu0 %v10924
        %11125 = vmatpush.bf16.msra.mxu0 %v10922
        %11126 = vmatpush.bf16.msra.mxu0 %v10920
        %11127 = vmatpush.bf16.msra.mxu0 %v10918
        %11128 = vmatmul.bf16.gmra.mxu0 %v10515
        %v11129 = vpop.f32.mrf.mxu0
        %v11130 = vadd.f32 %v11111, %v11129
        %v11131 = vpop.f32.mrf.mxu0
        %v11132 = vadd.f32 %v11113, %v11131
        %11133 = vmatmul.bf16.gmra.mxu0 %v10521
        %v11134 = vpop.f32.mrf.mxu0
        %v11135 = vadd.f32 %v11116, %v11134
        %v11136 = vpop.f32.mrf.mxu0
        %v11137 = vadd.f32 %v11118, %v11136
        %11138 = vdwg.mxu0
        %11139 = vmatpush.bf16.msra.mxu0 %v10948
        %11140 = vmatpush.bf16.msra.mxu0 %v10946
        %11141 = vmatpush.bf16.msra.mxu0 %v10944
        %11142 = vmatpush.bf16.msra.mxu0 %v10942
        %11143 = vmatpush.bf16.msra.mxu0 %v10940
        %11144 = vmatpush.bf16.msra.mxu0 %v10938
        %11145 = vmatpush.bf16.msra.mxu0 %v10936
        %11146 = vmatpush.bf16.msra.mxu0 %v10934
        %11147 = vmatmul.bf16.gmra.mxu0 %v10516
        %v11148 = vpop.f32.mrf.mxu0
        %v11149 = vadd.f32 %v11130, %v11148
        %v11150 = vpop.f32.mrf.mxu0
        %v11151 = vadd.f32 %v11132, %v11150
        %11152 = vmatmul.bf16.gmra.mxu0 %v10522
        %v11153 = vpop.f32.mrf.mxu0
        %v11154 = vadd.f32 %v11135, %v11153
        %v11155 = vpop.f32.mrf.mxu0
        %v11156 = vadd.f32 %v11137, %v11155
        %11157 = vdwg.mxu0
        %11158 = vmatpush.bf16.msra.mxu0 %v10964
        %11159 = vmatpush.bf16.msra.mxu0 %v10962
        %11160 = vmatpush.bf16.msra.mxu0 %v10960
        %11161 = vmatpush.bf16.msra.mxu0 %v10958
        %11162 = vmatpush.bf16.msra.mxu0 %v10956
        %11163 = vmatpush.bf16.msra.mxu0 %v10954
        %11164 = vmatpush.bf16.msra.mxu0 %v10952
        %11165 = vmatpush.bf16.msra.mxu0 %v10950
        %11166 = vmatmul.bf16.gmra.mxu0 %v10517
        %v11167 = vpop.f32.mrf.mxu0
        %v11168 = vadd.f32 %v11149, %v11167
        %v11169 = vpop.f32.mrf.mxu0
        %v11170 = vadd.f32 %v11151, %v11169
        %11171 = vmatmul.bf16.gmra.mxu0 %v10523
        %v11172 = vpop.f32.mrf.mxu0
        %v11173 = vadd.f32 %v11154, %v11172
        %v11174 = vpop.f32.mrf.mxu0
        %v11175 = vadd.f32 %v11156, %v11174
        %11176 = vdwg.mxu0
        %11177 = vmatpush.bf16.msra.mxu0 %v10980
        %11178 = vmatpush.bf16.msra.mxu0 %v10978
        %11179 = vmatpush.bf16.msra.mxu0 %v10976
        %11180 = vmatpush.bf16.msra.mxu0 %v10974
        %11181 = vmatpush.bf16.msra.mxu0 %v10972
        %11182 = vmatpush.bf16.msra.mxu0 %v10970
        %11183 = vmatpush.bf16.msra.mxu0 %v10968
        %11184 = vmatpush.bf16.msra.mxu0 %v10966
        %11185 = vmatmul.bf16.gmra.mxu0 %v10518
        %v11186 = vpop.f32.mrf.mxu0
        %v11187 = vadd.f32 %v11168, %v11186
        %v11188 = vpop.f32.mrf.mxu0
        %v11189 = vadd.f32 %v11170, %v11188
        %11190 = vmatmul.bf16.gmra.mxu0 %v10524
        %v11191 = vpop.f32.mrf.mxu0
        %v11192 = vadd.f32 %v11173, %v11191
        %v11193 = vpop.f32.mrf.mxu0
        %v11194 = vadd.f32 %v11175, %v11193
        %11195 = vdwg.mxu0
        %11196 = vmatpush.bf16.msra.mxu0 0
        %11197 = vmatpush.bf16.msra.mxu0 %v11096
        %11198 = vmatpush.bf16.msra.mxu0 %v10992
        %11199 = vmatpush.bf16.msra.mxu0 %v10990
        %11200 = vmatpush.bf16.msra.mxu0 %v10988
        %11201 = vmatpush.bf16.msra.mxu0 %v10986
        %11202 = vmatpush.bf16.msra.mxu0 %v10984
        %11203 = vmatpush.bf16.msra.mxu0 %v10982
        %11204 = vmatmul.bf16.gmra.mxu0 %v11089
        %v11205 = vpop.f32.mrf.mxu0
        %v11206 = vadd.f32 %v11187, %v11205
        %v11207 = vpop.f32.mrf.mxu0
        %v11208 = vadd.f32 %v11189, %v11207
        %11209 = vmatmul.bf16.gmra.mxu0 %v11092
        %v11210 = vpop.f32.mrf.mxu0
        %v11211 = vadd.f32 %v11192, %v11210
        %v11212 = vpop.f32.mrf.mxu0
        %v11213 = vadd.f32 %v11194, %v11212
        %11214 = vdwg.mxu0
        %11215 = vmatpush.bf16.msra.mxu0 %v10917
        %11216 = vmatpush.bf16.msra.mxu0 %v10915
        %11217 = vmatpush.bf16.msra.mxu0 %v10913
        %11218 = vmatpush.bf16.msra.mxu0 %v10911
        %11219 = vmatpush.bf16.msra.mxu0 %v10909
        %11220 = vmatpush.bf16.msra.mxu0 %v10907
        %11221 = vmatpush.bf16.msra.mxu0 %v10905
        %11222 = vmatpush.bf16.msra.mxu0 %v10903
        %11223 = vmatmul.bf16.gmra.mxu0 %v10514
        %v11224 = vpop.f32.mrf.mxu0
        %v11225 = vadd.f32 0.0, %v11224
        %v11226 = vpop.f32.mrf.mxu0
        %v11227 = vadd.f32 0.0, %v11226
        %11228 = vmatmul.bf16.gmra.mxu0 %v10520
        %v11229 = vpop.f32.mrf.mxu0
        %v11230 = vadd.f32 0.0, %v11229
        %v11231 = vpop.f32.mrf.mxu0
        %v11232 = vadd.f32 0.0, %v11231
        %11233 = vdwg.mxu0
        %11234 = vmatpush.bf16.msra.mxu0 %v10933
        %11235 = vmatpush.bf16.msra.mxu0 %v10931
        %11236 = vmatpush.bf16.msra.mxu0 %v10929
        %11237 = vmatpush.bf16.msra.mxu0 %v10927
        %11238 = vmatpush.bf16.msra.mxu0 %v10925
        %11239 = vmatpush.bf16.msra.mxu0 %v10923
        %11240 = vmatpush.bf16.msra.mxu0 %v10921
        %11241 = vmatpush.bf16.msra.mxu0 %v10919
        %11242 = vmatmul.bf16.gmra.mxu0 %v10515
        %v11243 = vpop.f32.mrf.mxu0
        %v11244 = vadd.f32 %v11225, %v11243
        %v11245 = vpop.f32.mrf.mxu0
        %v11246 = vadd.f32 %v11227, %v11245
        %11247 = vmatmul.bf16.gmra.mxu0 %v10521
        %v11248 = vpop.f32.mrf.mxu0
        %v11249 = vadd.f32 %v11230, %v11248
        %v11250 = vpop.f32.mrf.mxu0
        %v11251 = vadd.f32 %v11232, %v11250
        %11252 = vdwg.mxu0
        %11253 = vmatpush.bf16.msra.mxu0 %v10949
        %11254 = vmatpush.bf16.msra.mxu0 %v10947
        %11255 = vmatpush.bf16.msra.mxu0 %v10945
        %11256 = vmatpush.bf16.msra.mxu0 %v10943
        %11257 = vmatpush.bf16.msra.mxu0 %v10941
        %11258 = vmatpush.bf16.msra.mxu0 %v10939
        %11259 = vmatpush.bf16.msra.mxu0 %v10937
        %11260 = vmatpush.bf16.msra.mxu0 %v10935
        %11261 = vmatmul.bf16.gmra.mxu0 %v10516
        %v11262 = vpop.f32.mrf.mxu0
        %v11263 = vadd.f32 %v11244, %v11262
        %v11264 = vpop.f32.mrf.mxu0
        %v11265 = vadd.f32 %v11246, %v11264
        %11266 = vmatmul.bf16.gmra.mxu0 %v10522
        %v11267 = vpop.f32.mrf.mxu0
        %v11268 = vadd.f32 %v11249, %v11267
        %v11269 = vpop.f32.mrf.mxu0
        %v11270 = vadd.f32 %v11251, %v11269
        %11271 = vdwg.mxu0
        %11272 = vmatpush.bf16.msra.mxu0 %v10965
        %11273 = vmatpush.bf16.msra.mxu0 %v10963
        %11274 = vmatpush.bf16.msra.mxu0 %v10961
        %11275 = vmatpush.bf16.msra.mxu0 %v10959
        %11276 = vmatpush.bf16.msra.mxu0 %v10957
        %11277 = vmatpush.bf16.msra.mxu0 %v10955
        %11278 = vmatpush.bf16.msra.mxu0 %v10953
        %11279 = vmatpush.bf16.msra.mxu0 %v10951
        %11280 = vmatmul.bf16.gmra.mxu0 %v10517
        %v11281 = vpop.f32.mrf.mxu0
        %v11282 = vadd.f32 %v11263, %v11281
        %v11283 = vpop.f32.mrf.mxu0
        %v11284 = vadd.f32 %v11265, %v11283
        %11285 = vmatmul.bf16.gmra.mxu0 %v10523
        %v11286 = vpop.f32.mrf.mxu0
        %v11287 = vadd.f32 %v11268, %v11286
        %v11288 = vpop.f32.mrf.mxu0
        %v11289 = vadd.f32 %v11270, %v11288
        %11290 = vdwg.mxu0
        %11291 = vmatpush.bf16.msra.mxu0 %v10981
        %11292 = vmatpush.bf16.msra.mxu0 %v10979
        %11293 = vmatpush.bf16.msra.mxu0 %v10977
        %11294 = vmatpush.bf16.msra.mxu0 %v10975
        %11295 = vmatpush.bf16.msra.mxu0 %v10973
        %11296 = vmatpush.bf16.msra.mxu0 %v10971
        %11297 = vmatpush.bf16.msra.mxu0 %v10969
        %11298 = vmatpush.bf16.msra.mxu0 %v10967
        %11299 = vmatmul.bf16.gmra.mxu0 %v10518
        %v11300 = vpop.f32.mrf.mxu0
        %v11301 = vadd.f32 %v11282, %v11300
        %v11302 = vpop.f32.mrf.mxu0
        %v11303 = vadd.f32 %v11284, %v11302
        %11304 = vmatmul.bf16.gmra.mxu0 %v10524
        %v11305 = vpop.f32.mrf.mxu0
        %v11306 = vadd.f32 %v11287, %v11305
        %v11307 = vpop.f32.mrf.mxu0
        %v11308 = vadd.f32 %v11289, %v11307
        %11309 = vdwg.mxu0
        %11310 = vmatpush.bf16.msra.mxu0 0
        %11311 = vmatpush.bf16.msra.mxu0 %v11099
        %11312 = vmatpush.bf16.msra.mxu0 %v10993
        %11313 = vmatpush.bf16.msra.mxu0 %v10991
        %11314 = vmatpush.bf16.msra.mxu0 %v10989
        %11315 = vmatpush.bf16.msra.mxu0 %v10987
        %11316 = vmatpush.bf16.msra.mxu0 %v10985
        %11317 = vmatpush.bf16.msra.mxu0 %v10983
        %11318 = vmatmul.bf16.gmra.mxu0 %v11089
        %v11319 = vpop.f32.mrf.mxu0
        %v11320 = vadd.f32 %v11301, %v11319
        %v11321 = vpop.f32.mrf.mxu0
        %v11322 = vadd.f32 %v11303, %v11321
        %11323 = vmatmul.bf16.gmra.mxu0 %v11092
        %v11324 = vpop.f32.mrf.mxu0
        %v11325 = vadd.f32 %v11306, %v11324
        %v11326 = vpop.f32.mrf.mxu0
        %v11327 = vadd.f32 %v11308, %v11326
        %11328 = vdwg.mxu0
        %11337 = vrot.lane.b32.xlu0 %v11206, 7
        %v11338 = vpop.permute.xlu0 %11337
        %11339 = vrot.lane.b32.xlu0 %v11320, 7
        %v11340 = vpop.permute.xlu0 %11339
        %11341 = vrot.lane.b32.xlu0 %v11208, 7
        %v11342 = vpop.permute.xlu0 %11341
        %11343 = vrot.lane.b32.xlu0 %v11322, 7
        %v11344 = vpop.permute.xlu0 %11343
        %11345 = vrot.lane.b32.xlu0 %v11211, 7
        %v11346 = vpop.permute.xlu0 %11345
        %11347 = vrot.lane.b32.xlu0 %v11325, 7
        %v11348 = vpop.permute.xlu0 %11347
        %11349 = vrot.lane.b32.xlu0 %v11213, 7
        %v11350 = vpop.permute.xlu0 %11349
        %11351 = vrot.lane.b32.xlu0 %v11327, 7
        %v11352 = vpop.permute.xlu0 %11351
        %v11353 = vsel %vm424, %v11338, %v11340
        %v11354 = vsel %vm424, %v11342, %v11344
        %v11355 = vsel %vm424, %v11346, %v11348
        %v11356 = vsel %vm424, %v11350, %v11352
        %v11365 = vsel %vm424, 0.0, %v11338
        %v11366 = vsel %vm424, 0.0, %v11342
        %v11367 = vsel %vm424, 0.0, %v11346
        %v11368 = vsel %vm424, 0.0, %v11350
        %vm11369 = vcmask 539648
        %v11370 = vsel %vm11369, %v11353, 0.0
        %v11371 = vsel %vm11369, %v11354, 0.0
        %v11372 = vsel %vm11369, %v11355, 0.0
        %v11373 = vsel %vm11369, %v11356, 0.0
        %11382 = vrot.lane.b32.xlu0 %v11365, 127
        %v11383 = vpop.permute.xlu0 %11382
        %11384 = vrot.lane.b32.xlu0 %v11370, 127
        %v11385 = vpop.permute.xlu0 %11384
        %11386 = vrot.lane.b32.xlu0 %v11366, 127
        %v11387 = vpop.permute.xlu0 %11386
        %11388 = vrot.lane.b32.xlu0 %v11371, 127
        %v11389 = vpop.permute.xlu0 %11388
        %11390 = vrot.lane.b32.xlu0 %v11367, 127
        %v11391 = vpop.permute.xlu0 %11390
        %11392 = vrot.lane.b32.xlu0 %v11372, 127
        %v11393 = vpop.permute.xlu0 %11392
        %11394 = vrot.lane.b32.xlu0 %v11368, 127
        %v11395 = vpop.permute.xlu0 %11394
        %11396 = vrot.lane.b32.xlu0 %v11373, 127
        %v11397 = vpop.permute.xlu0 %11396
        %v11398 = vsel %vm624, %v11383, %v11385
        %v11399 = vsel %vm624, %v11387, %v11389
        %v11400 = vsel %vm624, %v11391, %v11393
        %v11401 = vsel %vm624, %v11395, %v11397
        %11410 = vrot.lane.b32.xlu0 %v11365, 126
        %v11411 = vpop.permute.xlu0 %11410
        %11412 = vrot.lane.b32.xlu0 %v11370, 126
        %v11413 = vpop.permute.xlu0 %11412
        %11414 = vrot.lane.b32.xlu0 %v11366, 126
        %v11415 = vpop.permute.xlu0 %11414
        %11416 = vrot.lane.b32.xlu0 %v11371, 126
        %v11417 = vpop.permute.xlu0 %11416
        %11418 = vrot.lane.b32.xlu0 %v11367, 126
        %v11419 = vpop.permute.xlu0 %11418
        %11420 = vrot.lane.b32.xlu0 %v11372, 126
        %v11421 = vpop.permute.xlu0 %11420
        %11422 = vrot.lane.b32.xlu0 %v11368, 126
        %v11423 = vpop.permute.xlu0 %11422
        %11424 = vrot.lane.b32.xlu0 %v11373, 126
        %v11425 = vpop.permute.xlu0 %11424
        %v11426 = vsel %vm805, %v11411, %v11413
        %v11427 = vsel %vm805, %v11415, %v11417
        %v11428 = vsel %vm805, %v11419, %v11421
        %v11429 = vsel %vm805, %v11423, %v11425
        %11438 = vrot.lane.b32.xlu0 %v11365, 125
        %v11439 = vpop.permute.xlu0 %11438
        %11440 = vrot.lane.b32.xlu0 %v11370, 125
        %v11441 = vpop.permute.xlu0 %11440
        %11442 = vrot.lane.b32.xlu0 %v11366, 125
        %v11443 = vpop.permute.xlu0 %11442
        %11444 = vrot.lane.b32.xlu0 %v11371, 125
        %v11445 = vpop.permute.xlu0 %11444
        %11446 = vrot.lane.b32.xlu0 %v11367, 125
        %v11447 = vpop.permute.xlu0 %11446
        %11448 = vrot.lane.b32.xlu0 %v11372, 125
        %v11449 = vpop.permute.xlu0 %11448
        %11450 = vrot.lane.b32.xlu0 %v11368, 125
        %v11451 = vpop.permute.xlu0 %11450
        %11452 = vrot.lane.b32.xlu0 %v11373, 125
        %v11453 = vpop.permute.xlu0 %11452
        %v11454 = vsel %vm986, %v11439, %v11441
        %v11455 = vsel %vm986, %v11443, %v11445
        %v11456 = vsel %vm986, %v11447, %v11449
        %v11457 = vsel %vm986, %v11451, %v11453
        %11466 = vrot.lane.b32.xlu0 %v11365, 124
        %v11467 = vpop.permute.xlu0 %11466
        %11468 = vrot.lane.b32.xlu0 %v11370, 124
        %v11469 = vpop.permute.xlu0 %11468
        %11470 = vrot.lane.b32.xlu0 %v11366, 124
        %v11471 = vpop.permute.xlu0 %11470
        %11472 = vrot.lane.b32.xlu0 %v11371, 124
        %v11473 = vpop.permute.xlu0 %11472
        %11474 = vrot.lane.b32.xlu0 %v11367, 124
        %v11475 = vpop.permute.xlu0 %11474
        %11476 = vrot.lane.b32.xlu0 %v11372, 124
        %v11477 = vpop.permute.xlu0 %11476
        %11478 = vrot.lane.b32.xlu0 %v11368, 124
        %v11479 = vpop.permute.xlu0 %11478
        %11480 = vrot.lane.b32.xlu0 %v11373, 124
        %v11481 = vpop.permute.xlu0 %11480
        %v11482 = vsel %vm1167, %v11467, %v11469
        %v11483 = vsel %vm1167, %v11471, %v11473
        %v11484 = vsel %vm1167, %v11475, %v11477
        %v11485 = vsel %vm1167, %v11479, %v11481
        %11494 = vrot.lane.b32.xlu0 %v11365, 123
        %v11495 = vpop.permute.xlu0 %11494
        %11496 = vrot.lane.b32.xlu0 %v11370, 123
        %v11497 = vpop.permute.xlu0 %11496
        %11498 = vrot.lane.b32.xlu0 %v11366, 123
        %v11499 = vpop.permute.xlu0 %11498
        %11500 = vrot.lane.b32.xlu0 %v11371, 123
        %v11501 = vpop.permute.xlu0 %11500
        %11502 = vrot.lane.b32.xlu0 %v11367, 123
        %v11503 = vpop.permute.xlu0 %11502
        %11504 = vrot.lane.b32.xlu0 %v11372, 123
        %v11505 = vpop.permute.xlu0 %11504
        %11506 = vrot.lane.b32.xlu0 %v11368, 123
        %v11507 = vpop.permute.xlu0 %11506
        %11508 = vrot.lane.b32.xlu0 %v11373, 123
        %v11509 = vpop.permute.xlu0 %11508
        %v11510 = vsel %vm1348, %v11495, %v11497
        %v11511 = vsel %vm1348, %v11499, %v11501
        %v11512 = vsel %vm1348, %v11503, %v11505
        %v11513 = vsel %vm1348, %v11507, %v11509
        %11522 = vrot.lane.b32.xlu0 %v11365, 122
        %v11523 = vpop.permute.xlu0 %11522
        %11524 = vrot.lane.b32.xlu0 %v11370, 122
        %v11525 = vpop.permute.xlu0 %11524
        %11526 = vrot.lane.b32.xlu0 %v11366, 122
        %v11527 = vpop.permute.xlu0 %11526
        %11528 = vrot.lane.b32.xlu0 %v11371, 122
        %v11529 = vpop.permute.xlu0 %11528
        %11530 = vrot.lane.b32.xlu0 %v11367, 122
        %v11531 = vpop.permute.xlu0 %11530
        %11532 = vrot.lane.b32.xlu0 %v11372, 122
        %v11533 = vpop.permute.xlu0 %11532
        %11534 = vrot.lane.b32.xlu0 %v11368, 122
        %v11535 = vpop.permute.xlu0 %11534
        %11536 = vrot.lane.b32.xlu0 %v11373, 122
        %v11537 = vpop.permute.xlu0 %11536
        %v11538 = vsel %vm1529, %v11523, %v11525
        %v11539 = vsel %vm1529, %v11527, %v11529
        %v11540 = vsel %vm1529, %v11531, %v11533
        %v11541 = vsel %vm1529, %v11535, %v11537
        %11550 = vrot.lane.b32.xlu0 %v11365, 121
        %v11551 = vpop.permute.xlu0 %11550
        %11552 = vrot.lane.b32.xlu0 %v11370, 121
        %v11553 = vpop.permute.xlu0 %11552
        %11554 = vrot.lane.b32.xlu0 %v11366, 121
        %v11555 = vpop.permute.xlu0 %11554
        %11556 = vrot.lane.b32.xlu0 %v11371, 121
        %v11557 = vpop.permute.xlu0 %11556
        %11558 = vrot.lane.b32.xlu0 %v11367, 121
        %v11559 = vpop.permute.xlu0 %11558
        %11560 = vrot.lane.b32.xlu0 %v11372, 121
        %v11561 = vpop.permute.xlu0 %11560
        %11562 = vrot.lane.b32.xlu0 %v11368, 121
        %v11563 = vpop.permute.xlu0 %11562
        %11564 = vrot.lane.b32.xlu0 %v11373, 121
        %v11565 = vpop.permute.xlu0 %11564
        %v11566 = vsel %vm1710, %v11551, %v11553
        %v11567 = vsel %vm1710, %v11555, %v11557
        %v11568 = vsel %vm1710, %v11559, %v11561
        %v11569 = vsel %vm1710, %v11563, %v11565
        %11578 = vrot.lane.b32.xlu0 %v11365, 120
        %v11579 = vpop.permute.xlu0 %11578
        %11580 = vrot.lane.b32.xlu0 %v11370, 120
        %v11581 = vpop.permute.xlu0 %11580
        %11582 = vrot.lane.b32.xlu0 %v11366, 120
        %v11583 = vpop.permute.xlu0 %11582
        %11584 = vrot.lane.b32.xlu0 %v11371, 120
        %v11585 = vpop.permute.xlu0 %11584
        %11586 = vrot.lane.b32.xlu0 %v11367, 120
        %v11587 = vpop.permute.xlu0 %11586
        %11588 = vrot.lane.b32.xlu0 %v11372, 120
        %v11589 = vpop.permute.xlu0 %11588
        %11590 = vrot.lane.b32.xlu0 %v11368, 120
        %v11591 = vpop.permute.xlu0 %11590
        %11592 = vrot.lane.b32.xlu0 %v11373, 120
        %v11593 = vpop.permute.xlu0 %11592
        %v11594 = vsel %vm1891, %v11579, %v11581
        %v11595 = vsel %vm1891, %v11583, %v11585
        %v11596 = vsel %vm1891, %v11587, %v11589
        %v11597 = vsel %vm1891, %v11591, %v11593
        %11606 = vrot.lane.b32.xlu0 %v11365, 119
        %v11607 = vpop.permute.xlu0 %11606
        %11608 = vrot.lane.b32.xlu0 %v11370, 119
        %v11609 = vpop.permute.xlu0 %11608
        %11610 = vrot.lane.b32.xlu0 %v11366, 119
        %v11611 = vpop.permute.xlu0 %11610
        %11612 = vrot.lane.b32.xlu0 %v11371, 119
        %v11613 = vpop.permute.xlu0 %11612
        %11614 = vrot.lane.b32.xlu0 %v11367, 119
        %v11615 = vpop.permute.xlu0 %11614
        %11616 = vrot.lane.b32.xlu0 %v11372, 119
        %v11617 = vpop.permute.xlu0 %11616
        %11618 = vrot.lane.b32.xlu0 %v11368, 119
        %v11619 = vpop.permute.xlu0 %11618
        %11620 = vrot.lane.b32.xlu0 %v11373, 119
        %v11621 = vpop.permute.xlu0 %11620
        %v11622 = vsel %vm2072, %v11607, %v11609
        %v11623 = vsel %vm2072, %v11611, %v11613
        %v11624 = vsel %vm2072, %v11615, %v11617
        %v11625 = vsel %vm2072, %v11619, %v11621
        %11634 = vrot.lane.b32.xlu0 %v11365, 118
        %v11635 = vpop.permute.xlu0 %11634
        %11636 = vrot.lane.b32.xlu0 %v11370, 118
        %v11637 = vpop.permute.xlu0 %11636
        %11638 = vrot.lane.b32.xlu0 %v11366, 118
        %v11639 = vpop.permute.xlu0 %11638
        %11640 = vrot.lane.b32.xlu0 %v11371, 118
        %v11641 = vpop.permute.xlu0 %11640
        %11642 = vrot.lane.b32.xlu0 %v11367, 118
        %v11643 = vpop.permute.xlu0 %11642
        %11644 = vrot.lane.b32.xlu0 %v11372, 118
        %v11645 = vpop.permute.xlu0 %11644
        %11646 = vrot.lane.b32.xlu0 %v11368, 118
        %v11647 = vpop.permute.xlu0 %11646
        %11648 = vrot.lane.b32.xlu0 %v11373, 118
        %v11649 = vpop.permute.xlu0 %11648
        %v11650 = vsel %vm2253, %v11635, %v11637
        %v11651 = vsel %vm2253, %v11639, %v11641
        %v11652 = vsel %vm2253, %v11643, %v11645
        %v11653 = vsel %vm2253, %v11647, %v11649
        %11662 = vrot.lane.b32.xlu0 %v11365, 117
        %v11663 = vpop.permute.xlu0 %11662
        %11664 = vrot.lane.b32.xlu0 %v11370, 117
        %v11665 = vpop.permute.xlu0 %11664
        %11666 = vrot.lane.b32.xlu0 %v11366, 117
        %v11667 = vpop.permute.xlu0 %11666
        %11668 = vrot.lane.b32.xlu0 %v11371, 117
        %v11669 = vpop.permute.xlu0 %11668
        %11670 = vrot.lane.b32.xlu0 %v11367, 117
        %v11671 = vpop.permute.xlu0 %11670
        %11672 = vrot.lane.b32.xlu0 %v11372, 117
        %v11673 = vpop.permute.xlu0 %11672
        %11674 = vrot.lane.b32.xlu0 %v11368, 117
        %v11675 = vpop.permute.xlu0 %11674
        %11676 = vrot.lane.b32.xlu0 %v11373, 117
        %v11677 = vpop.permute.xlu0 %11676
        %v11678 = vsel %vm2434, %v11663, %v11665
        %v11679 = vsel %vm2434, %v11667, %v11669
        %v11680 = vsel %vm2434, %v11671, %v11673
        %v11681 = vsel %vm2434, %v11675, %v11677
        %11690 = vrot.lane.b32.xlu0 %v11365, 116
        %v11691 = vpop.permute.xlu0 %11690
        %11692 = vrot.lane.b32.xlu0 %v11370, 116
        %v11693 = vpop.permute.xlu0 %11692
        %11694 = vrot.lane.b32.xlu0 %v11366, 116
        %v11695 = vpop.permute.xlu0 %11694
        %11696 = vrot.lane.b32.xlu0 %v11371, 116
        %v11697 = vpop.permute.xlu0 %11696
        %11698 = vrot.lane.b32.xlu0 %v11367, 116
        %v11699 = vpop.permute.xlu0 %11698
        %11700 = vrot.lane.b32.xlu0 %v11372, 116
        %v11701 = vpop.permute.xlu0 %11700
        %11702 = vrot.lane.b32.xlu0 %v11368, 116
        %v11703 = vpop.permute.xlu0 %11702
        %11704 = vrot.lane.b32.xlu0 %v11373, 116
        %v11705 = vpop.permute.xlu0 %11704
        %v11706 = vsel %vm2615, %v11691, %v11693
        %v11707 = vsel %vm2615, %v11695, %v11697
        %v11708 = vsel %vm2615, %v11699, %v11701
        %v11709 = vsel %vm2615, %v11703, %v11705
        %11718 = vrot.lane.b32.xlu0 %v11365, 115
        %v11719 = vpop.permute.xlu0 %11718
        %11720 = vrot.lane.b32.xlu0 %v11370, 115
        %v11721 = vpop.permute.xlu0 %11720
        %11722 = vrot.lane.b32.xlu0 %v11366, 115
        %v11723 = vpop.permute.xlu0 %11722
        %11724 = vrot.lane.b32.xlu0 %v11371, 115
        %v11725 = vpop.permute.xlu0 %11724
        %11726 = vrot.lane.b32.xlu0 %v11367, 115
        %v11727 = vpop.permute.xlu0 %11726
        %11728 = vrot.lane.b32.xlu0 %v11372, 115
        %v11729 = vpop.permute.xlu0 %11728
        %11730 = vrot.lane.b32.xlu0 %v11368, 115
        %v11731 = vpop.permute.xlu0 %11730
        %11732 = vrot.lane.b32.xlu0 %v11373, 115
        %v11733 = vpop.permute.xlu0 %11732
        %v11734 = vsel %vm2796, %v11719, %v11721
        %v11735 = vsel %vm2796, %v11723, %v11725
        %v11736 = vsel %vm2796, %v11727, %v11729
        %v11737 = vsel %vm2796, %v11731, %v11733
        %11746 = vrot.lane.b32.xlu0 %v11365, 114
        %v11747 = vpop.permute.xlu0 %11746
        %11748 = vrot.lane.b32.xlu0 %v11370, 114
        %v11749 = vpop.permute.xlu0 %11748
        %11750 = vrot.lane.b32.xlu0 %v11366, 114
        %v11751 = vpop.permute.xlu0 %11750
        %11752 = vrot.lane.b32.xlu0 %v11371, 114
        %v11753 = vpop.permute.xlu0 %11752
        %11754 = vrot.lane.b32.xlu0 %v11367, 114
        %v11755 = vpop.permute.xlu0 %11754
        %11756 = vrot.lane.b32.xlu0 %v11372, 114
        %v11757 = vpop.permute.xlu0 %11756
        %11758 = vrot.lane.b32.xlu0 %v11368, 114
        %v11759 = vpop.permute.xlu0 %11758
        %11760 = vrot.lane.b32.xlu0 %v11373, 114
        %v11761 = vpop.permute.xlu0 %11760
        %v11762 = vsel %vm2977, %v11747, %v11749
        %v11763 = vsel %vm2977, %v11751, %v11753
        %v11764 = vsel %vm2977, %v11755, %v11757
        %v11765 = vsel %vm2977, %v11759, %v11761
        %v11774 = vpack.c.bf16 %v11366, %v11365
        %v11775 = vpack.c.bf16 %v11371, %v11370
        %v11776 = vpack.c.bf16 %v11368, %v11367
        %v11777 = vpack.c.bf16 %v11373, %v11372
        %v11778 = vpack.c.bf16 %v11399, %v11398
        %v11779 = vpack.c.bf16 %v11389, %v11385
        %v11780 = vpack.c.bf16 %v11401, %v11400
        %v11781 = vpack.c.bf16 %v11397, %v11393
        %v11782 = vpack.c.bf16 %v11427, %v11426
        %v11783 = vpack.c.bf16 %v11417, %v11413
        %v11784 = vpack.c.bf16 %v11429, %v11428
        %v11785 = vpack.c.bf16 %v11425, %v11421
        %v11786 = vpack.c.bf16 %v11455, %v11454
        %v11787 = vpack.c.bf16 %v11445, %v11441
        %v11788 = vpack.c.bf16 %v11457, %v11456
        %v11789 = vpack.c.bf16 %v11453, %v11449
        %v11790 = vpack.c.bf16 %v11483, %v11482
        %v11791 = vpack.c.bf16 %v11473, %v11469
        %v11792 = vpack.c.bf16 %v11485, %v11484
        %v11793 = vpack.c.bf16 %v11481, %v11477
        %v11794 = vpack.c.bf16 %v11511, %v11510
        %v11795 = vpack.c.bf16 %v11501, %v11497
        %v11796 = vpack.c.bf16 %v11513, %v11512
        %v11797 = vpack.c.bf16 %v11509, %v11505
        %v11798 = vpack.c.bf16 %v11539, %v11538
        %v11799 = vpack.c.bf16 %v11529, %v11525
        %v11800 = vpack.c.bf16 %v11541, %v11540
        %v11801 = vpack.c.bf16 %v11537, %v11533
        %v11802 = vpack.c.bf16 %v11567, %v11566
        %v11803 = vpack.c.bf16 %v11557, %v11553
        %v11804 = vpack.c.bf16 %v11569, %v11568
        %v11805 = vpack.c.bf16 %v11565, %v11561
        %v11806 = vpack.c.bf16 %v11595, %v11594
        %v11807 = vpack.c.bf16 %v11585, %v11581
        %v11808 = vpack.c.bf16 %v11597, %v11596
        %v11809 = vpack.c.bf16 %v11593, %v11589
        %v11810 = vpack.c.bf16 %v11623, %v11622
        %v11811 = vpack.c.bf16 %v11613, %v11609
        %v11812 = vpack.c.bf16 %v11625, %v11624
        %v11813 = vpack.c.bf16 %v11621, %v11617
        %v11814 = vpack.c.bf16 %v11651, %v11650
        %v11815 = vpack.c.bf16 %v11641, %v11637
        %v11816 = vpack.c.bf16 %v11653, %v11652
        %v11817 = vpack.c.bf16 %v11649, %v11645
        %v11818 = vpack.c.bf16 %v11679, %v11678
        %v11819 = vpack.c.bf16 %v11669, %v11665
        %v11820 = vpack.c.bf16 %v11681, %v11680
        %v11821 = vpack.c.bf16 %v11677, %v11673
        %v11822 = vpack.c.bf16 %v11707, %v11706
        %v11823 = vpack.c.bf16 %v11697, %v11693
        %v11824 = vpack.c.bf16 %v11709, %v11708
        %v11825 = vpack.c.bf16 %v11705, %v11701
        %v11826 = vpack.c.bf16 %v11735, %v11734
        %v11827 = vpack.c.bf16 %v11725, %v11721
        %v11828 = vpack.c.bf16 %v11737, %v11736
        %v11829 = vpack.c.bf16 %v11733, %v11729
        %v11830 = vpack.c.bf16 %v11763, %v11762
        %v11831 = vpack.c.bf16 %v11753, %v11749
        %v11832 = vpack.c.bf16 %v11765, %v11764
        %v11833 = vpack.c.bf16 %v11761, %v11757
        %v11834 = vld [vmem:[%s6] sm:$0xff]
        %v11835 = vld [vmem:[%s6 + $0x8] sm:$0xff]
        %v11836 = vld [vmem:[%s6 + $0x10] sm:$0xff]
        %v11837 = vld [vmem:[%s6 + $0x18] sm:$0xff]
        %v11838 = vld [vmem:[%s6 + $0x20] sm:$0xff]
        %v11839 = vld [vmem:[%s6 + $0x28] sm:$0xff]
        %v11840 = vld [vmem:[%s6 + $0x30] sm:$0xff]
        %v11841 = vld [vmem:[%s6 + $0x38] sm:$0xff]
        %v11842 = vld [vmem:[%s7] sm:$0xff]
        %v11843 = vld [vmem:[%s7 + $0x8] sm:$0xff]
        %v11844 = vld [vmem:[%s7 + $0x10] sm:$0xff]
        %v11845 = vld [vmem:[%s7 + $0x18] sm:$0xff]
        %11847 = vset.pattern.permute.xlu0 0
        %11848 = vperm.xlu0 %11847, %v11842
        %v11849 = vpop.permute.xlu0 %11848
        %11852 = vset.pattern.permute.xlu0 0
        %11853 = vperm.xlu0 %11852, %v11843
        %v11854 = vpop.permute.xlu0 %11853
        %11857 = vset.pattern.permute.xlu0 0
        %11858 = vperm.xlu0 %11857, %v11844
        %v11859 = vpop.permute.xlu0 %11858
        %11862 = vset.pattern.permute.xlu0 0
        %11863 = vperm.xlu0 %11862, %v11845
        %v11864 = vpop.permute.xlu0 %11863
        %v11874 = vunpack.c.l.b16 %v11834
        %v11875 = vunpack.c.h.b16 %v11834
        %v11876 = vunpack.c.l.b16 %v11835
        %v11877 = vunpack.c.h.b16 %v11835
        %v11878 = vunpack.c.l.b16 %v11836
        %v11879 = vunpack.c.h.b16 %v11836
        %v11880 = vunpack.c.l.b16 %v11837
        %v11881 = vunpack.c.h.b16 %v11837
        %v11882 = vunpack.c.l.b16 %v11838
        %v11883 = vunpack.c.h.b16 %v11838
        %v11884 = vunpack.c.l.b16 %v11839
        %v11885 = vunpack.c.h.b16 %v11839
        %v11886 = vunpack.c.l.b16 %v11840
        %v11887 = vunpack.c.h.b16 %v11840
        %v11888 = vunpack.c.l.b16 %v11841
        %v11889 = vunpack.c.h.b16 %v11841
        %v11890 = vpack.c.b16 %v11878, %v11874
        %v11891 = vpack.c.b16 %v11879, %v11875
        %v11892 = vpack.c.b16 %v11880, %v11876
        %v11893 = vpack.c.b16 %v11881, %v11877
        %v11894 = vpack.c.b16 %v11886, %v11882
        %v11895 = vpack.c.b16 %v11887, %v11883
        %v11896 = vpack.c.b16 %v11888, %v11884
        %v11897 = vpack.c.b16 %v11889, %v11885
        %v11905 = vsel %vm6511, %v11893, 0
        %v11908 = vsel %vm6511, %v11897, 0
        %11910 = vmatpush.bf16.msra.mxu0 %v11788
        %11911 = vmatpush.bf16.msra.mxu0 %v11786
        %11912 = vmatpush.bf16.msra.mxu0 %v11784
        %11913 = vmatpush.bf16.msra.mxu0 %v11782
        %11914 = vmatpush.bf16.msra.mxu0 %v11780
        %11915 = vmatpush.bf16.msra.mxu0 %v11778
        %11916 = vmatpush.bf16.msra.mxu0 %v11776
        %11917 = vmatpush.bf16.msra.mxu0 %v11774
        %11918 = vmatmul.bf16.gmra.mxu0 %v11890
        %v11919 = vpop.f32.mrf.mxu0
        %v11920 = vadd.f32 %v11849, %v11919
        %v11921 = vpop.f32.mrf.mxu0
        %v11922 = vadd.f32 %v11854, %v11921
        %11923 = vmatmul.bf16.gmra.mxu0 %v11894
        %v11924 = vpop.f32.mrf.mxu0
        %v11925 = vadd.f32 %v11859, %v11924
        %v11926 = vpop.f32.mrf.mxu0
        %v11927 = vadd.f32 %v11864, %v11926
        %11928 = vdwg.mxu0
        %11929 = vmatpush.bf16.msra.mxu0 %v11804
        %11930 = vmatpush.bf16.msra.mxu0 %v11802
        %11931 = vmatpush.bf16.msra.mxu0 %v11800
        %11932 = vmatpush.bf16.msra.mxu0 %v11798
        %11933 = vmatpush.bf16.msra.mxu0 %v11796
        %11934 = vmatpush.bf16.msra.mxu0 %v11794
        %11935 = vmatpush.bf16.msra.mxu0 %v11792
        %11936 = vmatpush.bf16.msra.mxu0 %v11790
        %11937 = vmatmul.bf16.gmra.mxu0 %v11891
        %v11938 = vpop.f32.mrf.mxu0
        %v11939 = vadd.f32 %v11920, %v11938
        %v11940 = vpop.f32.mrf.mxu0
        %v11941 = vadd.f32 %v11922, %v11940
        %11942 = vmatmul.bf16.gmra.mxu0 %v11895
        %v11943 = vpop.f32.mrf.mxu0
        %v11944 = vadd.f32 %v11925, %v11943
        %v11945 = vpop.f32.mrf.mxu0
        %v11946 = vadd.f32 %v11927, %v11945
        %11947 = vdwg.mxu0
        %11948 = vmatpush.bf16.msra.mxu0 %v11820
        %11949 = vmatpush.bf16.msra.mxu0 %v11818
        %11950 = vmatpush.bf16.msra.mxu0 %v11816
        %11951 = vmatpush.bf16.msra.mxu0 %v11814
        %11952 = vmatpush.bf16.msra.mxu0 %v11812
        %11953 = vmatpush.bf16.msra.mxu0 %v11810
        %11954 = vmatpush.bf16.msra.mxu0 %v11808
        %11955 = vmatpush.bf16.msra.mxu0 %v11806
        %11956 = vmatmul.bf16.gmra.mxu0 %v11892
        %v11957 = vpop.f32.mrf.mxu0
        %v11958 = vadd.f32 %v11939, %v11957
        %v11959 = vpop.f32.mrf.mxu0
        %v11960 = vadd.f32 %v11941, %v11959
        %11961 = vmatmul.bf16.gmra.mxu0 %v11896
        %v11962 = vpop.f32.mrf.mxu0
        %v11963 = vadd.f32 %v11944, %v11962
        %v11964 = vpop.f32.mrf.mxu0
        %v11965 = vadd.f32 %v11946, %v11964
        %11966 = vdwg.mxu0
        %11967 = vmatpush.bf16.msra.mxu0 0
        %11968 = vmatpush.bf16.msra.mxu0 0
        %11969 = vmatpush.bf16.msra.mxu0 %v11832
        %11970 = vmatpush.bf16.msra.mxu0 %v11830
        %11971 = vmatpush.bf16.msra.mxu0 %v11828
        %11972 = vmatpush.bf16.msra.mxu0 %v11826
        %11973 = vmatpush.bf16.msra.mxu0 %v11824
        %11974 = vmatpush.bf16.msra.mxu0 %v11822
        %11975 = vmatmul.bf16.gmra.mxu0 %v11905
        %v11976 = vpop.f32.mrf.mxu0
        %v11977 = vadd.f32 %v11958, %v11976
        %v11978 = vpop.f32.mrf.mxu0
        %v11979 = vadd.f32 %v11960, %v11978
        %11980 = vmatmul.bf16.gmra.mxu0 %v11908
        %v11981 = vpop.f32.mrf.mxu0
        %v11982 = vadd.f32 %v11963, %v11981
        %v11983 = vpop.f32.mrf.mxu0
        %v11984 = vadd.f32 %v11965, %v11983
        %11985 = vdwg.mxu0
        %11986 = vmatpush.bf16.msra.mxu0 %v11789
        %11987 = vmatpush.bf16.msra.mxu0 %v11787
        %11988 = vmatpush.bf16.msra.mxu0 %v11785
        %11989 = vmatpush.bf16.msra.mxu0 %v11783
        %11990 = vmatpush.bf16.msra.mxu0 %v11781
        %11991 = vmatpush.bf16.msra.mxu0 %v11779
        %11992 = vmatpush.bf16.msra.mxu0 %v11777
        %11993 = vmatpush.bf16.msra.mxu0 %v11775
        %11994 = vmatmul.bf16.gmra.mxu0 %v11890
        %v11995 = vpop.f32.mrf.mxu0
        %v11996 = vadd.f32 %v11849, %v11995
        %v11997 = vpop.f32.mrf.mxu0
        %v11998 = vadd.f32 %v11854, %v11997
        %11999 = vmatmul.bf16.gmra.mxu0 %v11894
        %v12000 = vpop.f32.mrf.mxu0
        %v12001 = vadd.f32 %v11859, %v12000
        %v12002 = vpop.f32.mrf.mxu0
        %v12003 = vadd.f32 %v11864, %v12002
        %12004 = vdwg.mxu0
        %12005 = vmatpush.bf16.msra.mxu0 %v11805
        %12006 = vmatpush.bf16.msra.mxu0 %v11803
        %12007 = vmatpush.bf16.msra.mxu0 %v11801
        %12008 = vmatpush.bf16.msra.mxu0 %v11799
        %12009 = vmatpush.bf16.msra.mxu0 %v11797
        %12010 = vmatpush.bf16.msra.mxu0 %v11795
        %12011 = vmatpush.bf16.msra.mxu0 %v11793
        %12012 = vmatpush.bf16.msra.mxu0 %v11791
        %12013 = vmatmul.bf16.gmra.mxu0 %v11891
        %v12014 = vpop.f32.mrf.mxu0
        %v12015 = vadd.f32 %v11996, %v12014
        %v12016 = vpop.f32.mrf.mxu0
        %v12017 = vadd.f32 %v11998, %v12016
        %12018 = vmatmul.bf16.gmra.mxu0 %v11895
        %v12019 = vpop.f32.mrf.mxu0
        %v12020 = vadd.f32 %v12001, %v12019
        %v12021 = vpop.f32.mrf.mxu0
        %v12022 = vadd.f32 %v12003, %v12021
        %12023 = vdwg.mxu0
        %12024 = vmatpush.bf16.msra.mxu0 %v11821
        %12025 = vmatpush.bf16.msra.mxu0 %v11819
        %12026 = vmatpush.bf16.msra.mxu0 %v11817
        %12027 = vmatpush.bf16.msra.mxu0 %v11815
        %12028 = vmatpush.bf16.msra.mxu0 %v11813
        %12029 = vmatpush.bf16.msra.mxu0 %v11811
        %12030 = vmatpush.bf16.msra.mxu0 %v11809
        %12031 = vmatpush.bf16.msra.mxu0 %v11807
        %12032 = vmatmul.bf16.gmra.mxu0 %v11892
        %v12033 = vpop.f32.mrf.mxu0
        %v12034 = vadd.f32 %v12015, %v12033
        %v12035 = vpop.f32.mrf.mxu0
        %v12036 = vadd.f32 %v12017, %v12035
        %12037 = vmatmul.bf16.gmra.mxu0 %v11896
        %v12038 = vpop.f32.mrf.mxu0
        %v12039 = vadd.f32 %v12020, %v12038
        %v12040 = vpop.f32.mrf.mxu0
        %v12041 = vadd.f32 %v12022, %v12040
        %12042 = vdwg.mxu0
        %12043 = vmatpush.bf16.msra.mxu0 0
        %12044 = vmatpush.bf16.msra.mxu0 0
        %12045 = vmatpush.bf16.msra.mxu0 %v11833
        %12046 = vmatpush.bf16.msra.mxu0 %v11831
        %12047 = vmatpush.bf16.msra.mxu0 %v11829
        %12048 = vmatpush.bf16.msra.mxu0 %v11827
        %12049 = vmatpush.bf16.msra.mxu0 %v11825
        %12050 = vmatpush.bf16.msra.mxu0 %v11823
        %12051 = vmatmul.bf16.gmra.mxu0 %v11905
        %v12052 = vpop.f32.mrf.mxu0
        %v12053 = vadd.f32 %v12034, %v12052
        %v12054 = vpop.f32.mrf.mxu0
        %v12055 = vadd.f32 %v12036, %v12054
        %12056 = vmatmul.bf16.gmra.mxu0 %v11908
        %v12057 = vpop.f32.mrf.mxu0
        %v12058 = vadd.f32 %v12039, %v12057
        %v12059 = vpop.f32.mrf.mxu0
        %v12060 = vadd.f32 %v12041, %v12059
        %12061 = vdwg.mxu0
        %vm12062 = vcmp.gt.f32.partialorder %v11977, 0.0
        %vm12063 = vcmp.gt.f32.partialorder %v12053, 0.0
        %vm12064 = vcmp.gt.f32.partialorder %v11979, 0.0
        %vm12065 = vcmp.gt.f32.partialorder %v12055, 0.0
        %vm12066 = vcmp.gt.f32.partialorder %v11982, 0.0
        %vm12067 = vcmp.gt.f32.partialorder %v12058, 0.0
        %vm12068 = vcmp.gt.f32.partialorder %v11984, 0.0
        %vm12069 = vcmp.gt.f32.partialorder %v12060, 0.0
        %v12070 = vmin.f32 %v11977, 0.0
        %v12071 = vmin.f32 %v12053, 0.0
        %v12072 = vmin.f32 %v11979, 0.0
        %v12073 = vmin.f32 %v12055, 0.0
        %v12074 = vmin.f32 %v11982, 0.0
        %v12075 = vmin.f32 %v12058, 0.0
        %v12076 = vmin.f32 %v11984, 0.0
        %v12077 = vmin.f32 %v12060, 0.0
        %v12078 = vmul.f32 %v12070, 1.442695
        %v12079 = vpow.pop %v12078
        %v12080 = vmul.f32 %v12071, 1.442695
        %v12081 = vpow.pop %v12080
        %v12082 = vmul.f32 %v12072, 1.442695
        %v12083 = vpow.pop %v12082
        %v12084 = vmul.f32 %v12073, 1.442695
        %v12085 = vpow.pop %v12084
        %v12086 = vmul.f32 %v12074, 1.442695
        %v12087 = vpow.pop %v12086
        %v12088 = vmul.f32 %v12075, 1.442695
        %v12089 = vpow.pop %v12088
        %v12090 = vmul.f32 %v12076, 1.442695
        %v12091 = vpow.pop %v12090
        %v12092 = vmul.f32 %v12077, 1.442695
        %v12093 = vpow.pop %v12092
        %v12094 = vsub.f32 %v12079, 1.0
        %v12095 = vsub.f32 %v12081, 1.0
        %v12096 = vsub.f32 %v12083, 1.0
        %v12097 = vsub.f32 %v12085, 1.0
        %v12098 = vsub.f32 %v12087, 1.0
        %v12099 = vsub.f32 %v12089, 1.0
        %v12100 = vsub.f32 %v12091, 1.0
        %v12101 = vsub.f32 %v12093, 1.0
        %v12102 = vsel %vm12062, %v11977, %v12094
        %v12103 = vsel %vm12063, %v12053, %v12095
        %v12104 = vsel %vm12064, %v11979, %v12096
        %v12105 = vsel %vm12065, %v12055, %v12097
        %v12106 = vsel %vm12066, %v11982, %v12098
        %v12107 = vsel %vm12067, %v12058, %v12099
        %v12108 = vsel %vm12068, %v11984, %v12100
        %v12109 = vsel %vm12069, %v12060, %v12101
        %v12110 = vpack.c.bf16 %v12104, %v12102
        %v12111 = vpack.c.bf16 %v12105, %v12103
        %v12112 = vpack.c.bf16 %v12108, %v12106
        %v12113 = vpack.c.bf16 %v12109, %v12107
        %v12114 = vld [vmem:[%s8] sm:$0xf]
        %v12115 = vld [vmem:[%s8 + $0x4] sm:$0xf]
        %v12116 = vld [vmem:[%s8 + $0x8] sm:$0xf]
        %v12117 = vld [vmem:[%s8 + $0xc] sm:$0xf]
        %v12118 = vld [vmem:[%s8 + $0x10] sm:$0xf]
        %v12119 = vld [vmem:[%s8 + $0x14] sm:$0xf]
        %v12120 = vld [vmem:[%s8 + $0x18] sm:$0xf]
        %v12121 = vld [vmem:[%s8 + $0x1c] sm:$0xf]
        %v12122 = vld [vmem:[%s8 + $0x20] sm:$0xf]
        %v12123 = vld [vmem:[%s8 + $0x24] sm:$0xf]
        %v12124 = vld [vmem:[%s8 + $0x28] sm:$0xf]
        %v12125 = vld [vmem:[%s8 + $0x2c] sm:$0xf]
        %v12126 = vld [vmem:[%s8 + $0x30] sm:$0xf]
        %v12127 = vld [vmem:[%s8 + $0x34] sm:$0xf]
        %v12128 = vld [vmem:[%s8 + $0x38] sm:$0xf]
        %v12129 = vld [vmem:[%s8 + $0x3c] sm:$0xf]
        %v12130 = vld [vmem:[%s8 + $0x40] sm:$0xf]
        %v12131 = vld [vmem:[%s8 + $0x44] sm:$0xf]
        %v12132 = vld [vmem:[%s8 + $0x48] sm:$0xf]
        %v12133 = vld [vmem:[%s8 + $0x4c] sm:$0xf]
        %v12134 = vld [vmem:[%s8 + $0x50] sm:$0xf]
        %v12135 = vld [vmem:[%s8 + $0x54] sm:$0xf]
        %v12136 = vld [vmem:[%s8 + $0x58] sm:$0xf]
        %v12160 = vunpack.c.l.b16 %v12114
        %v12161 = vunpack.c.l.b16 %v12115
        %v12162 = vunpack.c.l.b16 %v12116
        %v12163 = vunpack.c.l.b16 %v12117
        %v12164 = vunpack.c.l.b16 %v12118
        %v12165 = vunpack.c.l.b16 %v12119
        %v12166 = vunpack.c.l.b16 %v12120
        %v12167 = vunpack.c.l.b16 %v12121
        %v12168 = vunpack.c.l.b16 %v12122
        %v12169 = vunpack.c.l.b16 %v12123
        %v12170 = vunpack.c.l.b16 %v12124
        %v12171 = vunpack.c.l.b16 %v12125
        %v12172 = vunpack.c.l.b16 %v12126
        %v12173 = vunpack.c.l.b16 %v12127
        %v12174 = vunpack.c.l.b16 %v12128
        %v12175 = vunpack.c.l.b16 %v12129
        %v12176 = vunpack.c.l.b16 %v12130
        %v12177 = vunpack.c.l.b16 %v12131
        %v12178 = vunpack.c.l.b16 %v12132
        %v12179 = vunpack.c.l.b16 %v12133
        %v12180 = vunpack.c.l.b16 %v12134
        %v12181 = vunpack.c.l.b16 %v12135
        %v12182 = vunpack.c.l.b16 %v12136
        %v12183 = vpack.c.b16 %v12161, %v12160
        %v12184 = vpack.c.b16 %v12163, %v12162
        %v12185 = vpack.c.b16 %v12165, %v12164
        %v12186 = vpack.c.b16 %v12167, %v12166
        %v12187 = vpack.c.b16 %v12169, %v12168
        %v12188 = vpack.c.b16 %v12171, %v12170
        %v12189 = vpack.c.b16 %v12173, %v12172
        %v12190 = vpack.c.b16 %v12175, %v12174
        %v12191 = vpack.c.b16 %v12177, %v12176
        %v12192 = vpack.c.b16 %v12179, %v12178
        %v12193 = vpack.c.b16 %v12181, %v12180
        %v12194 = vpack.c.b16 %v12182, %v12182
        %vm12206 = vcmask 457728
        %v12208 = vsel %vm12206, %v12111, 0
        %v12211 = vsel %vm12206, %v12113, 0
        %vm12213 = vcmask 1043456
        %v12215 = vsel %vm12213, %v12194, 0
        %12217 = vmatpush.bf16.msra.mxu0 %v12190
        %12218 = vmatpush.bf16.msra.mxu0 %v12189
        %12219 = vmatpush.bf16.msra.mxu0 %v12188
        %12220 = vmatpush.bf16.msra.mxu0 %v12187
        %12221 = vmatpush.bf16.msra.mxu0 %v12186
        %12222 = vmatpush.bf16.msra.mxu0 %v12185
        %12223 = vmatpush.bf16.msra.mxu0 %v12184
        %12224 = vmatpush.bf16.msra.mxu0 %v12183
        %12225 = vmatmul.bf16.gmra.mxu0 %v12110
        %v12226 = vpop.f32.mrf.mxu0
        %v12227 = vadd.f32 0.0, %v12226
        %v12228 = vpop.f32.mrf.mxu0
        %v12229 = vadd.f32 0.0, %v12228
        %12230 = vmatmul.bf16.gmra.mxu0 %v12112
        %v12231 = vpop.f32.mrf.mxu0
        %v12232 = vadd.f32 0.0, %v12231
        %v12233 = vpop.f32.mrf.mxu0
        %v12234 = vadd.f32 0.0, %v12233
        %12235 = vdwg.mxu0
        %12236 = vmatpush.bf16.msra.mxu0 0
        %12237 = vmatpush.bf16.msra.mxu0 0
        %12238 = vmatpush.bf16.msra.mxu0 0
        %12239 = vmatpush.bf16.msra.mxu0 0
        %12240 = vmatpush.bf16.msra.mxu0 %v12215
        %12241 = vmatpush.bf16.msra.mxu0 %v12193
        %12242 = vmatpush.bf16.msra.mxu0 %v12192
        %12243 = vmatpush.bf16.msra.mxu0 %v12191
        %12244 = vmatmul.bf16.gmra.mxu0 %v12208
        %v12245 = vpop.f32.mrf.mxu0
        %v12246 = vadd.f32 %v12227, %v12245
        %v12247 = vpop.f32.mrf.mxu0
        %v12248 = vadd.f32 %v12229, %v12247
        %12249 = vmatmul.bf16.gmra.mxu0 %v12211
        %v12250 = vpop.f32.mrf.mxu0
        %v12251 = vadd.f32 %v12232, %v12250
        %v12252 = vpop.f32.mrf.mxu0
        %v12253 = vadd.f32 %v12234, %v12252
        %12254 = vdwg.mxu0
        %v12255 = vld [vmem:[%s9] sm:$0xff]
        %v12256 = vld [vmem:[%s9 + $0x8] sm:$0xff]
        %v12257 = vld [vmem:[%s9 + $0x10] sm:$0xff]
        %v12258 = vld [vmem:[%s9 + $0x18] sm:$0xff]
        %v12259 = vmul.f32 %v12255, %v12246
        %v12260 = vmul.f32 %v12256, %v12248
        %v12261 = vmul.f32 %v12257, %v12251
        %v12262 = vmul.f32 %v12258, %v12253
        %vm12263 = vcmask 187392
        %v12264 = vsel %vm12263, %v12259, 0.0
        %12265 = vadd.xlane.f32.xlu0 %v12264
        %v12266 = vpop.xlane.xlu0 %12265
        %v12267 = vsel %vm12263, %v12260, 0.0
        %12268 = vadd.xlane.f32.xlu0 %v12267
        %v12269 = vpop.xlane.xlu0 %12268
        %v12270 = vsel %vm12263, %v12261, 0.0
        %12271 = vadd.xlane.f32.xlu0 %v12270
        %v12272 = vpop.xlane.xlu0 %12271
        %v12273 = vsel %vm12263, %v12262, 0.0
        %12274 = vadd.xlane.f32.xlu0 %v12273
        %v12275 = vpop.xlane.xlu0 %12274
        %s12276 = scalar_lea.vmem %s9, 32
        %v12277 = vld [vmem:[%s12276] sm:$0xff]
        %v12278 = vld [vmem:[%s12276 + $0x8] sm:$0xff]
        %v12279 = vld [vmem:[%s12276 + $0x10] sm:$0xff]
        %v12280 = vld [vmem:[%s12276 + $0x18] sm:$0xff]
        %v12281 = vmul.f32 %v12277, %v12246
        %v12282 = vmul.f32 %v12278, %v12248
        %v12283 = vmul.f32 %v12279, %v12251
        %v12284 = vmul.f32 %v12280, %v12253
        %v12285 = vsel %vm12263, %v12281, 0.0
        %12286 = vadd.xlane.f32.xlu0 %v12285
        %v12287 = vpop.xlane.xlu0 %12286
        %v12288 = vsel %vm12263, %v12282, 0.0
        %12289 = vadd.xlane.f32.xlu0 %v12288
        %v12290 = vpop.xlane.xlu0 %12289
        %v12291 = vsel %vm12263, %v12283, 0.0
        %12292 = vadd.xlane.f32.xlu0 %v12291
        %v12293 = vpop.xlane.xlu0 %12292
        %v12294 = vsel %vm12263, %v12284, 0.0
        %12295 = vadd.xlane.f32.xlu0 %v12294
        %v12296 = vpop.xlane.xlu0 %12295
        %vm12297 = vcmask 7168
        %v12298 = vsel %vm12297, %v12266, %v12287
        %v12299 = vsel %vm12297, %v12269, %v12290
        %v12300 = vsel %vm12297, %v12272, %v12293
        %v12301 = vsel %vm12297, %v12275, %v12296
        %vm12302 = vcmask 15360
        %v12303 = vsel %vm12302, %v12298, 0.0
        %v12304 = vsel %vm12302, %v12299, 0.0
        %v12305 = vadd.f32 %v12303, %v12304
        %v12306 = vsel %vm12302, %v12300, 0.0
        %v12307 = vadd.f32 %v12305, %v12306
        %v12308 = vsel %vm12302, %v12301, 0.0
        %v12309 = vadd.f32 %v12307, %v12308
        %v12310 = vrot.slane %v12309, 4
        %v12311 = vadd.f32 %v12309, %v12310
        %v12312 = vrot.slane %v12311, 2
        %v12313 = vadd.f32 %v12311, %v12312
        %v12314 = vrot.slane %v12313, 1
        %v12315 = vadd.f32 %v12313, %v12314
        %v12316 = vld [vmem:[%s10] sm:$0x1]
        %v12317 = vadd.f32 %v12315, %v12316
        %vm12318 = vcmask 8192
        %12319 = vst.msk [vmem:[%s378] sm:$0x1] %vm12318, %v12317
        %s12320 = sand.u32 %s269, 1
        %s12321 = scalar_lea.sflag [#allocation3], %s12320
        %s12322 = sand.u32 %s269, 1
        %s12323 = scalar_lea.vmem [#allocation2], %s12322
        // Predicated region
        $region65: #{eggnet_forward.1} parent=63 // pred_check
          %p12324 = pneg %p279
        $region66: #{eggnet_forward.1} parent=63 // pred_check_branch
          %12326 = sbr.rel (%p12324) target = $region68
        $region67: #{eggnet_forward.1} parent=63 // pred_region
          %12328 = vsyncadd %s12321, 0
          %s12329 = scalar_lea.hbm %s11, %s25
          %s12331 = sshll.u32 %s12323, 4
          %s12332 = int_to_ptr.vmem [resolvable:$true] %s12331
          %s12333 = sshll.u32 %s12329, 4
          %s12334 = int_to_ptr.hbm [resolvable:$true] %s12333
          %12336 = dma.vmem_to_hbm [thread:$0]  %s12332, 16, %s12334, %s12321
        $region68: #{eggnet_forward.1} parent=63 // pred_fallthru
          _
      $region64: #{eggnet_forward.1} parent=5 // pred_fallthru
        _
      %p12337 = scmp.le.s32.totalorder 2, %s20
      // Predicated region
      $region69: #{eggnet_forward.1} parent=5 // pred_check
        %p12338 = pneg %p12337
      $region70: #{eggnet_forward.1} parent=5 // pred_check_branch
        %12340 = sbr.rel (%p12338) target = $region72
      $region71: #{eggnet_forward.1} parent=5 // pred_region
        %s12341 = ssub.s32 %s20, 2
        // Predicated region
        $region73: #{eggnet_forward.1} parent=71 // pred_check
          %p12342 = pneg %p285
        $region74: #{eggnet_forward.1} parent=71 // pred_check_branch
          %12344 = sbr.rel (%p12342) target = $region76
        $region75: #{eggnet_forward.1} parent=71 // pred_region
          %s12345 = sand.u32 %s270, 1
          %s12346 = scalar_lea.sflag [#allocation3], %s12345
          %s12347 = sand.u32 %s270, 1
          %s12348 = scalar_lea.vmem [#allocation2], %s12347
          %12350 = dma.done %s12346, 16
        $region76: #{eggnet_forward.1} parent=71 // pred_fallthru
          _
      $region72: #{eggnet_forward.1} parent=5 // pred_fallthru
        _
    $region6: #{eggnet_forward.1} parent=1 // loop_footer
      %s24 = sadd.s32 1, %s20
    $region7: #{eggnet_forward.1} parent=1 // loop_footer_branch
      %19 = sbr.rel target = $region3
    $region8: #{eggnet_forward.1} parent=1 // loop_exit
      _
    %12351 = vsyncpa [#allocation3], 1
    %s12352 = scalar_lea.sflag [#allocation3], 1
    %12353 = vsyncpa %s12352, 1

</llo_original>
